<compile_context>
chip_gen: v5e
topology: v5e:2x2
jax: 0.10.0
libtpu: 0.0.40
codegen_flags: <defaults>
</compile_context>

<pallas_src>
import functools

import jax
import jax.numpy as jnp
from jax import lax
from jax.experimental import pallas as pl
from jax.experimental.pallas import tpu as pltpu


def _layer_norm(x, gamma, beta, eps=1e-5):
    mu = jnp.mean(x, axis=-1, keepdims=True)
    var = jnp.mean((x - mu) ** 2, axis=-1, keepdims=True)
    return (x - mu) * lax.rsqrt(var + eps) * gamma + beta


def _cell_ifog(gates, c, hidden):
    """LSTM cell update from fused pre-activation gates (1, 4*H), column order [i|f|o|g].

    PyTorch semantics (gate math identical to torch order [i|f|g|o]; only the column
    layout differs so the three sigmoid gates are one contiguous slice).
    """
    sig = jax.nn.sigmoid(gates[:, 0:3 * hidden])         # [i | f | o] in one EUP region
    i = sig[:, 0 * hidden:1 * hidden]
    f = sig[:, 1 * hidden:2 * hidden]
    o = sig[:, 2 * hidden:3 * hidden]
    g = jnp.tanh(gates[:, 3 * hidden:4 * hidden])
    c_new = f * c + i * g
    h_new = o * jnp.tanh(c_new)
    return h_new, c_new


def encoder_kernel(x_ref,
                   wih1_ref, whh1_ref, b1_ref, g1_ref, be1_ref,
                   wih2_ref, whh2_ref, b2_ref, g2_ref, be2_ref,
                   wih3_ref, whh3_ref, b3_ref,
                   out_ref,
                   y1_ref, y2_ref,
                   *, seq_len, h1_dim, h2_dim, emb_dim):
    f32 = jnp.float32
    bf16 = jnp.bfloat16

    # ======================= Phase 1: layer-1 LSTM + LayerNorm ======================
    # Hoisted x-side projection for ALL timesteps: (seq_len, in) @ (in, 4*h1) + b1.
    # Kept as a register value (seq_len * 4*h1 f32 is only a handful of vregs).
    xp1 = jnp.dot(x_ref[...].astype(bf16), wih1_ref[...],
                  preferred_element_type=f32) + b1_ref[...]

    g1 = g1_ref[...]
    be1 = be1_ref[...]

    h1 = jnp.zeros((1, h1_dim), f32)
    c1 = jnp.zeros((1, h1_dim), f32)
    # Fully-unrolled static loop: exactly one (bf16) matmul on the serial path per step.
    # whh1 (h1, 4*h1) bf16 is streamed from VMEM at point of use (too big for vregs).
    for t in range(seq_len):
        gates1 = xp1[t:t + 1, :] + jnp.dot(
            h1.astype(bf16), whh1_ref[...], preferred_element_type=f32)
        h1, c1 = _cell_ifog(gates1, c1, h1_dim)
        y1_ref[t:t + 1, :] = _layer_norm(h1, g1, be1)
        # dropout(p=0.4): identity (eval mode)

    # ======================= Phase 2: layer-2 LSTM + LayerNorm ======================
    # Hoisted x-side projection as one batched matmul: (seq_len, h1) @ (h1, 4*h2) + b2.
    xp2 = jnp.dot(y1_ref[...].astype(bf16), wih2_ref[...],
                  preferred_element_type=f32) + b2_ref[...]

    whh2 = whh2_ref[...]                 # (h2, 4*h2) bf16 — small, keep resident
    g2 = g2_ref[...]
    be2 = be2_ref[...]

    h2 = jnp.zeros((1, h2_dim), f32)
    c2 = jnp.zeros((1, h2_dim), f32)
    for t in range(seq_len):
        gates2 = xp2[t:t + 1, :] + jnp.dot(
            h2.astype(bf16), whh2, preferred_element_type=f32)
        h2, c2 = _cell_ifog(gates2, c2, h2_dim)
        y2_ref[t:t + 1, :] = _layer_norm(h2, g2, be2)
        # dropout(p=0.4): identity (eval mode)

    # ======================= Phase 3: layer-3 LSTM (hidden_n only) ==================
    # Tiny layer: weights kept f32, x-side projection hoisted the same way.
    xp3 = jnp.dot(y2_ref[...], wih3_ref[...],
                  preferred_element_type=f32) + b3_ref[...]

    whh3 = whh3_ref[...]                 # (emb, 4*emb) f32 — tiny, keep resident
    h3 = jnp.zeros((1, emb_dim), f32)
    c3 = jnp.zeros((1, emb_dim), f32)
    for t in range(seq_len):
        gates3 = xp3[t:t + 1, :] + jnp.dot(
            h3, whh3, preferred_element_type=f32)
        h3, c3 = _cell_ifog(gates3, c3, emb_dim)
    # layer_norm3 / dropout act on the sequence output, not on hidden_n.

    out_ref[...] = h3                    # final h of lstm3: (1, emb_dim)


def init_params(key, n_features, embedding_dim):
    h1, h2, h3 = 32 * embedding_dim, 8 * embedding_dim, embedding_dim
    params = {}

    def reorder(w):
        # torch gate order [i | f | g | o]  ->  kernel order [i | f | o | g]
        i_, f_, g_, o_ = jnp.split(w, 4, axis=-1)
        return jnp.concatenate([i_, f_, o_, g_], axis=-1)

    def lstm_params(key, in_dim, hidden, w_dtype):
        # Matches torch.nn.LSTM init: U(-1/sqrt(H), 1/sqrt(H)).
        # Stored pre-transposed, gate-fused and gate-reordered: Wih (in, 4H),
        # Whh (H, 4H), bias (1, 4H) = b_ih + b_hh.
        k = 1.0 / jnp.sqrt(jnp.float32(hidden))
        ks = jax.random.split(key, 4)
        wih = jax.random.uniform(ks[0], (in_dim, 4 * hidden), jnp.float32, -k, k)
        whh = jax.random.uniform(ks[1], (hidden, 4 * hidden), jnp.float32, -k, k)
        b_ih = jax.random.uniform(ks[2], (1, 4 * hidden), jnp.float32, -k, k)
        b_hh = jax.random.uniform(ks[3], (1, 4 * hidden), jnp.float32, -k, k)
        return (reorder(wih).astype(w_dtype),
                reorder(whh).astype(w_dtype),
                reorder(b_ih + b_hh))

    k1, k2, k3 = jax.random.split(key, 3)
    # Large layer-1/2 weights in bf16 (MXU-native, halves weight streaming);
    # biases / LayerNorm params / tiny layer-3 weights stay f32.
    params["wih1"], params["whh1"], params["b1"] = lstm_params(
        k1, n_features, h1, jnp.bfloat16)
    params["g1"] = jnp.ones((1, h1), jnp.float32)
    params["be1"] = jnp.zeros((1, h1), jnp.float32)
    params["wih2"], params["whh2"], params["b2"] = lstm_params(
        k2, h1, h2, jnp.bfloat16)
    params["g2"] = jnp.ones((1, h2), jnp.float32)
    params["be2"] = jnp.zeros((1, h2), jnp.float32)
    params["wih3"], params["whh3"], params["b3"] = lstm_params(
        k3, h2, h3, jnp.float32)
    return params


def encoder_forward(x, params, *, seq_len, n_features, embedding_dim):
    h1, h2, emb = 32 * embedding_dim, 8 * embedding_dim, embedding_dim
    x = x.reshape(seq_len, n_features).astype(jnp.float32)

    kernel = functools.partial(
        encoder_kernel, seq_len=seq_len, h1_dim=h1, h2_dim=h2, emb_dim=emb)

    args = (x,
            params["wih1"], params["whh1"], params["b1"], params["g1"], params["be1"],
            params["wih2"], params["whh2"], params["b2"], params["g2"], params["be2"],
            params["wih3"], params["whh3"], params["b3"])

    vmem = pl.BlockSpec(memory_space=pltpu.MemorySpace.VMEM)
    hidden_n = pl.pallas_call(
        kernel,
        out_shape=jax.ShapeDtypeStruct((1, emb), jnp.float32),
        in_specs=[vmem] * len(args),
        out_specs=vmem,
        # VMEM scratch for the LayerNorm'd layer-1 / layer-2 sequence outputs used by
        # the hoisted layer-2 / layer-3 x-projections.
        scratch_shapes=[pltpu.VMEM((seq_len, h1), jnp.float32),
                        pltpu.VMEM((seq_len, h2), jnp.float32)],
        # Total resident data ~1 MiB; no need to claim a huge VMEM budget.
        compiler_params=pltpu.CompilerParams(vmem_limit_bytes=8 << 20),
    )(*args)

    # Match torch: hidden_n has shape (num_layers=1, batch=1, embedding_dim)
    return hidden_n.reshape(1, 1, emb)


if __name__ == "__main__":
    seq_len, n_features, embedding_dim = 8, 4, 8

    key = jax.random.PRNGKey(0)
    k_params, k_x = jax.random.split(key)
    params = init_params(k_params, n_features, embedding_dim)
    x = jax.random.normal(k_x, (seq_len, n_features), jnp.float32)

    out = encoder_forward(x, params, seq_len=seq_len,
                          n_features=n_features, embedding_dim=embedding_dim)
    out = jax.block_until_ready(out)
    assert out.shape == (1, 1, embedding_dim)
    assert bool(jnp.all(jnp.isfinite(out)))
    print("KERNEL_OK")
</pallas_src>

<mosaic_0001>
module attributes {stable_mosaic.version = 11 : i64} {
  func.func @encoder_kernel(%arg0: memref<8x4xf32, #tpu.memory_space<vmem>>, %arg1: memref<4x1024xbf16, #tpu.memory_space<vmem>>, %arg2: memref<256x1024xbf16, #tpu.memory_space<vmem>>, %arg3: memref<1x1024xf32, #tpu.memory_space<vmem>>, %arg4: memref<1x256xf32, #tpu.memory_space<vmem>>, %arg5: memref<1x256xf32, #tpu.memory_space<vmem>>, %arg6: memref<256x256xbf16, #tpu.memory_space<vmem>>, %arg7: memref<64x256xbf16, #tpu.memory_space<vmem>>, %arg8: memref<1x256xf32, #tpu.memory_space<vmem>>, %arg9: memref<1x64xf32, #tpu.memory_space<vmem>>, %arg10: memref<1x64xf32, #tpu.memory_space<vmem>>, %arg11: memref<64x32xf32, #tpu.memory_space<vmem>>, %arg12: memref<8x32xf32, #tpu.memory_space<vmem>>, %arg13: memref<1x32xf32, #tpu.memory_space<vmem>>, %arg14: memref<1x8xf32, #tpu.memory_space<vmem>>, %arg15: memref<8x256xf32, #tpu.memory_space<vmem>>, %arg16: memref<8x64xf32, #tpu.memory_space<vmem>>) attributes {dimension_semantics = [], scalar_prefetch = 0 : i64, scratch_operands = 2 : i64, tpu.core_type = #tpu.core_type<tc>} {
    %c0 = arith.constant 0 : index
    %c0_0 = arith.constant 0 : index
    %0 = vector.load %arg0[%c0, %c0_0] : memref<8x4xf32, #tpu.memory_space<vmem>>, vector<8x4xf32>
    %1 = arith.truncf %0 : vector<8x4xf32> to vector<8x4xbf16>
    %c0_1 = arith.constant 0 : index
    %c0_2 = arith.constant 0 : index
    %2 = vector.load %arg1[%c0_1, %c0_2] : memref<4x1024xbf16, #tpu.memory_space<vmem>>, vector<4x1024xbf16>
    %cst = arith.constant dense<0.000000e+00> : vector<8x1024xf32>
    %3 = tpu.matmul %1, %2, %cst {dimension_numbers = #tpu.dot_dimension_numbers<[1], [0], [0], [1], [0, 0, 1, 1], [], []>} : vector<8x4xbf16>, vector<4x1024xbf16>, vector<8x1024xf32> -> vector<8x1024xf32>
    %c0_3 = arith.constant 0 : index
    %c0_4 = arith.constant 0 : index
    %4 = vector.load %arg3[%c0_3, %c0_4] : memref<1x1024xf32, #tpu.memory_space<vmem>>, vector<1x1024xf32>
    %5 = vector.broadcast %4 : vector<1x1024xf32> to vector<8x1024xf32>
    %6 = arith.addf %3, %5 : vector<8x1024xf32>
    %c0_5 = arith.constant 0 : index
    %c0_6 = arith.constant 0 : index
    %7 = vector.load %arg4[%c0_5, %c0_6] : memref<1x256xf32, #tpu.memory_space<vmem>>, vector<1x256xf32>
    %c0_7 = arith.constant 0 : index
    %c0_8 = arith.constant 0 : index
    %8 = vector.load %arg5[%c0_7, %c0_8] : memref<1x256xf32, #tpu.memory_space<vmem>>, vector<1x256xf32>
    %cst_9 = arith.constant 0.000000e+00 : f32
    %9 = vector.broadcast %cst_9 : f32 to vector<1x256xf32>
    %cst_10 = arith.constant 0.000000e+00 : f32
    %10 = vector.broadcast %cst_10 : f32 to vector<1x256xf32>
    %11 = vector.extract_strided_slice %6 {offsets = [0, 0], sizes = [1, 1024], strides = [1, 1]} : vector<8x1024xf32> to vector<1x1024xf32>
    %12 = arith.truncf %9 : vector<1x256xf32> to vector<1x256xbf16>
    %c0_11 = arith.constant 0 : index
    %c0_12 = arith.constant 0 : index
    %13 = vector.load %arg2[%c0_11, %c0_12] : memref<256x1024xbf16, #tpu.memory_space<vmem>>, vector<256x1024xbf16>
    %cst_13 = arith.constant dense<0.000000e+00> : vector<1x1024xf32>
    %14 = tpu.matmul %12, %13, %cst_13 {dimension_numbers = #tpu.dot_dimension_numbers<[1], [0], [0], [1], [0, 0, 1, 1], [], []>} : vector<1x256xbf16>, vector<256x1024xbf16>, vector<1x1024xf32> -> vector<1x1024xf32>
    %15 = arith.addf %11, %14 : vector<1x1024xf32>
    %16 = vector.extract_strided_slice %15 {offsets = [0, 0], sizes = [1, 768], strides = [1, 1]} : vector<1x1024xf32> to vector<1x768xf32>
    %17 = arith.negf %16 : vector<1x768xf32>
    %18 = math.exp %17 : vector<1x768xf32>
    %cst_14 = arith.constant 1.000000e+00 : f32
    %19 = vector.broadcast %cst_14 : f32 to vector<1x768xf32>
    %20 = arith.addf %19, %18 : vector<1x768xf32>
    %21 = arith.divf %19, %20 : vector<1x768xf32>
    %22 = vector.extract_strided_slice %21 {offsets = [0, 0], sizes = [1, 256], strides = [1, 1]} : vector<1x768xf32> to vector<1x256xf32>
    %23 = vector.extract_strided_slice %21 {offsets = [0, 256], sizes = [1, 256], strides = [1, 1]} : vector<1x768xf32> to vector<1x256xf32>
    %24 = vector.extract_strided_slice %21 {offsets = [0, 512], sizes = [1, 256], strides = [1, 1]} : vector<1x768xf32> to vector<1x256xf32>
    %25 = vector.extract_strided_slice %15 {offsets = [0, 768], sizes = [1, 256], strides = [1, 1]} : vector<1x1024xf32> to vector<1x256xf32>
    %26 = math.tanh %25 : vector<1x256xf32>
    %27 = arith.mulf %23, %10 : vector<1x256xf32>
    %28 = arith.mulf %22, %26 : vector<1x256xf32>
    %29 = arith.addf %27, %28 : vector<1x256xf32>
    %30 = math.tanh %29 : vector<1x256xf32>
    %31 = arith.mulf %24, %30 : vector<1x256xf32>
    %cst_15 = arith.constant dense<0.000000e+00> : vector<1xf32>
    %32 = vector.multi_reduction <add>, %31, %cst_15 [1] : vector<1x256xf32> to vector<1xf32>
    %33 = vector.shape_cast %32 : vector<1xf32> to vector<1x1xf32>
    %cst_16 = arith.constant 2.560000e+02 : f32
    %34 = vector.broadcast %cst_16 : f32 to vector<1x1xf32>
    %35 = arith.divf %33, %34 : vector<1x1xf32>
    %36 = vector.broadcast %35 : vector<1x1xf32> to vector<1x256xf32>
    %37 = arith.subf %31, %36 : vector<1x256xf32>
    %38 = arith.mulf %37, %37 : vector<1x256xf32>
    %cst_17 = arith.constant dense<0.000000e+00> : vector<1xf32>
    %39 = vector.multi_reduction <add>, %38, %cst_17 [1] : vector<1x256xf32> to vector<1xf32>
    %40 = vector.shape_cast %39 : vector<1xf32> to vector<1x1xf32>
    %cst_18 = arith.constant 2.560000e+02 : f32
    %41 = vector.broadcast %cst_18 : f32 to vector<1x1xf32>
    %42 = arith.divf %40, %41 : vector<1x1xf32>
    %43 = vector.broadcast %35 : vector<1x1xf32> to vector<1x256xf32>
    %44 = arith.subf %31, %43 : vector<1x256xf32>
    %cst_19 = arith.constant 9.99999974E-6 : f32
    %45 = vector.broadcast %cst_19 : f32 to vector<1x1xf32>
    %46 = arith.addf %42, %45 : vector<1x1xf32>
    %47 = math.rsqrt %46 : vector<1x1xf32>
    %48 = vector.broadcast %47 : vector<1x1xf32> to vector<1x256xf32>
    %49 = arith.mulf %44, %48 : vector<1x256xf32>
    %50 = arith.mulf %49, %7 : vector<1x256xf32>
    %51 = arith.addf %50, %8 : vector<1x256xf32>
    %c0_20 = arith.constant 0 : index
    %c0_21 = arith.constant 0 : index
    %52 = vector.load %arg15[%c0_20, %c0_21] : memref<8x256xf32, #tpu.memory_space<vmem>>, vector<1x256xf32>
    tpu.vector_store %arg15[%c0_20, %c0_21], %51 {strides = array<i32>} : memref<8x256xf32, #tpu.memory_space<vmem>>, vector<1x256xf32>,
    %53 = vector.extract_strided_slice %6 {offsets = [1, 0], sizes = [1, 1024], strides = [1, 1]} : vector<8x1024xf32> to vector<1x1024xf32>
    %54 = arith.truncf %31 : vector<1x256xf32> to vector<1x256xbf16>
    %c0_22 = arith.constant 0 : index
    %c0_23 = arith.constant 0 : index
    %55 = vector.load %arg2[%c0_22, %c0_23] : memref<256x1024xbf16, #tpu.memory_space<vmem>>, vector<256x1024xbf16>
    %cst_24 = arith.constant dense<0.000000e+00> : vector<1x1024xf32>
    %56 = tpu.matmul %54, %55, %cst_24 {dimension_numbers = #tpu.dot_dimension_numbers<[1], [0], [0], [1], [0, 0, 1, 1], [], []>} : vector<1x256xbf16>, vector<256x1024xbf16>, vector<1x1024xf32> -> vector<1x1024xf32>
    %57 = arith.addf %53, %56 : vector<1x1024xf32>
    %58 = vector.extract_strided_slice %57 {offsets = [0, 0], sizes = [1, 768], strides = [1, 1]} : vector<1x1024xf32> to vector<1x768xf32>
    %59 = arith.negf %58 : vector<1x768xf32>
    %60 = math.exp %59 : vector<1x768xf32>
    %cst_25 = arith.constant 1.000000e+00 : f32
    %61 = vector.broadcast %cst_25 : f32 to vector<1x768xf32>
    %62 = arith.addf %61, %60 : vector<1x768xf32>
    %63 = arith.divf %61, %62 : vector<1x768xf32>
    %64 = vector.extract_strided_slice %63 {offsets = [0, 0], sizes = [1, 256], strides = [1, 1]} : vector<1x768xf32> to vector<1x256xf32>
    %65 = vector.extract_strided_slice %63 {offsets = [0, 256], sizes = [1, 256], strides = [1, 1]} : vector<1x768xf32> to vector<1x256xf32>
    %66 = vector.extract_strided_slice %63 {offsets = [0, 512], sizes = [1, 256], strides = [1, 1]} : vector<1x768xf32> to vector<1x256xf32>
    %67 = vector.extract_strided_slice %57 {offsets = [0, 768], sizes = [1, 256], strides = [1, 1]} : vector<1x1024xf32> to vector<1x256xf32>
    %68 = math.tanh %67 : vector<1x256xf32>
    %69 = arith.mulf %65, %29 : vector<1x256xf32>
    %70 = arith.mulf %64, %68 : vector<1x256xf32>
    %71 = arith.addf %69, %70 : vector<1x256xf32>
    %72 = math.tanh %71 : vector<1x256xf32>
    %73 = arith.mulf %66, %72 : vector<1x256xf32>
    %cst_26 = arith.constant dense<0.000000e+00> : vector<1xf32>
    %74 = vector.multi_reduction <add>, %73, %cst_26 [1] : vector<1x256xf32> to vector<1xf32>
    %75 = vector.shape_cast %74 : vector<1xf32> to vector<1x1xf32>
    %cst_27 = arith.constant 2.560000e+02 : f32
    %76 = vector.broadcast %cst_27 : f32 to vector<1x1xf32>
    %77 = arith.divf %75, %76 : vector<1x1xf32>
    %78 = vector.broadcast %77 : vector<1x1xf32> to vector<1x256xf32>
    %79 = arith.subf %73, %78 : vector<1x256xf32>
    %80 = arith.mulf %79, %79 : vector<1x256xf32>
    %cst_28 = arith.constant dense<0.000000e+00> : vector<1xf32>
    %81 = vector.multi_reduction <add>, %80, %cst_28 [1] : vector<1x256xf32> to vector<1xf32>
    %82 = vector.shape_cast %81 : vector<1xf32> to vector<1x1xf32>
    %cst_29 = arith.constant 2.560000e+02 : f32
    %83 = vector.broadcast %cst_29 : f32 to vector<1x1xf32>
    %84 = arith.divf %82, %83 : vector<1x1xf32>
    %85 = vector.broadcast %77 : vector<1x1xf32> to vector<1x256xf32>
    %86 = arith.subf %73, %85 : vector<1x256xf32>
    %cst_30 = arith.constant 9.99999974E-6 : f32
    %87 = vector.broadcast %cst_30 : f32 to vector<1x1xf32>
    %88 = arith.addf %84, %87 : vector<1x1xf32>
    %89 = math.rsqrt %88 : vector<1x1xf32>
    %90 = vector.broadcast %89 : vector<1x1xf32> to vector<1x256xf32>
    %91 = arith.mulf %86, %90 : vector<1x256xf32>
    %92 = arith.mulf %91, %7 : vector<1x256xf32>
    %93 = arith.addf %92, %8 : vector<1x256xf32>
    %c1 = arith.constant 1 : index
    %c0_31 = arith.constant 0 : index
    %94 = vector.load %arg15[%c1, %c0_31] : memref<8x256xf32, #tpu.memory_space<vmem>>, vector<1x256xf32>
    tpu.vector_store %arg15[%c1, %c0_31], %93 {strides = array<i32>} : memref<8x256xf32, #tpu.memory_space<vmem>>, vector<1x256xf32>,
    %95 = vector.extract_strided_slice %6 {offsets = [2, 0], sizes = [1, 1024], strides = [1, 1]} : vector<8x1024xf32> to vector<1x1024xf32>
    %96 = arith.truncf %73 : vector<1x256xf32> to vector<1x256xbf16>
    %c0_32 = arith.constant 0 : index
    %c0_33 = arith.constant 0 : index
    %97 = vector.load %arg2[%c0_32, %c0_33] : memref<256x1024xbf16, #tpu.memory_space<vmem>>, vector<256x1024xbf16>
    %cst_34 = arith.constant dense<0.000000e+00> : vector<1x1024xf32>
    %98 = tpu.matmul %96, %97, %cst_34 {dimension_numbers = #tpu.dot_dimension_numbers<[1], [0], [0], [1], [0, 0, 1, 1], [], []>} : vector<1x256xbf16>, vector<256x1024xbf16>, vector<1x1024xf32> -> vector<1x1024xf32>
    %99 = arith.addf %95, %98 : vector<1x1024xf32>
    %100 = vector.extract_strided_slice %99 {offsets = [0, 0], sizes = [1, 768], strides = [1, 1]} : vector<1x1024xf32> to vector<1x768xf32>
    %101 = arith.negf %100 : vector<1x768xf32>
    %102 = math.exp %101 : vector<1x768xf32>
    %cst_35 = arith.constant 1.000000e+00 : f32
    %103 = vector.broadcast %cst_35 : f32 to vector<1x768xf32>
    %104 = arith.addf %103, %102 : vector<1x768xf32>
    %105 = arith.divf %103, %104 : vector<1x768xf32>
    %106 = vector.extract_strided_slice %105 {offsets = [0, 0], sizes = [1, 256], strides = [1, 1]} : vector<1x768xf32> to vector<1x256xf32>
    %107 = vector.extract_strided_slice %105 {offsets = [0, 256], sizes = [1, 256], strides = [1, 1]} : vector<1x768xf32> to vector<1x256xf32>
    %108 = vector.extract_strided_slice %105 {offsets = [0, 512], sizes = [1, 256], strides = [1, 1]} : vector<1x768xf32> to vector<1x256xf32>
    %109 = vector.extract_strided_slice %99 {offsets = [0, 768], sizes = [1, 256], strides = [1, 1]} : vector<1x1024xf32> to vector<1x256xf32>
    %110 = math.tanh %109 : vector<1x256xf32>
    %111 = arith.mulf %107, %71 : vector<1x256xf32>
    %112 = arith.mulf %106, %110 : vector<1x256xf32>
    %113 = arith.addf %111, %112 : vector<1x256xf32>
    %114 = math.tanh %113 : vector<1x256xf32>
    %115 = arith.mulf %108, %114 : vector<1x256xf32>
    %cst_36 = arith.constant dense<0.000000e+00> : vector<1xf32>
    %116 = vector.multi_reduction <add>, %115, %cst_36 [1] : vector<1x256xf32> to vector<1xf32>
    %117 = vector.shape_cast %116 : vector<1xf32> to vector<1x1xf32>
    %cst_37 = arith.constant 2.560000e+02 : f32
    %118 = vector.broadcast %cst_37 : f32 to vector<1x1xf32>
    %119 = arith.divf %117, %118 : vector<1x1xf32>
    %120 = vector.broadcast %119 : vector<1x1xf32> to vector<1x256xf32>
    %121 = arith.subf %115, %120 : vector<1x256xf32>
    %122 = arith.mulf %121, %121 : vector<1x256xf32>
    %cst_38 = arith.constant dense<0.000000e+00> : vector<1xf32>
    %123 = vector.multi_reduction <add>, %122, %cst_38 [1] : vector<1x256xf32> to vector<1xf32>
    %124 = vector.shape_cast %123 : vector<1xf32> to vector<1x1xf32>
    %cst_39 = arith.constant 2.560000e+02 : f32
    %125 = vector.broadcast %cst_39 : f32 to vector<1x1xf32>
    %126 = arith.divf %124, %125 : vector<1x1xf32>
    %127 = vector.broadcast %119 : vector<1x1xf32> to vector<1x256xf32>
    %128 = arith.subf %115, %127 : vector<1x256xf32>
    %cst_40 = arith.constant 9.99999974E-6 : f32
    %129 = vector.broadcast %cst_40 : f32 to vector<1x1xf32>
    %130 = arith.addf %126, %129 : vector<1x1xf32>
    %131 = math.rsqrt %130 : vector<1x1xf32>
    %132 = vector.broadcast %131 : vector<1x1xf32> to vector<1x256xf32>
    %133 = arith.mulf %128, %132 : vector<1x256xf32>
    %134 = arith.mulf %133, %7 : vector<1x256xf32>
    %135 = arith.addf %134, %8 : vector<1x256xf32>
    %c2 = arith.constant 2 : index
    %c0_41 = arith.constant 0 : index
    %136 = vector.load %arg15[%c2, %c0_41] : memref<8x256xf32, #tpu.memory_space<vmem>>, vector<1x256xf32>
    tpu.vector_store %arg15[%c2, %c0_41], %135 {strides = array<i32>} : memref<8x256xf32, #tpu.memory_space<vmem>>, vector<1x256xf32>,
    %137 = vector.extract_strided_slice %6 {offsets = [3, 0], sizes = [1, 1024], strides = [1, 1]} : vector<8x1024xf32> to vector<1x1024xf32>
    %138 = arith.truncf %115 : vector<1x256xf32> to vector<1x256xbf16>
    %c0_42 = arith.constant 0 : index
    %c0_43 = arith.constant 0 : index
    %139 = vector.load %arg2[%c0_42, %c0_43] : memref<256x1024xbf16, #tpu.memory_space<vmem>>, vector<256x1024xbf16>
    %cst_44 = arith.constant dense<0.000000e+00> : vector<1x1024xf32>
    %140 = tpu.matmul %138, %139, %cst_44 {dimension_numbers = #tpu.dot_dimension_numbers<[1], [0], [0], [1], [0, 0, 1, 1], [], []>} : vector<1x256xbf16>, vector<256x1024xbf16>, vector<1x1024xf32> -> vector<1x1024xf32>
    %141 = arith.addf %137, %140 : vector<1x1024xf32>
    %142 = vector.extract_strided_slice %141 {offsets = [0, 0], sizes = [1, 768], strides = [1, 1]} : vector<1x1024xf32> to vector<1x768xf32>
    %143 = arith.negf %142 : vector<1x768xf32>
    %144 = math.exp %143 : vector<1x768xf32>
    %cst_45 = arith.constant 1.000000e+00 : f32
    %145 = vector.broadcast %cst_45 : f32 to vector<1x768xf32>
    %146 = arith.addf %145, %144 : vector<1x768xf32>
    %147 = arith.divf %145, %146 : vector<1x768xf32>
    %148 = vector.extract_strided_slice %147 {offsets = [0, 0], sizes = [1, 256], strides = [1, 1]} : vector<1x768xf32> to vector<1x256xf32>
    %149 = vector.extract_strided_slice %147 {offsets = [0, 256], sizes = [1, 256], strides = [1, 1]} : vector<1x768xf32> to vector<1x256xf32>
    %150 = vector.extract_strided_slice %147 {offsets = [0, 512], sizes = [1, 256], strides = [1, 1]} : vector<1x768xf32> to vector<1x256xf32>
    %151 = vector.extract_strided_slice %141 {offsets = [0, 768], sizes = [1, 256], strides = [1, 1]} : vector<1x1024xf32> to vector<1x256xf32>
    %152 = math.tanh %151 : vector<1x256xf32>
    %153 = arith.mulf %149, %113 : vector<1x256xf32>
    %154 = arith.mulf %148, %152 : vector<1x256xf32>
    %155 = arith.addf %153, %154 : vector<1x256xf32>
    %156 = math.tanh %155 : vector<1x256xf32>
    %157 = arith.mulf %150, %156 : vector<1x256xf32>
    %cst_46 = arith.constant dense<0.000000e+00> : vector<1xf32>
    %158 = vector.multi_reduction <add>, %157, %cst_46 [1] : vector<1x256xf32> to vector<1xf32>
    %159 = vector.shape_cast %158 : vector<1xf32> to vector<1x1xf32>
    %cst_47 = arith.constant 2.560000e+02 : f32
    %160 = vector.broadcast %cst_47 : f32 to vector<1x1xf32>
    %161 = arith.divf %159, %160 : vector<1x1xf32>
    %162 = vector.broadcast %161 : vector<1x1xf32> to vector<1x256xf32>
    %163 = arith.subf %157, %162 : vector<1x256xf32>
    %164 = arith.mulf %163, %163 : vector<1x256xf32>
    %cst_48 = arith.constant dense<0.000000e+00> : vector<1xf32>
    %165 = vector.multi_reduction <add>, %164, %cst_48 [1] : vector<1x256xf32> to vector<1xf32>
    %166 = vector.shape_cast %165 : vector<1xf32> to vector<1x1xf32>
    %cst_49 = arith.constant 2.560000e+02 : f32
    %167 = vector.broadcast %cst_49 : f32 to vector<1x1xf32>
    %168 = arith.divf %166, %167 : vector<1x1xf32>
    %169 = vector.broadcast %161 : vector<1x1xf32> to vector<1x256xf32>
    %170 = arith.subf %157, %169 : vector<1x256xf32>
    %cst_50 = arith.constant 9.99999974E-6 : f32
    %171 = vector.broadcast %cst_50 : f32 to vector<1x1xf32>
    %172 = arith.addf %168, %171 : vector<1x1xf32>
    %173 = math.rsqrt %172 : vector<1x1xf32>
    %174 = vector.broadcast %173 : vector<1x1xf32> to vector<1x256xf32>
    %175 = arith.mulf %170, %174 : vector<1x256xf32>
    %176 = arith.mulf %175, %7 : vector<1x256xf32>
    %177 = arith.addf %176, %8 : vector<1x256xf32>
    %c3 = arith.constant 3 : index
    %c0_51 = arith.constant 0 : index
    %178 = vector.load %arg15[%c3, %c0_51] : memref<8x256xf32, #tpu.memory_space<vmem>>, vector<1x256xf32>
    tpu.vector_store %arg15[%c3, %c0_51], %177 {strides = array<i32>} : memref<8x256xf32, #tpu.memory_space<vmem>>, vector<1x256xf32>,
    %179 = vector.extract_strided_slice %6 {offsets = [4, 0], sizes = [1, 1024], strides = [1, 1]} : vector<8x1024xf32> to vector<1x1024xf32>
    %180 = arith.truncf %157 : vector<1x256xf32> to vector<1x256xbf16>
    %c0_52 = arith.constant 0 : index
    %c0_53 = arith.constant 0 : index
    %181 = vector.load %arg2[%c0_52, %c0_53] : memref<256x1024xbf16, #tpu.memory_space<vmem>>, vector<256x1024xbf16>
    %cst_54 = arith.constant dense<0.000000e+00> : vector<1x1024xf32>
    %182 = tpu.matmul %180, %181, %cst_54 {dimension_numbers = #tpu.dot_dimension_numbers<[1], [0], [0], [1], [0, 0, 1, 1], [], []>} : vector<1x256xbf16>, vector<256x1024xbf16>, vector<1x1024xf32> -> vector<1x1024xf32>
    %183 = arith.addf %179, %182 : vector<1x1024xf32>
    %184 = vector.extract_strided_slice %183 {offsets = [0, 0], sizes = [1, 768], strides = [1, 1]} : vector<1x1024xf32> to vector<1x768xf32>
    %185 = arith.negf %184 : vector<1x768xf32>
    %186 = math.exp %185 : vector<1x768xf32>
    %cst_55 = arith.constant 1.000000e+00 : f32
    %187 = vector.broadcast %cst_55 : f32 to vector<1x768xf32>
    %188 = arith.addf %187, %186 : vector<1x768xf32>
    %189 = arith.divf %187, %188 : vector<1x768xf32>
    %190 = vector.extract_strided_slice %189 {offsets = [0, 0], sizes = [1, 256], strides = [1, 1]} : vector<1x768xf32> to vector<1x256xf32>
    %191 = vector.extract_strided_slice %189 {offsets = [0, 256], sizes = [1, 256], strides = [1, 1]} : vector<1x768xf32> to vector<1x256xf32>
    %192 = vector.extract_strided_slice %189 {offsets = [0, 512], sizes = [1, 256], strides = [1, 1]} : vector<1x768xf32> to vector<1x256xf32>
    %193 = vector.extract_strided_slice %183 {offsets = [0, 768], sizes = [1, 256], strides = [1, 1]} : vector<1x1024xf32> to vector<1x256xf32>
    %194 = math.tanh %193 : vector<1x256xf32>
    %195 = arith.mulf %191, %155 : vector<1x256xf32>
    %196 = arith.mulf %190, %194 : vector<1x256xf32>
    %197 = arith.addf %195, %196 : vector<1x256xf32>
    %198 = math.tanh %197 : vector<1x256xf32>
    %199 = arith.mulf %192, %198 : vector<1x256xf32>
    %cst_56 = arith.constant dense<0.000000e+00> : vector<1xf32>
    %200 = vector.multi_reduction <add>, %199, %cst_56 [1] : vector<1x256xf32> to vector<1xf32>
    %201 = vector.shape_cast %200 : vector<1xf32> to vector<1x1xf32>
    %cst_57 = arith.constant 2.560000e+02 : f32
    %202 = vector.broadcast %cst_57 : f32 to vector<1x1xf32>
    %203 = arith.divf %201, %202 : vector<1x1xf32>
    %204 = vector.broadcast %203 : vector<1x1xf32> to vector<1x256xf32>
    %205 = arith.subf %199, %204 : vector<1x256xf32>
    %206 = arith.mulf %205, %205 : vector<1x256xf32>
    %cst_58 = arith.constant dense<0.000000e+00> : vector<1xf32>
    %207 = vector.multi_reduction <add>, %206, %cst_58 [1] : vector<1x256xf32> to vector<1xf32>
    %208 = vector.shape_cast %207 : vector<1xf32> to vector<1x1xf32>
    %cst_59 = arith.constant 2.560000e+02 : f32
    %209 = vector.broadcast %cst_59 : f32 to vector<1x1xf32>
    %210 = arith.divf %208, %209 : vector<1x1xf32>
    %211 = vector.broadcast %203 : vector<1x1xf32> to vector<1x256xf32>
    %212 = arith.subf %199, %211 : vector<1x256xf32>
    %cst_60 = arith.constant 9.99999974E-6 : f32
    %213 = vector.broadcast %cst_60 : f32 to vector<1x1xf32>
    %214 = arith.addf %210, %213 : vector<1x1xf32>
    %215 = math.rsqrt %214 : vector<1x1xf32>
    %216 = vector.broadcast %215 : vector<1x1xf32> to vector<1x256xf32>
    %217 = arith.mulf %212, %216 : vector<1x256xf32>
    %218 = arith.mulf %217, %7 : vector<1x256xf32>
    %219 = arith.addf %218, %8 : vector<1x256xf32>
    %c4 = arith.constant 4 : index
    %c0_61 = arith.constant 0 : index
    %220 = vector.load %arg15[%c4, %c0_61] : memref<8x256xf32, #tpu.memory_space<vmem>>, vector<1x256xf32>
    tpu.vector_store %arg15[%c4, %c0_61], %219 {strides = array<i32>} : memref<8x256xf32, #tpu.memory_space<vmem>>, vector<1x256xf32>,
    %221 = vector.extract_strided_slice %6 {offsets = [5, 0], sizes = [1, 1024], strides = [1, 1]} : vector<8x1024xf32> to vector<1x1024xf32>
    %222 = arith.truncf %199 : vector<1x256xf32> to vector<1x256xbf16>
    %c0_62 = arith.constant 0 : index
    %c0_63 = arith.constant 0 : index
    %223 = vector.load %arg2[%c0_62, %c0_63] : memref<256x1024xbf16, #tpu.memory_space<vmem>>, vector<256x1024xbf16>
    %cst_64 = arith.constant dense<0.000000e+00> : vector<1x1024xf32>
    %224 = tpu.matmul %222, %223, %cst_64 {dimension_numbers = #tpu.dot_dimension_numbers<[1], [0], [0], [1], [0, 0, 1, 1], [], []>} : vector<1x256xbf16>, vector<256x1024xbf16>, vector<1x1024xf32> -> vector<1x1024xf32>
    %225 = arith.addf %221, %224 : vector<1x1024xf32>
    %226 = vector.extract_strided_slice %225 {offsets = [0, 0], sizes = [1, 768], strides = [1, 1]} : vector<1x1024xf32> to vector<1x768xf32>
    %227 = arith.negf %226 : vector<1x768xf32>
    %228 = math.exp %227 : vector<1x768xf32>
    %cst_65 = arith.constant 1.000000e+00 : f32
    %229 = vector.broadcast %cst_65 : f32 to vector<1x768xf32>
    %230 = arith.addf %229, %228 : vector<1x768xf32>
    %231 = arith.divf %229, %230 : vector<1x768xf32>
    %232 = vector.extract_strided_slice %231 {offsets = [0, 0], sizes = [1, 256], strides = [1, 1]} : vector<1x768xf32> to vector<1x256xf32>
    %233 = vector.extract_strided_slice %231 {offsets = [0, 256], sizes = [1, 256], strides = [1, 1]} : vector<1x768xf32> to vector<1x256xf32>
    %234 = vector.extract_strided_slice %231 {offsets = [0, 512], sizes = [1, 256], strides = [1, 1]} : vector<1x768xf32> to vector<1x256xf32>
    %235 = vector.extract_strided_slice %225 {offsets = [0, 768], sizes = [1, 256], strides = [1, 1]} : vector<1x1024xf32> to vector<1x256xf32>
    %236 = math.tanh %235 : vector<1x256xf32>
    %237 = arith.mulf %233, %197 : vector<1x256xf32>
    %238 = arith.mulf %232, %236 : vector<1x256xf32>
    %239 = arith.addf %237, %238 : vector<1x256xf32>
    %240 = math.tanh %239 : vector<1x256xf32>
    %241 = arith.mulf %234, %240 : vector<1x256xf32>
    %cst_66 = arith.constant dense<0.000000e+00> : vector<1xf32>
    %242 = vector.multi_reduction <add>, %241, %cst_66 [1] : vector<1x256xf32> to vector<1xf32>
    %243 = vector.shape_cast %242 : vector<1xf32> to vector<1x1xf32>
    %cst_67 = arith.constant 2.560000e+02 : f32
    %244 = vector.broadcast %cst_67 : f32 to vector<1x1xf32>
    %245 = arith.divf %243, %244 : vector<1x1xf32>
    %246 = vector.broadcast %245 : vector<1x1xf32> to vector<1x256xf32>
    %247 = arith.subf %241, %246 : vector<1x256xf32>
    %248 = arith.mulf %247, %247 : vector<1x256xf32>
    %cst_68 = arith.constant dense<0.000000e+00> : vector<1xf32>
    %249 = vector.multi_reduction <add>, %248, %cst_68 [1] : vector<1x256xf32> to vector<1xf32>
    %250 = vector.shape_cast %249 : vector<1xf32> to vector<1x1xf32>
    %cst_69 = arith.constant 2.560000e+02 : f32
    %251 = vector.broadcast %cst_69 : f32 to vector<1x1xf32>
    %252 = arith.divf %250, %251 : vector<1x1xf32>
    %253 = vector.broadcast %245 : vector<1x1xf32> to vector<1x256xf32>
    %254 = arith.subf %241, %253 : vector<1x256xf32>
    %cst_70 = arith.constant 9.99999974E-6 : f32
    %255 = vector.broadcast %cst_70 : f32 to vector<1x1xf32>
    %256 = arith.addf %252, %255 : vector<1x1xf32>
    %257 = math.rsqrt %256 : vector<1x1xf32>
    %258 = vector.broadcast %257 : vector<1x1xf32> to vector<1x256xf32>
    %259 = arith.mulf %254, %258 : vector<1x256xf32>
    %260 = arith.mulf %259, %7 : vector<1x256xf32>
    %261 = arith.addf %260, %8 : vector<1x256xf32>
    %c5 = arith.constant 5 : index
    %c0_71 = arith.constant 0 : index
    %262 = vector.load %arg15[%c5, %c0_71] : memref<8x256xf32, #tpu.memory_space<vmem>>, vector<1x256xf32>
    tpu.vector_store %arg15[%c5, %c0_71], %261 {strides = array<i32>} : memref<8x256xf32, #tpu.memory_space<vmem>>, vector<1x256xf32>,
    %263 = vector.extract_strided_slice %6 {offsets = [6, 0], sizes = [1, 1024], strides = [1, 1]} : vector<8x1024xf32> to vector<1x1024xf32>
    %264 = arith.truncf %241 : vector<1x256xf32> to vector<1x256xbf16>
    %c0_72 = arith.constant 0 : index
    %c0_73 = arith.constant 0 : index
    %265 = vector.load %arg2[%c0_72, %c0_73] : memref<256x1024xbf16, #tpu.memory_space<vmem>>, vector<256x1024xbf16>
    %cst_74 = arith.constant dense<0.000000e+00> : vector<1x1024xf32>
    %266 = tpu.matmul %264, %265, %cst_74 {dimension_numbers = #tpu.dot_dimension_numbers<[1], [0], [0], [1], [0, 0, 1, 1], [], []>} : vector<1x256xbf16>, vector<256x1024xbf16>, vector<1x1024xf32> -> vector<1x1024xf32>
    %267 = arith.addf %263, %266 : vector<1x1024xf32>
    %268 = vector.extract_strided_slice %267 {offsets = [0, 0], sizes = [1, 768], strides = [1, 1]} : vector<1x1024xf32> to vector<1x768xf32>
    %269 = arith.negf %268 : vector<1x768xf32>
    %270 = math.exp %269 : vector<1x768xf32>
    %cst_75 = arith.constant 1.000000e+00 : f32
    %271 = vector.broadcast %cst_75 : f32 to vector<1x768xf32>
    %272 = arith.addf %271, %270 : vector<1x768xf32>
    %273 = arith.divf %271, %272 : vector<1x768xf32>
    %274 = vector.extract_strided_slice %273 {offsets = [0, 0], sizes = [1, 256], strides = [1, 1]} : vector<1x768xf32> to vector<1x256xf32>
    %275 = vector.extract_strided_slice %273 {offsets = [0, 256], sizes = [1, 256], strides = [1, 1]} : vector<1x768xf32> to vector<1x256xf32>
    %276 = vector.extract_strided_slice %273 {offsets = [0, 512], sizes = [1, 256], strides = [1, 1]} : vector<1x768xf32> to vector<1x256xf32>
    %277 = vector.extract_strided_slice %267 {offsets = [0, 768], sizes = [1, 256], strides = [1, 1]} : vector<1x1024xf32> to vector<1x256xf32>
    %278 = math.tanh %277 : vector<1x256xf32>
    %279 = arith.mulf %275, %239 : vector<1x256xf32>
    %280 = arith.mulf %274, %278 : vector<1x256xf32>
    %281 = arith.addf %279, %280 : vector<1x256xf32>
    %282 = math.tanh %281 : vector<1x256xf32>
    %283 = arith.mulf %276, %282 : vector<1x256xf32>
    %cst_76 = arith.constant dense<0.000000e+00> : vector<1xf32>
    %284 = vector.multi_reduction <add>, %283, %cst_76 [1] : vector<1x256xf32> to vector<1xf32>
    %285 = vector.shape_cast %284 : vector<1xf32> to vector<1x1xf32>
    %cst_77 = arith.constant 2.560000e+02 : f32
    %286 = vector.broadcast %cst_77 : f32 to vector<1x1xf32>
    %287 = arith.divf %285, %286 : vector<1x1xf32>
    %288 = vector.broadcast %287 : vector<1x1xf32> to vector<1x256xf32>
    %289 = arith.subf %283, %288 : vector<1x256xf32>
    %290 = arith.mulf %289, %289 : vector<1x256xf32>
    %cst_78 = arith.constant dense<0.000000e+00> : vector<1xf32>
    %291 = vector.multi_reduction <add>, %290, %cst_78 [1] : vector<1x256xf32> to vector<1xf32>
    %292 = vector.shape_cast %291 : vector<1xf32> to vector<1x1xf32>
    %cst_79 = arith.constant 2.560000e+02 : f32
    %293 = vector.broadcast %cst_79 : f32 to vector<1x1xf32>
    %294 = arith.divf %292, %293 : vector<1x1xf32>
    %295 = vector.broadcast %287 : vector<1x1xf32> to vector<1x256xf32>
    %296 = arith.subf %283, %295 : vector<1x256xf32>
    %cst_80 = arith.constant 9.99999974E-6 : f32
    %297 = vector.broadcast %cst_80 : f32 to vector<1x1xf32>
    %298 = arith.addf %294, %297 : vector<1x1xf32>
    %299 = math.rsqrt %298 : vector<1x1xf32>
    %300 = vector.broadcast %299 : vector<1x1xf32> to vector<1x256xf32>
    %301 = arith.mulf %296, %300 : vector<1x256xf32>
    %302 = arith.mulf %301, %7 : vector<1x256xf32>
    %303 = arith.addf %302, %8 : vector<1x256xf32>
    %c6 = arith.constant 6 : index
    %c0_81 = arith.constant 0 : index
    %304 = vector.load %arg15[%c6, %c0_81] : memref<8x256xf32, #tpu.memory_space<vmem>>, vector<1x256xf32>
    tpu.vector_store %arg15[%c6, %c0_81], %303 {strides = array<i32>} : memref<8x256xf32, #tpu.memory_space<vmem>>, vector<1x256xf32>,
    %305 = vector.extract_strided_slice %6 {offsets = [7, 0], sizes = [1, 1024], strides = [1, 1]} : vector<8x1024xf32> to vector<1x1024xf32>
    %306 = arith.truncf %283 : vector<1x256xf32> to vector<1x256xbf16>
    %c0_82 = arith.constant 0 : index
    %c0_83 = arith.constant 0 : index
    %307 = vector.load %arg2[%c0_82, %c0_83] : memref<256x1024xbf16, #tpu.memory_space<vmem>>, vector<256x1024xbf16>
    %cst_84 = arith.constant dense<0.000000e+00> : vector<1x1024xf32>
    %308 = tpu.matmul %306, %307, %cst_84 {dimension_numbers = #tpu.dot_dimension_numbers<[1], [0], [0], [1], [0, 0, 1, 1], [], []>} : vector<1x256xbf16>, vector<256x1024xbf16>, vector<1x1024xf32> -> vector<1x1024xf32>
    %309 = arith.addf %305, %308 : vector<1x1024xf32>
    %310 = vector.extract_strided_slice %309 {offsets = [0, 0], sizes = [1, 768], strides = [1, 1]} : vector<1x1024xf32> to vector<1x768xf32>
    %311 = arith.negf %310 : vector<1x768xf32>
    %312 = math.exp %311 : vector<1x768xf32>
    %cst_85 = arith.constant 1.000000e+00 : f32
    %313 = vector.broadcast %cst_85 : f32 to vector<1x768xf32>
    %314 = arith.addf %313, %312 : vector<1x768xf32>
    %315 = arith.divf %313, %314 : vector<1x768xf32>
    %316 = vector.extract_strided_slice %315 {offsets = [0, 0], sizes = [1, 256], strides = [1, 1]} : vector<1x768xf32> to vector<1x256xf32>
    %317 = vector.extract_strided_slice %315 {offsets = [0, 256], sizes = [1, 256], strides = [1, 1]} : vector<1x768xf32> to vector<1x256xf32>
    %318 = vector.extract_strided_slice %315 {offsets = [0, 512], sizes = [1, 256], strides = [1, 1]} : vector<1x768xf32> to vector<1x256xf32>
    %319 = vector.extract_strided_slice %309 {offsets = [0, 768], sizes = [1, 256], strides = [1, 1]} : vector<1x1024xf32> to vector<1x256xf32>
    %320 = math.tanh %319 : vector<1x256xf32>
    %321 = arith.mulf %317, %281 : vector<1x256xf32>
    %322 = arith.mulf %316, %320 : vector<1x256xf32>
    %323 = arith.addf %321, %322 : vector<1x256xf32>
    %324 = math.tanh %323 : vector<1x256xf32>
    %325 = arith.mulf %318, %324 : vector<1x256xf32>
    %cst_86 = arith.constant dense<0.000000e+00> : vector<1xf32>
    %326 = vector.multi_reduction <add>, %325, %cst_86 [1] : vector<1x256xf32> to vector<1xf32>
    %327 = vector.shape_cast %326 : vector<1xf32> to vector<1x1xf32>
    %cst_87 = arith.constant 2.560000e+02 : f32
    %328 = vector.broadcast %cst_87 : f32 to vector<1x1xf32>
    %329 = arith.divf %327, %328 : vector<1x1xf32>
    %330 = vector.broadcast %329 : vector<1x1xf32> to vector<1x256xf32>
    %331 = arith.subf %325, %330 : vector<1x256xf32>
    %332 = arith.mulf %331, %331 : vector<1x256xf32>
    %cst_88 = arith.constant dense<0.000000e+00> : vector<1xf32>
    %333 = vector.multi_reduction <add>, %332, %cst_88 [1] : vector<1x256xf32> to vector<1xf32>
    %334 = vector.shape_cast %333 : vector<1xf32> to vector<1x1xf32>
    %cst_89 = arith.constant 2.560000e+02 : f32
    %335 = vector.broadcast %cst_89 : f32 to vector<1x1xf32>
    %336 = arith.divf %334, %335 : vector<1x1xf32>
    %337 = vector.broadcast %329 : vector<1x1xf32> to vector<1x256xf32>
    %338 = arith.subf %325, %337 : vector<1x256xf32>
    %cst_90 = arith.constant 9.99999974E-6 : f32
    %339 = vector.broadcast %cst_90 : f32 to vector<1x1xf32>
    %340 = arith.addf %336, %339 : vector<1x1xf32>
    %341 = math.rsqrt %340 : vector<1x1xf32>
    %342 = vector.broadcast %341 : vector<1x1xf32> to vector<1x256xf32>
    %343 = arith.mulf %338, %342 : vector<1x256xf32>
    %344 = arith.mulf %343, %7 : vector<1x256xf32>
    %345 = arith.addf %344, %8 : vector<1x256xf32>
    %c7 = arith.constant 7 : index
    %c0_91 = arith.constant 0 : index
    %346 = vector.load %arg15[%c7, %c0_91] : memref<8x256xf32, #tpu.memory_space<vmem>>, vector<1x256xf32>
    tpu.vector_store %arg15[%c7, %c0_91], %345 {strides = array<i32>} : memref<8x256xf32, #tpu.memory_space<vmem>>, vector<1x256xf32>,
    %c0_92 = arith.constant 0 : index
    %c0_93 = arith.constant 0 : index
    %347 = vector.load %arg15[%c0_92, %c0_93] : memref<8x256xf32, #tpu.memory_space<vmem>>, vector<8x256xf32>
    %348 = arith.truncf %347 : vector<8x256xf32> to vector<8x256xbf16>
    %c0_94 = arith.constant 0 : index
    %c0_95 = arith.constant 0 : index
    %349 = vector.load %arg6[%c0_94, %c0_95] : memref<256x256xbf16, #tpu.memory_space<vmem>>, vector<256x256xbf16>
    %cst_96 = arith.constant dense<0.000000e+00> : vector<8x256xf32>
    %350 = tpu.matmul %348, %349, %cst_96 {dimension_numbers = #tpu.dot_dimension_numbers<[1], [0], [0], [1], [0, 0, 1, 1], [], []>} : vector<8x256xbf16>, vector<256x256xbf16>, vector<8x256xf32> -> vector<8x256xf32>
    %c0_97 = arith.constant 0 : index
    %c0_98 = arith.constant 0 : index
    %351 = vector.load %arg8[%c0_97, %c0_98] : memref<1x256xf32, #tpu.memory_space<vmem>>, vector<1x256xf32>
    %352 = vector.broadcast %351 : vector<1x256xf32> to vector<8x256xf32>
    %353 = arith.addf %350, %352 : vector<8x256xf32>
    %c0_99 = arith.constant 0 : index
    %c0_100 = arith.constant 0 : index
    %354 = vector.load %arg7[%c0_99, %c0_100] : memref<64x256xbf16, #tpu.memory_space<vmem>>, vector<64x256xbf16>
    %c0_101 = arith.constant 0 : index
    %c0_102 = arith.constant 0 : index
    %355 = vector.load %arg9[%c0_101, %c0_102] : memref<1x64xf32, #tpu.memory_space<vmem>>, vector<1x64xf32>
    %c0_103 = arith.constant 0 : index
    %c0_104 = arith.constant 0 : index
    %356 = vector.load %arg10[%c0_103, %c0_104] : memref<1x64xf32, #tpu.memory_space<vmem>>, vector<1x64xf32>
    %cst_105 = arith.constant 0.000000e+00 : f32
    %357 = vector.broadcast %cst_105 : f32 to vector<1x64xf32>
    %cst_106 = arith.constant 0.000000e+00 : f32
    %358 = vector.broadcast %cst_106 : f32 to vector<1x64xf32>
    %359 = vector.extract_strided_slice %353 {offsets = [0, 0], sizes = [1, 256], strides = [1, 1]} : vector<8x256xf32> to vector<1x256xf32>
    %360 = arith.truncf %357 : vector<1x64xf32> to vector<1x64xbf16>
    %cst_107 = arith.constant dense<0.000000e+00> : vector<1x256xf32>
    %361 = tpu.matmul %360, %354, %cst_107 {dimension_numbers = #tpu.dot_dimension_numbers<[1], [0], [0], [1], [0, 0, 1, 1], [], []>} : vector<1x64xbf16>, vector<64x256xbf16>, vector<1x256xf32> -> vector<1x256xf32>
    %362 = arith.addf %359, %361 : vector<1x256xf32>
    %363 = vector.extract_strided_slice %362 {offsets = [0, 0], sizes = [1, 192], strides = [1, 1]} : vector<1x256xf32> to vector<1x192xf32>
    %364 = arith.negf %363 : vector<1x192xf32>
    %365 = math.exp %364 : vector<1x192xf32>
    %cst_108 = arith.constant 1.000000e+00 : f32
    %366 = vector.broadcast %cst_108 : f32 to vector<1x192xf32>
    %367 = arith.addf %366, %365 : vector<1x192xf32>
    %368 = arith.divf %366, %367 : vector<1x192xf32>
    %369 = vector.extract_strided_slice %368 {offsets = [0, 0], sizes = [1, 64], strides = [1, 1]} : vector<1x192xf32> to vector<1x64xf32>
    %370 = vector.extract_strided_slice %368 {offsets = [0, 64], sizes = [1, 64], strides = [1, 1]} : vector<1x192xf32> to vector<1x64xf32>
    %371 = vector.extract_strided_slice %368 {offsets = [0, 128], sizes = [1, 64], strides = [1, 1]} : vector<1x192xf32> to vector<1x64xf32>
    %372 = vector.extract_strided_slice %362 {offsets = [0, 192], sizes = [1, 64], strides = [1, 1]} : vector<1x256xf32> to vector<1x64xf32>
    %373 = math.tanh %372 : vector<1x64xf32>
    %374 = arith.mulf %370, %358 : vector<1x64xf32>
    %375 = arith.mulf %369, %373 : vector<1x64xf32>
    %376 = arith.addf %374, %375 : vector<1x64xf32>
    %377 = math.tanh %376 : vector<1x64xf32>
    %378 = arith.mulf %371, %377 : vector<1x64xf32>
    %cst_109 = arith.constant dense<0.000000e+00> : vector<1xf32>
    %379 = vector.multi_reduction <add>, %378, %cst_109 [1] : vector<1x64xf32> to vector<1xf32>
    %380 = vector.shape_cast %379 : vector<1xf32> to vector<1x1xf32>
    %cst_110 = arith.constant 6.400000e+01 : f32
    %381 = vector.broadcast %cst_110 : f32 to vector<1x1xf32>
    %382 = arith.divf %380, %381 : vector<1x1xf32>
    %383 = vector.broadcast %382 : vector<1x1xf32> to vector<1x64xf32>
    %384 = arith.subf %378, %383 : vector<1x64xf32>
    %385 = arith.mulf %384, %384 : vector<1x64xf32>
    %cst_111 = arith.constant dense<0.000000e+00> : vector<1xf32>
    %386 = vector.multi_reduction <add>, %385, %cst_111 [1] : vector<1x64xf32> to vector<1xf32>
    %387 = vector.shape_cast %386 : vector<1xf32> to vector<1x1xf32>
    %cst_112 = arith.constant 6.400000e+01 : f32
    %388 = vector.broadcast %cst_112 : f32 to vector<1x1xf32>
    %389 = arith.divf %387, %388 : vector<1x1xf32>
    %390 = vector.broadcast %382 : vector<1x1xf32> to vector<1x64xf32>
    %391 = arith.subf %378, %390 : vector<1x64xf32>
    %cst_113 = arith.constant 9.99999974E-6 : f32
    %392 = vector.broadcast %cst_113 : f32 to vector<1x1xf32>
    %393 = arith.addf %389, %392 : vector<1x1xf32>
    %394 = math.rsqrt %393 : vector<1x1xf32>
    %395 = vector.broadcast %394 : vector<1x1xf32> to vector<1x64xf32>
    %396 = arith.mulf %391, %395 : vector<1x64xf32>
    %397 = arith.mulf %396, %355 : vector<1x64xf32>
    %398 = arith.addf %397, %356 : vector<1x64xf32>
    %c0_114 = arith.constant 0 : index
    %c0_115 = arith.constant 0 : index
    %399 = vector.load %arg16[%c0_114, %c0_115] : memref<8x64xf32, #tpu.memory_space<vmem>>, vector<1x64xf32>
    tpu.vector_store %arg16[%c0_114, %c0_115], %398 {strides = array<i32>} : memref<8x64xf32, #tpu.memory_space<vmem>>, vector<1x64xf32>,
    %400 = vector.extract_strided_slice %353 {offsets = [1, 0], sizes = [1, 256], strides = [1, 1]} : vector<8x256xf32> to vector<1x256xf32>
    %401 = arith.truncf %378 : vector<1x64xf32> to vector<1x64xbf16>
    %cst_116 = arith.constant dense<0.000000e+00> : vector<1x256xf32>
    %402 = tpu.matmul %401, %354, %cst_116 {dimension_numbers = #tpu.dot_dimension_numbers<[1], [0], [0], [1], [0, 0, 1, 1], [], []>} : vector<1x64xbf16>, vector<64x256xbf16>, vector<1x256xf32> -> vector<1x256xf32>
    %403 = arith.addf %400, %402 : vector<1x256xf32>
    %404 = vector.extract_strided_slice %403 {offsets = [0, 0], sizes = [1, 192], strides = [1, 1]} : vector<1x256xf32> to vector<1x192xf32>
    %405 = arith.negf %404 : vector<1x192xf32>
    %406 = math.exp %405 : vector<1x192xf32>
    %cst_117 = arith.constant 1.000000e+00 : f32
    %407 = vector.broadcast %cst_117 : f32 to vector<1x192xf32>
    %408 = arith.addf %407, %406 : vector<1x192xf32>
    %409 = arith.divf %407, %408 : vector<1x192xf32>
    %410 = vector.extract_strided_slice %409 {offsets = [0, 0], sizes = [1, 64], strides = [1, 1]} : vector<1x192xf32> to vector<1x64xf32>
    %411 = vector.extract_strided_slice %409 {offsets = [0, 64], sizes = [1, 64], strides = [1, 1]} : vector<1x192xf32> to vector<1x64xf32>
    %412 = vector.extract_strided_slice %409 {offsets = [0, 128], sizes = [1, 64], strides = [1, 1]} : vector<1x192xf32> to vector<1x64xf32>
    %413 = vector.extract_strided_slice %403 {offsets = [0, 192], sizes = [1, 64], strides = [1, 1]} : vector<1x256xf32> to vector<1x64xf32>
    %414 = math.tanh %413 : vector<1x64xf32>
    %415 = arith.mulf %411, %376 : vector<1x64xf32>
    %416 = arith.mulf %410, %414 : vector<1x64xf32>
    %417 = arith.addf %415, %416 : vector<1x64xf32>
    %418 = math.tanh %417 : vector<1x64xf32>
    %419 = arith.mulf %412, %418 : vector<1x64xf32>
    %cst_118 = arith.constant dense<0.000000e+00> : vector<1xf32>
    %420 = vector.multi_reduction <add>, %419, %cst_118 [1] : vector<1x64xf32> to vector<1xf32>
    %421 = vector.shape_cast %420 : vector<1xf32> to vector<1x1xf32>
    %cst_119 = arith.constant 6.400000e+01 : f32
    %422 = vector.broadcast %cst_119 : f32 to vector<1x1xf32>
    %423 = arith.divf %421, %422 : vector<1x1xf32>
    %424 = vector.broadcast %423 : vector<1x1xf32> to vector<1x64xf32>
    %425 = arith.subf %419, %424 : vector<1x64xf32>
    %426 = arith.mulf %425, %425 : vector<1x64xf32>
    %cst_120 = arith.constant dense<0.000000e+00> : vector<1xf32>
    %427 = vector.multi_reduction <add>, %426, %cst_120 [1] : vector<1x64xf32> to vector<1xf32>
    %428 = vector.shape_cast %427 : vector<1xf32> to vector<1x1xf32>
    %cst_121 = arith.constant 6.400000e+01 : f32
    %429 = vector.broadcast %cst_121 : f32 to vector<1x1xf32>
    %430 = arith.divf %428, %429 : vector<1x1xf32>
    %431 = vector.broadcast %423 : vector<1x1xf32> to vector<1x64xf32>
    %432 = arith.subf %419, %431 : vector<1x64xf32>
    %cst_122 = arith.constant 9.99999974E-6 : f32
    %433 = vector.broadcast %cst_122 : f32 to vector<1x1xf32>
    %434 = arith.addf %430, %433 : vector<1x1xf32>
    %435 = math.rsqrt %434 : vector<1x1xf32>
    %436 = vector.broadcast %435 : vector<1x1xf32> to vector<1x64xf32>
    %437 = arith.mulf %432, %436 : vector<1x64xf32>
    %438 = arith.mulf %437, %355 : vector<1x64xf32>
    %439 = arith.addf %438, %356 : vector<1x64xf32>
    %c1_123 = arith.constant 1 : index
    %c0_124 = arith.constant 0 : index
    %440 = vector.load %arg16[%c1_123, %c0_124] : memref<8x64xf32, #tpu.memory_space<vmem>>, vector<1x64xf32>
    tpu.vector_store %arg16[%c1_123, %c0_124], %439 {strides = array<i32>} : memref<8x64xf32, #tpu.memory_space<vmem>>, vector<1x64xf32>,
    %441 = vector.extract_strided_slice %353 {offsets = [2, 0], sizes = [1, 256], strides = [1, 1]} : vector<8x256xf32> to vector<1x256xf32>
    %442 = arith.truncf %419 : vector<1x64xf32> to vector<1x64xbf16>
    %cst_125 = arith.constant dense<0.000000e+00> : vector<1x256xf32>
    %443 = tpu.matmul %442, %354, %cst_125 {dimension_numbers = #tpu.dot_dimension_numbers<[1], [0], [0], [1], [0, 0, 1, 1], [], []>} : vector<1x64xbf16>, vector<64x256xbf16>, vector<1x256xf32> -> vector<1x256xf32>
    %444 = arith.addf %441, %443 : vector<1x256xf32>
    %445 = vector.extract_strided_slice %444 {offsets = [0, 0], sizes = [1, 192], strides = [1, 1]} : vector<1x256xf32> to vector<1x192xf32>
    %446 = arith.negf %445 : vector<1x192xf32>
    %447 = math.exp %446 : vector<1x192xf32>
    %cst_126 = arith.constant 1.000000e+00 : f32
    %448 = vector.broadcast %cst_126 : f32 to vector<1x192xf32>
    %449 = arith.addf %448, %447 : vector<1x192xf32>
    %450 = arith.divf %448, %449 : vector<1x192xf32>
    %451 = vector.extract_strided_slice %450 {offsets = [0, 0], sizes = [1, 64], strides = [1, 1]} : vector<1x192xf32> to vector<1x64xf32>
    %452 = vector.extract_strided_slice %450 {offsets = [0, 64], sizes = [1, 64], strides = [1, 1]} : vector<1x192xf32> to vector<1x64xf32>
    %453 = vector.extract_strided_slice %450 {offsets = [0, 128], sizes = [1, 64], strides = [1, 1]} : vector<1x192xf32> to vector<1x64xf32>
    %454 = vector.extract_strided_slice %444 {offsets = [0, 192], sizes = [1, 64], strides = [1, 1]} : vector<1x256xf32> to vector<1x64xf32>
    %455 = math.tanh %454 : vector<1x64xf32>
    %456 = arith.mulf %452, %417 : vector<1x64xf32>
    %457 = arith.mulf %451, %455 : vector<1x64xf32>
    %458 = arith.addf %456, %457 : vector<1x64xf32>
    %459 = math.tanh %458 : vector<1x64xf32>
    %460 = arith.mulf %453, %459 : vector<1x64xf32>
    %cst_127 = arith.constant dense<0.000000e+00> : vector<1xf32>
    %461 = vector.multi_reduction <add>, %460, %cst_127 [1] : vector<1x64xf32> to vector<1xf32>
    %462 = vector.shape_cast %461 : vector<1xf32> to vector<1x1xf32>
    %cst_128 = arith.constant 6.400000e+01 : f32
    %463 = vector.broadcast %cst_128 : f32 to vector<1x1xf32>
    %464 = arith.divf %462, %463 : vector<1x1xf32>
    %465 = vector.broadcast %464 : vector<1x1xf32> to vector<1x64xf32>
    %466 = arith.subf %460, %465 : vector<1x64xf32>
    %467 = arith.mulf %466, %466 : vector<1x64xf32>
    %cst_129 = arith.constant dense<0.000000e+00> : vector<1xf32>
    %468 = vector.multi_reduction <add>, %467, %cst_129 [1] : vector<1x64xf32> to vector<1xf32>
    %469 = vector.shape_cast %468 : vector<1xf32> to vector<1x1xf32>
    %cst_130 = arith.constant 6.400000e+01 : f32
    %470 = vector.broadcast %cst_130 : f32 to vector<1x1xf32>
    %471 = arith.divf %469, %470 : vector<1x1xf32>
    %472 = vector.broadcast %464 : vector<1x1xf32> to vector<1x64xf32>
    %473 = arith.subf %460, %472 : vector<1x64xf32>
    %cst_131 = arith.constant 9.99999974E-6 : f32
    %474 = vector.broadcast %cst_131 : f32 to vector<1x1xf32>
    %475 = arith.addf %471, %474 : vector<1x1xf32>
    %476 = math.rsqrt %475 : vector<1x1xf32>
    %477 = vector.broadcast %476 : vector<1x1xf32> to vector<1x64xf32>
    %478 = arith.mulf %473, %477 : vector<1x64xf32>
    %479 = arith.mulf %478, %355 : vector<1x64xf32>
    %480 = arith.addf %479, %356 : vector<1x64xf32>
    %c2_132 = arith.constant 2 : index
    %c0_133 = arith.constant 0 : index
    %481 = vector.load %arg16[%c2_132, %c0_133] : memref<8x64xf32, #tpu.memory_space<vmem>>, vector<1x64xf32>
    tpu.vector_store %arg16[%c2_132, %c0_133], %480 {strides = array<i32>} : memref<8x64xf32, #tpu.memory_space<vmem>>, vector<1x64xf32>,
    %482 = vector.extract_strided_slice %353 {offsets = [3, 0], sizes = [1, 256], strides = [1, 1]} : vector<8x256xf32> to vector<1x256xf32>
    %483 = arith.truncf %460 : vector<1x64xf32> to vector<1x64xbf16>
    %cst_134 = arith.constant dense<0.000000e+00> : vector<1x256xf32>
    %484 = tpu.matmul %483, %354, %cst_134 {dimension_numbers = #tpu.dot_dimension_numbers<[1], [0], [0], [1], [0, 0, 1, 1], [], []>} : vector<1x64xbf16>, vector<64x256xbf16>, vector<1x256xf32> -> vector<1x256xf32>
    %485 = arith.addf %482, %484 : vector<1x256xf32>
    %486 = vector.extract_strided_slice %485 {offsets = [0, 0], sizes = [1, 192], strides = [1, 1]} : vector<1x256xf32> to vector<1x192xf32>
    %487 = arith.negf %486 : vector<1x192xf32>
    %488 = math.exp %487 : vector<1x192xf32>
    %cst_135 = arith.constant 1.000000e+00 : f32
    %489 = vector.broadcast %cst_135 : f32 to vector<1x192xf32>
    %490 = arith.addf %489, %488 : vector<1x192xf32>
    %491 = arith.divf %489, %490 : vector<1x192xf32>
    %492 = vector.extract_strided_slice %491 {offsets = [0, 0], sizes = [1, 64], strides = [1, 1]} : vector<1x192xf32> to vector<1x64xf32>
    %493 = vector.extract_strided_slice %491 {offsets = [0, 64], sizes = [1, 64], strides = [1, 1]} : vector<1x192xf32> to vector<1x64xf32>
    %494 = vector.extract_strided_slice %491 {offsets = [0, 128], sizes = [1, 64], strides = [1, 1]} : vector<1x192xf32> to vector<1x64xf32>
    %495 = vector.extract_strided_slice %485 {offsets = [0, 192], sizes = [1, 64], strides = [1, 1]} : vector<1x256xf32> to vector<1x64xf32>
    %496 = math.tanh %495 : vector<1x64xf32>
    %497 = arith.mulf %493, %458 : vector<1x64xf32>
    %498 = arith.mulf %492, %496 : vector<1x64xf32>
    %499 = arith.addf %497, %498 : vector<1x64xf32>
    %500 = math.tanh %499 : vector<1x64xf32>
    %501 = arith.mulf %494, %500 : vector<1x64xf32>
    %cst_136 = arith.constant dense<0.000000e+00> : vector<1xf32>
    %502 = vector.multi_reduction <add>, %501, %cst_136 [1] : vector<1x64xf32> to vector<1xf32>
    %503 = vector.shape_cast %502 : vector<1xf32> to vector<1x1xf32>
    %cst_137 = arith.constant 6.400000e+01 : f32
    %504 = vector.broadcast %cst_137 : f32 to vector<1x1xf32>
    %505 = arith.divf %503, %504 : vector<1x1xf32>
    %506 = vector.broadcast %505 : vector<1x1xf32> to vector<1x64xf32>
    %507 = arith.subf %501, %506 : vector<1x64xf32>
    %508 = arith.mulf %507, %507 : vector<1x64xf32>
    %cst_138 = arith.constant dense<0.000000e+00> : vector<1xf32>
    %509 = vector.multi_reduction <add>, %508, %cst_138 [1] : vector<1x64xf32> to vector<1xf32>
    %510 = vector.shape_cast %509 : vector<1xf32> to vector<1x1xf32>
    %cst_139 = arith.constant 6.400000e+01 : f32
    %511 = vector.broadcast %cst_139 : f32 to vector<1x1xf32>
    %512 = arith.divf %510, %511 : vector<1x1xf32>
    %513 = vector.broadcast %505 : vector<1x1xf32> to vector<1x64xf32>
    %514 = arith.subf %501, %513 : vector<1x64xf32>
    %cst_140 = arith.constant 9.99999974E-6 : f32
    %515 = vector.broadcast %cst_140 : f32 to vector<1x1xf32>
    %516 = arith.addf %512, %515 : vector<1x1xf32>
    %517 = math.rsqrt %516 : vector<1x1xf32>
    %518 = vector.broadcast %517 : vector<1x1xf32> to vector<1x64xf32>
    %519 = arith.mulf %514, %518 : vector<1x64xf32>
    %520 = arith.mulf %519, %355 : vector<1x64xf32>
    %521 = arith.addf %520, %356 : vector<1x64xf32>
    %c3_141 = arith.constant 3 : index
    %c0_142 = arith.constant 0 : index
    %522 = vector.load %arg16[%c3_141, %c0_142] : memref<8x64xf32, #tpu.memory_space<vmem>>, vector<1x64xf32>
    tpu.vector_store %arg16[%c3_141, %c0_142], %521 {strides = array<i32>} : memref<8x64xf32, #tpu.memory_space<vmem>>, vector<1x64xf32>,
    %523 = vector.extract_strided_slice %353 {offsets = [4, 0], sizes = [1, 256], strides = [1, 1]} : vector<8x256xf32> to vector<1x256xf32>
    %524 = arith.truncf %501 : vector<1x64xf32> to vector<1x64xbf16>
    %cst_143 = arith.constant dense<0.000000e+00> : vector<1x256xf32>
    %525 = tpu.matmul %524, %354, %cst_143 {dimension_numbers = #tpu.dot_dimension_numbers<[1], [0], [0], [1], [0, 0, 1, 1], [], []>} : vector<1x64xbf16>, vector<64x256xbf16>, vector<1x256xf32> -> vector<1x256xf32>
    %526 = arith.addf %523, %525 : vector<1x256xf32>
    %527 = vector.extract_strided_slice %526 {offsets = [0, 0], sizes = [1, 192], strides = [1, 1]} : vector<1x256xf32> to vector<1x192xf32>
    %528 = arith.negf %527 : vector<1x192xf32>
    %529 = math.exp %528 : vector<1x192xf32>
    %cst_144 = arith.constant 1.000000e+00 : f32
    %530 = vector.broadcast %cst_144 : f32 to vector<1x192xf32>
    %531 = arith.addf %530, %529 : vector<1x192xf32>
    %532 = arith.divf %530, %531 : vector<1x192xf32>
    %533 = vector.extract_strided_slice %532 {offsets = [0, 0], sizes = [1, 64], strides = [1, 1]} : vector<1x192xf32> to vector<1x64xf32>
    %534 = vector.extract_strided_slice %532 {offsets = [0, 64], sizes = [1, 64], strides = [1, 1]} : vector<1x192xf32> to vector<1x64xf32>
    %535 = vector.extract_strided_slice %532 {offsets = [0, 128], sizes = [1, 64], strides = [1, 1]} : vector<1x192xf32> to vector<1x64xf32>
    %536 = vector.extract_strided_slice %526 {offsets = [0, 192], sizes = [1, 64], strides = [1, 1]} : vector<1x256xf32> to vector<1x64xf32>
    %537 = math.tanh %536 : vector<1x64xf32>
    %538 = arith.mulf %534, %499 : vector<1x64xf32>
    %539 = arith.mulf %533, %537 : vector<1x64xf32>
    %540 = arith.addf %538, %539 : vector<1x64xf32>
    %541 = math.tanh %540 : vector<1x64xf32>
    %542 = arith.mulf %535, %541 : vector<1x64xf32>
    %cst_145 = arith.constant dense<0.000000e+00> : vector<1xf32>
    %543 = vector.multi_reduction <add>, %542, %cst_145 [1] : vector<1x64xf32> to vector<1xf32>
    %544 = vector.shape_cast %543 : vector<1xf32> to vector<1x1xf32>
    %cst_146 = arith.constant 6.400000e+01 : f32
    %545 = vector.broadcast %cst_146 : f32 to vector<1x1xf32>
    %546 = arith.divf %544, %545 : vector<1x1xf32>
    %547 = vector.broadcast %546 : vector<1x1xf32> to vector<1x64xf32>
    %548 = arith.subf %542, %547 : vector<1x64xf32>
    %549 = arith.mulf %548, %548 : vector<1x64xf32>
    %cst_147 = arith.constant dense<0.000000e+00> : vector<1xf32>
    %550 = vector.multi_reduction <add>, %549, %cst_147 [1] : vector<1x64xf32> to vector<1xf32>
    %551 = vector.shape_cast %550 : vector<1xf32> to vector<1x1xf32>
    %cst_148 = arith.constant 6.400000e+01 : f32
    %552 = vector.broadcast %cst_148 : f32 to vector<1x1xf32>
    %553 = arith.divf %551, %552 : vector<1x1xf32>
    %554 = vector.broadcast %546 : vector<1x1xf32> to vector<1x64xf32>
    %555 = arith.subf %542, %554 : vector<1x64xf32>
    %cst_149 = arith.constant 9.99999974E-6 : f32
    %556 = vector.broadcast %cst_149 : f32 to vector<1x1xf32>
    %557 = arith.addf %553, %556 : vector<1x1xf32>
    %558 = math.rsqrt %557 : vector<1x1xf32>
    %559 = vector.broadcast %558 : vector<1x1xf32> to vector<1x64xf32>
    %560 = arith.mulf %555, %559 : vector<1x64xf32>
    %561 = arith.mulf %560, %355 : vector<1x64xf32>
    %562 = arith.addf %561, %356 : vector<1x64xf32>
    %c4_150 = arith.constant 4 : index
    %c0_151 = arith.constant 0 : index
    %563 = vector.load %arg16[%c4_150, %c0_151] : memref<8x64xf32, #tpu.memory_space<vmem>>, vector<1x64xf32>
    tpu.vector_store %arg16[%c4_150, %c0_151], %562 {strides = array<i32>} : memref<8x64xf32, #tpu.memory_space<vmem>>, vector<1x64xf32>,
    %564 = vector.extract_strided_slice %353 {offsets = [5, 0], sizes = [1, 256], strides = [1, 1]} : vector<8x256xf32> to vector<1x256xf32>
    %565 = arith.truncf %542 : vector<1x64xf32> to vector<1x64xbf16>
    %cst_152 = arith.constant dense<0.000000e+00> : vector<1x256xf32>
    %566 = tpu.matmul %565, %354, %cst_152 {dimension_numbers = #tpu.dot_dimension_numbers<[1], [0], [0], [1], [0, 0, 1, 1], [], []>} : vector<1x64xbf16>, vector<64x256xbf16>, vector<1x256xf32> -> vector<1x256xf32>
    %567 = arith.addf %564, %566 : vector<1x256xf32>
    %568 = vector.extract_strided_slice %567 {offsets = [0, 0], sizes = [1, 192], strides = [1, 1]} : vector<1x256xf32> to vector<1x192xf32>
    %569 = arith.negf %568 : vector<1x192xf32>
    %570 = math.exp %569 : vector<1x192xf32>
    %cst_153 = arith.constant 1.000000e+00 : f32
    %571 = vector.broadcast %cst_153 : f32 to vector<1x192xf32>
    %572 = arith.addf %571, %570 : vector<1x192xf32>
    %573 = arith.divf %571, %572 : vector<1x192xf32>
    %574 = vector.extract_strided_slice %573 {offsets = [0, 0], sizes = [1, 64], strides = [1, 1]} : vector<1x192xf32> to vector<1x64xf32>
    %575 = vector.extract_strided_slice %573 {offsets = [0, 64], sizes = [1, 64], strides = [1, 1]} : vector<1x192xf32> to vector<1x64xf32>
    %576 = vector.extract_strided_slice %573 {offsets = [0, 128], sizes = [1, 64], strides = [1, 1]} : vector<1x192xf32> to vector<1x64xf32>
    %577 = vector.extract_strided_slice %567 {offsets = [0, 192], sizes = [1, 64], strides = [1, 1]} : vector<1x256xf32> to vector<1x64xf32>
    %578 = math.tanh %577 : vector<1x64xf32>
    %579 = arith.mulf %575, %540 : vector<1x64xf32>
    %580 = arith.mulf %574, %578 : vector<1x64xf32>
    %581 = arith.addf %579, %580 : vector<1x64xf32>
    %582 = math.tanh %581 : vector<1x64xf32>
    %583 = arith.mulf %576, %582 : vector<1x64xf32>
    %cst_154 = arith.constant dense<0.000000e+00> : vector<1xf32>
    %584 = vector.multi_reduction <add>, %583, %cst_154 [1] : vector<1x64xf32> to vector<1xf32>
    %585 = vector.shape_cast %584 : vector<1xf32> to vector<1x1xf32>
    %cst_155 = arith.constant 6.400000e+01 : f32
    %586 = vector.broadcast %cst_155 : f32 to vector<1x1xf32>
    %587 = arith.divf %585, %586 : vector<1x1xf32>
    %588 = vector.broadcast %587 : vector<1x1xf32> to vector<1x64xf32>
    %589 = arith.subf %583, %588 : vector<1x64xf32>
    %590 = arith.mulf %589, %589 : vector<1x64xf32>
    %cst_156 = arith.constant dense<0.000000e+00> : vector<1xf32>
    %591 = vector.multi_reduction <add>, %590, %cst_156 [1] : vector<1x64xf32> to vector<1xf32>
    %592 = vector.shape_cast %591 : vector<1xf32> to vector<1x1xf32>
    %cst_157 = arith.constant 6.400000e+01 : f32
    %593 = vector.broadcast %cst_157 : f32 to vector<1x1xf32>
    %594 = arith.divf %592, %593 : vector<1x1xf32>
    %595 = vector.broadcast %587 : vector<1x1xf32> to vector<1x64xf32>
    %596 = arith.subf %583, %595 : vector<1x64xf32>
    %cst_158 = arith.constant 9.99999974E-6 : f32
    %597 = vector.broadcast %cst_158 : f32 to vector<1x1xf32>
    %598 = arith.addf %594, %597 : vector<1x1xf32>
    %599 = math.rsqrt %598 : vector<1x1xf32>
    %600 = vector.broadcast %599 : vector<1x1xf32> to vector<1x64xf32>
    %601 = arith.mulf %596, %600 : vector<1x64xf32>
    %602 = arith.mulf %601, %355 : vector<1x64xf32>
    %603 = arith.addf %602, %356 : vector<1x64xf32>
    %c5_159 = arith.constant 5 : index
    %c0_160 = arith.constant 0 : index
    %604 = vector.load %arg16[%c5_159, %c0_160] : memref<8x64xf32, #tpu.memory_space<vmem>>, vector<1x64xf32>
    tpu.vector_store %arg16[%c5_159, %c0_160], %603 {strides = array<i32>} : memref<8x64xf32, #tpu.memory_space<vmem>>, vector<1x64xf32>,
    %605 = vector.extract_strided_slice %353 {offsets = [6, 0], sizes = [1, 256], strides = [1, 1]} : vector<8x256xf32> to vector<1x256xf32>
    %606 = arith.truncf %583 : vector<1x64xf32> to vector<1x64xbf16>
    %cst_161 = arith.constant dense<0.000000e+00> : vector<1x256xf32>
    %607 = tpu.matmul %606, %354, %cst_161 {dimension_numbers = #tpu.dot_dimension_numbers<[1], [0], [0], [1], [0, 0, 1, 1], [], []>} : vector<1x64xbf16>, vector<64x256xbf16>, vector<1x256xf32> -> vector<1x256xf32>
    %608 = arith.addf %605, %607 : vector<1x256xf32>
    %609 = vector.extract_strided_slice %608 {offsets = [0, 0], sizes = [1, 192], strides = [1, 1]} : vector<1x256xf32> to vector<1x192xf32>
    %610 = arith.negf %609 : vector<1x192xf32>
    %611 = math.exp %610 : vector<1x192xf32>
    %cst_162 = arith.constant 1.000000e+00 : f32
    %612 = vector.broadcast %cst_162 : f32 to vector<1x192xf32>
    %613 = arith.addf %612, %611 : vector<1x192xf32>
    %614 = arith.divf %612, %613 : vector<1x192xf32>
    %615 = vector.extract_strided_slice %614 {offsets = [0, 0], sizes = [1, 64], strides = [1, 1]} : vector<1x192xf32> to vector<1x64xf32>
    %616 = vector.extract_strided_slice %614 {offsets = [0, 64], sizes = [1, 64], strides = [1, 1]} : vector<1x192xf32> to vector<1x64xf32>
    %617 = vector.extract_strided_slice %614 {offsets = [0, 128], sizes = [1, 64], strides = [1, 1]} : vector<1x192xf32> to vector<1x64xf32>
    %618 = vector.extract_strided_slice %608 {offsets = [0, 192], sizes = [1, 64], strides = [1, 1]} : vector<1x256xf32> to vector<1x64xf32>
    %619 = math.tanh %618 : vector<1x64xf32>
    %620 = arith.mulf %616, %581 : vector<1x64xf32>
    %621 = arith.mulf %615, %619 : vector<1x64xf32>
    %622 = arith.addf %620, %621 : vector<1x64xf32>
    %623 = math.tanh %622 : vector<1x64xf32>
    %624 = arith.mulf %617, %623 : vector<1x64xf32>
    %cst_163 = arith.constant dense<0.000000e+00> : vector<1xf32>
    %625 = vector.multi_reduction <add>, %624, %cst_163 [1] : vector<1x64xf32> to vector<1xf32>
    %626 = vector.shape_cast %625 : vector<1xf32> to vector<1x1xf32>
    %cst_164 = arith.constant 6.400000e+01 : f32
    %627 = vector.broadcast %cst_164 : f32 to vector<1x1xf32>
    %628 = arith.divf %626, %627 : vector<1x1xf32>
    %629 = vector.broadcast %628 : vector<1x1xf32> to vector<1x64xf32>
    %630 = arith.subf %624, %629 : vector<1x64xf32>
    %631 = arith.mulf %630, %630 : vector<1x64xf32>
    %cst_165 = arith.constant dense<0.000000e+00> : vector<1xf32>
    %632 = vector.multi_reduction <add>, %631, %cst_165 [1] : vector<1x64xf32> to vector<1xf32>
    %633 = vector.shape_cast %632 : vector<1xf32> to vector<1x1xf32>
    %cst_166 = arith.constant 6.400000e+01 : f32
    %634 = vector.broadcast %cst_166 : f32 to vector<1x1xf32>
    %635 = arith.divf %633, %634 : vector<1x1xf32>
    %636 = vector.broadcast %628 : vector<1x1xf32> to vector<1x64xf32>
    %637 = arith.subf %624, %636 : vector<1x64xf32>
    %cst_167 = arith.constant 9.99999974E-6 : f32
    %638 = vector.broadcast %cst_167 : f32 to vector<1x1xf32>
    %639 = arith.addf %635, %638 : vector<1x1xf32>
    %640 = math.rsqrt %639 : vector<1x1xf32>
    %641 = vector.broadcast %640 : vector<1x1xf32> to vector<1x64xf32>
    %642 = arith.mulf %637, %641 : vector<1x64xf32>
    %643 = arith.mulf %642, %355 : vector<1x64xf32>
    %644 = arith.addf %643, %356 : vector<1x64xf32>
    %c6_168 = arith.constant 6 : index
    %c0_169 = arith.constant 0 : index
    %645 = vector.load %arg16[%c6_168, %c0_169] : memref<8x64xf32, #tpu.memory_space<vmem>>, vector<1x64xf32>
    tpu.vector_store %arg16[%c6_168, %c0_169], %644 {strides = array<i32>} : memref<8x64xf32, #tpu.memory_space<vmem>>, vector<1x64xf32>,
    %646 = vector.extract_strided_slice %353 {offsets = [7, 0], sizes = [1, 256], strides = [1, 1]} : vector<8x256xf32> to vector<1x256xf32>
    %647 = arith.truncf %624 : vector<1x64xf32> to vector<1x64xbf16>
    %cst_170 = arith.constant dense<0.000000e+00> : vector<1x256xf32>
    %648 = tpu.matmul %647, %354, %cst_170 {dimension_numbers = #tpu.dot_dimension_numbers<[1], [0], [0], [1], [0, 0, 1, 1], [], []>} : vector<1x64xbf16>, vector<64x256xbf16>, vector<1x256xf32> -> vector<1x256xf32>
    %649 = arith.addf %646, %648 : vector<1x256xf32>
    %650 = vector.extract_strided_slice %649 {offsets = [0, 0], sizes = [1, 192], strides = [1, 1]} : vector<1x256xf32> to vector<1x192xf32>
    %651 = arith.negf %650 : vector<1x192xf32>
    %652 = math.exp %651 : vector<1x192xf32>
    %cst_171 = arith.constant 1.000000e+00 : f32
    %653 = vector.broadcast %cst_171 : f32 to vector<1x192xf32>
    %654 = arith.addf %653, %652 : vector<1x192xf32>
    %655 = arith.divf %653, %654 : vector<1x192xf32>
    %656 = vector.extract_strided_slice %655 {offsets = [0, 0], sizes = [1, 64], strides = [1, 1]} : vector<1x192xf32> to vector<1x64xf32>
    %657 = vector.extract_strided_slice %655 {offsets = [0, 64], sizes = [1, 64], strides = [1, 1]} : vector<1x192xf32> to vector<1x64xf32>
    %658 = vector.extract_strided_slice %655 {offsets = [0, 128], sizes = [1, 64], strides = [1, 1]} : vector<1x192xf32> to vector<1x64xf32>
    %659 = vector.extract_strided_slice %649 {offsets = [0, 192], sizes = [1, 64], strides = [1, 1]} : vector<1x256xf32> to vector<1x64xf32>
    %660 = math.tanh %659 : vector<1x64xf32>
    %661 = arith.mulf %657, %622 : vector<1x64xf32>
    %662 = arith.mulf %656, %660 : vector<1x64xf32>
    %663 = arith.addf %661, %662 : vector<1x64xf32>
    %664 = math.tanh %663 : vector<1x64xf32>
    %665 = arith.mulf %658, %664 : vector<1x64xf32>
    %cst_172 = arith.constant dense<0.000000e+00> : vector<1xf32>
    %666 = vector.multi_reduction <add>, %665, %cst_172 [1] : vector<1x64xf32> to vector<1xf32>
    %667 = vector.shape_cast %666 : vector<1xf32> to vector<1x1xf32>
    %cst_173 = arith.constant 6.400000e+01 : f32
    %668 = vector.broadcast %cst_173 : f32 to vector<1x1xf32>
    %669 = arith.divf %667, %668 : vector<1x1xf32>
    %670 = vector.broadcast %669 : vector<1x1xf32> to vector<1x64xf32>
    %671 = arith.subf %665, %670 : vector<1x64xf32>
    %672 = arith.mulf %671, %671 : vector<1x64xf32>
    %cst_174 = arith.constant dense<0.000000e+00> : vector<1xf32>
    %673 = vector.multi_reduction <add>, %672, %cst_174 [1] : vector<1x64xf32> to vector<1xf32>
    %674 = vector.shape_cast %673 : vector<1xf32> to vector<1x1xf32>
    %cst_175 = arith.constant 6.400000e+01 : f32
    %675 = vector.broadcast %cst_175 : f32 to vector<1x1xf32>
    %676 = arith.divf %674, %675 : vector<1x1xf32>
    %677 = vector.broadcast %669 : vector<1x1xf32> to vector<1x64xf32>
    %678 = arith.subf %665, %677 : vector<1x64xf32>
    %cst_176 = arith.constant 9.99999974E-6 : f32
    %679 = vector.broadcast %cst_176 : f32 to vector<1x1xf32>
    %680 = arith.addf %676, %679 : vector<1x1xf32>
    %681 = math.rsqrt %680 : vector<1x1xf32>
    %682 = vector.broadcast %681 : vector<1x1xf32> to vector<1x64xf32>
    %683 = arith.mulf %678, %682 : vector<1x64xf32>
    %684 = arith.mulf %683, %355 : vector<1x64xf32>
    %685 = arith.addf %684, %356 : vector<1x64xf32>
    %c7_177 = arith.constant 7 : index
    %c0_178 = arith.constant 0 : index
    %686 = vector.load %arg16[%c7_177, %c0_178] : memref<8x64xf32, #tpu.memory_space<vmem>>, vector<1x64xf32>
    tpu.vector_store %arg16[%c7_177, %c0_178], %685 {strides = array<i32>} : memref<8x64xf32, #tpu.memory_space<vmem>>, vector<1x64xf32>,
    %c0_179 = arith.constant 0 : index
    %c0_180 = arith.constant 0 : index
    %687 = vector.load %arg16[%c0_179, %c0_180] : memref<8x64xf32, #tpu.memory_space<vmem>>, vector<8x64xf32>
    %c0_181 = arith.constant 0 : index
    %c0_182 = arith.constant 0 : index
    %688 = vector.load %arg11[%c0_181, %c0_182] : memref<64x32xf32, #tpu.memory_space<vmem>>, vector<64x32xf32>
    %cst_183 = arith.constant dense<0.000000e+00> : vector<8x32xf32>
    %689 = tpu.matmul %687, %688, %cst_183 {dimension_numbers = #tpu.dot_dimension_numbers<[1], [0], [0], [1], [0, 0, 1, 1], [], []>} : vector<8x64xf32>, vector<64x32xf32>, vector<8x32xf32> -> vector<8x32xf32>
    %c0_184 = arith.constant 0 : index
    %c0_185 = arith.constant 0 : index
    %690 = vector.load %arg13[%c0_184, %c0_185] : memref<1x32xf32, #tpu.memory_space<vmem>>, vector<1x32xf32>
    %691 = vector.broadcast %690 : vector<1x32xf32> to vector<8x32xf32>
    %692 = arith.addf %689, %691 : vector<8x32xf32>
    %c0_186 = arith.constant 0 : index
    %c0_187 = arith.constant 0 : index
    %693 = vector.load %arg12[%c0_186, %c0_187] : memref<8x32xf32, #tpu.memory_space<vmem>>, vector<8x32xf32>
    %cst_188 = arith.constant 0.000000e+00 : f32
    %694 = vector.broadcast %cst_188 : f32 to vector<1x8xf32>
    %cst_189 = arith.constant 0.000000e+00 : f32
    %695 = vector.broadcast %cst_189 : f32 to vector<1x8xf32>
    %696 = vector.extract_strided_slice %692 {offsets = [0, 0], sizes = [1, 32], strides = [1, 1]} : vector<8x32xf32> to vector<1x32xf32>
    %cst_190 = arith.constant dense<0.000000e+00> : vector<1x32xf32>
    %697 = tpu.matmul %694, %693, %cst_190 {dimension_numbers = #tpu.dot_dimension_numbers<[1], [0], [0], [1], [0, 0, 1, 1], [], []>} : vector<1x8xf32>, vector<8x32xf32>, vector<1x32xf32> -> vector<1x32xf32>
    %698 = arith.addf %696, %697 : vector<1x32xf32>
    %699 = vector.extract_strided_slice %698 {offsets = [0, 0], sizes = [1, 24], strides = [1, 1]} : vector<1x32xf32> to vector<1x24xf32>
    %700 = arith.negf %699 : vector<1x24xf32>
    %701 = math.exp %700 : vector<1x24xf32>
    %cst_191 = arith.constant 1.000000e+00 : f32
    %702 = vector.broadcast %cst_191 : f32 to vector<1x24xf32>
    %703 = arith.addf %702, %701 : vector<1x24xf32>
    %704 = arith.divf %702, %703 : vector<1x24xf32>
    %705 = vector.extract_strided_slice %704 {offsets = [0, 0], sizes = [1, 8], strides = [1, 1]} : vector<1x24xf32> to vector<1x8xf32>
    %706 = vector.extract_strided_slice %704 {offsets = [0, 8], sizes = [1, 8], strides = [1, 1]} : vector<1x24xf32> to vector<1x8xf32>
    %707 = vector.extract_strided_slice %704 {offsets = [0, 16], sizes = [1, 8], strides = [1, 1]} : vector<1x24xf32> to vector<1x8xf32>
    %708 = vector.extract_strided_slice %698 {offsets = [0, 24], sizes = [1, 8], strides = [1, 1]} : vector<1x32xf32> to vector<1x8xf32>
    %709 = math.tanh %708 : vector<1x8xf32>
    %710 = arith.mulf %706, %695 : vector<1x8xf32>
    %711 = arith.mulf %705, %709 : vector<1x8xf32>
    %712 = arith.addf %710, %711 : vector<1x8xf32>
    %713 = math.tanh %712 : vector<1x8xf32>
    %714 = arith.mulf %707, %713 : vector<1x8xf32>
    %715 = vector.extract_strided_slice %692 {offsets = [1, 0], sizes = [1, 32], strides = [1, 1]} : vector<8x32xf32> to vector<1x32xf32>
    %cst_192 = arith.constant dense<0.000000e+00> : vector<1x32xf32>
    %716 = tpu.matmul %714, %693, %cst_192 {dimension_numbers = #tpu.dot_dimension_numbers<[1], [0], [0], [1], [0, 0, 1, 1], [], []>} : vector<1x8xf32>, vector<8x32xf32>, vector<1x32xf32> -> vector<1x32xf32>
    %717 = arith.addf %715, %716 : vector<1x32xf32>
    %718 = vector.extract_strided_slice %717 {offsets = [0, 0], sizes = [1, 24], strides = [1, 1]} : vector<1x32xf32> to vector<1x24xf32>
    %719 = arith.negf %718 : vector<1x24xf32>
    %720 = math.exp %719 : vector<1x24xf32>
    %cst_193 = arith.constant 1.000000e+00 : f32
    %721 = vector.broadcast %cst_193 : f32 to vector<1x24xf32>
    %722 = arith.addf %721, %720 : vector<1x24xf32>
    %723 = arith.divf %721, %722 : vector<1x24xf32>
    %724 = vector.extract_strided_slice %723 {offsets = [0, 0], sizes = [1, 8], strides = [1, 1]} : vector<1x24xf32> to vector<1x8xf32>
    %725 = vector.extract_strided_slice %723 {offsets = [0, 8], sizes = [1, 8], strides = [1, 1]} : vector<1x24xf32> to vector<1x8xf32>
    %726 = vector.extract_strided_slice %723 {offsets = [0, 16], sizes = [1, 8], strides = [1, 1]} : vector<1x24xf32> to vector<1x8xf32>
    %727 = vector.extract_strided_slice %717 {offsets = [0, 24], sizes = [1, 8], strides = [1, 1]} : vector<1x32xf32> to vector<1x8xf32>
    %728 = math.tanh %727 : vector<1x8xf32>
    %729 = arith.mulf %725, %712 : vector<1x8xf32>
    %730 = arith.mulf %724, %728 : vector<1x8xf32>
    %731 = arith.addf %729, %730 : vector<1x8xf32>
    %732 = math.tanh %731 : vector<1x8xf32>
    %733 = arith.mulf %726, %732 : vector<1x8xf32>
    %734 = vector.extract_strided_slice %692 {offsets = [2, 0], sizes = [1, 32], strides = [1, 1]} : vector<8x32xf32> to vector<1x32xf32>
    %cst_194 = arith.constant dense<0.000000e+00> : vector<1x32xf32>
    %735 = tpu.matmul %733, %693, %cst_194 {dimension_numbers = #tpu.dot_dimension_numbers<[1], [0], [0], [1], [0, 0, 1, 1], [], []>} : vector<1x8xf32>, vector<8x32xf32>, vector<1x32xf32> -> vector<1x32xf32>
    %736 = arith.addf %734, %735 : vector<1x32xf32>
    %737 = vector.extract_strided_slice %736 {offsets = [0, 0], sizes = [1, 24], strides = [1, 1]} : vector<1x32xf32> to vector<1x24xf32>
    %738 = arith.negf %737 : vector<1x24xf32>
    %739 = math.exp %738 : vector<1x24xf32>
    %cst_195 = arith.constant 1.000000e+00 : f32
    %740 = vector.broadcast %cst_195 : f32 to vector<1x24xf32>
    %741 = arith.addf %740, %739 : vector<1x24xf32>
    %742 = arith.divf %740, %741 : vector<1x24xf32>
    %743 = vector.extract_strided_slice %742 {offsets = [0, 0], sizes = [1, 8], strides = [1, 1]} : vector<1x24xf32> to vector<1x8xf32>
    %744 = vector.extract_strided_slice %742 {offsets = [0, 8], sizes = [1, 8], strides = [1, 1]} : vector<1x24xf32> to vector<1x8xf32>
    %745 = vector.extract_strided_slice %742 {offsets = [0, 16], sizes = [1, 8], strides = [1, 1]} : vector<1x24xf32> to vector<1x8xf32>
    %746 = vector.extract_strided_slice %736 {offsets = [0, 24], sizes = [1, 8], strides = [1, 1]} : vector<1x32xf32> to vector<1x8xf32>
    %747 = math.tanh %746 : vector<1x8xf32>
    %748 = arith.mulf %744, %731 : vector<1x8xf32>
    %749 = arith.mulf %743, %747 : vector<1x8xf32>
    %750 = arith.addf %748, %749 : vector<1x8xf32>
    %751 = math.tanh %750 : vector<1x8xf32>
    %752 = arith.mulf %745, %751 : vector<1x8xf32>
    %753 = vector.extract_strided_slice %692 {offsets = [3, 0], sizes = [1, 32], strides = [1, 1]} : vector<8x32xf32> to vector<1x32xf32>
    %cst_196 = arith.constant dense<0.000000e+00> : vector<1x32xf32>
    %754 = tpu.matmul %752, %693, %cst_196 {dimension_numbers = #tpu.dot_dimension_numbers<[1], [0], [0], [1], [0, 0, 1, 1], [], []>} : vector<1x8xf32>, vector<8x32xf32>, vector<1x32xf32> -> vector<1x32xf32>
    %755 = arith.addf %753, %754 : vector<1x32xf32>
    %756 = vector.extract_strided_slice %755 {offsets = [0, 0], sizes = [1, 24], strides = [1, 1]} : vector<1x32xf32> to vector<1x24xf32>
    %757 = arith.negf %756 : vector<1x24xf32>
    %758 = math.exp %757 : vector<1x24xf32>
    %cst_197 = arith.constant 1.000000e+00 : f32
    %759 = vector.broadcast %cst_197 : f32 to vector<1x24xf32>
    %760 = arith.addf %759, %758 : vector<1x24xf32>
    %761 = arith.divf %759, %760 : vector<1x24xf32>
    %762 = vector.extract_strided_slice %761 {offsets = [0, 0], sizes = [1, 8], strides = [1, 1]} : vector<1x24xf32> to vector<1x8xf32>
    %763 = vector.extract_strided_slice %761 {offsets = [0, 8], sizes = [1, 8], strides = [1, 1]} : vector<1x24xf32> to vector<1x8xf32>
    %764 = vector.extract_strided_slice %761 {offsets = [0, 16], sizes = [1, 8], strides = [1, 1]} : vector<1x24xf32> to vector<1x8xf32>
    %765 = vector.extract_strided_slice %755 {offsets = [0, 24], sizes = [1, 8], strides = [1, 1]} : vector<1x32xf32> to vector<1x8xf32>
    %766 = math.tanh %765 : vector<1x8xf32>
    %767 = arith.mulf %763, %750 : vector<1x8xf32>
    %768 = arith.mulf %762, %766 : vector<1x8xf32>
    %769 = arith.addf %767, %768 : vector<1x8xf32>
    %770 = math.tanh %769 : vector<1x8xf32>
    %771 = arith.mulf %764, %770 : vector<1x8xf32>
    %772 = vector.extract_strided_slice %692 {offsets = [4, 0], sizes = [1, 32], strides = [1, 1]} : vector<8x32xf32> to vector<1x32xf32>
    %cst_198 = arith.constant dense<0.000000e+00> : vector<1x32xf32>
    %773 = tpu.matmul %771, %693, %cst_198 {dimension_numbers = #tpu.dot_dimension_numbers<[1], [0], [0], [1], [0, 0, 1, 1], [], []>} : vector<1x8xf32>, vector<8x32xf32>, vector<1x32xf32> -> vector<1x32xf32>
    %774 = arith.addf %772, %773 : vector<1x32xf32>
    %775 = vector.extract_strided_slice %774 {offsets = [0, 0], sizes = [1, 24], strides = [1, 1]} : vector<1x32xf32> to vector<1x24xf32>
    %776 = arith.negf %775 : vector<1x24xf32>
    %777 = math.exp %776 : vector<1x24xf32>
    %cst_199 = arith.constant 1.000000e+00 : f32
    %778 = vector.broadcast %cst_199 : f32 to vector<1x24xf32>
    %779 = arith.addf %778, %777 : vector<1x24xf32>
    %780 = arith.divf %778, %779 : vector<1x24xf32>
    %781 = vector.extract_strided_slice %780 {offsets = [0, 0], sizes = [1, 8], strides = [1, 1]} : vector<1x24xf32> to vector<1x8xf32>
    %782 = vector.extract_strided_slice %780 {offsets = [0, 8], sizes = [1, 8], strides = [1, 1]} : vector<1x24xf32> to vector<1x8xf32>
    %783 = vector.extract_strided_slice %780 {offsets = [0, 16], sizes = [1, 8], strides = [1, 1]} : vector<1x24xf32> to vector<1x8xf32>
    %784 = vector.extract_strided_slice %774 {offsets = [0, 24], sizes = [1, 8], strides = [1, 1]} : vector<1x32xf32> to vector<1x8xf32>
    %785 = math.tanh %784 : vector<1x8xf32>
    %786 = arith.mulf %782, %769 : vector<1x8xf32>
    %787 = arith.mulf %781, %785 : vector<1x8xf32>
    %788 = arith.addf %786, %787 : vector<1x8xf32>
    %789 = math.tanh %788 : vector<1x8xf32>
    %790 = arith.mulf %783, %789 : vector<1x8xf32>
    %791 = vector.extract_strided_slice %692 {offsets = [5, 0], sizes = [1, 32], strides = [1, 1]} : vector<8x32xf32> to vector<1x32xf32>
    %cst_200 = arith.constant dense<0.000000e+00> : vector<1x32xf32>
    %792 = tpu.matmul %790, %693, %cst_200 {dimension_numbers = #tpu.dot_dimension_numbers<[1], [0], [0], [1], [0, 0, 1, 1], [], []>} : vector<1x8xf32>, vector<8x32xf32>, vector<1x32xf32> -> vector<1x32xf32>
    %793 = arith.addf %791, %792 : vector<1x32xf32>
    %794 = vector.extract_strided_slice %793 {offsets = [0, 0], sizes = [1, 24], strides = [1, 1]} : vector<1x32xf32> to vector<1x24xf32>
    %795 = arith.negf %794 : vector<1x24xf32>
    %796 = math.exp %795 : vector<1x24xf32>
    %cst_201 = arith.constant 1.000000e+00 : f32
    %797 = vector.broadcast %cst_201 : f32 to vector<1x24xf32>
    %798 = arith.addf %797, %796 : vector<1x24xf32>
    %799 = arith.divf %797, %798 : vector<1x24xf32>
    %800 = vector.extract_strided_slice %799 {offsets = [0, 0], sizes = [1, 8], strides = [1, 1]} : vector<1x24xf32> to vector<1x8xf32>
    %801 = vector.extract_strided_slice %799 {offsets = [0, 8], sizes = [1, 8], strides = [1, 1]} : vector<1x24xf32> to vector<1x8xf32>
    %802 = vector.extract_strided_slice %799 {offsets = [0, 16], sizes = [1, 8], strides = [1, 1]} : vector<1x24xf32> to vector<1x8xf32>
    %803 = vector.extract_strided_slice %793 {offsets = [0, 24], sizes = [1, 8], strides = [1, 1]} : vector<1x32xf32> to vector<1x8xf32>
    %804 = math.tanh %803 : vector<1x8xf32>
    %805 = arith.mulf %801, %788 : vector<1x8xf32>
    %806 = arith.mulf %800, %804 : vector<1x8xf32>
    %807 = arith.addf %805, %806 : vector<1x8xf32>
    %808 = math.tanh %807 : vector<1x8xf32>
    %809 = arith.mulf %802, %808 : vector<1x8xf32>
    %810 = vector.extract_strided_slice %692 {offsets = [6, 0], sizes = [1, 32], strides = [1, 1]} : vector<8x32xf32> to vector<1x32xf32>
    %cst_202 = arith.constant dense<0.000000e+00> : vector<1x32xf32>
    %811 = tpu.matmul %809, %693, %cst_202 {dimension_numbers = #tpu.dot_dimension_numbers<[1], [0], [0], [1], [0, 0, 1, 1], [], []>} : vector<1x8xf32>, vector<8x32xf32>, vector<1x32xf32> -> vector<1x32xf32>
    %812 = arith.addf %810, %811 : vector<1x32xf32>
    %813 = vector.extract_strided_slice %812 {offsets = [0, 0], sizes = [1, 24], strides = [1, 1]} : vector<1x32xf32> to vector<1x24xf32>
    %814 = arith.negf %813 : vector<1x24xf32>
    %815 = math.exp %814 : vector<1x24xf32>
    %cst_203 = arith.constant 1.000000e+00 : f32
    %816 = vector.broadcast %cst_203 : f32 to vector<1x24xf32>
    %817 = arith.addf %816, %815 : vector<1x24xf32>
    %818 = arith.divf %816, %817 : vector<1x24xf32>
    %819 = vector.extract_strided_slice %818 {offsets = [0, 0], sizes = [1, 8], strides = [1, 1]} : vector<1x24xf32> to vector<1x8xf32>
    %820 = vector.extract_strided_slice %818 {offsets = [0, 8], sizes = [1, 8], strides = [1, 1]} : vector<1x24xf32> to vector<1x8xf32>
    %821 = vector.extract_strided_slice %818 {offsets = [0, 16], sizes = [1, 8], strides = [1, 1]} : vector<1x24xf32> to vector<1x8xf32>
    %822 = vector.extract_strided_slice %812 {offsets = [0, 24], sizes = [1, 8], strides = [1, 1]} : vector<1x32xf32> to vector<1x8xf32>
    %823 = math.tanh %822 : vector<1x8xf32>
    %824 = arith.mulf %820, %807 : vector<1x8xf32>
    %825 = arith.mulf %819, %823 : vector<1x8xf32>
    %826 = arith.addf %824, %825 : vector<1x8xf32>
    %827 = math.tanh %826 : vector<1x8xf32>
    %828 = arith.mulf %821, %827 : vector<1x8xf32>
    %829 = vector.extract_strided_slice %692 {offsets = [7, 0], sizes = [1, 32], strides = [1, 1]} : vector<8x32xf32> to vector<1x32xf32>
    %cst_204 = arith.constant dense<0.000000e+00> : vector<1x32xf32>
    %830 = tpu.matmul %828, %693, %cst_204 {dimension_numbers = #tpu.dot_dimension_numbers<[1], [0], [0], [1], [0, 0, 1, 1], [], []>} : vector<1x8xf32>, vector<8x32xf32>, vector<1x32xf32> -> vector<1x32xf32>
    %831 = arith.addf %829, %830 : vector<1x32xf32>
    %832 = vector.extract_strided_slice %831 {offsets = [0, 0], sizes = [1, 24], strides = [1, 1]} : vector<1x32xf32> to vector<1x24xf32>
    %833 = arith.negf %832 : vector<1x24xf32>
    %834 = math.exp %833 : vector<1x24xf32>
    %cst_205 = arith.constant 1.000000e+00 : f32
    %835 = vector.broadcast %cst_205 : f32 to vector<1x24xf32>
    %836 = arith.addf %835, %834 : vector<1x24xf32>
    %837 = arith.divf %835, %836 : vector<1x24xf32>
    %838 = vector.extract_strided_slice %837 {offsets = [0, 0], sizes = [1, 8], strides = [1, 1]} : vector<1x24xf32> to vector<1x8xf32>
    %839 = vector.extract_strided_slice %837 {offsets = [0, 8], sizes = [1, 8], strides = [1, 1]} : vector<1x24xf32> to vector<1x8xf32>
    %840 = vector.extract_strided_slice %837 {offsets = [0, 16], sizes = [1, 8], strides = [1, 1]} : vector<1x24xf32> to vector<1x8xf32>
    %841 = vector.extract_strided_slice %831 {offsets = [0, 24], sizes = [1, 8], strides = [1, 1]} : vector<1x32xf32> to vector<1x8xf32>
    %842 = math.tanh %841 : vector<1x8xf32>
    %843 = arith.mulf %839, %826 : vector<1x8xf32>
    %844 = arith.mulf %838, %842 : vector<1x8xf32>
    %845 = arith.addf %843, %844 : vector<1x8xf32>
    %846 = math.tanh %845 : vector<1x8xf32>
    %847 = arith.mulf %840, %846 : vector<1x8xf32>
    %c0_206 = arith.constant 0 : index
    %c0_207 = arith.constant 0 : index
    %848 = vector.load %arg14[%c0_206, %c0_207] : memref<1x8xf32, #tpu.memory_space<vmem>>, vector<1x8xf32>
    tpu.vector_store %arg14[%c0_206, %c0_207], %847 {strides = array<i32>} : memref<1x8xf32, #tpu.memory_space<vmem>>, vector<1x8xf32>,
    return
  }
}

</mosaic_0001>

<llo_original>
// kernel: tpu_custom_call.1
$region0: #{tpu_custom_call.1}
  #allocation0 [shape = 'u32[]', space=smem, size = 0x4, offset = 0x4, fixed_abs, tag = 'smem constant byte address 0x4 - core index']
  #allocation1 [shape = 'u32[72,128]{1,0:T(1,128)}', space=vmem, size = 0x9000, scoped, tag = 'internal scratch']
  #allocation2 [shape = 'f32[8,256]{1,0:T(8,128)}', space=vmem, size = 0x2000, scoped, tag = 'scratch operand']
  #allocation3 [shape = 'f32[8,64]{1,0:T(8,128)}', space=vmem, size = 0x1000, scoped, tag = 'scratch operand']
  %s0 = inlined_call_operand.vmem [shape: f32[8,4], index: 0, kind: input, shape index: {}]
  %s1 = inlined_call_operand.vmem [shape: bf16[4,1024], index: 1, kind: input, shape index: {}]
  %s2 = inlined_call_operand.hbm [shape: bf16[256,1024], index: 2, kind: input, shape index: {}]
  %s3 = inlined_call_operand.vmem [shape: f32[1,1024], index: 3, kind: input, shape index: {}]
  %s4 = inlined_call_operand.vmem [shape: f32[1,256], index: 4, kind: input, shape index: {}]
  %s5 = inlined_call_operand.vmem [shape: f32[1,256], index: 5, kind: input, shape index: {}]
  %s6 = inlined_call_operand.hbm [shape: bf16[256,256], index: 6, kind: input, shape index: {}]
  %s7 = inlined_call_operand.vmem [shape: bf16[64,256], index: 7, kind: input, shape index: {}]
  %s8 = inlined_call_operand.vmem [shape: f32[1,256], index: 8, kind: input, shape index: {}]
  %s9 = inlined_call_operand.vmem [shape: f32[1,64], index: 9, kind: input, shape index: {}]
  %s10 = inlined_call_operand.vmem [shape: f32[1,64], index: 10, kind: input, shape index: {}]
  %s11 = inlined_call_operand.vmem [shape: f32[64,32], index: 11, kind: input, shape index: {}]
  %s12 = inlined_call_operand.vmem [shape: f32[8,32], index: 12, kind: input, shape index: {}]
  %s13 = inlined_call_operand.vmem [shape: f32[1,32], index: 13, kind: input, shape index: {}]
  %s14 = inlined_call_operand.hbm [shape: f32[1,8], index: 14, kind: output, shape index: {}]
  %s15 = sld [smem:[#allocation0]]
  $region74: #{tpu_custom_call.1} parent=0
    _
  %s17 = ssub.s32 1, %s15
  %s18 = scalar_select 0, %s17, %s15
  $region1: #{tpu_custom_call.1} parent=0
    #allocation4 [shape = 'u8[524288]{0}', space=vmem, size = 0x80000, scoped, tag = 'input window, operand 2, single buffered']
    #allocation5 [shape = 's32[1]{0}', space=sflag, size = 0x4, scoped, tag = 'scoped memory for tpu_custom_call.1']
    #allocation6 [shape = 's32[1]{0}', space=sflag, size = 0x4, scoped, tag = 'scoped memory for tpu_custom_call.1']
    #allocation7 [shape = 'u8[131072]{0}', space=vmem, size = 0x20000, scoped, tag = 'input window, operand 6, single buffered']
    #allocation8 [shape = 's32[1]{0}', space=sflag, size = 0x4, scoped, tag = 'scoped memory for tpu_custom_call.1']
    #allocation9 [shape = 'u8[512]{0}', space=vmem, size = 0x400, scoped, tag = 'output window, operand 0, single buffered']
    %19 = vsyncpa [#allocation5], 0
    %20 = vsyncpa [#allocation8], 0
    %21 = vsyncpa [#allocation6], 0
    // Predicated region
    $region2: #{tpu_custom_call.1} parent=1 // pred_check
      _
    $region3: #{tpu_custom_call.1} parent=1 // pred_check_branch
      %23 = sbr.rel (0) target = $region5
    $region4: #{tpu_custom_call.1} parent=1 // pred_region
      _
    $region5: #{tpu_custom_call.1} parent=1 // pred_fallthru
      _
    // Predicated region
    $region6: #{tpu_custom_call.1} parent=1 // pred_check
      _
    $region7: #{tpu_custom_call.1} parent=1 // pred_check_branch
      %25 = sbr.rel (0) target = $region9
    $region8: #{tpu_custom_call.1} parent=1 // pred_region
      _
    $region9: #{tpu_custom_call.1} parent=1 // pred_fallthru
      _
    // Predicated region
    $region10: #{tpu_custom_call.1} parent=1 // pred_check
      _
    $region11: #{tpu_custom_call.1} parent=1 // pred_check_branch
      %27 = sbr.rel (0) target = $region13
    $region12: #{tpu_custom_call.1} parent=1 // pred_region
      %29 = vsyncadd [#allocation5], 0
      %s30 = sshll.u32 %s2, 4
      %s31 = int_to_ptr.hbm [resolvable:$true] %s30
      %s32 = sshll.u32 [#allocation4], 4
      %s33 = int_to_ptr.vmem [resolvable:$true] %s32
      %38 = dma.hbm_to_vmem [thread:$0]  %s31, 16384, %s33, [#allocation5], 512, 512, 32
    $region13: #{tpu_custom_call.1} parent=1 // pred_fallthru
      _
    // Predicated region
    $region14: #{tpu_custom_call.1} parent=1 // pred_check
      _
    $region15: #{tpu_custom_call.1} parent=1 // pred_check_branch
      %40 = sbr.rel (0) target = $region17
    $region16: #{tpu_custom_call.1} parent=1 // pred_region
      _
    $region17: #{tpu_custom_call.1} parent=1 // pred_fallthru
      _
    // Predicated region
    $region18: #{tpu_custom_call.1} parent=1 // pred_check
      _
    $region19: #{tpu_custom_call.1} parent=1 // pred_check_branch
      %42 = sbr.rel (0) target = $region21
    $region20: #{tpu_custom_call.1} parent=1 // pred_region
      _
    $region21: #{tpu_custom_call.1} parent=1 // pred_fallthru
      _
    // Predicated region
    $region22: #{tpu_custom_call.1} parent=1 // pred_check
      _
    $region23: #{tpu_custom_call.1} parent=1 // pred_check_branch
      %44 = sbr.rel (0) target = $region25
    $region24: #{tpu_custom_call.1} parent=1 // pred_region
      _
    $region25: #{tpu_custom_call.1} parent=1 // pred_fallthru
      _
    // Predicated region
    $region26: #{tpu_custom_call.1} parent=1 // pred_check
      _
    $region27: #{tpu_custom_call.1} parent=1 // pred_check_branch
      %46 = sbr.rel (0) target = $region29
    $region28: #{tpu_custom_call.1} parent=1 // pred_region
      %48 = vsyncadd [#allocation8], 0
      %s49 = sshll.u32 %s6, 4
      %s50 = int_to_ptr.hbm [resolvable:$true] %s49
      %s51 = sshll.u32 [#allocation7], 4
      %s52 = int_to_ptr.vmem [resolvable:$true] %s51
      %57 = dma.hbm_to_vmem [thread:$0]  %s50, 4096, %s52, [#allocation8], 128, 128, 8
    $region29: #{tpu_custom_call.1} parent=1 // pred_fallthru
      _
    // Predicated region
    $region30: #{tpu_custom_call.1} parent=1 // pred_check
      _
    $region31: #{tpu_custom_call.1} parent=1 // pred_check_branch
      %59 = sbr.rel (0) target = $region33
    $region32: #{tpu_custom_call.1} parent=1 // pred_region
      _
    $region33: #{tpu_custom_call.1} parent=1 // pred_fallthru
      _
    // Predicated region
    $region34: #{tpu_custom_call.1} parent=1 // pred_check
      _
    $region35: #{tpu_custom_call.1} parent=1 // pred_check_branch
      %61 = sbr.rel (0) target = $region37
    $region36: #{tpu_custom_call.1} parent=1 // pred_region
      _
    $region37: #{tpu_custom_call.1} parent=1 // pred_fallthru
      _
    // Predicated region
    $region38: #{tpu_custom_call.1} parent=1 // pred_check
      _
    $region39: #{tpu_custom_call.1} parent=1 // pred_check_branch
      %63 = sbr.rel (0) target = $region41
    $region40: #{tpu_custom_call.1} parent=1 // pred_region
      _
    $region41: #{tpu_custom_call.1} parent=1 // pred_fallthru
      _
    // Predicated region
    $region42: #{tpu_custom_call.1} parent=1 // pred_check
      _
    $region43: #{tpu_custom_call.1} parent=1 // pred_check_branch
      %65 = sbr.rel (0) target = $region45
    $region44: #{tpu_custom_call.1} parent=1 // pred_region
      _
    $region45: #{tpu_custom_call.1} parent=1 // pred_fallthru
      _
    // Predicated region
    $region46: #{tpu_custom_call.1} parent=1 // pred_check
      _
    $region47: #{tpu_custom_call.1} parent=1 // pred_check_branch
      %67 = sbr.rel (0) target = $region49
    $region48: #{tpu_custom_call.1} parent=1 // pred_region
      _
    $region49: #{tpu_custom_call.1} parent=1 // pred_fallthru
      _
    // Predicated region
    $region50: #{tpu_custom_call.1} parent=1 // pred_check
      _
    $region51: #{tpu_custom_call.1} parent=1 // pred_check_branch
      %69 = sbr.rel (0) target = $region53
    $region52: #{tpu_custom_call.1} parent=1 // pred_region
      _
    $region53: #{tpu_custom_call.1} parent=1 // pred_fallthru
      _
    // Predicated region
    $region54: #{tpu_custom_call.1} parent=1 // pred_check
      _
    $region55: #{tpu_custom_call.1} parent=1 // pred_check_branch
      %71 = sbr.rel (0) target = $region57
    $region56: #{tpu_custom_call.1} parent=1 // pred_region
      _
    $region57: #{tpu_custom_call.1} parent=1 // pred_fallthru
      _
    // Predicated region
    $region58: #{tpu_custom_call.1} parent=1 // pred_check
      _
    $region59: #{tpu_custom_call.1} parent=1 // pred_check_branch
      %73 = sbr.rel (0) target = $region61
    $region60: #{tpu_custom_call.1} parent=1 // pred_region
      %75 = dma.done [#allocation5], 16384
    $region61: #{tpu_custom_call.1} parent=1 // pred_fallthru
      _
    // Predicated region
    $region62: #{tpu_custom_call.1} parent=1 // pred_check
      _
    $region63: #{tpu_custom_call.1} parent=1 // pred_check_branch
      %77 = sbr.rel (0) target = $region65
    $region64: #{tpu_custom_call.1} parent=1 // pred_region
      %79 = dma.done [#allocation8], 4096
    $region65: #{tpu_custom_call.1} parent=1 // pred_fallthru
      _
    %v81 = vld [vmem:[%s0] sm:$0xff]
    %v82 = vpack.c.bf16 %v81, %v81
    %v83 = vld [vmem:[%s1] sm:$0xff]
    %v84 = vld [vmem:[%s1 + $0x8] sm:$0xff]
    %v85 = vld [vmem:[%s3] sm:$0xff]
    %v87 = vperm.slane %v85, 0
    %v88 = vperm.slane %v85, 1
    %v89 = vperm.slane %v85, 2
    %v90 = vperm.slane %v85, 3
    %v91 = vperm.slane %v85, 4
    %v92 = vperm.slane %v85, 5
    %v93 = vperm.slane %v85, 6
    %v94 = vperm.slane %v85, 7
    %104 = vst [vmem:[#allocation1] ss:$4 sm:$0xff] %v83
    %s106 = scalar_lea.vmem [#allocation1], 32
    %107 = vst [vmem:[%s106] ss:$4 sm:$0xff] %v84
    %v108 = vld.sshfl [vmem:[#allocation1] sm:$0xff pattern:$0x73625140]
    %v109 = vld.sshfl [vmem:[#allocation1 + $0x8] sm:$0xff pattern:$0x73625140]
    %v110 = vld.sshfl [vmem:[#allocation1 + $0x10] sm:$0xff pattern:$0x73625140]
    %v111 = vld.sshfl [vmem:[#allocation1 + $0x18] sm:$0xff pattern:$0x73625140]
    %v112 = vld.sshfl [vmem:[#allocation1 + $0x20] sm:$0xff pattern:$0x73625140]
    %v113 = vld.sshfl [vmem:[#allocation1 + $0x28] sm:$0xff pattern:$0x73625140]
    %v114 = vld.sshfl [vmem:[#allocation1 + $0x30] sm:$0xff pattern:$0x73625140]
    %v115 = vld.sshfl [vmem:[#allocation1 + $0x38] sm:$0xff pattern:$0x73625140]
    %vm116 = vcmask 31744
    %v118 = vsel %vm116, %v82, 0
    %vm120 = vcmask 1041408
    %v121 = vsel %vm120, %v108, 0
    %v123 = vsel %vm120, %v109, 0
    %v125 = vsel %vm120, %v110, 0
    %v127 = vsel %vm120, %v111, 0
    %v129 = vsel %vm120, %v112, 0
    %v131 = vsel %vm120, %v113, 0
    %v133 = vsel %vm120, %v114, 0
    %v135 = vsel %vm120, %v115, 0
    %137 = vmatpush.bf16.msra.mxu0 0
    %138 = vmatpush.bf16.msra.mxu0 0
    %139 = vmatpush.bf16.msra.mxu0 0
    %140 = vmatpush.bf16.msra.mxu0 0
    %141 = vmatpush.bf16.msra.mxu0 0
    %142 = vmatpush.bf16.msra.mxu0 0
    %143 = vmatpush.bf16.msra.mxu0 0
    %144 = vmatpush.bf16.msra.mxu0 %v121
    %145 = vmatmul.bf16.gmra.mxu0 %v118
    %v146 = vpop.f32.mrf.mxu0
    %v147 = vadd.f32 %v87, %v146
    %v148 = vpop.f32.mrf.mxu0
    %149 = vdwg.mxu0
    %150 = vmatpush.bf16.msra.mxu0 0
    %151 = vmatpush.bf16.msra.mxu0 0
    %152 = vmatpush.bf16.msra.mxu0 0
    %153 = vmatpush.bf16.msra.mxu0 0
    %154 = vmatpush.bf16.msra.mxu0 0
    %155 = vmatpush.bf16.msra.mxu0 0
    %156 = vmatpush.bf16.msra.mxu0 0
    %157 = vmatpush.bf16.msra.mxu0 %v123
    %158 = vmatmul.bf16.gmra.mxu0 %v118
    %v159 = vpop.f32.mrf.mxu0
    %v160 = vadd.f32 %v88, %v159
    %v161 = vpop.f32.mrf.mxu0
    %162 = vdwg.mxu0
    %163 = vmatpush.bf16.msra.mxu0 0
    %164 = vmatpush.bf16.msra.mxu0 0
    %165 = vmatpush.bf16.msra.mxu0 0
    %166 = vmatpush.bf16.msra.mxu0 0
    %167 = vmatpush.bf16.msra.mxu0 0
    %168 = vmatpush.bf16.msra.mxu0 0
    %169 = vmatpush.bf16.msra.mxu0 0
    %170 = vmatpush.bf16.msra.mxu0 %v125
    %171 = vmatmul.bf16.gmra.mxu0 %v118
    %v172 = vpop.f32.mrf.mxu0
    %v173 = vadd.f32 %v89, %v172
    %v174 = vpop.f32.mrf.mxu0
    %175 = vdwg.mxu0
    %176 = vmatpush.bf16.msra.mxu0 0
    %177 = vmatpush.bf16.msra.mxu0 0
    %178 = vmatpush.bf16.msra.mxu0 0
    %179 = vmatpush.bf16.msra.mxu0 0
    %180 = vmatpush.bf16.msra.mxu0 0
    %181 = vmatpush.bf16.msra.mxu0 0
    %182 = vmatpush.bf16.msra.mxu0 0
    %183 = vmatpush.bf16.msra.mxu0 %v127
    %184 = vmatmul.bf16.gmra.mxu0 %v118
    %v185 = vpop.f32.mrf.mxu0
    %v186 = vadd.f32 %v90, %v185
    %v187 = vpop.f32.mrf.mxu0
    %188 = vdwg.mxu0
    %189 = vmatpush.bf16.msra.mxu0 0
    %190 = vmatpush.bf16.msra.mxu0 0
    %191 = vmatpush.bf16.msra.mxu0 0
    %192 = vmatpush.bf16.msra.mxu0 0
    %193 = vmatpush.bf16.msra.mxu0 0
    %194 = vmatpush.bf16.msra.mxu0 0
    %195 = vmatpush.bf16.msra.mxu0 0
    %196 = vmatpush.bf16.msra.mxu0 %v129
    %197 = vmatmul.bf16.gmra.mxu0 %v118
    %v198 = vpop.f32.mrf.mxu0
    %v199 = vadd.f32 %v91, %v198
    %v200 = vpop.f32.mrf.mxu0
    %201 = vdwg.mxu0
    %202 = vmatpush.bf16.msra.mxu0 0
    %203 = vmatpush.bf16.msra.mxu0 0
    %204 = vmatpush.bf16.msra.mxu0 0
    %205 = vmatpush.bf16.msra.mxu0 0
    %206 = vmatpush.bf16.msra.mxu0 0
    %207 = vmatpush.bf16.msra.mxu0 0
    %208 = vmatpush.bf16.msra.mxu0 0
    %209 = vmatpush.bf16.msra.mxu0 %v131
    %210 = vmatmul.bf16.gmra.mxu0 %v118
    %v211 = vpop.f32.mrf.mxu0
    %v212 = vadd.f32 %v92, %v211
    %v213 = vpop.f32.mrf.mxu0
    %214 = vdwg.mxu0
    %215 = vmatpush.bf16.msra.mxu0 0
    %216 = vmatpush.bf16.msra.mxu0 0
    %217 = vmatpush.bf16.msra.mxu0 0
    %218 = vmatpush.bf16.msra.mxu0 0
    %219 = vmatpush.bf16.msra.mxu0 0
    %220 = vmatpush.bf16.msra.mxu0 0
    %221 = vmatpush.bf16.msra.mxu0 0
    %222 = vmatpush.bf16.msra.mxu0 %v133
    %223 = vmatmul.bf16.gmra.mxu0 %v118
    %v224 = vpop.f32.mrf.mxu0
    %v225 = vadd.f32 %v93, %v224
    %v226 = vpop.f32.mrf.mxu0
    %227 = vdwg.mxu0
    %228 = vmatpush.bf16.msra.mxu0 0
    %229 = vmatpush.bf16.msra.mxu0 0
    %230 = vmatpush.bf16.msra.mxu0 0
    %231 = vmatpush.bf16.msra.mxu0 0
    %232 = vmatpush.bf16.msra.mxu0 0
    %233 = vmatpush.bf16.msra.mxu0 0
    %234 = vmatpush.bf16.msra.mxu0 0
    %235 = vmatpush.bf16.msra.mxu0 %v135
    %236 = vmatmul.bf16.gmra.mxu0 %v118
    %v237 = vpop.f32.mrf.mxu0
    %v238 = vadd.f32 %v94, %v237
    %v239 = vpop.f32.mrf.mxu0
    %240 = vdwg.mxu0
    %v241 = vld [vmem:[%s4] sm:$0x3]
    %v242 = vld [vmem:[%s5] sm:$0x3]
    %v243 = vld [vmem:[#allocation4] sm:$0xff]
    %v244 = vld [vmem:[#allocation4 + $0x8] sm:$0xff]
    %v245 = vld [vmem:[#allocation4 + $0x10] sm:$0xff]
    %v246 = vld [vmem:[#allocation4 + $0x18] sm:$0xff]
    %v247 = vld [vmem:[#allocation4 + $0x20] sm:$0xff]
    %v248 = vld [vmem:[#allocation4 + $0x28] sm:$0xff]
    %v249 = vld [vmem:[#allocation4 + $0x30] sm:$0xff]
    %v250 = vld [vmem:[#allocation4 + $0x38] sm:$0xff]
    %v251 = vld [vmem:[#allocation4 + $0x40] sm:$0xff]
    %v252 = vld [vmem:[#allocation4 + $0x48] sm:$0xff]
    %v253 = vld [vmem:[#allocation4 + $0x50] sm:$0xff]
    %v254 = vld [vmem:[#allocation4 + $0x58] sm:$0xff]
    %v255 = vld [vmem:[#allocation4 + $0x60] sm:$0xff]
    %v256 = vld [vmem:[#allocation4 + $0x68] sm:$0xff]
    %v257 = vld [vmem:[#allocation4 + $0x70] sm:$0xff]
    %v258 = vld [vmem:[#allocation4 + $0x78] sm:$0xff]
    %v259 = vld [vmem:[#allocation4 + $0x80] sm:$0xff]
    %v260 = vld [vmem:[#allocation4 + $0x88] sm:$0xff]
    %v261 = vld [vmem:[#allocation4 + $0x90] sm:$0xff]
    %v262 = vld [vmem:[#allocation4 + $0x98] sm:$0xff]
    %v263 = vld [vmem:[#allocation4 + $0xa0] sm:$0xff]
    %v264 = vld [vmem:[#allocation4 + $0xa8] sm:$0xff]
    %v265 = vld [vmem:[#allocation4 + $0xb0] sm:$0xff]
    %v266 = vld [vmem:[#allocation4 + $0xb8] sm:$0xff]
    %v267 = vld [vmem:[#allocation4 + $0xc0] sm:$0xff]
    %v268 = vld [vmem:[#allocation4 + $0xc8] sm:$0xff]
    %v269 = vld [vmem:[#allocation4 + $0xd0] sm:$0xff]
    %v270 = vld [vmem:[#allocation4 + $0xd8] sm:$0xff]
    %v271 = vld [vmem:[#allocation4 + $0xe0] sm:$0xff]
    %v272 = vld [vmem:[#allocation4 + $0xe8] sm:$0xff]
    %v273 = vld [vmem:[#allocation4 + $0xf0] sm:$0xff]
    %v274 = vld [vmem:[#allocation4 + $0xf8] sm:$0xff]
    %v275 = vld [vmem:[#allocation4 + $0x100] sm:$0xff]
    %v276 = vld [vmem:[#allocation4 + $0x108] sm:$0xff]
    %v277 = vld [vmem:[#allocation4 + $0x110] sm:$0xff]
    %v278 = vld [vmem:[#allocation4 + $0x118] sm:$0xff]
    %v279 = vld [vmem:[#allocation4 + $0x120] sm:$0xff]
    %v280 = vld [vmem:[#allocation4 + $0x128] sm:$0xff]
    %v281 = vld [vmem:[#allocation4 + $0x130] sm:$0xff]
    %v282 = vld [vmem:[#allocation4 + $0x138] sm:$0xff]
    %v283 = vld [vmem:[#allocation4 + $0x140] sm:$0xff]
    %v284 = vld [vmem:[#allocation4 + $0x148] sm:$0xff]
    %v285 = vld [vmem:[#allocation4 + $0x150] sm:$0xff]
    %v286 = vld [vmem:[#allocation4 + $0x158] sm:$0xff]
    %v287 = vld [vmem:[#allocation4 + $0x160] sm:$0xff]
    %v288 = vld [vmem:[#allocation4 + $0x168] sm:$0xff]
    %v289 = vld [vmem:[#allocation4 + $0x170] sm:$0xff]
    %v290 = vld [vmem:[#allocation4 + $0x178] sm:$0xff]
    %v291 = vld [vmem:[#allocation4 + $0x180] sm:$0xff]
    %v292 = vld [vmem:[#allocation4 + $0x188] sm:$0xff]
    %v293 = vld [vmem:[#allocation4 + $0x190] sm:$0xff]
    %v294 = vld [vmem:[#allocation4 + $0x198] sm:$0xff]
    %v295 = vld [vmem:[#allocation4 + $0x1a0] sm:$0xff]
    %v296 = vld [vmem:[#allocation4 + $0x1a8] sm:$0xff]
    %v297 = vld [vmem:[#allocation4 + $0x1b0] sm:$0xff]
    %v298 = vld [vmem:[#allocation4 + $0x1b8] sm:$0xff]
    %v299 = vld [vmem:[#allocation4 + $0x1c0] sm:$0xff]
    %v300 = vld [vmem:[#allocation4 + $0x1c8] sm:$0xff]
    %v301 = vld [vmem:[#allocation4 + $0x1d0] sm:$0xff]
    %v302 = vld [vmem:[#allocation4 + $0x1d8] sm:$0xff]
    %v303 = vld [vmem:[#allocation4 + $0x1e0] sm:$0xff]
    %v304 = vld [vmem:[#allocation4 + $0x1e8] sm:$0xff]
    %v305 = vld [vmem:[#allocation4 + $0x1f0] sm:$0xff]
    %v306 = vld [vmem:[#allocation4 + $0x1f8] sm:$0xff]
    %v307 = vld [vmem:[#allocation4 + $0x200] sm:$0xff]
    %v308 = vld [vmem:[#allocation4 + $0x208] sm:$0xff]
    %v309 = vld [vmem:[#allocation4 + $0x210] sm:$0xff]
    %v310 = vld [vmem:[#allocation4 + $0x218] sm:$0xff]
    %v311 = vld [vmem:[#allocation4 + $0x220] sm:$0xff]
    %v312 = vld [vmem:[#allocation4 + $0x228] sm:$0xff]
    %v313 = vld [vmem:[#allocation4 + $0x230] sm:$0xff]
    %v314 = vld [vmem:[#allocation4 + $0x238] sm:$0xff]
    %v315 = vld [vmem:[#allocation4 + $0x240] sm:$0xff]
    %v316 = vld [vmem:[#allocation4 + $0x248] sm:$0xff]
    %v317 = vld [vmem:[#allocation4 + $0x250] sm:$0xff]
    %v318 = vld [vmem:[#allocation4 + $0x258] sm:$0xff]
    %v319 = vld [vmem:[#allocation4 + $0x260] sm:$0xff]
    %v320 = vld [vmem:[#allocation4 + $0x268] sm:$0xff]
    %v321 = vld [vmem:[#allocation4 + $0x270] sm:$0xff]
    %v322 = vld [vmem:[#allocation4 + $0x278] sm:$0xff]
    %v323 = vld [vmem:[#allocation4 + $0x280] sm:$0xff]
    %v324 = vld [vmem:[#allocation4 + $0x288] sm:$0xff]
    %v325 = vld [vmem:[#allocation4 + $0x290] sm:$0xff]
    %v326 = vld [vmem:[#allocation4 + $0x298] sm:$0xff]
    %v327 = vld [vmem:[#allocation4 + $0x2a0] sm:$0xff]
    %v328 = vld [vmem:[#allocation4 + $0x2a8] sm:$0xff]
    %v329 = vld [vmem:[#allocation4 + $0x2b0] sm:$0xff]
    %v330 = vld [vmem:[#allocation4 + $0x2b8] sm:$0xff]
    %v331 = vld [vmem:[#allocation4 + $0x2c0] sm:$0xff]
    %v332 = vld [vmem:[#allocation4 + $0x2c8] sm:$0xff]
    %v333 = vld [vmem:[#allocation4 + $0x2d0] sm:$0xff]
    %v334 = vld [vmem:[#allocation4 + $0x2d8] sm:$0xff]
    %v335 = vld [vmem:[#allocation4 + $0x2e0] sm:$0xff]
    %v336 = vld [vmem:[#allocation4 + $0x2e8] sm:$0xff]
    %v337 = vld [vmem:[#allocation4 + $0x2f0] sm:$0xff]
    %v338 = vld [vmem:[#allocation4 + $0x2f8] sm:$0xff]
    %v339 = vld [vmem:[#allocation4 + $0x300] sm:$0xff]
    %v340 = vld [vmem:[#allocation4 + $0x308] sm:$0xff]
    %v341 = vld [vmem:[#allocation4 + $0x310] sm:$0xff]
    %v342 = vld [vmem:[#allocation4 + $0x318] sm:$0xff]
    %v343 = vld [vmem:[#allocation4 + $0x320] sm:$0xff]
    %v344 = vld [vmem:[#allocation4 + $0x328] sm:$0xff]
    %v345 = vld [vmem:[#allocation4 + $0x330] sm:$0xff]
    %v346 = vld [vmem:[#allocation4 + $0x338] sm:$0xff]
    %v347 = vld [vmem:[#allocation4 + $0x340] sm:$0xff]
    %v348 = vld [vmem:[#allocation4 + $0x348] sm:$0xff]
    %v349 = vld [vmem:[#allocation4 + $0x350] sm:$0xff]
    %v350 = vld [vmem:[#allocation4 + $0x358] sm:$0xff]
    %v351 = vld [vmem:[#allocation4 + $0x360] sm:$0xff]
    %v352 = vld [vmem:[#allocation4 + $0x368] sm:$0xff]
    %v353 = vld [vmem:[#allocation4 + $0x370] sm:$0xff]
    %v354 = vld [vmem:[#allocation4 + $0x378] sm:$0xff]
    %v355 = vld [vmem:[#allocation4 + $0x380] sm:$0xff]
    %v356 = vld [vmem:[#allocation4 + $0x388] sm:$0xff]
    %v357 = vld [vmem:[#allocation4 + $0x390] sm:$0xff]
    %v358 = vld [vmem:[#allocation4 + $0x398] sm:$0xff]
    %v359 = vld [vmem:[#allocation4 + $0x3a0] sm:$0xff]
    %v360 = vld [vmem:[#allocation4 + $0x3a8] sm:$0xff]
    %v361 = vld [vmem:[#allocation4 + $0x3b0] sm:$0xff]
    %v362 = vld [vmem:[#allocation4 + $0x3b8] sm:$0xff]
    %v363 = vld [vmem:[#allocation4 + $0x3c0] sm:$0xff]
    %v364 = vld [vmem:[#allocation4 + $0x3c8] sm:$0xff]
    %v365 = vld [vmem:[#allocation4 + $0x3d0] sm:$0xff]
    %v366 = vld [vmem:[#allocation4 + $0x3d8] sm:$0xff]
    %v367 = vld [vmem:[#allocation4 + $0x3e0] sm:$0xff]
    %v368 = vld [vmem:[#allocation4 + $0x3e8] sm:$0xff]
    %v369 = vld [vmem:[#allocation4 + $0x3f0] sm:$0xff]
    %v370 = vld [vmem:[#allocation4 + $0x3f8] sm:$0xff]
    %v499 = vunpack.c.l.b16 %v243
    %v500 = vunpack.c.h.b16 %v243
    %v501 = vunpack.c.l.b16 %v244
    %v502 = vunpack.c.h.b16 %v244
    %v503 = vunpack.c.l.b16 %v245
    %v504 = vunpack.c.h.b16 %v245
    %v505 = vunpack.c.l.b16 %v246
    %v506 = vunpack.c.h.b16 %v246
    %v507 = vunpack.c.l.b16 %v247
    %v508 = vunpack.c.h.b16 %v247
    %v509 = vunpack.c.l.b16 %v248
    %v510 = vunpack.c.h.b16 %v248
    %v511 = vunpack.c.l.b16 %v249
    %v512 = vunpack.c.h.b16 %v249
    %v513 = vunpack.c.l.b16 %v250
    %v514 = vunpack.c.h.b16 %v250
    %v515 = vunpack.c.l.b16 %v251
    %v516 = vunpack.c.h.b16 %v251
    %v517 = vunpack.c.l.b16 %v252
    %v518 = vunpack.c.h.b16 %v252
    %v519 = vunpack.c.l.b16 %v253
    %v520 = vunpack.c.h.b16 %v253
    %v521 = vunpack.c.l.b16 %v254
    %v522 = vunpack.c.h.b16 %v254
    %v523 = vunpack.c.l.b16 %v255
    %v524 = vunpack.c.h.b16 %v255
    %v525 = vunpack.c.l.b16 %v256
    %v526 = vunpack.c.h.b16 %v256
    %v527 = vunpack.c.l.b16 %v257
    %v528 = vunpack.c.h.b16 %v257
    %v529 = vunpack.c.l.b16 %v258
    %v530 = vunpack.c.h.b16 %v258
    %v531 = vunpack.c.l.b16 %v259
    %v532 = vunpack.c.h.b16 %v259
    %v533 = vunpack.c.l.b16 %v260
    %v534 = vunpack.c.h.b16 %v260
    %v535 = vunpack.c.l.b16 %v261
    %v536 = vunpack.c.h.b16 %v261
    %v537 = vunpack.c.l.b16 %v262
    %v538 = vunpack.c.h.b16 %v262
    %v539 = vunpack.c.l.b16 %v263
    %v540 = vunpack.c.h.b16 %v263
    %v541 = vunpack.c.l.b16 %v264
    %v542 = vunpack.c.h.b16 %v264
    %v543 = vunpack.c.l.b16 %v265
    %v544 = vunpack.c.h.b16 %v265
    %v545 = vunpack.c.l.b16 %v266
    %v546 = vunpack.c.h.b16 %v266
    %v547 = vunpack.c.l.b16 %v267
    %v548 = vunpack.c.h.b16 %v267
    %v549 = vunpack.c.l.b16 %v268
    %v550 = vunpack.c.h.b16 %v268
    %v551 = vunpack.c.l.b16 %v269
    %v552 = vunpack.c.h.b16 %v269
    %v553 = vunpack.c.l.b16 %v270
    %v554 = vunpack.c.h.b16 %v270
    %v555 = vunpack.c.l.b16 %v271
    %v556 = vunpack.c.h.b16 %v271
    %v557 = vunpack.c.l.b16 %v272
    %v558 = vunpack.c.h.b16 %v272
    %v559 = vunpack.c.l.b16 %v273
    %v560 = vunpack.c.h.b16 %v273
    %v561 = vunpack.c.l.b16 %v274
    %v562 = vunpack.c.h.b16 %v274
    %v563 = vunpack.c.l.b16 %v275
    %v564 = vunpack.c.h.b16 %v275
    %v565 = vunpack.c.l.b16 %v276
    %v566 = vunpack.c.h.b16 %v276
    %v567 = vunpack.c.l.b16 %v277
    %v568 = vunpack.c.h.b16 %v277
    %v569 = vunpack.c.l.b16 %v278
    %v570 = vunpack.c.h.b16 %v278
    %v571 = vunpack.c.l.b16 %v279
    %v572 = vunpack.c.h.b16 %v279
    %v573 = vunpack.c.l.b16 %v280
    %v574 = vunpack.c.h.b16 %v280
    %v575 = vunpack.c.l.b16 %v281
    %v576 = vunpack.c.h.b16 %v281
    %v577 = vunpack.c.l.b16 %v282
    %v578 = vunpack.c.h.b16 %v282
    %v579 = vunpack.c.l.b16 %v283
    %v580 = vunpack.c.h.b16 %v283
    %v581 = vunpack.c.l.b16 %v284
    %v582 = vunpack.c.h.b16 %v284
    %v583 = vunpack.c.l.b16 %v285
    %v584 = vunpack.c.h.b16 %v285
    %v585 = vunpack.c.l.b16 %v286
    %v586 = vunpack.c.h.b16 %v286
    %v587 = vunpack.c.l.b16 %v287
    %v588 = vunpack.c.h.b16 %v287
    %v589 = vunpack.c.l.b16 %v288
    %v590 = vunpack.c.h.b16 %v288
    %v591 = vunpack.c.l.b16 %v289
    %v592 = vunpack.c.h.b16 %v289
    %v593 = vunpack.c.l.b16 %v290
    %v594 = vunpack.c.h.b16 %v290
    %v595 = vunpack.c.l.b16 %v291
    %v596 = vunpack.c.h.b16 %v291
    %v597 = vunpack.c.l.b16 %v292
    %v598 = vunpack.c.h.b16 %v292
    %v599 = vunpack.c.l.b16 %v293
    %v600 = vunpack.c.h.b16 %v293
    %v601 = vunpack.c.l.b16 %v294
    %v602 = vunpack.c.h.b16 %v294
    %v603 = vunpack.c.l.b16 %v295
    %v604 = vunpack.c.h.b16 %v295
    %v605 = vunpack.c.l.b16 %v296
    %v606 = vunpack.c.h.b16 %v296
    %v607 = vunpack.c.l.b16 %v297
    %v608 = vunpack.c.h.b16 %v297
    %v609 = vunpack.c.l.b16 %v298
    %v610 = vunpack.c.h.b16 %v298
    %v611 = vunpack.c.l.b16 %v299
    %v612 = vunpack.c.h.b16 %v299
    %v613 = vunpack.c.l.b16 %v300
    %v614 = vunpack.c.h.b16 %v300
    %v615 = vunpack.c.l.b16 %v301
    %v616 = vunpack.c.h.b16 %v301
    %v617 = vunpack.c.l.b16 %v302
    %v618 = vunpack.c.h.b16 %v302
    %v619 = vunpack.c.l.b16 %v303
    %v620 = vunpack.c.h.b16 %v303
    %v621 = vunpack.c.l.b16 %v304
    %v622 = vunpack.c.h.b16 %v304
    %v623 = vunpack.c.l.b16 %v305
    %v624 = vunpack.c.h.b16 %v305
    %v625 = vunpack.c.l.b16 %v306
    %v626 = vunpack.c.h.b16 %v306
    %v627 = vunpack.c.l.b16 %v307
    %v628 = vunpack.c.h.b16 %v307
    %v629 = vunpack.c.l.b16 %v308
    %v630 = vunpack.c.h.b16 %v308
    %v631 = vunpack.c.l.b16 %v309
    %v632 = vunpack.c.h.b16 %v309
    %v633 = vunpack.c.l.b16 %v310
    %v634 = vunpack.c.h.b16 %v310
    %v635 = vunpack.c.l.b16 %v311
    %v636 = vunpack.c.h.b16 %v311
    %v637 = vunpack.c.l.b16 %v312
    %v638 = vunpack.c.h.b16 %v312
    %v639 = vunpack.c.l.b16 %v313
    %v640 = vunpack.c.h.b16 %v313
    %v641 = vunpack.c.l.b16 %v314
    %v642 = vunpack.c.h.b16 %v314
    %v643 = vunpack.c.l.b16 %v315
    %v644 = vunpack.c.h.b16 %v315
    %v645 = vunpack.c.l.b16 %v316
    %v646 = vunpack.c.h.b16 %v316
    %v647 = vunpack.c.l.b16 %v317
    %v648 = vunpack.c.h.b16 %v317
    %v649 = vunpack.c.l.b16 %v318
    %v650 = vunpack.c.h.b16 %v318
    %v651 = vunpack.c.l.b16 %v319
    %v652 = vunpack.c.h.b16 %v319
    %v653 = vunpack.c.l.b16 %v320
    %v654 = vunpack.c.h.b16 %v320
    %v655 = vunpack.c.l.b16 %v321
    %v656 = vunpack.c.h.b16 %v321
    %v657 = vunpack.c.l.b16 %v322
    %v658 = vunpack.c.h.b16 %v322
    %v659 = vunpack.c.l.b16 %v323
    %v660 = vunpack.c.h.b16 %v323
    %v661 = vunpack.c.l.b16 %v324
    %v662 = vunpack.c.h.b16 %v324
    %v663 = vunpack.c.l.b16 %v325
    %v664 = vunpack.c.h.b16 %v325
    %v665 = vunpack.c.l.b16 %v326
    %v666 = vunpack.c.h.b16 %v326
    %v667 = vunpack.c.l.b16 %v327
    %v668 = vunpack.c.h.b16 %v327
    %v669 = vunpack.c.l.b16 %v328
    %v670 = vunpack.c.h.b16 %v328
    %v671 = vunpack.c.l.b16 %v329
    %v672 = vunpack.c.h.b16 %v329
    %v673 = vunpack.c.l.b16 %v330
    %v674 = vunpack.c.h.b16 %v330
    %v675 = vunpack.c.l.b16 %v331
    %v676 = vunpack.c.h.b16 %v331
    %v677 = vunpack.c.l.b16 %v332
    %v678 = vunpack.c.h.b16 %v332
    %v679 = vunpack.c.l.b16 %v333
    %v680 = vunpack.c.h.b16 %v333
    %v681 = vunpack.c.l.b16 %v334
    %v682 = vunpack.c.h.b16 %v334
    %v683 = vunpack.c.l.b16 %v335
    %v684 = vunpack.c.h.b16 %v335
    %v685 = vunpack.c.l.b16 %v336
    %v686 = vunpack.c.h.b16 %v336
    %v687 = vunpack.c.l.b16 %v337
    %v688 = vunpack.c.h.b16 %v337
    %v689 = vunpack.c.l.b16 %v338
    %v690 = vunpack.c.h.b16 %v338
    %v691 = vunpack.c.l.b16 %v339
    %v692 = vunpack.c.h.b16 %v339
    %v693 = vunpack.c.l.b16 %v340
    %v694 = vunpack.c.h.b16 %v340
    %v695 = vunpack.c.l.b16 %v341
    %v696 = vunpack.c.h.b16 %v341
    %v697 = vunpack.c.l.b16 %v342
    %v698 = vunpack.c.h.b16 %v342
    %v699 = vunpack.c.l.b16 %v343
    %v700 = vunpack.c.h.b16 %v343
    %v701 = vunpack.c.l.b16 %v344
    %v702 = vunpack.c.h.b16 %v344
    %v703 = vunpack.c.l.b16 %v345
    %v704 = vunpack.c.h.b16 %v345
    %v705 = vunpack.c.l.b16 %v346
    %v706 = vunpack.c.h.b16 %v346
    %v707 = vunpack.c.l.b16 %v347
    %v708 = vunpack.c.h.b16 %v347
    %v709 = vunpack.c.l.b16 %v348
    %v710 = vunpack.c.h.b16 %v348
    %v711 = vunpack.c.l.b16 %v349
    %v712 = vunpack.c.h.b16 %v349
    %v713 = vunpack.c.l.b16 %v350
    %v714 = vunpack.c.h.b16 %v350
    %v715 = vunpack.c.l.b16 %v351
    %v716 = vunpack.c.h.b16 %v351
    %v717 = vunpack.c.l.b16 %v352
    %v718 = vunpack.c.h.b16 %v352
    %v719 = vunpack.c.l.b16 %v353
    %v720 = vunpack.c.h.b16 %v353
    %v721 = vunpack.c.l.b16 %v354
    %v722 = vunpack.c.h.b16 %v354
    %v723 = vunpack.c.l.b16 %v355
    %v724 = vunpack.c.h.b16 %v355
    %v725 = vunpack.c.l.b16 %v356
    %v726 = vunpack.c.h.b16 %v356
    %v727 = vunpack.c.l.b16 %v357
    %v728 = vunpack.c.h.b16 %v357
    %v729 = vunpack.c.l.b16 %v358
    %v730 = vunpack.c.h.b16 %v358
    %v731 = vunpack.c.l.b16 %v359
    %v732 = vunpack.c.h.b16 %v359
    %v733 = vunpack.c.l.b16 %v360
    %v734 = vunpack.c.h.b16 %v360
    %v735 = vunpack.c.l.b16 %v361
    %v736 = vunpack.c.h.b16 %v361
    %v737 = vunpack.c.l.b16 %v362
    %v738 = vunpack.c.h.b16 %v362
    %v739 = vunpack.c.l.b16 %v363
    %v740 = vunpack.c.h.b16 %v363
    %v741 = vunpack.c.l.b16 %v364
    %v742 = vunpack.c.h.b16 %v364
    %v743 = vunpack.c.l.b16 %v365
    %v744 = vunpack.c.h.b16 %v365
    %v745 = vunpack.c.l.b16 %v366
    %v746 = vunpack.c.h.b16 %v366
    %v747 = vunpack.c.l.b16 %v367
    %v748 = vunpack.c.h.b16 %v367
    %v749 = vunpack.c.l.b16 %v368
    %v750 = vunpack.c.h.b16 %v368
    %v751 = vunpack.c.l.b16 %v369
    %v752 = vunpack.c.h.b16 %v369
    %v753 = vunpack.c.l.b16 %v370
    %v754 = vunpack.c.h.b16 %v370
    %v755 = vpack.c.b16 %v507, %v499
    %v756 = vpack.c.b16 %v508, %v500
    %v757 = vpack.c.b16 %v509, %v501
    %v758 = vpack.c.b16 %v510, %v502
    %v759 = vpack.c.b16 %v511, %v503
    %v760 = vpack.c.b16 %v512, %v504
    %v761 = vpack.c.b16 %v513, %v505
    %v762 = vpack.c.b16 %v514, %v506
    %v763 = vpack.c.b16 %v523, %v515
    %v764 = vpack.c.b16 %v524, %v516
    %v765 = vpack.c.b16 %v525, %v517
    %v766 = vpack.c.b16 %v526, %v518
    %v767 = vpack.c.b16 %v527, %v519
    %v768 = vpack.c.b16 %v528, %v520
    %v769 = vpack.c.b16 %v529, %v521
    %v770 = vpack.c.b16 %v530, %v522
    %v771 = vpack.c.b16 %v539, %v531
    %v772 = vpack.c.b16 %v540, %v532
    %v773 = vpack.c.b16 %v541, %v533
    %v774 = vpack.c.b16 %v542, %v534
    %v775 = vpack.c.b16 %v543, %v535
    %v776 = vpack.c.b16 %v544, %v536
    %v777 = vpack.c.b16 %v545, %v537
    %v778 = vpack.c.b16 %v546, %v538
    %v779 = vpack.c.b16 %v555, %v547
    %v780 = vpack.c.b16 %v556, %v548
    %v781 = vpack.c.b16 %v557, %v549
    %v782 = vpack.c.b16 %v558, %v550
    %v783 = vpack.c.b16 %v559, %v551
    %v784 = vpack.c.b16 %v560, %v552
    %v785 = vpack.c.b16 %v561, %v553
    %v786 = vpack.c.b16 %v562, %v554
    %v787 = vpack.c.b16 %v571, %v563
    %v788 = vpack.c.b16 %v572, %v564
    %v789 = vpack.c.b16 %v573, %v565
    %v790 = vpack.c.b16 %v574, %v566
    %v791 = vpack.c.b16 %v575, %v567
    %v792 = vpack.c.b16 %v576, %v568
    %v793 = vpack.c.b16 %v577, %v569
    %v794 = vpack.c.b16 %v578, %v570
    %v795 = vpack.c.b16 %v587, %v579
    %v796 = vpack.c.b16 %v588, %v580
    %v797 = vpack.c.b16 %v589, %v581
    %v798 = vpack.c.b16 %v590, %v582
    %v799 = vpack.c.b16 %v591, %v583
    %v800 = vpack.c.b16 %v592, %v584
    %v801 = vpack.c.b16 %v593, %v585
    %v802 = vpack.c.b16 %v594, %v586
    %v803 = vpack.c.b16 %v603, %v595
    %v804 = vpack.c.b16 %v604, %v596
    %v805 = vpack.c.b16 %v605, %v597
    %v806 = vpack.c.b16 %v606, %v598
    %v807 = vpack.c.b16 %v607, %v599
    %v808 = vpack.c.b16 %v608, %v600
    %v809 = vpack.c.b16 %v609, %v601
    %v810 = vpack.c.b16 %v610, %v602
    %v811 = vpack.c.b16 %v619, %v611
    %v812 = vpack.c.b16 %v620, %v612
    %v813 = vpack.c.b16 %v621, %v613
    %v814 = vpack.c.b16 %v622, %v614
    %v815 = vpack.c.b16 %v623, %v615
    %v816 = vpack.c.b16 %v624, %v616
    %v817 = vpack.c.b16 %v625, %v617
    %v818 = vpack.c.b16 %v626, %v618
    %v819 = vpack.c.b16 %v635, %v627
    %v820 = vpack.c.b16 %v636, %v628
    %v821 = vpack.c.b16 %v637, %v629
    %v822 = vpack.c.b16 %v638, %v630
    %v823 = vpack.c.b16 %v639, %v631
    %v824 = vpack.c.b16 %v640, %v632
    %v825 = vpack.c.b16 %v641, %v633
    %v826 = vpack.c.b16 %v642, %v634
    %v827 = vpack.c.b16 %v651, %v643
    %v828 = vpack.c.b16 %v652, %v644
    %v829 = vpack.c.b16 %v653, %v645
    %v830 = vpack.c.b16 %v654, %v646
    %v831 = vpack.c.b16 %v655, %v647
    %v832 = vpack.c.b16 %v656, %v648
    %v833 = vpack.c.b16 %v657, %v649
    %v834 = vpack.c.b16 %v658, %v650
    %v835 = vpack.c.b16 %v667, %v659
    %v836 = vpack.c.b16 %v668, %v660
    %v837 = vpack.c.b16 %v669, %v661
    %v838 = vpack.c.b16 %v670, %v662
    %v839 = vpack.c.b16 %v671, %v663
    %v840 = vpack.c.b16 %v672, %v664
    %v841 = vpack.c.b16 %v673, %v665
    %v842 = vpack.c.b16 %v674, %v666
    %v843 = vpack.c.b16 %v683, %v675
    %v844 = vpack.c.b16 %v684, %v676
    %v845 = vpack.c.b16 %v685, %v677
    %v846 = vpack.c.b16 %v686, %v678
    %v847 = vpack.c.b16 %v687, %v679
    %v848 = vpack.c.b16 %v688, %v680
    %v849 = vpack.c.b16 %v689, %v681
    %v850 = vpack.c.b16 %v690, %v682
    %v851 = vpack.c.b16 %v699, %v691
    %v852 = vpack.c.b16 %v700, %v692
    %v853 = vpack.c.b16 %v701, %v693
    %v854 = vpack.c.b16 %v702, %v694
    %v855 = vpack.c.b16 %v703, %v695
    %v856 = vpack.c.b16 %v704, %v696
    %v857 = vpack.c.b16 %v705, %v697
    %v858 = vpack.c.b16 %v706, %v698
    %v859 = vpack.c.b16 %v715, %v707
    %v860 = vpack.c.b16 %v716, %v708
    %v861 = vpack.c.b16 %v717, %v709
    %v862 = vpack.c.b16 %v718, %v710
    %v863 = vpack.c.b16 %v719, %v711
    %v864 = vpack.c.b16 %v720, %v712
    %v865 = vpack.c.b16 %v721, %v713
    %v866 = vpack.c.b16 %v722, %v714
    %v867 = vpack.c.b16 %v731, %v723
    %v868 = vpack.c.b16 %v732, %v724
    %v869 = vpack.c.b16 %v733, %v725
    %v870 = vpack.c.b16 %v734, %v726
    %v871 = vpack.c.b16 %v735, %v727
    %v872 = vpack.c.b16 %v736, %v728
    %v873 = vpack.c.b16 %v737, %v729
    %v874 = vpack.c.b16 %v738, %v730
    %v875 = vpack.c.b16 %v747, %v739
    %v876 = vpack.c.b16 %v748, %v740
    %v877 = vpack.c.b16 %v749, %v741
    %v878 = vpack.c.b16 %v750, %v742
    %v879 = vpack.c.b16 %v751, %v743
    %v880 = vpack.c.b16 %v752, %v744
    %v881 = vpack.c.b16 %v753, %v745
    %v882 = vpack.c.b16 %v754, %v746
    %1011 = vmatpush.bf16.msra.mxu0 %v811
    %1012 = vmatpush.bf16.msra.mxu0 %v803
    %1013 = vmatpush.bf16.msra.mxu0 %v795
    %1014 = vmatpush.bf16.msra.mxu0 %v787
    %1015 = vmatpush.bf16.msra.mxu0 %v779
    %1016 = vmatpush.bf16.msra.mxu0 %v771
    %1017 = vmatpush.bf16.msra.mxu0 %v763
    %1018 = vmatpush.bf16.msra.mxu0 %v755
    %1019 = vmatmul.bf16.gmra.mxu0 0
    %v1020 = vpop.f32.mrf.mxu0
    %v1021 = vadd.f32 0.0, %v1020
    %v1022 = vpop.f32.mrf.mxu0
    %1023 = vdwg.mxu0
    %1024 = vmatpush.bf16.msra.mxu0 %v875
    %1025 = vmatpush.bf16.msra.mxu0 %v867
    %1026 = vmatpush.bf16.msra.mxu0 %v859
    %1027 = vmatpush.bf16.msra.mxu0 %v851
    %1028 = vmatpush.bf16.msra.mxu0 %v843
    %1029 = vmatpush.bf16.msra.mxu0 %v835
    %1030 = vmatpush.bf16.msra.mxu0 %v827
    %1031 = vmatpush.bf16.msra.mxu0 %v819
    %1032 = vmatmul.bf16.gmra.mxu0 0
    %v1033 = vpop.f32.mrf.mxu0
    %v1034 = vadd.f32 %v1021, %v1033
    %v1035 = vpop.f32.mrf.mxu0
    %1036 = vdwg.mxu0
    %1037 = vmatpush.bf16.msra.mxu0 %v812
    %1038 = vmatpush.bf16.msra.mxu0 %v804
    %1039 = vmatpush.bf16.msra.mxu0 %v796
    %1040 = vmatpush.bf16.msra.mxu0 %v788
    %1041 = vmatpush.bf16.msra.mxu0 %v780
    %1042 = vmatpush.bf16.msra.mxu0 %v772
    %1043 = vmatpush.bf16.msra.mxu0 %v764
    %1044 = vmatpush.bf16.msra.mxu0 %v756
    %1045 = vmatmul.bf16.gmra.mxu0 0
    %v1046 = vpop.f32.mrf.mxu0
    %v1047 = vadd.f32 0.0, %v1046
    %v1048 = vpop.f32.mrf.mxu0
    %1049 = vdwg.mxu0
    %1050 = vmatpush.bf16.msra.mxu0 %v876
    %1051 = vmatpush.bf16.msra.mxu0 %v868
    %1052 = vmatpush.bf16.msra.mxu0 %v860
    %1053 = vmatpush.bf16.msra.mxu0 %v852
    %1054 = vmatpush.bf16.msra.mxu0 %v844
    %1055 = vmatpush.bf16.msra.mxu0 %v836
    %1056 = vmatpush.bf16.msra.mxu0 %v828
    %1057 = vmatpush.bf16.msra.mxu0 %v820
    %1058 = vmatmul.bf16.gmra.mxu0 0
    %v1059 = vpop.f32.mrf.mxu0
    %v1060 = vadd.f32 %v1047, %v1059
    %v1061 = vpop.f32.mrf.mxu0
    %1062 = vdwg.mxu0
    %1063 = vmatpush.bf16.msra.mxu0 %v813
    %1064 = vmatpush.bf16.msra.mxu0 %v805
    %1065 = vmatpush.bf16.msra.mxu0 %v797
    %1066 = vmatpush.bf16.msra.mxu0 %v789
    %1067 = vmatpush.bf16.msra.mxu0 %v781
    %1068 = vmatpush.bf16.msra.mxu0 %v773
    %1069 = vmatpush.bf16.msra.mxu0 %v765
    %1070 = vmatpush.bf16.msra.mxu0 %v757
    %1071 = vmatmul.bf16.gmra.mxu0 0
    %v1072 = vpop.f32.mrf.mxu0
    %v1073 = vadd.f32 0.0, %v1072
    %v1074 = vpop.f32.mrf.mxu0
    %1075 = vdwg.mxu0
    %1076 = vmatpush.bf16.msra.mxu0 %v877
    %1077 = vmatpush.bf16.msra.mxu0 %v869
    %1078 = vmatpush.bf16.msra.mxu0 %v861
    %1079 = vmatpush.bf16.msra.mxu0 %v853
    %1080 = vmatpush.bf16.msra.mxu0 %v845
    %1081 = vmatpush.bf16.msra.mxu0 %v837
    %1082 = vmatpush.bf16.msra.mxu0 %v829
    %1083 = vmatpush.bf16.msra.mxu0 %v821
    %1084 = vmatmul.bf16.gmra.mxu0 0
    %v1085 = vpop.f32.mrf.mxu0
    %v1086 = vadd.f32 %v1073, %v1085
    %v1087 = vpop.f32.mrf.mxu0
    %1088 = vdwg.mxu0
    %1089 = vmatpush.bf16.msra.mxu0 %v814
    %1090 = vmatpush.bf16.msra.mxu0 %v806
    %1091 = vmatpush.bf16.msra.mxu0 %v798
    %1092 = vmatpush.bf16.msra.mxu0 %v790
    %1093 = vmatpush.bf16.msra.mxu0 %v782
    %1094 = vmatpush.bf16.msra.mxu0 %v774
    %1095 = vmatpush.bf16.msra.mxu0 %v766
    %1096 = vmatpush.bf16.msra.mxu0 %v758
    %1097 = vmatmul.bf16.gmra.mxu0 0
    %v1098 = vpop.f32.mrf.mxu0
    %v1099 = vadd.f32 0.0, %v1098
    %v1100 = vpop.f32.mrf.mxu0
    %1101 = vdwg.mxu0
    %1102 = vmatpush.bf16.msra.mxu0 %v878
    %1103 = vmatpush.bf16.msra.mxu0 %v870
    %1104 = vmatpush.bf16.msra.mxu0 %v862
    %1105 = vmatpush.bf16.msra.mxu0 %v854
    %1106 = vmatpush.bf16.msra.mxu0 %v846
    %1107 = vmatpush.bf16.msra.mxu0 %v838
    %1108 = vmatpush.bf16.msra.mxu0 %v830
    %1109 = vmatpush.bf16.msra.mxu0 %v822
    %1110 = vmatmul.bf16.gmra.mxu0 0
    %v1111 = vpop.f32.mrf.mxu0
    %v1112 = vadd.f32 %v1099, %v1111
    %v1113 = vpop.f32.mrf.mxu0
    %1114 = vdwg.mxu0
    %1115 = vmatpush.bf16.msra.mxu0 %v815
    %1116 = vmatpush.bf16.msra.mxu0 %v807
    %1117 = vmatpush.bf16.msra.mxu0 %v799
    %1118 = vmatpush.bf16.msra.mxu0 %v791
    %1119 = vmatpush.bf16.msra.mxu0 %v783
    %1120 = vmatpush.bf16.msra.mxu0 %v775
    %1121 = vmatpush.bf16.msra.mxu0 %v767
    %1122 = vmatpush.bf16.msra.mxu0 %v759
    %1123 = vmatmul.bf16.gmra.mxu0 0
    %v1124 = vpop.f32.mrf.mxu0
    %v1125 = vadd.f32 0.0, %v1124
    %v1126 = vpop.f32.mrf.mxu0
    %1127 = vdwg.mxu0
    %1128 = vmatpush.bf16.msra.mxu0 %v879
    %1129 = vmatpush.bf16.msra.mxu0 %v871
    %1130 = vmatpush.bf16.msra.mxu0 %v863
    %1131 = vmatpush.bf16.msra.mxu0 %v855
    %1132 = vmatpush.bf16.msra.mxu0 %v847
    %1133 = vmatpush.bf16.msra.mxu0 %v839
    %1134 = vmatpush.bf16.msra.mxu0 %v831
    %1135 = vmatpush.bf16.msra.mxu0 %v823
    %1136 = vmatmul.bf16.gmra.mxu0 0
    %v1137 = vpop.f32.mrf.mxu0
    %v1138 = vadd.f32 %v1125, %v1137
    %v1139 = vpop.f32.mrf.mxu0
    %1140 = vdwg.mxu0
    %1141 = vmatpush.bf16.msra.mxu0 %v816
    %1142 = vmatpush.bf16.msra.mxu0 %v808
    %1143 = vmatpush.bf16.msra.mxu0 %v800
    %1144 = vmatpush.bf16.msra.mxu0 %v792
    %1145 = vmatpush.bf16.msra.mxu0 %v784
    %1146 = vmatpush.bf16.msra.mxu0 %v776
    %1147 = vmatpush.bf16.msra.mxu0 %v768
    %1148 = vmatpush.bf16.msra.mxu0 %v760
    %1149 = vmatmul.bf16.gmra.mxu0 0
    %v1150 = vpop.f32.mrf.mxu0
    %v1151 = vadd.f32 0.0, %v1150
    %v1152 = vpop.f32.mrf.mxu0
    %1153 = vdwg.mxu0
    %1154 = vmatpush.bf16.msra.mxu0 %v880
    %1155 = vmatpush.bf16.msra.mxu0 %v872
    %1156 = vmatpush.bf16.msra.mxu0 %v864
    %1157 = vmatpush.bf16.msra.mxu0 %v856
    %1158 = vmatpush.bf16.msra.mxu0 %v848
    %1159 = vmatpush.bf16.msra.mxu0 %v840
    %1160 = vmatpush.bf16.msra.mxu0 %v832
    %1161 = vmatpush.bf16.msra.mxu0 %v824
    %1162 = vmatmul.bf16.gmra.mxu0 0
    %v1163 = vpop.f32.mrf.mxu0
    %v1164 = vadd.f32 %v1151, %v1163
    %v1165 = vpop.f32.mrf.mxu0
    %1166 = vdwg.mxu0
    %1167 = vmatpush.bf16.msra.mxu0 %v817
    %1168 = vmatpush.bf16.msra.mxu0 %v809
    %1169 = vmatpush.bf16.msra.mxu0 %v801
    %1170 = vmatpush.bf16.msra.mxu0 %v793
    %1171 = vmatpush.bf16.msra.mxu0 %v785
    %1172 = vmatpush.bf16.msra.mxu0 %v777
    %1173 = vmatpush.bf16.msra.mxu0 %v769
    %1174 = vmatpush.bf16.msra.mxu0 %v761
    %1175 = vmatmul.bf16.gmra.mxu0 0
    %v1176 = vpop.f32.mrf.mxu0
    %v1177 = vadd.f32 0.0, %v1176
    %v1178 = vpop.f32.mrf.mxu0
    %1179 = vdwg.mxu0
    %1180 = vmatpush.bf16.msra.mxu0 %v881
    %1181 = vmatpush.bf16.msra.mxu0 %v873
    %1182 = vmatpush.bf16.msra.mxu0 %v865
    %1183 = vmatpush.bf16.msra.mxu0 %v857
    %1184 = vmatpush.bf16.msra.mxu0 %v849
    %1185 = vmatpush.bf16.msra.mxu0 %v841
    %1186 = vmatpush.bf16.msra.mxu0 %v833
    %1187 = vmatpush.bf16.msra.mxu0 %v825
    %1188 = vmatmul.bf16.gmra.mxu0 0
    %v1189 = vpop.f32.mrf.mxu0
    %v1190 = vadd.f32 %v1177, %v1189
    %v1191 = vpop.f32.mrf.mxu0
    %1192 = vdwg.mxu0
    %1193 = vmatpush.bf16.msra.mxu0 %v818
    %1194 = vmatpush.bf16.msra.mxu0 %v810
    %1195 = vmatpush.bf16.msra.mxu0 %v802
    %1196 = vmatpush.bf16.msra.mxu0 %v794
    %1197 = vmatpush.bf16.msra.mxu0 %v786
    %1198 = vmatpush.bf16.msra.mxu0 %v778
    %1199 = vmatpush.bf16.msra.mxu0 %v770
    %1200 = vmatpush.bf16.msra.mxu0 %v762
    %1201 = vmatmul.bf16.gmra.mxu0 0
    %v1202 = vpop.f32.mrf.mxu0
    %v1203 = vadd.f32 0.0, %v1202
    %v1204 = vpop.f32.mrf.mxu0
    %1205 = vdwg.mxu0
    %1206 = vmatpush.bf16.msra.mxu0 %v882
    %1207 = vmatpush.bf16.msra.mxu0 %v874
    %1208 = vmatpush.bf16.msra.mxu0 %v866
    %1209 = vmatpush.bf16.msra.mxu0 %v858
    %1210 = vmatpush.bf16.msra.mxu0 %v850
    %1211 = vmatpush.bf16.msra.mxu0 %v842
    %1212 = vmatpush.bf16.msra.mxu0 %v834
    %1213 = vmatpush.bf16.msra.mxu0 %v826
    %1214 = vmatmul.bf16.gmra.mxu0 0
    %v1215 = vpop.f32.mrf.mxu0
    %v1216 = vadd.f32 %v1203, %v1215
    %v1217 = vpop.f32.mrf.mxu0
    %1218 = vdwg.mxu0
    %v1219 = vadd.f32 %v147, %v1034
    %v1220 = vadd.f32 %v160, %v1060
    %v1221 = vadd.f32 %v173, %v1086
    %v1222 = vadd.f32 %v186, %v1112
    %v1223 = vadd.f32 %v199, %v1138
    %v1224 = vadd.f32 %v212, %v1164
    %v1225 = vadd.f32 %v225, %v1190
    %v1226 = vadd.f32 %v238, %v1216
    %v1227 = vxor.u32 %v1219, 2147483648
    %v1228 = vxor.u32 %v1220, 2147483648
    %v1229 = vxor.u32 %v1221, 2147483648
    %v1230 = vxor.u32 %v1222, 2147483648
    %v1231 = vxor.u32 %v1223, 2147483648
    %v1232 = vxor.u32 %v1224, 2147483648
    %v1233 = vmul.f32 %v1227, 1.442695
    %v1234 = vpow.pop %v1233
    %v1235 = vmul.f32 %v1228, 1.442695
    %v1236 = vpow.pop %v1235
    %v1237 = vmul.f32 %v1229, 1.442695
    %v1238 = vpow.pop %v1237
    %v1239 = vmul.f32 %v1230, 1.442695
    %v1240 = vpow.pop %v1239
    %v1241 = vmul.f32 %v1231, 1.442695
    %v1242 = vpow.pop %v1241
    %v1243 = vmul.f32 %v1232, 1.442695
    %v1244 = vpow.pop %v1243
    %v1245 = vadd.f32 %v1234, 1.0
    %v1246 = vadd.f32 %v1236, 1.0
    %v1247 = vadd.f32 %v1238, 1.0
    %v1248 = vadd.f32 %v1240, 1.0
    %v1249 = vadd.f32 %v1242, 1.0
    %v1250 = vadd.f32 %v1244, 1.0
    %v1251 = vrcp.pop %v1245
    %v1252 = vmul.f32 %v1245, %v1251
    %v1253 = vsub.f32 1.0, %v1252
    %v1254 = vmul.f32 %v1251, %v1253
    %v1255 = vadd.f32 %v1251, %v1254
    %vm1256 = vweird.f32 %v1245
    %vm1257 = vweird.f32 %v1251
    %vm1258 = vmor %vm1256, %vm1257
    %v1259 = vsel %vm1258, %v1251, %v1255
    %v1260 = vand.u32 2147483647, %v1245
    %vm1261 = vcmp.eq.f32.partialorder %v1260, 8.507059e+37
    %v1262 = vand.u32 %v1245, 2147483648
    %v1263 = vor.u32 1.1754944e-38, %v1262
    %v1264 = vsel %vm1261, %v1263, %v1259
    %v1265 = vmul.f32 1.0, %v1264
    %v1266 = vrcp.pop %v1246
    %v1267 = vmul.f32 %v1246, %v1266
    %v1268 = vsub.f32 1.0, %v1267
    %v1269 = vmul.f32 %v1266, %v1268
    %v1270 = vadd.f32 %v1266, %v1269
    %vm1271 = vweird.f32 %v1246
    %vm1272 = vweird.f32 %v1266
    %vm1273 = vmor %vm1271, %vm1272
    %v1274 = vsel %vm1273, %v1266, %v1270
    %v1275 = vand.u32 2147483647, %v1246
    %vm1276 = vcmp.eq.f32.partialorder %v1275, 8.507059e+37
    %v1277 = vand.u32 %v1246, 2147483648
    %v1278 = vor.u32 1.1754944e-38, %v1277
    %v1279 = vsel %vm1276, %v1278, %v1274
    %v1280 = vmul.f32 1.0, %v1279
    %v1281 = vrcp.pop %v1247
    %v1282 = vmul.f32 %v1247, %v1281
    %v1283 = vsub.f32 1.0, %v1282
    %v1284 = vmul.f32 %v1281, %v1283
    %v1285 = vadd.f32 %v1281, %v1284
    %vm1286 = vweird.f32 %v1247
    %vm1287 = vweird.f32 %v1281
    %vm1288 = vmor %vm1286, %vm1287
    %v1289 = vsel %vm1288, %v1281, %v1285
    %v1290 = vand.u32 2147483647, %v1247
    %vm1291 = vcmp.eq.f32.partialorder %v1290, 8.507059e+37
    %v1292 = vand.u32 %v1247, 2147483648
    %v1293 = vor.u32 1.1754944e-38, %v1292
    %v1294 = vsel %vm1291, %v1293, %v1289
    %v1295 = vmul.f32 1.0, %v1294
    %v1296 = vrcp.pop %v1248
    %v1297 = vmul.f32 %v1248, %v1296
    %v1298 = vsub.f32 1.0, %v1297
    %v1299 = vmul.f32 %v1296, %v1298
    %v1300 = vadd.f32 %v1296, %v1299
    %vm1301 = vweird.f32 %v1248
    %vm1302 = vweird.f32 %v1296
    %vm1303 = vmor %vm1301, %vm1302
    %v1304 = vsel %vm1303, %v1296, %v1300
    %v1305 = vand.u32 2147483647, %v1248
    %vm1306 = vcmp.eq.f32.partialorder %v1305, 8.507059e+37
    %v1307 = vand.u32 %v1248, 2147483648
    %v1308 = vor.u32 1.1754944e-38, %v1307
    %v1309 = vsel %vm1306, %v1308, %v1304
    %v1310 = vmul.f32 1.0, %v1309
    %v1311 = vrcp.pop %v1249
    %v1312 = vmul.f32 %v1249, %v1311
    %v1313 = vsub.f32 1.0, %v1312
    %v1314 = vmul.f32 %v1311, %v1313
    %v1315 = vadd.f32 %v1311, %v1314
    %vm1316 = vweird.f32 %v1249
    %vm1317 = vweird.f32 %v1311
    %vm1318 = vmor %vm1316, %vm1317
    %v1319 = vsel %vm1318, %v1311, %v1315
    %v1320 = vand.u32 2147483647, %v1249
    %vm1321 = vcmp.eq.f32.partialorder %v1320, 8.507059e+37
    %v1322 = vand.u32 %v1249, 2147483648
    %v1323 = vor.u32 1.1754944e-38, %v1322
    %v1324 = vsel %vm1321, %v1323, %v1319
    %v1325 = vmul.f32 1.0, %v1324
    %v1326 = vrcp.pop %v1250
    %v1327 = vmul.f32 %v1250, %v1326
    %v1328 = vsub.f32 1.0, %v1327
    %v1329 = vmul.f32 %v1326, %v1328
    %v1330 = vadd.f32 %v1326, %v1329
    %vm1331 = vweird.f32 %v1250
    %vm1332 = vweird.f32 %v1326
    %vm1333 = vmor %vm1331, %vm1332
    %v1334 = vsel %vm1333, %v1326, %v1330
    %v1335 = vand.u32 2147483647, %v1250
    %vm1336 = vcmp.eq.f32.partialorder %v1335, 8.507059e+37
    %v1337 = vand.u32 %v1250, 2147483648
    %v1338 = vor.u32 1.1754944e-38, %v1337
    %v1339 = vsel %vm1336, %v1338, %v1334
    %v1340 = vmul.f32 1.0, %v1339
    %v1341 = vtanh.pop %v1225
    %v1342 = vtanh.pop %v1226
    %v1343 = vmul.f32 %v1295, 0.0
    %v1344 = vmul.f32 %v1310, 0.0
    %v1345 = vmul.f32 %v1265, %v1341
    %v1346 = vmul.f32 %v1280, %v1342
    %v1347 = vadd.f32 %v1343, %v1345
    %v1348 = vadd.f32 %v1344, %v1346
    %v1349 = vtanh.pop %v1347
    %v1350 = vtanh.pop %v1348
    %v1351 = vmul.f32 %v1325, %v1349
    %v1352 = vmul.f32 %v1340, %v1350
    %vm1353 = vcmask 1040384
    %v1354 = vsel %vm1353, %v1351, 0.0
    %v1355 = vsel %vm1353, %v1352, 0.0
    %v1356 = vadd.f32 %v1354, %v1355
    %1357 = vadd.xlane.f32.xlu0 %v1356
    %v1358 = vpop.xlane.xlu0 %1357
    %v1359 = vrcp.pop 256.0
    %v1360 = vmul.f32 256.0, %v1359
    %v1361 = vsub.f32 1.0, %v1360
    %v1362 = vmul.f32 %v1359, %v1361
    %v1363 = vadd.f32 %v1359, %v1362
    %vm1364 = vweird.f32 %v1359
    %v1365 = vsel %vm1364, %v1359, %v1363
    %v1366 = vmul.f32 %v1358, %v1365
    %v1367 = vsub.f32 %v1351, %v1366
    %v1368 = vsub.f32 %v1352, %v1366
    %v1369 = vmul.f32 %v1367, %v1367
    %v1370 = vmul.f32 %v1368, %v1368
    %v1371 = vsel %vm1353, %v1369, 0.0
    %v1372 = vsel %vm1353, %v1370, 0.0
    %v1373 = vadd.f32 %v1371, %v1372
    %1374 = vadd.xlane.f32.xlu0 %v1373
    %v1375 = vpop.xlane.xlu0 %1374
    %v1376 = vmul.f32 %v1375, %v1365
    %v1377 = vadd.f32 %v1376, 1e-05
    %v1378 = vrsqrt.pop %v1377
    %v1379 = vmul.f32 %v1378, %v1377
    %v1380 = vmul.f32 %v1379, %v1378
    %v1381 = vmul.f32 0.5, %v1380
    %v1382 = vsub.f32 1.5, %v1381
    %v1383 = vmul.f32 %v1378, %v1382
    %vm1384 = vweird.f32 %v1377
    %vm1385 = vweird.f32 %v1378
    %vm1386 = vmor %vm1384, %vm1385
    %v1387 = vsel %vm1386, %v1378, %v1383
    %v1388 = vmul.f32 %v1367, %v1387
    %v1389 = vmul.f32 %v1368, %v1387
    %v1391 = vperm.slane %v241, 0
    %v1392 = vperm.slane %v241, 1
    %v1395 = vmul.f32 %v1388, %v1391
    %v1396 = vmul.f32 %v1389, %v1392
    %v1398 = vperm.slane %v242, 0
    %v1399 = vperm.slane %v242, 1
    %v1402 = vadd.f32 %v1395, %v1398
    %v1403 = vadd.f32 %v1396, %v1399
    %v1406 = vrot.slane %v1403, 7
    %v1407 = vsel %vm1353, %v1402, %v1406
    %v1409 = vlaneseq
    %vm1410 = vcmp.ge.s32.totalorder %v1409, 0
    %vm1411 = vcmp.lt.s32.totalorder %v1409, 256
    %vm1412 = vmand %vm1410, %vm1411
    %1413 = vst.msk [vmem:[#allocation2] ss:$8 sm:$0x3] %vm1412, %v1407
    %1414 = vst.msk [vmem:[#allocation2] ss:$8 sm:$0x0] %vm1412, %v1407
    %v1415 = vpack.c.bf16 %v1351, %v1351
    %v1416 = vpack.c.bf16 %v1352, %v1352
    %v1417 = vld [vmem:[#allocation4] sm:$0xff]
    %v1418 = vld [vmem:[#allocation4 + $0x8] sm:$0xff]
    %v1419 = vld [vmem:[#allocation4 + $0x10] sm:$0xff]
    %v1420 = vld [vmem:[#allocation4 + $0x18] sm:$0xff]
    %v1421 = vld [vmem:[#allocation4 + $0x20] sm:$0xff]
    %v1422 = vld [vmem:[#allocation4 + $0x28] sm:$0xff]
    %v1423 = vld [vmem:[#allocation4 + $0x30] sm:$0xff]
    %v1424 = vld [vmem:[#allocation4 + $0x38] sm:$0xff]
    %v1425 = vld [vmem:[#allocation4 + $0x40] sm:$0xff]
    %v1426 = vld [vmem:[#allocation4 + $0x48] sm:$0xff]
    %v1427 = vld [vmem:[#allocation4 + $0x50] sm:$0xff]
    %v1428 = vld [vmem:[#allocation4 + $0x58] sm:$0xff]
    %v1429 = vld [vmem:[#allocation4 + $0x60] sm:$0xff]
    %v1430 = vld [vmem:[#allocation4 + $0x68] sm:$0xff]
    %v1431 = vld [vmem:[#allocation4 + $0x70] sm:$0xff]
    %v1432 = vld [vmem:[#allocation4 + $0x78] sm:$0xff]
    %v1433 = vld [vmem:[#allocation4 + $0x80] sm:$0xff]
    %v1434 = vld [vmem:[#allocation4 + $0x88] sm:$0xff]
    %v1435 = vld [vmem:[#allocation4 + $0x90] sm:$0xff]
    %v1436 = vld [vmem:[#allocation4 + $0x98] sm:$0xff]
    %v1437 = vld [vmem:[#allocation4 + $0xa0] sm:$0xff]
    %v1438 = vld [vmem:[#allocation4 + $0xa8] sm:$0xff]
    %v1439 = vld [vmem:[#allocation4 + $0xb0] sm:$0xff]
    %v1440 = vld [vmem:[#allocation4 + $0xb8] sm:$0xff]
    %v1441 = vld [vmem:[#allocation4 + $0xc0] sm:$0xff]
    %v1442 = vld [vmem:[#allocation4 + $0xc8] sm:$0xff]
    %v1443 = vld [vmem:[#allocation4 + $0xd0] sm:$0xff]
    %v1444 = vld [vmem:[#allocation4 + $0xd8] sm:$0xff]
    %v1445 = vld [vmem:[#allocation4 + $0xe0] sm:$0xff]
    %v1446 = vld [vmem:[#allocation4 + $0xe8] sm:$0xff]
    %v1447 = vld [vmem:[#allocation4 + $0xf0] sm:$0xff]
    %v1448 = vld [vmem:[#allocation4 + $0xf8] sm:$0xff]
    %v1449 = vld [vmem:[#allocation4 + $0x100] sm:$0xff]
    %v1450 = vld [vmem:[#allocation4 + $0x108] sm:$0xff]
    %v1451 = vld [vmem:[#allocation4 + $0x110] sm:$0xff]
    %v1452 = vld [vmem:[#allocation4 + $0x118] sm:$0xff]
    %v1453 = vld [vmem:[#allocation4 + $0x120] sm:$0xff]
    %v1454 = vld [vmem:[#allocation4 + $0x128] sm:$0xff]
    %v1455 = vld [vmem:[#allocation4 + $0x130] sm:$0xff]
    %v1456 = vld [vmem:[#allocation4 + $0x138] sm:$0xff]
    %v1457 = vld [vmem:[#allocation4 + $0x140] sm:$0xff]
    %v1458 = vld [vmem:[#allocation4 + $0x148] sm:$0xff]
    %v1459 = vld [vmem:[#allocation4 + $0x150] sm:$0xff]
    %v1460 = vld [vmem:[#allocation4 + $0x158] sm:$0xff]
    %v1461 = vld [vmem:[#allocation4 + $0x160] sm:$0xff]
    %v1462 = vld [vmem:[#allocation4 + $0x168] sm:$0xff]
    %v1463 = vld [vmem:[#allocation4 + $0x170] sm:$0xff]
    %v1464 = vld [vmem:[#allocation4 + $0x178] sm:$0xff]
    %v1465 = vld [vmem:[#allocation4 + $0x180] sm:$0xff]
    %v1466 = vld [vmem:[#allocation4 + $0x188] sm:$0xff]
    %v1467 = vld [vmem:[#allocation4 + $0x190] sm:$0xff]
    %v1468 = vld [vmem:[#allocation4 + $0x198] sm:$0xff]
    %v1469 = vld [vmem:[#allocation4 + $0x1a0] sm:$0xff]
    %v1470 = vld [vmem:[#allocation4 + $0x1a8] sm:$0xff]
    %v1471 = vld [vmem:[#allocation4 + $0x1b0] sm:$0xff]
    %v1472 = vld [vmem:[#allocation4 + $0x1b8] sm:$0xff]
    %v1473 = vld [vmem:[#allocation4 + $0x1c0] sm:$0xff]
    %v1474 = vld [vmem:[#allocation4 + $0x1c8] sm:$0xff]
    %v1475 = vld [vmem:[#allocation4 + $0x1d0] sm:$0xff]
    %v1476 = vld [vmem:[#allocation4 + $0x1d8] sm:$0xff]
    %v1477 = vld [vmem:[#allocation4 + $0x1e0] sm:$0xff]
    %v1478 = vld [vmem:[#allocation4 + $0x1e8] sm:$0xff]
    %v1479 = vld [vmem:[#allocation4 + $0x1f0] sm:$0xff]
    %v1480 = vld [vmem:[#allocation4 + $0x1f8] sm:$0xff]
    %v1481 = vld [vmem:[#allocation4 + $0x200] sm:$0xff]
    %v1482 = vld [vmem:[#allocation4 + $0x208] sm:$0xff]
    %v1483 = vld [vmem:[#allocation4 + $0x210] sm:$0xff]
    %v1484 = vld [vmem:[#allocation4 + $0x218] sm:$0xff]
    %v1485 = vld [vmem:[#allocation4 + $0x220] sm:$0xff]
    %v1486 = vld [vmem:[#allocation4 + $0x228] sm:$0xff]
    %v1487 = vld [vmem:[#allocation4 + $0x230] sm:$0xff]
    %v1488 = vld [vmem:[#allocation4 + $0x238] sm:$0xff]
    %v1489 = vld [vmem:[#allocation4 + $0x240] sm:$0xff]
    %v1490 = vld [vmem:[#allocation4 + $0x248] sm:$0xff]
    %v1491 = vld [vmem:[#allocation4 + $0x250] sm:$0xff]
    %v1492 = vld [vmem:[#allocation4 + $0x258] sm:$0xff]
    %v1493 = vld [vmem:[#allocation4 + $0x260] sm:$0xff]
    %v1494 = vld [vmem:[#allocation4 + $0x268] sm:$0xff]
    %v1495 = vld [vmem:[#allocation4 + $0x270] sm:$0xff]
    %v1496 = vld [vmem:[#allocation4 + $0x278] sm:$0xff]
    %v1497 = vld [vmem:[#allocation4 + $0x280] sm:$0xff]
    %v1498 = vld [vmem:[#allocation4 + $0x288] sm:$0xff]
    %v1499 = vld [vmem:[#allocation4 + $0x290] sm:$0xff]
    %v1500 = vld [vmem:[#allocation4 + $0x298] sm:$0xff]
    %v1501 = vld [vmem:[#allocation4 + $0x2a0] sm:$0xff]
    %v1502 = vld [vmem:[#allocation4 + $0x2a8] sm:$0xff]
    %v1503 = vld [vmem:[#allocation4 + $0x2b0] sm:$0xff]
    %v1504 = vld [vmem:[#allocation4 + $0x2b8] sm:$0xff]
    %v1505 = vld [vmem:[#allocation4 + $0x2c0] sm:$0xff]
    %v1506 = vld [vmem:[#allocation4 + $0x2c8] sm:$0xff]
    %v1507 = vld [vmem:[#allocation4 + $0x2d0] sm:$0xff]
    %v1508 = vld [vmem:[#allocation4 + $0x2d8] sm:$0xff]
    %v1509 = vld [vmem:[#allocation4 + $0x2e0] sm:$0xff]
    %v1510 = vld [vmem:[#allocation4 + $0x2e8] sm:$0xff]
    %v1511 = vld [vmem:[#allocation4 + $0x2f0] sm:$0xff]
    %v1512 = vld [vmem:[#allocation4 + $0x2f8] sm:$0xff]
    %v1513 = vld [vmem:[#allocation4 + $0x300] sm:$0xff]
    %v1514 = vld [vmem:[#allocation4 + $0x308] sm:$0xff]
    %v1515 = vld [vmem:[#allocation4 + $0x310] sm:$0xff]
    %v1516 = vld [vmem:[#allocation4 + $0x318] sm:$0xff]
    %v1517 = vld [vmem:[#allocation4 + $0x320] sm:$0xff]
    %v1518 = vld [vmem:[#allocation4 + $0x328] sm:$0xff]
    %v1519 = vld [vmem:[#allocation4 + $0x330] sm:$0xff]
    %v1520 = vld [vmem:[#allocation4 + $0x338] sm:$0xff]
    %v1521 = vld [vmem:[#allocation4 + $0x340] sm:$0xff]
    %v1522 = vld [vmem:[#allocation4 + $0x348] sm:$0xff]
    %v1523 = vld [vmem:[#allocation4 + $0x350] sm:$0xff]
    %v1524 = vld [vmem:[#allocation4 + $0x358] sm:$0xff]
    %v1525 = vld [vmem:[#allocation4 + $0x360] sm:$0xff]
    %v1526 = vld [vmem:[#allocation4 + $0x368] sm:$0xff]
    %v1527 = vld [vmem:[#allocation4 + $0x370] sm:$0xff]
    %v1528 = vld [vmem:[#allocation4 + $0x378] sm:$0xff]
    %v1529 = vld [vmem:[#allocation4 + $0x380] sm:$0xff]
    %v1530 = vld [vmem:[#allocation4 + $0x388] sm:$0xff]
    %v1531 = vld [vmem:[#allocation4 + $0x390] sm:$0xff]
    %v1532 = vld [vmem:[#allocation4 + $0x398] sm:$0xff]
    %v1533 = vld [vmem:[#allocation4 + $0x3a0] sm:$0xff]
    %v1534 = vld [vmem:[#allocation4 + $0x3a8] sm:$0xff]
    %v1535 = vld [vmem:[#allocation4 + $0x3b0] sm:$0xff]
    %v1536 = vld [vmem:[#allocation4 + $0x3b8] sm:$0xff]
    %v1537 = vld [vmem:[#allocation4 + $0x3c0] sm:$0xff]
    %v1538 = vld [vmem:[#allocation4 + $0x3c8] sm:$0xff]
    %v1539 = vld [vmem:[#allocation4 + $0x3d0] sm:$0xff]
    %v1540 = vld [vmem:[#allocation4 + $0x3d8] sm:$0xff]
    %v1541 = vld [vmem:[#allocation4 + $0x3e0] sm:$0xff]
    %v1542 = vld [vmem:[#allocation4 + $0x3e8] sm:$0xff]
    %v1543 = vld [vmem:[#allocation4 + $0x3f0] sm:$0xff]
    %v1544 = vld [vmem:[#allocation4 + $0x3f8] sm:$0xff]
    %v1673 = vunpack.c.l.b16 %v1417
    %v1674 = vunpack.c.h.b16 %v1417
    %v1675 = vunpack.c.l.b16 %v1418
    %v1676 = vunpack.c.h.b16 %v1418
    %v1677 = vunpack.c.l.b16 %v1419
    %v1678 = vunpack.c.h.b16 %v1419
    %v1679 = vunpack.c.l.b16 %v1420
    %v1680 = vunpack.c.h.b16 %v1420
    %v1681 = vunpack.c.l.b16 %v1421
    %v1682 = vunpack.c.h.b16 %v1421
    %v1683 = vunpack.c.l.b16 %v1422
    %v1684 = vunpack.c.h.b16 %v1422
    %v1685 = vunpack.c.l.b16 %v1423
    %v1686 = vunpack.c.h.b16 %v1423
    %v1687 = vunpack.c.l.b16 %v1424
    %v1688 = vunpack.c.h.b16 %v1424
    %v1689 = vunpack.c.l.b16 %v1425
    %v1690 = vunpack.c.h.b16 %v1425
    %v1691 = vunpack.c.l.b16 %v1426
    %v1692 = vunpack.c.h.b16 %v1426
    %v1693 = vunpack.c.l.b16 %v1427
    %v1694 = vunpack.c.h.b16 %v1427
    %v1695 = vunpack.c.l.b16 %v1428
    %v1696 = vunpack.c.h.b16 %v1428
    %v1697 = vunpack.c.l.b16 %v1429
    %v1698 = vunpack.c.h.b16 %v1429
    %v1699 = vunpack.c.l.b16 %v1430
    %v1700 = vunpack.c.h.b16 %v1430
    %v1701 = vunpack.c.l.b16 %v1431
    %v1702 = vunpack.c.h.b16 %v1431
    %v1703 = vunpack.c.l.b16 %v1432
    %v1704 = vunpack.c.h.b16 %v1432
    %v1705 = vunpack.c.l.b16 %v1433
    %v1706 = vunpack.c.h.b16 %v1433
    %v1707 = vunpack.c.l.b16 %v1434
    %v1708 = vunpack.c.h.b16 %v1434
    %v1709 = vunpack.c.l.b16 %v1435
    %v1710 = vunpack.c.h.b16 %v1435
    %v1711 = vunpack.c.l.b16 %v1436
    %v1712 = vunpack.c.h.b16 %v1436
    %v1713 = vunpack.c.l.b16 %v1437
    %v1714 = vunpack.c.h.b16 %v1437
    %v1715 = vunpack.c.l.b16 %v1438
    %v1716 = vunpack.c.h.b16 %v1438
    %v1717 = vunpack.c.l.b16 %v1439
    %v1718 = vunpack.c.h.b16 %v1439
    %v1719 = vunpack.c.l.b16 %v1440
    %v1720 = vunpack.c.h.b16 %v1440
    %v1721 = vunpack.c.l.b16 %v1441
    %v1722 = vunpack.c.h.b16 %v1441
    %v1723 = vunpack.c.l.b16 %v1442
    %v1724 = vunpack.c.h.b16 %v1442
    %v1725 = vunpack.c.l.b16 %v1443
    %v1726 = vunpack.c.h.b16 %v1443
    %v1727 = vunpack.c.l.b16 %v1444
    %v1728 = vunpack.c.h.b16 %v1444
    %v1729 = vunpack.c.l.b16 %v1445
    %v1730 = vunpack.c.h.b16 %v1445
    %v1731 = vunpack.c.l.b16 %v1446
    %v1732 = vunpack.c.h.b16 %v1446
    %v1733 = vunpack.c.l.b16 %v1447
    %v1734 = vunpack.c.h.b16 %v1447
    %v1735 = vunpack.c.l.b16 %v1448
    %v1736 = vunpack.c.h.b16 %v1448
    %v1737 = vunpack.c.l.b16 %v1449
    %v1738 = vunpack.c.h.b16 %v1449
    %v1739 = vunpack.c.l.b16 %v1450
    %v1740 = vunpack.c.h.b16 %v1450
    %v1741 = vunpack.c.l.b16 %v1451
    %v1742 = vunpack.c.h.b16 %v1451
    %v1743 = vunpack.c.l.b16 %v1452
    %v1744 = vunpack.c.h.b16 %v1452
    %v1745 = vunpack.c.l.b16 %v1453
    %v1746 = vunpack.c.h.b16 %v1453
    %v1747 = vunpack.c.l.b16 %v1454
    %v1748 = vunpack.c.h.b16 %v1454
    %v1749 = vunpack.c.l.b16 %v1455
    %v1750 = vunpack.c.h.b16 %v1455
    %v1751 = vunpack.c.l.b16 %v1456
    %v1752 = vunpack.c.h.b16 %v1456
    %v1753 = vunpack.c.l.b16 %v1457
    %v1754 = vunpack.c.h.b16 %v1457
    %v1755 = vunpack.c.l.b16 %v1458
    %v1756 = vunpack.c.h.b16 %v1458
    %v1757 = vunpack.c.l.b16 %v1459
    %v1758 = vunpack.c.h.b16 %v1459
    %v1759 = vunpack.c.l.b16 %v1460
    %v1760 = vunpack.c.h.b16 %v1460
    %v1761 = vunpack.c.l.b16 %v1461
    %v1762 = vunpack.c.h.b16 %v1461
    %v1763 = vunpack.c.l.b16 %v1462
    %v1764 = vunpack.c.h.b16 %v1462
    %v1765 = vunpack.c.l.b16 %v1463
    %v1766 = vunpack.c.h.b16 %v1463
    %v1767 = vunpack.c.l.b16 %v1464
    %v1768 = vunpack.c.h.b16 %v1464
    %v1769 = vunpack.c.l.b16 %v1465
    %v1770 = vunpack.c.h.b16 %v1465
    %v1771 = vunpack.c.l.b16 %v1466
    %v1772 = vunpack.c.h.b16 %v1466
    %v1773 = vunpack.c.l.b16 %v1467
    %v1774 = vunpack.c.h.b16 %v1467
    %v1775 = vunpack.c.l.b16 %v1468
    %v1776 = vunpack.c.h.b16 %v1468
    %v1777 = vunpack.c.l.b16 %v1469
    %v1778 = vunpack.c.h.b16 %v1469
    %v1779 = vunpack.c.l.b16 %v1470
    %v1780 = vunpack.c.h.b16 %v1470
    %v1781 = vunpack.c.l.b16 %v1471
    %v1782 = vunpack.c.h.b16 %v1471
    %v1783 = vunpack.c.l.b16 %v1472
    %v1784 = vunpack.c.h.b16 %v1472
    %v1785 = vunpack.c.l.b16 %v1473
    %v1786 = vunpack.c.h.b16 %v1473
    %v1787 = vunpack.c.l.b16 %v1474
    %v1788 = vunpack.c.h.b16 %v1474
    %v1789 = vunpack.c.l.b16 %v1475
    %v1790 = vunpack.c.h.b16 %v1475
    %v1791 = vunpack.c.l.b16 %v1476
    %v1792 = vunpack.c.h.b16 %v1476
    %v1793 = vunpack.c.l.b16 %v1477
    %v1794 = vunpack.c.h.b16 %v1477
    %v1795 = vunpack.c.l.b16 %v1478
    %v1796 = vunpack.c.h.b16 %v1478
    %v1797 = vunpack.c.l.b16 %v1479
    %v1798 = vunpack.c.h.b16 %v1479
    %v1799 = vunpack.c.l.b16 %v1480
    %v1800 = vunpack.c.h.b16 %v1480
    %v1801 = vunpack.c.l.b16 %v1481
    %v1802 = vunpack.c.h.b16 %v1481
    %v1803 = vunpack.c.l.b16 %v1482
    %v1804 = vunpack.c.h.b16 %v1482
    %v1805 = vunpack.c.l.b16 %v1483
    %v1806 = vunpack.c.h.b16 %v1483
    %v1807 = vunpack.c.l.b16 %v1484
    %v1808 = vunpack.c.h.b16 %v1484
    %v1809 = vunpack.c.l.b16 %v1485
    %v1810 = vunpack.c.h.b16 %v1485
    %v1811 = vunpack.c.l.b16 %v1486
    %v1812 = vunpack.c.h.b16 %v1486
    %v1813 = vunpack.c.l.b16 %v1487
    %v1814 = vunpack.c.h.b16 %v1487
    %v1815 = vunpack.c.l.b16 %v1488
    %v1816 = vunpack.c.h.b16 %v1488
    %v1817 = vunpack.c.l.b16 %v1489
    %v1818 = vunpack.c.h.b16 %v1489
    %v1819 = vunpack.c.l.b16 %v1490
    %v1820 = vunpack.c.h.b16 %v1490
    %v1821 = vunpack.c.l.b16 %v1491
    %v1822 = vunpack.c.h.b16 %v1491
    %v1823 = vunpack.c.l.b16 %v1492
    %v1824 = vunpack.c.h.b16 %v1492
    %v1825 = vunpack.c.l.b16 %v1493
    %v1826 = vunpack.c.h.b16 %v1493
    %v1827 = vunpack.c.l.b16 %v1494
    %v1828 = vunpack.c.h.b16 %v1494
    %v1829 = vunpack.c.l.b16 %v1495
    %v1830 = vunpack.c.h.b16 %v1495
    %v1831 = vunpack.c.l.b16 %v1496
    %v1832 = vunpack.c.h.b16 %v1496
    %v1833 = vunpack.c.l.b16 %v1497
    %v1834 = vunpack.c.h.b16 %v1497
    %v1835 = vunpack.c.l.b16 %v1498
    %v1836 = vunpack.c.h.b16 %v1498
    %v1837 = vunpack.c.l.b16 %v1499
    %v1838 = vunpack.c.h.b16 %v1499
    %v1839 = vunpack.c.l.b16 %v1500
    %v1840 = vunpack.c.h.b16 %v1500
    %v1841 = vunpack.c.l.b16 %v1501
    %v1842 = vunpack.c.h.b16 %v1501
    %v1843 = vunpack.c.l.b16 %v1502
    %v1844 = vunpack.c.h.b16 %v1502
    %v1845 = vunpack.c.l.b16 %v1503
    %v1846 = vunpack.c.h.b16 %v1503
    %v1847 = vunpack.c.l.b16 %v1504
    %v1848 = vunpack.c.h.b16 %v1504
    %v1849 = vunpack.c.l.b16 %v1505
    %v1850 = vunpack.c.h.b16 %v1505
    %v1851 = vunpack.c.l.b16 %v1506
    %v1852 = vunpack.c.h.b16 %v1506
    %v1853 = vunpack.c.l.b16 %v1507
    %v1854 = vunpack.c.h.b16 %v1507
    %v1855 = vunpack.c.l.b16 %v1508
    %v1856 = vunpack.c.h.b16 %v1508
    %v1857 = vunpack.c.l.b16 %v1509
    %v1858 = vunpack.c.h.b16 %v1509
    %v1859 = vunpack.c.l.b16 %v1510
    %v1860 = vunpack.c.h.b16 %v1510
    %v1861 = vunpack.c.l.b16 %v1511
    %v1862 = vunpack.c.h.b16 %v1511
    %v1863 = vunpack.c.l.b16 %v1512
    %v1864 = vunpack.c.h.b16 %v1512
    %v1865 = vunpack.c.l.b16 %v1513
    %v1866 = vunpack.c.h.b16 %v1513
    %v1867 = vunpack.c.l.b16 %v1514
    %v1868 = vunpack.c.h.b16 %v1514
    %v1869 = vunpack.c.l.b16 %v1515
    %v1870 = vunpack.c.h.b16 %v1515
    %v1871 = vunpack.c.l.b16 %v1516
    %v1872 = vunpack.c.h.b16 %v1516
    %v1873 = vunpack.c.l.b16 %v1517
    %v1874 = vunpack.c.h.b16 %v1517
    %v1875 = vunpack.c.l.b16 %v1518
    %v1876 = vunpack.c.h.b16 %v1518
    %v1877 = vunpack.c.l.b16 %v1519
    %v1878 = vunpack.c.h.b16 %v1519
    %v1879 = vunpack.c.l.b16 %v1520
    %v1880 = vunpack.c.h.b16 %v1520
    %v1881 = vunpack.c.l.b16 %v1521
    %v1882 = vunpack.c.h.b16 %v1521
    %v1883 = vunpack.c.l.b16 %v1522
    %v1884 = vunpack.c.h.b16 %v1522
    %v1885 = vunpack.c.l.b16 %v1523
    %v1886 = vunpack.c.h.b16 %v1523
    %v1887 = vunpack.c.l.b16 %v1524
    %v1888 = vunpack.c.h.b16 %v1524
    %v1889 = vunpack.c.l.b16 %v1525
    %v1890 = vunpack.c.h.b16 %v1525
    %v1891 = vunpack.c.l.b16 %v1526
    %v1892 = vunpack.c.h.b16 %v1526
    %v1893 = vunpack.c.l.b16 %v1527
    %v1894 = vunpack.c.h.b16 %v1527
    %v1895 = vunpack.c.l.b16 %v1528
    %v1896 = vunpack.c.h.b16 %v1528
    %v1897 = vunpack.c.l.b16 %v1529
    %v1898 = vunpack.c.h.b16 %v1529
    %v1899 = vunpack.c.l.b16 %v1530
    %v1900 = vunpack.c.h.b16 %v1530
    %v1901 = vunpack.c.l.b16 %v1531
    %v1902 = vunpack.c.h.b16 %v1531
    %v1903 = vunpack.c.l.b16 %v1532
    %v1904 = vunpack.c.h.b16 %v1532
    %v1905 = vunpack.c.l.b16 %v1533
    %v1906 = vunpack.c.h.b16 %v1533
    %v1907 = vunpack.c.l.b16 %v1534
    %v1908 = vunpack.c.h.b16 %v1534
    %v1909 = vunpack.c.l.b16 %v1535
    %v1910 = vunpack.c.h.b16 %v1535
    %v1911 = vunpack.c.l.b16 %v1536
    %v1912 = vunpack.c.h.b16 %v1536
    %v1913 = vunpack.c.l.b16 %v1537
    %v1914 = vunpack.c.h.b16 %v1537
    %v1915 = vunpack.c.l.b16 %v1538
    %v1916 = vunpack.c.h.b16 %v1538
    %v1917 = vunpack.c.l.b16 %v1539
    %v1918 = vunpack.c.h.b16 %v1539
    %v1919 = vunpack.c.l.b16 %v1540
    %v1920 = vunpack.c.h.b16 %v1540
    %v1921 = vunpack.c.l.b16 %v1541
    %v1922 = vunpack.c.h.b16 %v1541
    %v1923 = vunpack.c.l.b16 %v1542
    %v1924 = vunpack.c.h.b16 %v1542
    %v1925 = vunpack.c.l.b16 %v1543
    %v1926 = vunpack.c.h.b16 %v1543
    %v1927 = vunpack.c.l.b16 %v1544
    %v1928 = vunpack.c.h.b16 %v1544
    %v1929 = vpack.c.b16 %v1681, %v1673
    %v1930 = vpack.c.b16 %v1682, %v1674
    %v1931 = vpack.c.b16 %v1683, %v1675
    %v1932 = vpack.c.b16 %v1684, %v1676
    %v1933 = vpack.c.b16 %v1685, %v1677
    %v1934 = vpack.c.b16 %v1686, %v1678
    %v1935 = vpack.c.b16 %v1687, %v1679
    %v1936 = vpack.c.b16 %v1688, %v1680
    %v1937 = vpack.c.b16 %v1697, %v1689
    %v1938 = vpack.c.b16 %v1698, %v1690
    %v1939 = vpack.c.b16 %v1699, %v1691
    %v1940 = vpack.c.b16 %v1700, %v1692
    %v1941 = vpack.c.b16 %v1701, %v1693
    %v1942 = vpack.c.b16 %v1702, %v1694
    %v1943 = vpack.c.b16 %v1703, %v1695
    %v1944 = vpack.c.b16 %v1704, %v1696
    %v1945 = vpack.c.b16 %v1713, %v1705
    %v1946 = vpack.c.b16 %v1714, %v1706
    %v1947 = vpack.c.b16 %v1715, %v1707
    %v1948 = vpack.c.b16 %v1716, %v1708
    %v1949 = vpack.c.b16 %v1717, %v1709
    %v1950 = vpack.c.b16 %v1718, %v1710
    %v1951 = vpack.c.b16 %v1719, %v1711
    %v1952 = vpack.c.b16 %v1720, %v1712
    %v1953 = vpack.c.b16 %v1729, %v1721
    %v1954 = vpack.c.b16 %v1730, %v1722
    %v1955 = vpack.c.b16 %v1731, %v1723
    %v1956 = vpack.c.b16 %v1732, %v1724
    %v1957 = vpack.c.b16 %v1733, %v1725
    %v1958 = vpack.c.b16 %v1734, %v1726
    %v1959 = vpack.c.b16 %v1735, %v1727
    %v1960 = vpack.c.b16 %v1736, %v1728
    %v1961 = vpack.c.b16 %v1745, %v1737
    %v1962 = vpack.c.b16 %v1746, %v1738
    %v1963 = vpack.c.b16 %v1747, %v1739
    %v1964 = vpack.c.b16 %v1748, %v1740
    %v1965 = vpack.c.b16 %v1749, %v1741
    %v1966 = vpack.c.b16 %v1750, %v1742
    %v1967 = vpack.c.b16 %v1751, %v1743
    %v1968 = vpack.c.b16 %v1752, %v1744
    %v1969 = vpack.c.b16 %v1761, %v1753
    %v1970 = vpack.c.b16 %v1762, %v1754
    %v1971 = vpack.c.b16 %v1763, %v1755
    %v1972 = vpack.c.b16 %v1764, %v1756
    %v1973 = vpack.c.b16 %v1765, %v1757
    %v1974 = vpack.c.b16 %v1766, %v1758
    %v1975 = vpack.c.b16 %v1767, %v1759
    %v1976 = vpack.c.b16 %v1768, %v1760
    %v1977 = vpack.c.b16 %v1777, %v1769
    %v1978 = vpack.c.b16 %v1778, %v1770
    %v1979 = vpack.c.b16 %v1779, %v1771
    %v1980 = vpack.c.b16 %v1780, %v1772
    %v1981 = vpack.c.b16 %v1781, %v1773
    %v1982 = vpack.c.b16 %v1782, %v1774
    %v1983 = vpack.c.b16 %v1783, %v1775
    %v1984 = vpack.c.b16 %v1784, %v1776
    %v1985 = vpack.c.b16 %v1793, %v1785
    %v1986 = vpack.c.b16 %v1794, %v1786
    %v1987 = vpack.c.b16 %v1795, %v1787
    %v1988 = vpack.c.b16 %v1796, %v1788
    %v1989 = vpack.c.b16 %v1797, %v1789
    %v1990 = vpack.c.b16 %v1798, %v1790
    %v1991 = vpack.c.b16 %v1799, %v1791
    %v1992 = vpack.c.b16 %v1800, %v1792
    %v1993 = vpack.c.b16 %v1809, %v1801
    %v1994 = vpack.c.b16 %v1810, %v1802
    %v1995 = vpack.c.b16 %v1811, %v1803
    %v1996 = vpack.c.b16 %v1812, %v1804
    %v1997 = vpack.c.b16 %v1813, %v1805
    %v1998 = vpack.c.b16 %v1814, %v1806
    %v1999 = vpack.c.b16 %v1815, %v1807
    %v2000 = vpack.c.b16 %v1816, %v1808
    %v2001 = vpack.c.b16 %v1825, %v1817
    %v2002 = vpack.c.b16 %v1826, %v1818
    %v2003 = vpack.c.b16 %v1827, %v1819
    %v2004 = vpack.c.b16 %v1828, %v1820
    %v2005 = vpack.c.b16 %v1829, %v1821
    %v2006 = vpack.c.b16 %v1830, %v1822
    %v2007 = vpack.c.b16 %v1831, %v1823
    %v2008 = vpack.c.b16 %v1832, %v1824
    %v2009 = vpack.c.b16 %v1841, %v1833
    %v2010 = vpack.c.b16 %v1842, %v1834
    %v2011 = vpack.c.b16 %v1843, %v1835
    %v2012 = vpack.c.b16 %v1844, %v1836
    %v2013 = vpack.c.b16 %v1845, %v1837
    %v2014 = vpack.c.b16 %v1846, %v1838
    %v2015 = vpack.c.b16 %v1847, %v1839
    %v2016 = vpack.c.b16 %v1848, %v1840
    %v2017 = vpack.c.b16 %v1857, %v1849
    %v2018 = vpack.c.b16 %v1858, %v1850
    %v2019 = vpack.c.b16 %v1859, %v1851
    %v2020 = vpack.c.b16 %v1860, %v1852
    %v2021 = vpack.c.b16 %v1861, %v1853
    %v2022 = vpack.c.b16 %v1862, %v1854
    %v2023 = vpack.c.b16 %v1863, %v1855
    %v2024 = vpack.c.b16 %v1864, %v1856
    %v2025 = vpack.c.b16 %v1873, %v1865
    %v2026 = vpack.c.b16 %v1874, %v1866
    %v2027 = vpack.c.b16 %v1875, %v1867
    %v2028 = vpack.c.b16 %v1876, %v1868
    %v2029 = vpack.c.b16 %v1877, %v1869
    %v2030 = vpack.c.b16 %v1878, %v1870
    %v2031 = vpack.c.b16 %v1879, %v1871
    %v2032 = vpack.c.b16 %v1880, %v1872
    %v2033 = vpack.c.b16 %v1889, %v1881
    %v2034 = vpack.c.b16 %v1890, %v1882
    %v2035 = vpack.c.b16 %v1891, %v1883
    %v2036 = vpack.c.b16 %v1892, %v1884
    %v2037 = vpack.c.b16 %v1893, %v1885
    %v2038 = vpack.c.b16 %v1894, %v1886
    %v2039 = vpack.c.b16 %v1895, %v1887
    %v2040 = vpack.c.b16 %v1896, %v1888
    %v2041 = vpack.c.b16 %v1905, %v1897
    %v2042 = vpack.c.b16 %v1906, %v1898
    %v2043 = vpack.c.b16 %v1907, %v1899
    %v2044 = vpack.c.b16 %v1908, %v1900
    %v2045 = vpack.c.b16 %v1909, %v1901
    %v2046 = vpack.c.b16 %v1910, %v1902
    %v2047 = vpack.c.b16 %v1911, %v1903
    %v2048 = vpack.c.b16 %v1912, %v1904
    %v2049 = vpack.c.b16 %v1921, %v1913
    %v2050 = vpack.c.b16 %v1922, %v1914
    %v2051 = vpack.c.b16 %v1923, %v1915
    %v2052 = vpack.c.b16 %v1924, %v1916
    %v2053 = vpack.c.b16 %v1925, %v1917
    %v2054 = vpack.c.b16 %v1926, %v1918
    %v2055 = vpack.c.b16 %v1927, %v1919
    %v2056 = vpack.c.b16 %v1928, %v1920
    %2185 = vmatpush.bf16.msra.mxu0 %v1985
    %2186 = vmatpush.bf16.msra.mxu0 %v1977
    %2187 = vmatpush.bf16.msra.mxu0 %v1969
    %2188 = vmatpush.bf16.msra.mxu0 %v1961
    %2189 = vmatpush.bf16.msra.mxu0 %v1953
    %2190 = vmatpush.bf16.msra.mxu0 %v1945
    %2191 = vmatpush.bf16.msra.mxu0 %v1937
    %2192 = vmatpush.bf16.msra.mxu0 %v1929
    %2193 = vmatmul.bf16.gmra.mxu0 %v1415
    %v2194 = vpop.f32.mrf.mxu0
    %v2195 = vadd.f32 0.0, %v2194
    %v2196 = vpop.f32.mrf.mxu0
    %2197 = vdwg.mxu0
    %2198 = vmatpush.bf16.msra.mxu0 %v2049
    %2199 = vmatpush.bf16.msra.mxu0 %v2041
    %2200 = vmatpush.bf16.msra.mxu0 %v2033
    %2201 = vmatpush.bf16.msra.mxu0 %v2025
    %2202 = vmatpush.bf16.msra.mxu0 %v2017
    %2203 = vmatpush.bf16.msra.mxu0 %v2009
    %2204 = vmatpush.bf16.msra.mxu0 %v2001
    %2205 = vmatpush.bf16.msra.mxu0 %v1993
    %2206 = vmatmul.bf16.gmra.mxu0 %v1416
    %v2207 = vpop.f32.mrf.mxu0
    %v2208 = vadd.f32 %v2195, %v2207
    %v2209 = vpop.f32.mrf.mxu0
    %2210 = vdwg.mxu0
    %2211 = vmatpush.bf16.msra.mxu0 %v1986
    %2212 = vmatpush.bf16.msra.mxu0 %v1978
    %2213 = vmatpush.bf16.msra.mxu0 %v1970
    %2214 = vmatpush.bf16.msra.mxu0 %v1962
    %2215 = vmatpush.bf16.msra.mxu0 %v1954
    %2216 = vmatpush.bf16.msra.mxu0 %v1946
    %2217 = vmatpush.bf16.msra.mxu0 %v1938
    %2218 = vmatpush.bf16.msra.mxu0 %v1930
    %2219 = vmatmul.bf16.gmra.mxu0 %v1415
    %v2220 = vpop.f32.mrf.mxu0
    %v2221 = vadd.f32 0.0, %v2220
    %v2222 = vpop.f32.mrf.mxu0
    %2223 = vdwg.mxu0
    %2224 = vmatpush.bf16.msra.mxu0 %v2050
    %2225 = vmatpush.bf16.msra.mxu0 %v2042
    %2226 = vmatpush.bf16.msra.mxu0 %v2034
    %2227 = vmatpush.bf16.msra.mxu0 %v2026
    %2228 = vmatpush.bf16.msra.mxu0 %v2018
    %2229 = vmatpush.bf16.msra.mxu0 %v2010
    %2230 = vmatpush.bf16.msra.mxu0 %v2002
    %2231 = vmatpush.bf16.msra.mxu0 %v1994
    %2232 = vmatmul.bf16.gmra.mxu0 %v1416
    %v2233 = vpop.f32.mrf.mxu0
    %v2234 = vadd.f32 %v2221, %v2233
    %v2235 = vpop.f32.mrf.mxu0
    %2236 = vdwg.mxu0
    %2237 = vmatpush.bf16.msra.mxu0 %v1987
    %2238 = vmatpush.bf16.msra.mxu0 %v1979
    %2239 = vmatpush.bf16.msra.mxu0 %v1971
    %2240 = vmatpush.bf16.msra.mxu0 %v1963
    %2241 = vmatpush.bf16.msra.mxu0 %v1955
    %2242 = vmatpush.bf16.msra.mxu0 %v1947
    %2243 = vmatpush.bf16.msra.mxu0 %v1939
    %2244 = vmatpush.bf16.msra.mxu0 %v1931
    %2245 = vmatmul.bf16.gmra.mxu0 %v1415
    %v2246 = vpop.f32.mrf.mxu0
    %v2247 = vadd.f32 0.0, %v2246
    %v2248 = vpop.f32.mrf.mxu0
    %2249 = vdwg.mxu0
    %2250 = vmatpush.bf16.msra.mxu0 %v2051
    %2251 = vmatpush.bf16.msra.mxu0 %v2043
    %2252 = vmatpush.bf16.msra.mxu0 %v2035
    %2253 = vmatpush.bf16.msra.mxu0 %v2027
    %2254 = vmatpush.bf16.msra.mxu0 %v2019
    %2255 = vmatpush.bf16.msra.mxu0 %v2011
    %2256 = vmatpush.bf16.msra.mxu0 %v2003
    %2257 = vmatpush.bf16.msra.mxu0 %v1995
    %2258 = vmatmul.bf16.gmra.mxu0 %v1416
    %v2259 = vpop.f32.mrf.mxu0
    %v2260 = vadd.f32 %v2247, %v2259
    %v2261 = vpop.f32.mrf.mxu0
    %2262 = vdwg.mxu0
    %2263 = vmatpush.bf16.msra.mxu0 %v1988
    %2264 = vmatpush.bf16.msra.mxu0 %v1980
    %2265 = vmatpush.bf16.msra.mxu0 %v1972
    %2266 = vmatpush.bf16.msra.mxu0 %v1964
    %2267 = vmatpush.bf16.msra.mxu0 %v1956
    %2268 = vmatpush.bf16.msra.mxu0 %v1948
    %2269 = vmatpush.bf16.msra.mxu0 %v1940
    %2270 = vmatpush.bf16.msra.mxu0 %v1932
    %2271 = vmatmul.bf16.gmra.mxu0 %v1415
    %v2272 = vpop.f32.mrf.mxu0
    %v2273 = vadd.f32 0.0, %v2272
    %v2274 = vpop.f32.mrf.mxu0
    %2275 = vdwg.mxu0
    %2276 = vmatpush.bf16.msra.mxu0 %v2052
    %2277 = vmatpush.bf16.msra.mxu0 %v2044
    %2278 = vmatpush.bf16.msra.mxu0 %v2036
    %2279 = vmatpush.bf16.msra.mxu0 %v2028
    %2280 = vmatpush.bf16.msra.mxu0 %v2020
    %2281 = vmatpush.bf16.msra.mxu0 %v2012
    %2282 = vmatpush.bf16.msra.mxu0 %v2004
    %2283 = vmatpush.bf16.msra.mxu0 %v1996
    %2284 = vmatmul.bf16.gmra.mxu0 %v1416
    %v2285 = vpop.f32.mrf.mxu0
    %v2286 = vadd.f32 %v2273, %v2285
    %v2287 = vpop.f32.mrf.mxu0
    %2288 = vdwg.mxu0
    %2289 = vmatpush.bf16.msra.mxu0 %v1989
    %2290 = vmatpush.bf16.msra.mxu0 %v1981
    %2291 = vmatpush.bf16.msra.mxu0 %v1973
    %2292 = vmatpush.bf16.msra.mxu0 %v1965
    %2293 = vmatpush.bf16.msra.mxu0 %v1957
    %2294 = vmatpush.bf16.msra.mxu0 %v1949
    %2295 = vmatpush.bf16.msra.mxu0 %v1941
    %2296 = vmatpush.bf16.msra.mxu0 %v1933
    %2297 = vmatmul.bf16.gmra.mxu0 %v1415
    %v2298 = vpop.f32.mrf.mxu0
    %v2299 = vadd.f32 0.0, %v2298
    %v2300 = vpop.f32.mrf.mxu0
    %2301 = vdwg.mxu0
    %2302 = vmatpush.bf16.msra.mxu0 %v2053
    %2303 = vmatpush.bf16.msra.mxu0 %v2045
    %2304 = vmatpush.bf16.msra.mxu0 %v2037
    %2305 = vmatpush.bf16.msra.mxu0 %v2029
    %2306 = vmatpush.bf16.msra.mxu0 %v2021
    %2307 = vmatpush.bf16.msra.mxu0 %v2013
    %2308 = vmatpush.bf16.msra.mxu0 %v2005
    %2309 = vmatpush.bf16.msra.mxu0 %v1997
    %2310 = vmatmul.bf16.gmra.mxu0 %v1416
    %v2311 = vpop.f32.mrf.mxu0
    %v2312 = vadd.f32 %v2299, %v2311
    %v2313 = vpop.f32.mrf.mxu0
    %2314 = vdwg.mxu0
    %2315 = vmatpush.bf16.msra.mxu0 %v1990
    %2316 = vmatpush.bf16.msra.mxu0 %v1982
    %2317 = vmatpush.bf16.msra.mxu0 %v1974
    %2318 = vmatpush.bf16.msra.mxu0 %v1966
    %2319 = vmatpush.bf16.msra.mxu0 %v1958
    %2320 = vmatpush.bf16.msra.mxu0 %v1950
    %2321 = vmatpush.bf16.msra.mxu0 %v1942
    %2322 = vmatpush.bf16.msra.mxu0 %v1934
    %2323 = vmatmul.bf16.gmra.mxu0 %v1415
    %v2324 = vpop.f32.mrf.mxu0
    %v2325 = vadd.f32 0.0, %v2324
    %v2326 = vpop.f32.mrf.mxu0
    %2327 = vdwg.mxu0
    %2328 = vmatpush.bf16.msra.mxu0 %v2054
    %2329 = vmatpush.bf16.msra.mxu0 %v2046
    %2330 = vmatpush.bf16.msra.mxu0 %v2038
    %2331 = vmatpush.bf16.msra.mxu0 %v2030
    %2332 = vmatpush.bf16.msra.mxu0 %v2022
    %2333 = vmatpush.bf16.msra.mxu0 %v2014
    %2334 = vmatpush.bf16.msra.mxu0 %v2006
    %2335 = vmatpush.bf16.msra.mxu0 %v1998
    %2336 = vmatmul.bf16.gmra.mxu0 %v1416
    %v2337 = vpop.f32.mrf.mxu0
    %v2338 = vadd.f32 %v2325, %v2337
    %v2339 = vpop.f32.mrf.mxu0
    %2340 = vdwg.mxu0
    %2341 = vmatpush.bf16.msra.mxu0 %v1991
    %2342 = vmatpush.bf16.msra.mxu0 %v1983
    %2343 = vmatpush.bf16.msra.mxu0 %v1975
    %2344 = vmatpush.bf16.msra.mxu0 %v1967
    %2345 = vmatpush.bf16.msra.mxu0 %v1959
    %2346 = vmatpush.bf16.msra.mxu0 %v1951
    %2347 = vmatpush.bf16.msra.mxu0 %v1943
    %2348 = vmatpush.bf16.msra.mxu0 %v1935
    %2349 = vmatmul.bf16.gmra.mxu0 %v1415
    %v2350 = vpop.f32.mrf.mxu0
    %v2351 = vadd.f32 0.0, %v2350
    %v2352 = vpop.f32.mrf.mxu0
    %2353 = vdwg.mxu0
    %2354 = vmatpush.bf16.msra.mxu0 %v2055
    %2355 = vmatpush.bf16.msra.mxu0 %v2047
    %2356 = vmatpush.bf16.msra.mxu0 %v2039
    %2357 = vmatpush.bf16.msra.mxu0 %v2031
    %2358 = vmatpush.bf16.msra.mxu0 %v2023
    %2359 = vmatpush.bf16.msra.mxu0 %v2015
    %2360 = vmatpush.bf16.msra.mxu0 %v2007
    %2361 = vmatpush.bf16.msra.mxu0 %v1999
    %2362 = vmatmul.bf16.gmra.mxu0 %v1416
    %v2363 = vpop.f32.mrf.mxu0
    %v2364 = vadd.f32 %v2351, %v2363
    %v2365 = vpop.f32.mrf.mxu0
    %2366 = vdwg.mxu0
    %2367 = vmatpush.bf16.msra.mxu0 %v1992
    %2368 = vmatpush.bf16.msra.mxu0 %v1984
    %2369 = vmatpush.bf16.msra.mxu0 %v1976
    %2370 = vmatpush.bf16.msra.mxu0 %v1968
    %2371 = vmatpush.bf16.msra.mxu0 %v1960
    %2372 = vmatpush.bf16.msra.mxu0 %v1952
    %2373 = vmatpush.bf16.msra.mxu0 %v1944
    %2374 = vmatpush.bf16.msra.mxu0 %v1936
    %2375 = vmatmul.bf16.gmra.mxu0 %v1415
    %v2376 = vpop.f32.mrf.mxu0
    %v2377 = vadd.f32 0.0, %v2376
    %v2378 = vpop.f32.mrf.mxu0
    %2379 = vdwg.mxu0
    %2380 = vmatpush.bf16.msra.mxu0 %v2056
    %2381 = vmatpush.bf16.msra.mxu0 %v2048
    %2382 = vmatpush.bf16.msra.mxu0 %v2040
    %2383 = vmatpush.bf16.msra.mxu0 %v2032
    %2384 = vmatpush.bf16.msra.mxu0 %v2024
    %2385 = vmatpush.bf16.msra.mxu0 %v2016
    %2386 = vmatpush.bf16.msra.mxu0 %v2008
    %2387 = vmatpush.bf16.msra.mxu0 %v2000
    %2388 = vmatmul.bf16.gmra.mxu0 %v1416
    %v2389 = vpop.f32.mrf.mxu0
    %v2390 = vadd.f32 %v2377, %v2389
    %v2391 = vpop.f32.mrf.mxu0
    %2392 = vdwg.mxu0
    %v2401 = vrot.slane %v2208, 7
    %v2402 = vrot.slane %v2234, 7
    %v2403 = vrot.slane %v2260, 7
    %v2404 = vrot.slane %v2286, 7
    %v2405 = vrot.slane %v2312, 7
    %v2406 = vrot.slane %v2338, 7
    %v2407 = vrot.slane %v2364, 7
    %v2408 = vrot.slane %v2390, 7
    %v2417 = vadd.f32 %v147, %v2401
    %v2418 = vadd.f32 %v160, %v2402
    %v2419 = vadd.f32 %v173, %v2403
    %v2420 = vadd.f32 %v186, %v2404
    %v2421 = vadd.f32 %v199, %v2405
    %v2422 = vadd.f32 %v212, %v2406
    %v2423 = vadd.f32 %v225, %v2407
    %v2424 = vadd.f32 %v238, %v2408
    %v2425 = vxor.u32 %v2417, 2147483648
    %v2426 = vxor.u32 %v2418, 2147483648
    %v2427 = vxor.u32 %v2419, 2147483648
    %v2428 = vxor.u32 %v2420, 2147483648
    %v2429 = vxor.u32 %v2421, 2147483648
    %v2430 = vxor.u32 %v2422, 2147483648
    %v2431 = vmul.f32 %v2425, 1.442695
    %v2432 = vpow.pop %v2431
    %v2433 = vmul.f32 %v2426, 1.442695
    %v2434 = vpow.pop %v2433
    %v2435 = vmul.f32 %v2427, 1.442695
    %v2436 = vpow.pop %v2435
    %v2437 = vmul.f32 %v2428, 1.442695
    %v2438 = vpow.pop %v2437
    %v2439 = vmul.f32 %v2429, 1.442695
    %v2440 = vpow.pop %v2439
    %v2441 = vmul.f32 %v2430, 1.442695
    %v2442 = vpow.pop %v2441
    %v2443 = vadd.f32 %v2432, 1.0
    %v2444 = vadd.f32 %v2434, 1.0
    %v2445 = vadd.f32 %v2436, 1.0
    %v2446 = vadd.f32 %v2438, 1.0
    %v2447 = vadd.f32 %v2440, 1.0
    %v2448 = vadd.f32 %v2442, 1.0
    %v2449 = vrcp.pop %v2443
    %v2450 = vmul.f32 %v2443, %v2449
    %v2451 = vsub.f32 1.0, %v2450
    %v2452 = vmul.f32 %v2449, %v2451
    %v2453 = vadd.f32 %v2449, %v2452
    %vm2454 = vweird.f32 %v2443
    %vm2455 = vweird.f32 %v2449
    %vm2456 = vmor %vm2454, %vm2455
    %v2457 = vsel %vm2456, %v2449, %v2453
    %v2458 = vand.u32 2147483647, %v2443
    %vm2459 = vcmp.eq.f32.partialorder %v2458, 8.507059e+37
    %v2460 = vand.u32 %v2443, 2147483648
    %v2461 = vor.u32 1.1754944e-38, %v2460
    %v2462 = vsel %vm2459, %v2461, %v2457
    %v2463 = vmul.f32 1.0, %v2462
    %v2464 = vrcp.pop %v2444
    %v2465 = vmul.f32 %v2444, %v2464
    %v2466 = vsub.f32 1.0, %v2465
    %v2467 = vmul.f32 %v2464, %v2466
    %v2468 = vadd.f32 %v2464, %v2467
    %vm2469 = vweird.f32 %v2444
    %vm2470 = vweird.f32 %v2464
    %vm2471 = vmor %vm2469, %vm2470
    %v2472 = vsel %vm2471, %v2464, %v2468
    %v2473 = vand.u32 2147483647, %v2444
    %vm2474 = vcmp.eq.f32.partialorder %v2473, 8.507059e+37
    %v2475 = vand.u32 %v2444, 2147483648
    %v2476 = vor.u32 1.1754944e-38, %v2475
    %v2477 = vsel %vm2474, %v2476, %v2472
    %v2478 = vmul.f32 1.0, %v2477
    %v2479 = vrcp.pop %v2445
    %v2480 = vmul.f32 %v2445, %v2479
    %v2481 = vsub.f32 1.0, %v2480
    %v2482 = vmul.f32 %v2479, %v2481
    %v2483 = vadd.f32 %v2479, %v2482
    %vm2484 = vweird.f32 %v2445
    %vm2485 = vweird.f32 %v2479
    %vm2486 = vmor %vm2484, %vm2485
    %v2487 = vsel %vm2486, %v2479, %v2483
    %v2488 = vand.u32 2147483647, %v2445
    %vm2489 = vcmp.eq.f32.partialorder %v2488, 8.507059e+37
    %v2490 = vand.u32 %v2445, 2147483648
    %v2491 = vor.u32 1.1754944e-38, %v2490
    %v2492 = vsel %vm2489, %v2491, %v2487
    %v2493 = vmul.f32 1.0, %v2492
    %v2494 = vrcp.pop %v2446
    %v2495 = vmul.f32 %v2446, %v2494
    %v2496 = vsub.f32 1.0, %v2495
    %v2497 = vmul.f32 %v2494, %v2496
    %v2498 = vadd.f32 %v2494, %v2497
    %vm2499 = vweird.f32 %v2446
    %vm2500 = vweird.f32 %v2494
    %vm2501 = vmor %vm2499, %vm2500
    %v2502 = vsel %vm2501, %v2494, %v2498
    %v2503 = vand.u32 2147483647, %v2446
    %vm2504 = vcmp.eq.f32.partialorder %v2503, 8.507059e+37
    %v2505 = vand.u32 %v2446, 2147483648
    %v2506 = vor.u32 1.1754944e-38, %v2505
    %v2507 = vsel %vm2504, %v2506, %v2502
    %v2508 = vmul.f32 1.0, %v2507
    %v2509 = vrcp.pop %v2447
    %v2510 = vmul.f32 %v2447, %v2509
    %v2511 = vsub.f32 1.0, %v2510
    %v2512 = vmul.f32 %v2509, %v2511
    %v2513 = vadd.f32 %v2509, %v2512
    %vm2514 = vweird.f32 %v2447
    %vm2515 = vweird.f32 %v2509
    %vm2516 = vmor %vm2514, %vm2515
    %v2517 = vsel %vm2516, %v2509, %v2513
    %v2518 = vand.u32 2147483647, %v2447
    %vm2519 = vcmp.eq.f32.partialorder %v2518, 8.507059e+37
    %v2520 = vand.u32 %v2447, 2147483648
    %v2521 = vor.u32 1.1754944e-38, %v2520
    %v2522 = vsel %vm2519, %v2521, %v2517
    %v2523 = vmul.f32 1.0, %v2522
    %v2524 = vrcp.pop %v2448
    %v2525 = vmul.f32 %v2448, %v2524
    %v2526 = vsub.f32 1.0, %v2525
    %v2527 = vmul.f32 %v2524, %v2526
    %v2528 = vadd.f32 %v2524, %v2527
    %vm2529 = vweird.f32 %v2448
    %vm2530 = vweird.f32 %v2524
    %vm2531 = vmor %vm2529, %vm2530
    %v2532 = vsel %vm2531, %v2524, %v2528
    %v2533 = vand.u32 2147483647, %v2448
    %vm2534 = vcmp.eq.f32.partialorder %v2533, 8.507059e+37
    %v2535 = vand.u32 %v2448, 2147483648
    %v2536 = vor.u32 1.1754944e-38, %v2535
    %v2537 = vsel %vm2534, %v2536, %v2532
    %v2538 = vmul.f32 1.0, %v2537
    %v2539 = vtanh.pop %v2423
    %v2540 = vtanh.pop %v2424
    %v2543 = vrot.slane %v1347, 7
    %v2544 = vrot.slane %v1348, 7
    %v2547 = vmul.f32 %v2493, %v2543
    %v2548 = vmul.f32 %v2508, %v2544
    %v2549 = vmul.f32 %v2463, %v2539
    %v2550 = vmul.f32 %v2478, %v2540
    %v2551 = vadd.f32 %v2547, %v2549
    %v2552 = vadd.f32 %v2548, %v2550
    %v2553 = vtanh.pop %v2551
    %v2554 = vtanh.pop %v2552
    %v2555 = vmul.f32 %v2523, %v2553
    %v2556 = vmul.f32 %v2538, %v2554
    %vm2557 = vcmask 1041409
    %v2558 = vsel %vm2557, %v2555, 0.0
    %v2559 = vsel %vm2557, %v2556, 0.0
    %v2560 = vadd.f32 %v2558, %v2559
    %2561 = vadd.xlane.f32.xlu0 %v2560
    %v2562 = vpop.xlane.xlu0 %2561
    %v2563 = vmul.f32 %v2562, %v1365
    %v2564 = vsub.f32 %v2555, %v2563
    %v2565 = vsub.f32 %v2556, %v2563
    %v2566 = vmul.f32 %v2564, %v2564
    %v2567 = vmul.f32 %v2565, %v2565
    %v2568 = vsel %vm2557, %v2566, 0.0
    %v2569 = vsel %vm2557, %v2567, 0.0
    %v2570 = vadd.f32 %v2568, %v2569
    %2571 = vadd.xlane.f32.xlu0 %v2570
    %v2572 = vpop.xlane.xlu0 %2571
    %v2573 = vmul.f32 %v2572, %v1365
    %v2574 = vadd.f32 %v2573, 1e-05
    %v2575 = vrsqrt.pop %v2574
    %v2576 = vmul.f32 %v2575, %v2574
    %v2577 = vmul.f32 %v2576, %v2575
    %v2578 = vmul.f32 0.5, %v2577
    %v2579 = vsub.f32 1.5, %v2578
    %v2580 = vmul.f32 %v2575, %v2579
    %vm2581 = vweird.f32 %v2574
    %vm2582 = vweird.f32 %v2575
    %vm2583 = vmor %vm2581, %vm2582
    %v2584 = vsel %vm2583, %v2575, %v2580
    %v2585 = vmul.f32 %v2564, %v2584
    %v2586 = vmul.f32 %v2565, %v2584
    %v2587 = vmul.f32 %v2585, %v1391
    %v2588 = vmul.f32 %v2586, %v1392
    %v2589 = vadd.f32 %v2587, %v1398
    %v2590 = vadd.f32 %v2588, %v1399
    %2593 = vst [vmem:[#allocation1] sm:$0xff] %v2589
    %2594 = vst [vmem:[#allocation1 + $0x9] sm:$0xff] %v2590
    %s2595 = scalar_lea.vmem [#allocation1], 1
    %v2596 = vld [vmem:[%s2595] ss:$9 sm:$0xff]
    %s2598 = scalar_lea.vmem [#allocation2], 1
    %2599 = vst.msk [vmem:[%s2598] ss:$8 sm:$0x3] %vm1412, %v2596
    %2600 = vst.msk [vmem:[%s2598] ss:$8 sm:$0x0] %vm1412, %v2596
    %v2601 = vpack.c.bf16 %v2555, %v2555
    %v2602 = vpack.c.bf16 %v2556, %v2556
    %v2603 = vld [vmem:[#allocation4] sm:$0xff]
    %v2604 = vld [vmem:[#allocation4 + $0x8] sm:$0xff]
    %v2605 = vld [vmem:[#allocation4 + $0x10] sm:$0xff]
    %v2606 = vld [vmem:[#allocation4 + $0x18] sm:$0xff]
    %v2607 = vld [vmem:[#allocation4 + $0x20] sm:$0xff]
    %v2608 = vld [vmem:[#allocation4 + $0x28] sm:$0xff]
    %v2609 = vld [vmem:[#allocation4 + $0x30] sm:$0xff]
    %v2610 = vld [vmem:[#allocation4 + $0x38] sm:$0xff]
    %v2611 = vld [vmem:[#allocation4 + $0x40] sm:$0xff]
    %v2612 = vld [vmem:[#allocation4 + $0x48] sm:$0xff]
    %v2613 = vld [vmem:[#allocation4 + $0x50] sm:$0xff]
    %v2614 = vld [vmem:[#allocation4 + $0x58] sm:$0xff]
    %v2615 = vld [vmem:[#allocation4 + $0x60] sm:$0xff]
    %v2616 = vld [vmem:[#allocation4 + $0x68] sm:$0xff]
    %v2617 = vld [vmem:[#allocation4 + $0x70] sm:$0xff]
    %v2618 = vld [vmem:[#allocation4 + $0x78] sm:$0xff]
    %v2619 = vld [vmem:[#allocation4 + $0x80] sm:$0xff]
    %v2620 = vld [vmem:[#allocation4 + $0x88] sm:$0xff]
    %v2621 = vld [vmem:[#allocation4 + $0x90] sm:$0xff]
    %v2622 = vld [vmem:[#allocation4 + $0x98] sm:$0xff]
    %v2623 = vld [vmem:[#allocation4 + $0xa0] sm:$0xff]
    %v2624 = vld [vmem:[#allocation4 + $0xa8] sm:$0xff]
    %v2625 = vld [vmem:[#allocation4 + $0xb0] sm:$0xff]
    %v2626 = vld [vmem:[#allocation4 + $0xb8] sm:$0xff]
    %v2627 = vld [vmem:[#allocation4 + $0xc0] sm:$0xff]
    %v2628 = vld [vmem:[#allocation4 + $0xc8] sm:$0xff]
    %v2629 = vld [vmem:[#allocation4 + $0xd0] sm:$0xff]
    %v2630 = vld [vmem:[#allocation4 + $0xd8] sm:$0xff]
    %v2631 = vld [vmem:[#allocation4 + $0xe0] sm:$0xff]
    %v2632 = vld [vmem:[#allocation4 + $0xe8] sm:$0xff]
    %v2633 = vld [vmem:[#allocation4 + $0xf0] sm:$0xff]
    %v2634 = vld [vmem:[#allocation4 + $0xf8] sm:$0xff]
    %v2635 = vld [vmem:[#allocation4 + $0x100] sm:$0xff]
    %v2636 = vld [vmem:[#allocation4 + $0x108] sm:$0xff]
    %v2637 = vld [vmem:[#allocation4 + $0x110] sm:$0xff]
    %v2638 = vld [vmem:[#allocation4 + $0x118] sm:$0xff]
    %v2639 = vld [vmem:[#allocation4 + $0x120] sm:$0xff]
    %v2640 = vld [vmem:[#allocation4 + $0x128] sm:$0xff]
    %v2641 = vld [vmem:[#allocation4 + $0x130] sm:$0xff]
    %v2642 = vld [vmem:[#allocation4 + $0x138] sm:$0xff]
    %v2643 = vld [vmem:[#allocation4 + $0x140] sm:$0xff]
    %v2644 = vld [vmem:[#allocation4 + $0x148] sm:$0xff]
    %v2645 = vld [vmem:[#allocation4 + $0x150] sm:$0xff]
    %v2646 = vld [vmem:[#allocation4 + $0x158] sm:$0xff]
    %v2647 = vld [vmem:[#allocation4 + $0x160] sm:$0xff]
    %v2648 = vld [vmem:[#allocation4 + $0x168] sm:$0xff]
    %v2649 = vld [vmem:[#allocation4 + $0x170] sm:$0xff]
    %v2650 = vld [vmem:[#allocation4 + $0x178] sm:$0xff]
    %v2651 = vld [vmem:[#allocation4 + $0x180] sm:$0xff]
    %v2652 = vld [vmem:[#allocation4 + $0x188] sm:$0xff]
    %v2653 = vld [vmem:[#allocation4 + $0x190] sm:$0xff]
    %v2654 = vld [vmem:[#allocation4 + $0x198] sm:$0xff]
    %v2655 = vld [vmem:[#allocation4 + $0x1a0] sm:$0xff]
    %v2656 = vld [vmem:[#allocation4 + $0x1a8] sm:$0xff]
    %v2657 = vld [vmem:[#allocation4 + $0x1b0] sm:$0xff]
    %v2658 = vld [vmem:[#allocation4 + $0x1b8] sm:$0xff]
    %v2659 = vld [vmem:[#allocation4 + $0x1c0] sm:$0xff]
    %v2660 = vld [vmem:[#allocation4 + $0x1c8] sm:$0xff]
    %v2661 = vld [vmem:[#allocation4 + $0x1d0] sm:$0xff]
    %v2662 = vld [vmem:[#allocation4 + $0x1d8] sm:$0xff]
    %v2663 = vld [vmem:[#allocation4 + $0x1e0] sm:$0xff]
    %v2664 = vld [vmem:[#allocation4 + $0x1e8] sm:$0xff]
    %v2665 = vld [vmem:[#allocation4 + $0x1f0] sm:$0xff]
    %v2666 = vld [vmem:[#allocation4 + $0x1f8] sm:$0xff]
    %v2667 = vld [vmem:[#allocation4 + $0x200] sm:$0xff]
    %v2668 = vld [vmem:[#allocation4 + $0x208] sm:$0xff]
    %v2669 = vld [vmem:[#allocation4 + $0x210] sm:$0xff]
    %v2670 = vld [vmem:[#allocation4 + $0x218] sm:$0xff]
    %v2671 = vld [vmem:[#allocation4 + $0x220] sm:$0xff]
    %v2672 = vld [vmem:[#allocation4 + $0x228] sm:$0xff]
    %v2673 = vld [vmem:[#allocation4 + $0x230] sm:$0xff]
    %v2674 = vld [vmem:[#allocation4 + $0x238] sm:$0xff]
    %v2675 = vld [vmem:[#allocation4 + $0x240] sm:$0xff]
    %v2676 = vld [vmem:[#allocation4 + $0x248] sm:$0xff]
    %v2677 = vld [vmem:[#allocation4 + $0x250] sm:$0xff]
    %v2678 = vld [vmem:[#allocation4 + $0x258] sm:$0xff]
    %v2679 = vld [vmem:[#allocation4 + $0x260] sm:$0xff]
    %v2680 = vld [vmem:[#allocation4 + $0x268] sm:$0xff]
    %v2681 = vld [vmem:[#allocation4 + $0x270] sm:$0xff]
    %v2682 = vld [vmem:[#allocation4 + $0x278] sm:$0xff]
    %v2683 = vld [vmem:[#allocation4 + $0x280] sm:$0xff]
    %v2684 = vld [vmem:[#allocation4 + $0x288] sm:$0xff]
    %v2685 = vld [vmem:[#allocation4 + $0x290] sm:$0xff]
    %v2686 = vld [vmem:[#allocation4 + $0x298] sm:$0xff]
    %v2687 = vld [vmem:[#allocation4 + $0x2a0] sm:$0xff]
    %v2688 = vld [vmem:[#allocation4 + $0x2a8] sm:$0xff]
    %v2689 = vld [vmem:[#allocation4 + $0x2b0] sm:$0xff]
    %v2690 = vld [vmem:[#allocation4 + $0x2b8] sm:$0xff]
    %v2691 = vld [vmem:[#allocation4 + $0x2c0] sm:$0xff]
    %v2692 = vld [vmem:[#allocation4 + $0x2c8] sm:$0xff]
    %v2693 = vld [vmem:[#allocation4 + $0x2d0] sm:$0xff]
    %v2694 = vld [vmem:[#allocation4 + $0x2d8] sm:$0xff]
    %v2695 = vld [vmem:[#allocation4 + $0x2e0] sm:$0xff]
    %v2696 = vld [vmem:[#allocation4 + $0x2e8] sm:$0xff]
    %v2697 = vld [vmem:[#allocation4 + $0x2f0] sm:$0xff]
    %v2698 = vld [vmem:[#allocation4 + $0x2f8] sm:$0xff]
    %v2699 = vld [vmem:[#allocation4 + $0x300] sm:$0xff]
    %v2700 = vld [vmem:[#allocation4 + $0x308] sm:$0xff]
    %v2701 = vld [vmem:[#allocation4 + $0x310] sm:$0xff]
    %v2702 = vld [vmem:[#allocation4 + $0x318] sm:$0xff]
    %v2703 = vld [vmem:[#allocation4 + $0x320] sm:$0xff]
    %v2704 = vld [vmem:[#allocation4 + $0x328] sm:$0xff]
    %v2705 = vld [vmem:[#allocation4 + $0x330] sm:$0xff]
    %v2706 = vld [vmem:[#allocation4 + $0x338] sm:$0xff]
    %v2707 = vld [vmem:[#allocation4 + $0x340] sm:$0xff]
    %v2708 = vld [vmem:[#allocation4 + $0x348] sm:$0xff]
    %v2709 = vld [vmem:[#allocation4 + $0x350] sm:$0xff]
    %v2710 = vld [vmem:[#allocation4 + $0x358] sm:$0xff]
    %v2711 = vld [vmem:[#allocation4 + $0x360] sm:$0xff]
    %v2712 = vld [vmem:[#allocation4 + $0x368] sm:$0xff]
    %v2713 = vld [vmem:[#allocation4 + $0x370] sm:$0xff]
    %v2714 = vld [vmem:[#allocation4 + $0x378] sm:$0xff]
    %v2715 = vld [vmem:[#allocation4 + $0x380] sm:$0xff]
    %v2716 = vld [vmem:[#allocation4 + $0x388] sm:$0xff]
    %v2717 = vld [vmem:[#allocation4 + $0x390] sm:$0xff]
    %v2718 = vld [vmem:[#allocation4 + $0x398] sm:$0xff]
    %v2719 = vld [vmem:[#allocation4 + $0x3a0] sm:$0xff]
    %v2720 = vld [vmem:[#allocation4 + $0x3a8] sm:$0xff]
    %v2721 = vld [vmem:[#allocation4 + $0x3b0] sm:$0xff]
    %v2722 = vld [vmem:[#allocation4 + $0x3b8] sm:$0xff]
    %v2723 = vld [vmem:[#allocation4 + $0x3c0] sm:$0xff]
    %v2724 = vld [vmem:[#allocation4 + $0x3c8] sm:$0xff]
    %v2725 = vld [vmem:[#allocation4 + $0x3d0] sm:$0xff]
    %v2726 = vld [vmem:[#allocation4 + $0x3d8] sm:$0xff]
    %v2727 = vld [vmem:[#allocation4 + $0x3e0] sm:$0xff]
    %v2728 = vld [vmem:[#allocation4 + $0x3e8] sm:$0xff]
    %v2729 = vld [vmem:[#allocation4 + $0x3f0] sm:$0xff]
    %v2730 = vld [vmem:[#allocation4 + $0x3f8] sm:$0xff]
    %v2732 = vshrl.u32 %v2601, 16
    %v2735 = vshrl.u32 %v2602, 16
    %v2867 = vunpack.c.l.b16 %v2603
    %v2868 = vunpack.c.h.b16 %v2603
    %v2869 = vunpack.c.l.b16 %v2604
    %v2870 = vunpack.c.h.b16 %v2604
    %v2871 = vunpack.c.l.b16 %v2605
    %v2872 = vunpack.c.h.b16 %v2605
    %v2873 = vunpack.c.l.b16 %v2606
    %v2874 = vunpack.c.h.b16 %v2606
    %v2875 = vunpack.c.l.b16 %v2607
    %v2876 = vunpack.c.h.b16 %v2607
    %v2877 = vunpack.c.l.b16 %v2608
    %v2878 = vunpack.c.h.b16 %v2608
    %v2879 = vunpack.c.l.b16 %v2609
    %v2880 = vunpack.c.h.b16 %v2609
    %v2881 = vunpack.c.l.b16 %v2610
    %v2882 = vunpack.c.h.b16 %v2610
    %v2883 = vunpack.c.l.b16 %v2611
    %v2884 = vunpack.c.h.b16 %v2611
    %v2885 = vunpack.c.l.b16 %v2612
    %v2886 = vunpack.c.h.b16 %v2612
    %v2887 = vunpack.c.l.b16 %v2613
    %v2888 = vunpack.c.h.b16 %v2613
    %v2889 = vunpack.c.l.b16 %v2614
    %v2890 = vunpack.c.h.b16 %v2614
    %v2891 = vunpack.c.l.b16 %v2615
    %v2892 = vunpack.c.h.b16 %v2615
    %v2893 = vunpack.c.l.b16 %v2616
    %v2894 = vunpack.c.h.b16 %v2616
    %v2895 = vunpack.c.l.b16 %v2617
    %v2896 = vunpack.c.h.b16 %v2617
    %v2897 = vunpack.c.l.b16 %v2618
    %v2898 = vunpack.c.h.b16 %v2618
    %v2899 = vunpack.c.l.b16 %v2619
    %v2900 = vunpack.c.h.b16 %v2619
    %v2901 = vunpack.c.l.b16 %v2620
    %v2902 = vunpack.c.h.b16 %v2620
    %v2903 = vunpack.c.l.b16 %v2621
    %v2904 = vunpack.c.h.b16 %v2621
    %v2905 = vunpack.c.l.b16 %v2622
    %v2906 = vunpack.c.h.b16 %v2622
    %v2907 = vunpack.c.l.b16 %v2623
    %v2908 = vunpack.c.h.b16 %v2623
    %v2909 = vunpack.c.l.b16 %v2624
    %v2910 = vunpack.c.h.b16 %v2624
    %v2911 = vunpack.c.l.b16 %v2625
    %v2912 = vunpack.c.h.b16 %v2625
    %v2913 = vunpack.c.l.b16 %v2626
    %v2914 = vunpack.c.h.b16 %v2626
    %v2915 = vunpack.c.l.b16 %v2627
    %v2916 = vunpack.c.h.b16 %v2627
    %v2917 = vunpack.c.l.b16 %v2628
    %v2918 = vunpack.c.h.b16 %v2628
    %v2919 = vunpack.c.l.b16 %v2629
    %v2920 = vunpack.c.h.b16 %v2629
    %v2921 = vunpack.c.l.b16 %v2630
    %v2922 = vunpack.c.h.b16 %v2630
    %v2923 = vunpack.c.l.b16 %v2631
    %v2924 = vunpack.c.h.b16 %v2631
    %v2925 = vunpack.c.l.b16 %v2632
    %v2926 = vunpack.c.h.b16 %v2632
    %v2927 = vunpack.c.l.b16 %v2633
    %v2928 = vunpack.c.h.b16 %v2633
    %v2929 = vunpack.c.l.b16 %v2634
    %v2930 = vunpack.c.h.b16 %v2634
    %v2931 = vunpack.c.l.b16 %v2635
    %v2932 = vunpack.c.h.b16 %v2635
    %v2933 = vunpack.c.l.b16 %v2636
    %v2934 = vunpack.c.h.b16 %v2636
    %v2935 = vunpack.c.l.b16 %v2637
    %v2936 = vunpack.c.h.b16 %v2637
    %v2937 = vunpack.c.l.b16 %v2638
    %v2938 = vunpack.c.h.b16 %v2638
    %v2939 = vunpack.c.l.b16 %v2639
    %v2940 = vunpack.c.h.b16 %v2639
    %v2941 = vunpack.c.l.b16 %v2640
    %v2942 = vunpack.c.h.b16 %v2640
    %v2943 = vunpack.c.l.b16 %v2641
    %v2944 = vunpack.c.h.b16 %v2641
    %v2945 = vunpack.c.l.b16 %v2642
    %v2946 = vunpack.c.h.b16 %v2642
    %v2947 = vunpack.c.l.b16 %v2643
    %v2948 = vunpack.c.h.b16 %v2643
    %v2949 = vunpack.c.l.b16 %v2644
    %v2950 = vunpack.c.h.b16 %v2644
    %v2951 = vunpack.c.l.b16 %v2645
    %v2952 = vunpack.c.h.b16 %v2645
    %v2953 = vunpack.c.l.b16 %v2646
    %v2954 = vunpack.c.h.b16 %v2646
    %v2955 = vunpack.c.l.b16 %v2647
    %v2956 = vunpack.c.h.b16 %v2647
    %v2957 = vunpack.c.l.b16 %v2648
    %v2958 = vunpack.c.h.b16 %v2648
    %v2959 = vunpack.c.l.b16 %v2649
    %v2960 = vunpack.c.h.b16 %v2649
    %v2961 = vunpack.c.l.b16 %v2650
    %v2962 = vunpack.c.h.b16 %v2650
    %v2963 = vunpack.c.l.b16 %v2651
    %v2964 = vunpack.c.h.b16 %v2651
    %v2965 = vunpack.c.l.b16 %v2652
    %v2966 = vunpack.c.h.b16 %v2652
    %v2967 = vunpack.c.l.b16 %v2653
    %v2968 = vunpack.c.h.b16 %v2653
    %v2969 = vunpack.c.l.b16 %v2654
    %v2970 = vunpack.c.h.b16 %v2654
    %v2971 = vunpack.c.l.b16 %v2655
    %v2972 = vunpack.c.h.b16 %v2655
    %v2973 = vunpack.c.l.b16 %v2656
    %v2974 = vunpack.c.h.b16 %v2656
    %v2975 = vunpack.c.l.b16 %v2657
    %v2976 = vunpack.c.h.b16 %v2657
    %v2977 = vunpack.c.l.b16 %v2658
    %v2978 = vunpack.c.h.b16 %v2658
    %v2979 = vunpack.c.l.b16 %v2659
    %v2980 = vunpack.c.h.b16 %v2659
    %v2981 = vunpack.c.l.b16 %v2660
    %v2982 = vunpack.c.h.b16 %v2660
    %v2983 = vunpack.c.l.b16 %v2661
    %v2984 = vunpack.c.h.b16 %v2661
    %v2985 = vunpack.c.l.b16 %v2662
    %v2986 = vunpack.c.h.b16 %v2662
    %v2987 = vunpack.c.l.b16 %v2663
    %v2988 = vunpack.c.h.b16 %v2663
    %v2989 = vunpack.c.l.b16 %v2664
    %v2990 = vunpack.c.h.b16 %v2664
    %v2991 = vunpack.c.l.b16 %v2665
    %v2992 = vunpack.c.h.b16 %v2665
    %v2993 = vunpack.c.l.b16 %v2666
    %v2994 = vunpack.c.h.b16 %v2666
    %v2995 = vunpack.c.l.b16 %v2667
    %v2996 = vunpack.c.h.b16 %v2667
    %v2997 = vunpack.c.l.b16 %v2668
    %v2998 = vunpack.c.h.b16 %v2668
    %v2999 = vunpack.c.l.b16 %v2669
    %v3000 = vunpack.c.h.b16 %v2669
    %v3001 = vunpack.c.l.b16 %v2670
    %v3002 = vunpack.c.h.b16 %v2670
    %v3003 = vunpack.c.l.b16 %v2671
    %v3004 = vunpack.c.h.b16 %v2671
    %v3005 = vunpack.c.l.b16 %v2672
    %v3006 = vunpack.c.h.b16 %v2672
    %v3007 = vunpack.c.l.b16 %v2673
    %v3008 = vunpack.c.h.b16 %v2673
    %v3009 = vunpack.c.l.b16 %v2674
    %v3010 = vunpack.c.h.b16 %v2674
    %v3011 = vunpack.c.l.b16 %v2675
    %v3012 = vunpack.c.h.b16 %v2675
    %v3013 = vunpack.c.l.b16 %v2676
    %v3014 = vunpack.c.h.b16 %v2676
    %v3015 = vunpack.c.l.b16 %v2677
    %v3016 = vunpack.c.h.b16 %v2677
    %v3017 = vunpack.c.l.b16 %v2678
    %v3018 = vunpack.c.h.b16 %v2678
    %v3019 = vunpack.c.l.b16 %v2679
    %v3020 = vunpack.c.h.b16 %v2679
    %v3021 = vunpack.c.l.b16 %v2680
    %v3022 = vunpack.c.h.b16 %v2680
    %v3023 = vunpack.c.l.b16 %v2681
    %v3024 = vunpack.c.h.b16 %v2681
    %v3025 = vunpack.c.l.b16 %v2682
    %v3026 = vunpack.c.h.b16 %v2682
    %v3027 = vunpack.c.l.b16 %v2683
    %v3028 = vunpack.c.h.b16 %v2683
    %v3029 = vunpack.c.l.b16 %v2684
    %v3030 = vunpack.c.h.b16 %v2684
    %v3031 = vunpack.c.l.b16 %v2685
    %v3032 = vunpack.c.h.b16 %v2685
    %v3033 = vunpack.c.l.b16 %v2686
    %v3034 = vunpack.c.h.b16 %v2686
    %v3035 = vunpack.c.l.b16 %v2687
    %v3036 = vunpack.c.h.b16 %v2687
    %v3037 = vunpack.c.l.b16 %v2688
    %v3038 = vunpack.c.h.b16 %v2688
    %v3039 = vunpack.c.l.b16 %v2689
    %v3040 = vunpack.c.h.b16 %v2689
    %v3041 = vunpack.c.l.b16 %v2690
    %v3042 = vunpack.c.h.b16 %v2690
    %v3043 = vunpack.c.l.b16 %v2691
    %v3044 = vunpack.c.h.b16 %v2691
    %v3045 = vunpack.c.l.b16 %v2692
    %v3046 = vunpack.c.h.b16 %v2692
    %v3047 = vunpack.c.l.b16 %v2693
    %v3048 = vunpack.c.h.b16 %v2693
    %v3049 = vunpack.c.l.b16 %v2694
    %v3050 = vunpack.c.h.b16 %v2694
    %v3051 = vunpack.c.l.b16 %v2695
    %v3052 = vunpack.c.h.b16 %v2695
    %v3053 = vunpack.c.l.b16 %v2696
    %v3054 = vunpack.c.h.b16 %v2696
    %v3055 = vunpack.c.l.b16 %v2697
    %v3056 = vunpack.c.h.b16 %v2697
    %v3057 = vunpack.c.l.b16 %v2698
    %v3058 = vunpack.c.h.b16 %v2698
    %v3059 = vunpack.c.l.b16 %v2699
    %v3060 = vunpack.c.h.b16 %v2699
    %v3061 = vunpack.c.l.b16 %v2700
    %v3062 = vunpack.c.h.b16 %v2700
    %v3063 = vunpack.c.l.b16 %v2701
    %v3064 = vunpack.c.h.b16 %v2701
    %v3065 = vunpack.c.l.b16 %v2702
    %v3066 = vunpack.c.h.b16 %v2702
    %v3067 = vunpack.c.l.b16 %v2703
    %v3068 = vunpack.c.h.b16 %v2703
    %v3069 = vunpack.c.l.b16 %v2704
    %v3070 = vunpack.c.h.b16 %v2704
    %v3071 = vunpack.c.l.b16 %v2705
    %v3072 = vunpack.c.h.b16 %v2705
    %v3073 = vunpack.c.l.b16 %v2706
    %v3074 = vunpack.c.h.b16 %v2706
    %v3075 = vunpack.c.l.b16 %v2707
    %v3076 = vunpack.c.h.b16 %v2707
    %v3077 = vunpack.c.l.b16 %v2708
    %v3078 = vunpack.c.h.b16 %v2708
    %v3079 = vunpack.c.l.b16 %v2709
    %v3080 = vunpack.c.h.b16 %v2709
    %v3081 = vunpack.c.l.b16 %v2710
    %v3082 = vunpack.c.h.b16 %v2710
    %v3083 = vunpack.c.l.b16 %v2711
    %v3084 = vunpack.c.h.b16 %v2711
    %v3085 = vunpack.c.l.b16 %v2712
    %v3086 = vunpack.c.h.b16 %v2712
    %v3087 = vunpack.c.l.b16 %v2713
    %v3088 = vunpack.c.h.b16 %v2713
    %v3089 = vunpack.c.l.b16 %v2714
    %v3090 = vunpack.c.h.b16 %v2714
    %v3091 = vunpack.c.l.b16 %v2715
    %v3092 = vunpack.c.h.b16 %v2715
    %v3093 = vunpack.c.l.b16 %v2716
    %v3094 = vunpack.c.h.b16 %v2716
    %v3095 = vunpack.c.l.b16 %v2717
    %v3096 = vunpack.c.h.b16 %v2717
    %v3097 = vunpack.c.l.b16 %v2718
    %v3098 = vunpack.c.h.b16 %v2718
    %v3099 = vunpack.c.l.b16 %v2719
    %v3100 = vunpack.c.h.b16 %v2719
    %v3101 = vunpack.c.l.b16 %v2720
    %v3102 = vunpack.c.h.b16 %v2720
    %v3103 = vunpack.c.l.b16 %v2721
    %v3104 = vunpack.c.h.b16 %v2721
    %v3105 = vunpack.c.l.b16 %v2722
    %v3106 = vunpack.c.h.b16 %v2722
    %v3107 = vunpack.c.l.b16 %v2723
    %v3108 = vunpack.c.h.b16 %v2723
    %v3109 = vunpack.c.l.b16 %v2724
    %v3110 = vunpack.c.h.b16 %v2724
    %v3111 = vunpack.c.l.b16 %v2725
    %v3112 = vunpack.c.h.b16 %v2725
    %v3113 = vunpack.c.l.b16 %v2726
    %v3114 = vunpack.c.h.b16 %v2726
    %v3115 = vunpack.c.l.b16 %v2727
    %v3116 = vunpack.c.h.b16 %v2727
    %v3117 = vunpack.c.l.b16 %v2728
    %v3118 = vunpack.c.h.b16 %v2728
    %v3119 = vunpack.c.l.b16 %v2729
    %v3120 = vunpack.c.h.b16 %v2729
    %v3121 = vunpack.c.l.b16 %v2730
    %v3122 = vunpack.c.h.b16 %v2730
    %v3123 = vpack.c.b16 %v2875, %v2867
    %v3124 = vpack.c.b16 %v2876, %v2868
    %v3125 = vpack.c.b16 %v2877, %v2869
    %v3126 = vpack.c.b16 %v2878, %v2870
    %v3127 = vpack.c.b16 %v2879, %v2871
    %v3128 = vpack.c.b16 %v2880, %v2872
    %v3129 = vpack.c.b16 %v2881, %v2873
    %v3130 = vpack.c.b16 %v2882, %v2874
    %v3131 = vpack.c.b16 %v2891, %v2883
    %v3132 = vpack.c.b16 %v2892, %v2884
    %v3133 = vpack.c.b16 %v2893, %v2885
    %v3134 = vpack.c.b16 %v2894, %v2886
    %v3135 = vpack.c.b16 %v2895, %v2887
    %v3136 = vpack.c.b16 %v2896, %v2888
    %v3137 = vpack.c.b16 %v2897, %v2889
    %v3138 = vpack.c.b16 %v2898, %v2890
    %v3139 = vpack.c.b16 %v2907, %v2899
    %v3140 = vpack.c.b16 %v2908, %v2900
    %v3141 = vpack.c.b16 %v2909, %v2901
    %v3142 = vpack.c.b16 %v2910, %v2902
    %v3143 = vpack.c.b16 %v2911, %v2903
    %v3144 = vpack.c.b16 %v2912, %v2904
    %v3145 = vpack.c.b16 %v2913, %v2905
    %v3146 = vpack.c.b16 %v2914, %v2906
    %v3147 = vpack.c.b16 %v2923, %v2915
    %v3148 = vpack.c.b16 %v2924, %v2916
    %v3149 = vpack.c.b16 %v2925, %v2917
    %v3150 = vpack.c.b16 %v2926, %v2918
    %v3151 = vpack.c.b16 %v2927, %v2919
    %v3152 = vpack.c.b16 %v2928, %v2920
    %v3153 = vpack.c.b16 %v2929, %v2921
    %v3154 = vpack.c.b16 %v2930, %v2922
    %v3155 = vpack.c.b16 %v2939, %v2931
    %v3156 = vpack.c.b16 %v2940, %v2932
    %v3157 = vpack.c.b16 %v2941, %v2933
    %v3158 = vpack.c.b16 %v2942, %v2934
    %v3159 = vpack.c.b16 %v2943, %v2935
    %v3160 = vpack.c.b16 %v2944, %v2936
    %v3161 = vpack.c.b16 %v2945, %v2937
    %v3162 = vpack.c.b16 %v2946, %v2938
    %v3163 = vpack.c.b16 %v2955, %v2947
    %v3164 = vpack.c.b16 %v2956, %v2948
    %v3165 = vpack.c.b16 %v2957, %v2949
    %v3166 = vpack.c.b16 %v2958, %v2950
    %v3167 = vpack.c.b16 %v2959, %v2951
    %v3168 = vpack.c.b16 %v2960, %v2952
    %v3169 = vpack.c.b16 %v2961, %v2953
    %v3170 = vpack.c.b16 %v2962, %v2954
    %v3171 = vpack.c.b16 %v2971, %v2963
    %v3172 = vpack.c.b16 %v2972, %v2964
    %v3173 = vpack.c.b16 %v2973, %v2965
    %v3174 = vpack.c.b16 %v2974, %v2966
    %v3175 = vpack.c.b16 %v2975, %v2967
    %v3176 = vpack.c.b16 %v2976, %v2968
    %v3177 = vpack.c.b16 %v2977, %v2969
    %v3178 = vpack.c.b16 %v2978, %v2970
    %v3179 = vpack.c.b16 %v2987, %v2979
    %v3180 = vpack.c.b16 %v2988, %v2980
    %v3181 = vpack.c.b16 %v2989, %v2981
    %v3182 = vpack.c.b16 %v2990, %v2982
    %v3183 = vpack.c.b16 %v2991, %v2983
    %v3184 = vpack.c.b16 %v2992, %v2984
    %v3185 = vpack.c.b16 %v2993, %v2985
    %v3186 = vpack.c.b16 %v2994, %v2986
    %v3187 = vpack.c.b16 %v3003, %v2995
    %v3188 = vpack.c.b16 %v3004, %v2996
    %v3189 = vpack.c.b16 %v3005, %v2997
    %v3190 = vpack.c.b16 %v3006, %v2998
    %v3191 = vpack.c.b16 %v3007, %v2999
    %v3192 = vpack.c.b16 %v3008, %v3000
    %v3193 = vpack.c.b16 %v3009, %v3001
    %v3194 = vpack.c.b16 %v3010, %v3002
    %v3195 = vpack.c.b16 %v3019, %v3011
    %v3196 = vpack.c.b16 %v3020, %v3012
    %v3197 = vpack.c.b16 %v3021, %v3013
    %v3198 = vpack.c.b16 %v3022, %v3014
    %v3199 = vpack.c.b16 %v3023, %v3015
    %v3200 = vpack.c.b16 %v3024, %v3016
    %v3201 = vpack.c.b16 %v3025, %v3017
    %v3202 = vpack.c.b16 %v3026, %v3018
    %v3203 = vpack.c.b16 %v3035, %v3027
    %v3204 = vpack.c.b16 %v3036, %v3028
    %v3205 = vpack.c.b16 %v3037, %v3029
    %v3206 = vpack.c.b16 %v3038, %v3030
    %v3207 = vpack.c.b16 %v3039, %v3031
    %v3208 = vpack.c.b16 %v3040, %v3032
    %v3209 = vpack.c.b16 %v3041, %v3033
    %v3210 = vpack.c.b16 %v3042, %v3034
    %v3211 = vpack.c.b16 %v3051, %v3043
    %v3212 = vpack.c.b16 %v3052, %v3044
    %v3213 = vpack.c.b16 %v3053, %v3045
    %v3214 = vpack.c.b16 %v3054, %v3046
    %v3215 = vpack.c.b16 %v3055, %v3047
    %v3216 = vpack.c.b16 %v3056, %v3048
    %v3217 = vpack.c.b16 %v3057, %v3049
    %v3218 = vpack.c.b16 %v3058, %v3050
    %v3219 = vpack.c.b16 %v3067, %v3059
    %v3220 = vpack.c.b16 %v3068, %v3060
    %v3221 = vpack.c.b16 %v3069, %v3061
    %v3222 = vpack.c.b16 %v3070, %v3062
    %v3223 = vpack.c.b16 %v3071, %v3063
    %v3224 = vpack.c.b16 %v3072, %v3064
    %v3225 = vpack.c.b16 %v3073, %v3065
    %v3226 = vpack.c.b16 %v3074, %v3066
    %v3227 = vpack.c.b16 %v3083, %v3075
    %v3228 = vpack.c.b16 %v3084, %v3076
    %v3229 = vpack.c.b16 %v3085, %v3077
    %v3230 = vpack.c.b16 %v3086, %v3078
    %v3231 = vpack.c.b16 %v3087, %v3079
    %v3232 = vpack.c.b16 %v3088, %v3080
    %v3233 = vpack.c.b16 %v3089, %v3081
    %v3234 = vpack.c.b16 %v3090, %v3082
    %v3235 = vpack.c.b16 %v3099, %v3091
    %v3236 = vpack.c.b16 %v3100, %v3092
    %v3237 = vpack.c.b16 %v3101, %v3093
    %v3238 = vpack.c.b16 %v3102, %v3094
    %v3239 = vpack.c.b16 %v3103, %v3095
    %v3240 = vpack.c.b16 %v3104, %v3096
    %v3241 = vpack.c.b16 %v3105, %v3097
    %v3242 = vpack.c.b16 %v3106, %v3098
    %v3243 = vpack.c.b16 %v3115, %v3107
    %v3244 = vpack.c.b16 %v3116, %v3108
    %v3245 = vpack.c.b16 %v3117, %v3109
    %v3246 = vpack.c.b16 %v3118, %v3110
    %v3247 = vpack.c.b16 %v3119, %v3111
    %v3248 = vpack.c.b16 %v3120, %v3112
    %v3249 = vpack.c.b16 %v3121, %v3113
    %v3250 = vpack.c.b16 %v3122, %v3114
    %3379 = vmatpush.bf16.msra.mxu0 %v3179
    %3380 = vmatpush.bf16.msra.mxu0 %v3171
    %3381 = vmatpush.bf16.msra.mxu0 %v3163
    %3382 = vmatpush.bf16.msra.mxu0 %v3155
    %3383 = vmatpush.bf16.msra.mxu0 %v3147
    %3384 = vmatpush.bf16.msra.mxu0 %v3139
    %3385 = vmatpush.bf16.msra.mxu0 %v3131
    %3386 = vmatpush.bf16.msra.mxu0 %v3123
    %3387 = vmatmul.bf16.gmra.mxu0 %v2732
    %v3388 = vpop.f32.mrf.mxu0
    %v3389 = vadd.f32 0.0, %v3388
    %v3390 = vpop.f32.mrf.mxu0
    %3391 = vdwg.mxu0
    %3392 = vmatpush.bf16.msra.mxu0 %v3243
    %3393 = vmatpush.bf16.msra.mxu0 %v3235
    %3394 = vmatpush.bf16.msra.mxu0 %v3227
    %3395 = vmatpush.bf16.msra.mxu0 %v3219
    %3396 = vmatpush.bf16.msra.mxu0 %v3211
    %3397 = vmatpush.bf16.msra.mxu0 %v3203
    %3398 = vmatpush.bf16.msra.mxu0 %v3195
    %3399 = vmatpush.bf16.msra.mxu0 %v3187
    %3400 = vmatmul.bf16.gmra.mxu0 %v2735
    %v3401 = vpop.f32.mrf.mxu0
    %v3402 = vadd.f32 %v3389, %v3401
    %v3403 = vpop.f32.mrf.mxu0
    %3404 = vdwg.mxu0
    %3405 = vmatpush.bf16.msra.mxu0 %v3180
    %3406 = vmatpush.bf16.msra.mxu0 %v3172
    %3407 = vmatpush.bf16.msra.mxu0 %v3164
    %3408 = vmatpush.bf16.msra.mxu0 %v3156
    %3409 = vmatpush.bf16.msra.mxu0 %v3148
    %3410 = vmatpush.bf16.msra.mxu0 %v3140
    %3411 = vmatpush.bf16.msra.mxu0 %v3132
    %3412 = vmatpush.bf16.msra.mxu0 %v3124
    %3413 = vmatmul.bf16.gmra.mxu0 %v2732
    %v3414 = vpop.f32.mrf.mxu0
    %v3415 = vadd.f32 0.0, %v3414
    %v3416 = vpop.f32.mrf.mxu0
    %3417 = vdwg.mxu0
    %3418 = vmatpush.bf16.msra.mxu0 %v3244
    %3419 = vmatpush.bf16.msra.mxu0 %v3236
    %3420 = vmatpush.bf16.msra.mxu0 %v3228
    %3421 = vmatpush.bf16.msra.mxu0 %v3220
    %3422 = vmatpush.bf16.msra.mxu0 %v3212
    %3423 = vmatpush.bf16.msra.mxu0 %v3204
    %3424 = vmatpush.bf16.msra.mxu0 %v3196
    %3425 = vmatpush.bf16.msra.mxu0 %v3188
    %3426 = vmatmul.bf16.gmra.mxu0 %v2735
    %v3427 = vpop.f32.mrf.mxu0
    %v3428 = vadd.f32 %v3415, %v3427
    %v3429 = vpop.f32.mrf.mxu0
    %3430 = vdwg.mxu0
    %3431 = vmatpush.bf16.msra.mxu0 %v3181
    %3432 = vmatpush.bf16.msra.mxu0 %v3173
    %3433 = vmatpush.bf16.msra.mxu0 %v3165
    %3434 = vmatpush.bf16.msra.mxu0 %v3157
    %3435 = vmatpush.bf16.msra.mxu0 %v3149
    %3436 = vmatpush.bf16.msra.mxu0 %v3141
    %3437 = vmatpush.bf16.msra.mxu0 %v3133
    %3438 = vmatpush.bf16.msra.mxu0 %v3125
    %3439 = vmatmul.bf16.gmra.mxu0 %v2732
    %v3440 = vpop.f32.mrf.mxu0
    %v3441 = vadd.f32 0.0, %v3440
    %v3442 = vpop.f32.mrf.mxu0
    %3443 = vdwg.mxu0
    %3444 = vmatpush.bf16.msra.mxu0 %v3245
    %3445 = vmatpush.bf16.msra.mxu0 %v3237
    %3446 = vmatpush.bf16.msra.mxu0 %v3229
    %3447 = vmatpush.bf16.msra.mxu0 %v3221
    %3448 = vmatpush.bf16.msra.mxu0 %v3213
    %3449 = vmatpush.bf16.msra.mxu0 %v3205
    %3450 = vmatpush.bf16.msra.mxu0 %v3197
    %3451 = vmatpush.bf16.msra.mxu0 %v3189
    %3452 = vmatmul.bf16.gmra.mxu0 %v2735
    %v3453 = vpop.f32.mrf.mxu0
    %v3454 = vadd.f32 %v3441, %v3453
    %v3455 = vpop.f32.mrf.mxu0
    %3456 = vdwg.mxu0
    %3457 = vmatpush.bf16.msra.mxu0 %v3182
    %3458 = vmatpush.bf16.msra.mxu0 %v3174
    %3459 = vmatpush.bf16.msra.mxu0 %v3166
    %3460 = vmatpush.bf16.msra.mxu0 %v3158
    %3461 = vmatpush.bf16.msra.mxu0 %v3150
    %3462 = vmatpush.bf16.msra.mxu0 %v3142
    %3463 = vmatpush.bf16.msra.mxu0 %v3134
    %3464 = vmatpush.bf16.msra.mxu0 %v3126
    %3465 = vmatmul.bf16.gmra.mxu0 %v2732
    %v3466 = vpop.f32.mrf.mxu0
    %v3467 = vadd.f32 0.0, %v3466
    %v3468 = vpop.f32.mrf.mxu0
    %3469 = vdwg.mxu0
    %3470 = vmatpush.bf16.msra.mxu0 %v3246
    %3471 = vmatpush.bf16.msra.mxu0 %v3238
    %3472 = vmatpush.bf16.msra.mxu0 %v3230
    %3473 = vmatpush.bf16.msra.mxu0 %v3222
    %3474 = vmatpush.bf16.msra.mxu0 %v3214
    %3475 = vmatpush.bf16.msra.mxu0 %v3206
    %3476 = vmatpush.bf16.msra.mxu0 %v3198
    %3477 = vmatpush.bf16.msra.mxu0 %v3190
    %3478 = vmatmul.bf16.gmra.mxu0 %v2735
    %v3479 = vpop.f32.mrf.mxu0
    %v3480 = vadd.f32 %v3467, %v3479
    %v3481 = vpop.f32.mrf.mxu0
    %3482 = vdwg.mxu0
    %3483 = vmatpush.bf16.msra.mxu0 %v3183
    %3484 = vmatpush.bf16.msra.mxu0 %v3175
    %3485 = vmatpush.bf16.msra.mxu0 %v3167
    %3486 = vmatpush.bf16.msra.mxu0 %v3159
    %3487 = vmatpush.bf16.msra.mxu0 %v3151
    %3488 = vmatpush.bf16.msra.mxu0 %v3143
    %3489 = vmatpush.bf16.msra.mxu0 %v3135
    %3490 = vmatpush.bf16.msra.mxu0 %v3127
    %3491 = vmatmul.bf16.gmra.mxu0 %v2732
    %v3492 = vpop.f32.mrf.mxu0
    %v3493 = vadd.f32 0.0, %v3492
    %v3494 = vpop.f32.mrf.mxu0
    %3495 = vdwg.mxu0
    %3496 = vmatpush.bf16.msra.mxu0 %v3247
    %3497 = vmatpush.bf16.msra.mxu0 %v3239
    %3498 = vmatpush.bf16.msra.mxu0 %v3231
    %3499 = vmatpush.bf16.msra.mxu0 %v3223
    %3500 = vmatpush.bf16.msra.mxu0 %v3215
    %3501 = vmatpush.bf16.msra.mxu0 %v3207
    %3502 = vmatpush.bf16.msra.mxu0 %v3199
    %3503 = vmatpush.bf16.msra.mxu0 %v3191
    %3504 = vmatmul.bf16.gmra.mxu0 %v2735
    %v3505 = vpop.f32.mrf.mxu0
    %v3506 = vadd.f32 %v3493, %v3505
    %v3507 = vpop.f32.mrf.mxu0
    %3508 = vdwg.mxu0
    %3509 = vmatpush.bf16.msra.mxu0 %v3184
    %3510 = vmatpush.bf16.msra.mxu0 %v3176
    %3511 = vmatpush.bf16.msra.mxu0 %v3168
    %3512 = vmatpush.bf16.msra.mxu0 %v3160
    %3513 = vmatpush.bf16.msra.mxu0 %v3152
    %3514 = vmatpush.bf16.msra.mxu0 %v3144
    %3515 = vmatpush.bf16.msra.mxu0 %v3136
    %3516 = vmatpush.bf16.msra.mxu0 %v3128
    %3517 = vmatmul.bf16.gmra.mxu0 %v2732
    %v3518 = vpop.f32.mrf.mxu0
    %v3519 = vadd.f32 0.0, %v3518
    %v3520 = vpop.f32.mrf.mxu0
    %3521 = vdwg.mxu0
    %3522 = vmatpush.bf16.msra.mxu0 %v3248
    %3523 = vmatpush.bf16.msra.mxu0 %v3240
    %3524 = vmatpush.bf16.msra.mxu0 %v3232
    %3525 = vmatpush.bf16.msra.mxu0 %v3224
    %3526 = vmatpush.bf16.msra.mxu0 %v3216
    %3527 = vmatpush.bf16.msra.mxu0 %v3208
    %3528 = vmatpush.bf16.msra.mxu0 %v3200
    %3529 = vmatpush.bf16.msra.mxu0 %v3192
    %3530 = vmatmul.bf16.gmra.mxu0 %v2735
    %v3531 = vpop.f32.mrf.mxu0
    %v3532 = vadd.f32 %v3519, %v3531
    %v3533 = vpop.f32.mrf.mxu0
    %3534 = vdwg.mxu0
    %3535 = vmatpush.bf16.msra.mxu0 %v3185
    %3536 = vmatpush.bf16.msra.mxu0 %v3177
    %3537 = vmatpush.bf16.msra.mxu0 %v3169
    %3538 = vmatpush.bf16.msra.mxu0 %v3161
    %3539 = vmatpush.bf16.msra.mxu0 %v3153
    %3540 = vmatpush.bf16.msra.mxu0 %v3145
    %3541 = vmatpush.bf16.msra.mxu0 %v3137
    %3542 = vmatpush.bf16.msra.mxu0 %v3129
    %3543 = vmatmul.bf16.gmra.mxu0 %v2732
    %v3544 = vpop.f32.mrf.mxu0
    %v3545 = vadd.f32 0.0, %v3544
    %v3546 = vpop.f32.mrf.mxu0
    %3547 = vdwg.mxu0
    %3548 = vmatpush.bf16.msra.mxu0 %v3249
    %3549 = vmatpush.bf16.msra.mxu0 %v3241
    %3550 = vmatpush.bf16.msra.mxu0 %v3233
    %3551 = vmatpush.bf16.msra.mxu0 %v3225
    %3552 = vmatpush.bf16.msra.mxu0 %v3217
    %3553 = vmatpush.bf16.msra.mxu0 %v3209
    %3554 = vmatpush.bf16.msra.mxu0 %v3201
    %3555 = vmatpush.bf16.msra.mxu0 %v3193
    %3556 = vmatmul.bf16.gmra.mxu0 %v2735
    %v3557 = vpop.f32.mrf.mxu0
    %v3558 = vadd.f32 %v3545, %v3557
    %v3559 = vpop.f32.mrf.mxu0
    %3560 = vdwg.mxu0
    %3561 = vmatpush.bf16.msra.mxu0 %v3186
    %3562 = vmatpush.bf16.msra.mxu0 %v3178
    %3563 = vmatpush.bf16.msra.mxu0 %v3170
    %3564 = vmatpush.bf16.msra.mxu0 %v3162
    %3565 = vmatpush.bf16.msra.mxu0 %v3154
    %3566 = vmatpush.bf16.msra.mxu0 %v3146
    %3567 = vmatpush.bf16.msra.mxu0 %v3138
    %3568 = vmatpush.bf16.msra.mxu0 %v3130
    %3569 = vmatmul.bf16.gmra.mxu0 %v2732
    %v3570 = vpop.f32.mrf.mxu0
    %v3571 = vadd.f32 0.0, %v3570
    %v3572 = vpop.f32.mrf.mxu0
    %3573 = vdwg.mxu0
    %3574 = vmatpush.bf16.msra.mxu0 %v3250
    %3575 = vmatpush.bf16.msra.mxu0 %v3242
    %3576 = vmatpush.bf16.msra.mxu0 %v3234
    %3577 = vmatpush.bf16.msra.mxu0 %v3226
    %3578 = vmatpush.bf16.msra.mxu0 %v3218
    %3579 = vmatpush.bf16.msra.mxu0 %v3210
    %3580 = vmatpush.bf16.msra.mxu0 %v3202
    %3581 = vmatpush.bf16.msra.mxu0 %v3194
    %3582 = vmatmul.bf16.gmra.mxu0 %v2735
    %v3583 = vpop.f32.mrf.mxu0
    %v3584 = vadd.f32 %v3571, %v3583
    %v3585 = vpop.f32.mrf.mxu0
    %3586 = vdwg.mxu0
    %v3595 = vrot.slane %v3402, 6
    %v3596 = vrot.slane %v3428, 6
    %v3597 = vrot.slane %v3454, 6
    %v3598 = vrot.slane %v3480, 6
    %v3599 = vrot.slane %v3506, 6
    %v3600 = vrot.slane %v3532, 6
    %v3601 = vrot.slane %v3558, 6
    %v3602 = vrot.slane %v3584, 6
    %v3611 = vadd.f32 %v147, %v3595
    %v3612 = vadd.f32 %v160, %v3596
    %v3613 = vadd.f32 %v173, %v3597
    %v3614 = vadd.f32 %v186, %v3598
    %v3615 = vadd.f32 %v199, %v3599
    %v3616 = vadd.f32 %v212, %v3600
    %v3617 = vadd.f32 %v225, %v3601
    %v3618 = vadd.f32 %v238, %v3602
    %v3619 = vxor.u32 %v3611, 2147483648
    %v3620 = vxor.u32 %v3612, 2147483648
    %v3621 = vxor.u32 %v3613, 2147483648
    %v3622 = vxor.u32 %v3614, 2147483648
    %v3623 = vxor.u32 %v3615, 2147483648
    %v3624 = vxor.u32 %v3616, 2147483648
    %v3625 = vmul.f32 %v3619, 1.442695
    %v3626 = vpow.pop %v3625
    %v3627 = vmul.f32 %v3620, 1.442695
    %v3628 = vpow.pop %v3627
    %v3629 = vmul.f32 %v3621, 1.442695
    %v3630 = vpow.pop %v3629
    %v3631 = vmul.f32 %v3622, 1.442695
    %v3632 = vpow.pop %v3631
    %v3633 = vmul.f32 %v3623, 1.442695
    %v3634 = vpow.pop %v3633
    %v3635 = vmul.f32 %v3624, 1.442695
    %v3636 = vpow.pop %v3635
    %v3637 = vadd.f32 %v3626, 1.0
    %v3638 = vadd.f32 %v3628, 1.0
    %v3639 = vadd.f32 %v3630, 1.0
    %v3640 = vadd.f32 %v3632, 1.0
    %v3641 = vadd.f32 %v3634, 1.0
    %v3642 = vadd.f32 %v3636, 1.0
    %v3643 = vrcp.pop %v3637
    %v3644 = vmul.f32 %v3637, %v3643
    %v3645 = vsub.f32 1.0, %v3644
    %v3646 = vmul.f32 %v3643, %v3645
    %v3647 = vadd.f32 %v3643, %v3646
    %vm3648 = vweird.f32 %v3637
    %vm3649 = vweird.f32 %v3643
    %vm3650 = vmor %vm3648, %vm3649
    %v3651 = vsel %vm3650, %v3643, %v3647
    %v3652 = vand.u32 2147483647, %v3637
    %vm3653 = vcmp.eq.f32.partialorder %v3652, 8.507059e+37
    %v3654 = vand.u32 %v3637, 2147483648
    %v3655 = vor.u32 1.1754944e-38, %v3654
    %v3656 = vsel %vm3653, %v3655, %v3651
    %v3657 = vmul.f32 1.0, %v3656
    %v3658 = vrcp.pop %v3638
    %v3659 = vmul.f32 %v3638, %v3658
    %v3660 = vsub.f32 1.0, %v3659
    %v3661 = vmul.f32 %v3658, %v3660
    %v3662 = vadd.f32 %v3658, %v3661
    %vm3663 = vweird.f32 %v3638
    %vm3664 = vweird.f32 %v3658
    %vm3665 = vmor %vm3663, %vm3664
    %v3666 = vsel %vm3665, %v3658, %v3662
    %v3667 = vand.u32 2147483647, %v3638
    %vm3668 = vcmp.eq.f32.partialorder %v3667, 8.507059e+37
    %v3669 = vand.u32 %v3638, 2147483648
    %v3670 = vor.u32 1.1754944e-38, %v3669
    %v3671 = vsel %vm3668, %v3670, %v3666
    %v3672 = vmul.f32 1.0, %v3671
    %v3673 = vrcp.pop %v3639
    %v3674 = vmul.f32 %v3639, %v3673
    %v3675 = vsub.f32 1.0, %v3674
    %v3676 = vmul.f32 %v3673, %v3675
    %v3677 = vadd.f32 %v3673, %v3676
    %vm3678 = vweird.f32 %v3639
    %vm3679 = vweird.f32 %v3673
    %vm3680 = vmor %vm3678, %vm3679
    %v3681 = vsel %vm3680, %v3673, %v3677
    %v3682 = vand.u32 2147483647, %v3639
    %vm3683 = vcmp.eq.f32.partialorder %v3682, 8.507059e+37
    %v3684 = vand.u32 %v3639, 2147483648
    %v3685 = vor.u32 1.1754944e-38, %v3684
    %v3686 = vsel %vm3683, %v3685, %v3681
    %v3687 = vmul.f32 1.0, %v3686
    %v3688 = vrcp.pop %v3640
    %v3689 = vmul.f32 %v3640, %v3688
    %v3690 = vsub.f32 1.0, %v3689
    %v3691 = vmul.f32 %v3688, %v3690
    %v3692 = vadd.f32 %v3688, %v3691
    %vm3693 = vweird.f32 %v3640
    %vm3694 = vweird.f32 %v3688
    %vm3695 = vmor %vm3693, %vm3694
    %v3696 = vsel %vm3695, %v3688, %v3692
    %v3697 = vand.u32 2147483647, %v3640
    %vm3698 = vcmp.eq.f32.partialorder %v3697, 8.507059e+37
    %v3699 = vand.u32 %v3640, 2147483648
    %v3700 = vor.u32 1.1754944e-38, %v3699
    %v3701 = vsel %vm3698, %v3700, %v3696
    %v3702 = vmul.f32 1.0, %v3701
    %v3703 = vrcp.pop %v3641
    %v3704 = vmul.f32 %v3641, %v3703
    %v3705 = vsub.f32 1.0, %v3704
    %v3706 = vmul.f32 %v3703, %v3705
    %v3707 = vadd.f32 %v3703, %v3706
    %vm3708 = vweird.f32 %v3641
    %vm3709 = vweird.f32 %v3703
    %vm3710 = vmor %vm3708, %vm3709
    %v3711 = vsel %vm3710, %v3703, %v3707
    %v3712 = vand.u32 2147483647, %v3641
    %vm3713 = vcmp.eq.f32.partialorder %v3712, 8.507059e+37
    %v3714 = vand.u32 %v3641, 2147483648
    %v3715 = vor.u32 1.1754944e-38, %v3714
    %v3716 = vsel %vm3713, %v3715, %v3711
    %v3717 = vmul.f32 1.0, %v3716
    %v3718 = vrcp.pop %v3642
    %v3719 = vmul.f32 %v3642, %v3718
    %v3720 = vsub.f32 1.0, %v3719
    %v3721 = vmul.f32 %v3718, %v3720
    %v3722 = vadd.f32 %v3718, %v3721
    %vm3723 = vweird.f32 %v3642
    %vm3724 = vweird.f32 %v3718
    %vm3725 = vmor %vm3723, %vm3724
    %v3726 = vsel %vm3725, %v3718, %v3722
    %v3727 = vand.u32 2147483647, %v3642
    %vm3728 = vcmp.eq.f32.partialorder %v3727, 8.507059e+37
    %v3729 = vand.u32 %v3642, 2147483648
    %v3730 = vor.u32 1.1754944e-38, %v3729
    %v3731 = vsel %vm3728, %v3730, %v3726
    %v3732 = vmul.f32 1.0, %v3731
    %v3733 = vtanh.pop %v3617
    %v3734 = vtanh.pop %v3618
    %v3737 = vrot.slane %v2551, 7
    %v3738 = vrot.slane %v2552, 7
    %v3741 = vmul.f32 %v3687, %v3737
    %v3742 = vmul.f32 %v3702, %v3738
    %v3743 = vmul.f32 %v3657, %v3733
    %v3744 = vmul.f32 %v3672, %v3734
    %v3745 = vadd.f32 %v3741, %v3743
    %v3746 = vadd.f32 %v3742, %v3744
    %v3747 = vtanh.pop %v3745
    %v3748 = vtanh.pop %v3746
    %v3749 = vmul.f32 %v3717, %v3747
    %v3750 = vmul.f32 %v3732, %v3748
    %vm3751 = vcmask 1042434
    %v3752 = vsel %vm3751, %v3749, 0.0
    %v3753 = vsel %vm3751, %v3750, 0.0
    %v3754 = vadd.f32 %v3752, %v3753
    %3755 = vadd.xlane.f32.xlu0 %v3754
    %v3756 = vpop.xlane.xlu0 %3755
    %v3757 = vmul.f32 %v3756, %v1365
    %v3758 = vsub.f32 %v3749, %v3757
    %v3759 = vsub.f32 %v3750, %v3757
    %v3760 = vmul.f32 %v3758, %v3758
    %v3761 = vmul.f32 %v3759, %v3759
    %v3762 = vsel %vm3751, %v3760, 0.0
    %v3763 = vsel %vm3751, %v3761, 0.0
    %v3764 = vadd.f32 %v3762, %v3763
    %3765 = vadd.xlane.f32.xlu0 %v3764
    %v3766 = vpop.xlane.xlu0 %3765
    %v3767 = vmul.f32 %v3766, %v1365
    %v3768 = vadd.f32 %v3767, 1e-05
    %v3769 = vrsqrt.pop %v3768
    %v3770 = vmul.f32 %v3769, %v3768
    %v3771 = vmul.f32 %v3770, %v3769
    %v3772 = vmul.f32 0.5, %v3771
    %v3773 = vsub.f32 1.5, %v3772
    %v3774 = vmul.f32 %v3769, %v3773
    %vm3775 = vweird.f32 %v3768
    %vm3776 = vweird.f32 %v3769
    %vm3777 = vmor %vm3775, %vm3776
    %v3778 = vsel %vm3777, %v3769, %v3774
    %v3779 = vmul.f32 %v3758, %v3778
    %v3780 = vmul.f32 %v3759, %v3778
    %v3781 = vmul.f32 %v3779, %v1391
    %v3782 = vmul.f32 %v3780, %v1392
    %v3783 = vadd.f32 %v3781, %v1398
    %v3784 = vadd.f32 %v3782, %v1399
    %3787 = vst [vmem:[#allocation1] sm:$0xff] %v3783
    %3788 = vst [vmem:[#allocation1 + $0x9] sm:$0xff] %v3784
    %s3789 = scalar_lea.vmem [#allocation1], 2
    %v3790 = vld [vmem:[%s3789] ss:$9 sm:$0xff]
    %s3792 = scalar_lea.vmem [#allocation2], 2
    %3793 = vst.msk [vmem:[%s3792] ss:$8 sm:$0x3] %vm1412, %v3790
    %3794 = vst.msk [vmem:[%s3792] ss:$8 sm:$0x0] %vm1412, %v3790
    %v3795 = vpack.c.bf16 %v3749, %v3749
    %v3796 = vpack.c.bf16 %v3750, %v3750
    %v3797 = vld [vmem:[#allocation4] sm:$0xff]
    %v3798 = vld [vmem:[#allocation4 + $0x8] sm:$0xff]
    %v3799 = vld [vmem:[#allocation4 + $0x10] sm:$0xff]
    %v3800 = vld [vmem:[#allocation4 + $0x18] sm:$0xff]
    %v3801 = vld [vmem:[#allocation4 + $0x20] sm:$0xff]
    %v3802 = vld [vmem:[#allocation4 + $0x28] sm:$0xff]
    %v3803 = vld [vmem:[#allocation4 + $0x30] sm:$0xff]
    %v3804 = vld [vmem:[#allocation4 + $0x38] sm:$0xff]
    %v3805 = vld [vmem:[#allocation4 + $0x40] sm:$0xff]
    %v3806 = vld [vmem:[#allocation4 + $0x48] sm:$0xff]
    %v3807 = vld [vmem:[#allocation4 + $0x50] sm:$0xff]
    %v3808 = vld [vmem:[#allocation4 + $0x58] sm:$0xff]
    %v3809 = vld [vmem:[#allocation4 + $0x60] sm:$0xff]
    %v3810 = vld [vmem:[#allocation4 + $0x68] sm:$0xff]
    %v3811 = vld [vmem:[#allocation4 + $0x70] sm:$0xff]
    %v3812 = vld [vmem:[#allocation4 + $0x78] sm:$0xff]
    %v3813 = vld [vmem:[#allocation4 + $0x80] sm:$0xff]
    %v3814 = vld [vmem:[#allocation4 + $0x88] sm:$0xff]
    %v3815 = vld [vmem:[#allocation4 + $0x90] sm:$0xff]
    %v3816 = vld [vmem:[#allocation4 + $0x98] sm:$0xff]
    %v3817 = vld [vmem:[#allocation4 + $0xa0] sm:$0xff]
    %v3818 = vld [vmem:[#allocation4 + $0xa8] sm:$0xff]
    %v3819 = vld [vmem:[#allocation4 + $0xb0] sm:$0xff]
    %v3820 = vld [vmem:[#allocation4 + $0xb8] sm:$0xff]
    %v3821 = vld [vmem:[#allocation4 + $0xc0] sm:$0xff]
    %v3822 = vld [vmem:[#allocation4 + $0xc8] sm:$0xff]
    %v3823 = vld [vmem:[#allocation4 + $0xd0] sm:$0xff]
    %v3824 = vld [vmem:[#allocation4 + $0xd8] sm:$0xff]
    %v3825 = vld [vmem:[#allocation4 + $0xe0] sm:$0xff]
    %v3826 = vld [vmem:[#allocation4 + $0xe8] sm:$0xff]
    %v3827 = vld [vmem:[#allocation4 + $0xf0] sm:$0xff]
    %v3828 = vld [vmem:[#allocation4 + $0xf8] sm:$0xff]
    %v3829 = vld [vmem:[#allocation4 + $0x100] sm:$0xff]
    %v3830 = vld [vmem:[#allocation4 + $0x108] sm:$0xff]
    %v3831 = vld [vmem:[#allocation4 + $0x110] sm:$0xff]
    %v3832 = vld [vmem:[#allocation4 + $0x118] sm:$0xff]
    %v3833 = vld [vmem:[#allocation4 + $0x120] sm:$0xff]
    %v3834 = vld [vmem:[#allocation4 + $0x128] sm:$0xff]
    %v3835 = vld [vmem:[#allocation4 + $0x130] sm:$0xff]
    %v3836 = vld [vmem:[#allocation4 + $0x138] sm:$0xff]
    %v3837 = vld [vmem:[#allocation4 + $0x140] sm:$0xff]
    %v3838 = vld [vmem:[#allocation4 + $0x148] sm:$0xff]
    %v3839 = vld [vmem:[#allocation4 + $0x150] sm:$0xff]
    %v3840 = vld [vmem:[#allocation4 + $0x158] sm:$0xff]
    %v3841 = vld [vmem:[#allocation4 + $0x160] sm:$0xff]
    %v3842 = vld [vmem:[#allocation4 + $0x168] sm:$0xff]
    %v3843 = vld [vmem:[#allocation4 + $0x170] sm:$0xff]
    %v3844 = vld [vmem:[#allocation4 + $0x178] sm:$0xff]
    %v3845 = vld [vmem:[#allocation4 + $0x180] sm:$0xff]
    %v3846 = vld [vmem:[#allocation4 + $0x188] sm:$0xff]
    %v3847 = vld [vmem:[#allocation4 + $0x190] sm:$0xff]
    %v3848 = vld [vmem:[#allocation4 + $0x198] sm:$0xff]
    %v3849 = vld [vmem:[#allocation4 + $0x1a0] sm:$0xff]
    %v3850 = vld [vmem:[#allocation4 + $0x1a8] sm:$0xff]
    %v3851 = vld [vmem:[#allocation4 + $0x1b0] sm:$0xff]
    %v3852 = vld [vmem:[#allocation4 + $0x1b8] sm:$0xff]
    %v3853 = vld [vmem:[#allocation4 + $0x1c0] sm:$0xff]
    %v3854 = vld [vmem:[#allocation4 + $0x1c8] sm:$0xff]
    %v3855 = vld [vmem:[#allocation4 + $0x1d0] sm:$0xff]
    %v3856 = vld [vmem:[#allocation4 + $0x1d8] sm:$0xff]
    %v3857 = vld [vmem:[#allocation4 + $0x1e0] sm:$0xff]
    %v3858 = vld [vmem:[#allocation4 + $0x1e8] sm:$0xff]
    %v3859 = vld [vmem:[#allocation4 + $0x1f0] sm:$0xff]
    %v3860 = vld [vmem:[#allocation4 + $0x1f8] sm:$0xff]
    %v3861 = vld [vmem:[#allocation4 + $0x200] sm:$0xff]
    %v3862 = vld [vmem:[#allocation4 + $0x208] sm:$0xff]
    %v3863 = vld [vmem:[#allocation4 + $0x210] sm:$0xff]
    %v3864 = vld [vmem:[#allocation4 + $0x218] sm:$0xff]
    %v3865 = vld [vmem:[#allocation4 + $0x220] sm:$0xff]
    %v3866 = vld [vmem:[#allocation4 + $0x228] sm:$0xff]
    %v3867 = vld [vmem:[#allocation4 + $0x230] sm:$0xff]
    %v3868 = vld [vmem:[#allocation4 + $0x238] sm:$0xff]
    %v3869 = vld [vmem:[#allocation4 + $0x240] sm:$0xff]
    %v3870 = vld [vmem:[#allocation4 + $0x248] sm:$0xff]
    %v3871 = vld [vmem:[#allocation4 + $0x250] sm:$0xff]
    %v3872 = vld [vmem:[#allocation4 + $0x258] sm:$0xff]
    %v3873 = vld [vmem:[#allocation4 + $0x260] sm:$0xff]
    %v3874 = vld [vmem:[#allocation4 + $0x268] sm:$0xff]
    %v3875 = vld [vmem:[#allocation4 + $0x270] sm:$0xff]
    %v3876 = vld [vmem:[#allocation4 + $0x278] sm:$0xff]
    %v3877 = vld [vmem:[#allocation4 + $0x280] sm:$0xff]
    %v3878 = vld [vmem:[#allocation4 + $0x288] sm:$0xff]
    %v3879 = vld [vmem:[#allocation4 + $0x290] sm:$0xff]
    %v3880 = vld [vmem:[#allocation4 + $0x298] sm:$0xff]
    %v3881 = vld [vmem:[#allocation4 + $0x2a0] sm:$0xff]
    %v3882 = vld [vmem:[#allocation4 + $0x2a8] sm:$0xff]
    %v3883 = vld [vmem:[#allocation4 + $0x2b0] sm:$0xff]
    %v3884 = vld [vmem:[#allocation4 + $0x2b8] sm:$0xff]
    %v3885 = vld [vmem:[#allocation4 + $0x2c0] sm:$0xff]
    %v3886 = vld [vmem:[#allocation4 + $0x2c8] sm:$0xff]
    %v3887 = vld [vmem:[#allocation4 + $0x2d0] sm:$0xff]
    %v3888 = vld [vmem:[#allocation4 + $0x2d8] sm:$0xff]
    %v3889 = vld [vmem:[#allocation4 + $0x2e0] sm:$0xff]
    %v3890 = vld [vmem:[#allocation4 + $0x2e8] sm:$0xff]
    %v3891 = vld [vmem:[#allocation4 + $0x2f0] sm:$0xff]
    %v3892 = vld [vmem:[#allocation4 + $0x2f8] sm:$0xff]
    %v3893 = vld [vmem:[#allocation4 + $0x300] sm:$0xff]
    %v3894 = vld [vmem:[#allocation4 + $0x308] sm:$0xff]
    %v3895 = vld [vmem:[#allocation4 + $0x310] sm:$0xff]
    %v3896 = vld [vmem:[#allocation4 + $0x318] sm:$0xff]
    %v3897 = vld [vmem:[#allocation4 + $0x320] sm:$0xff]
    %v3898 = vld [vmem:[#allocation4 + $0x328] sm:$0xff]
    %v3899 = vld [vmem:[#allocation4 + $0x330] sm:$0xff]
    %v3900 = vld [vmem:[#allocation4 + $0x338] sm:$0xff]
    %v3901 = vld [vmem:[#allocation4 + $0x340] sm:$0xff]
    %v3902 = vld [vmem:[#allocation4 + $0x348] sm:$0xff]
    %v3903 = vld [vmem:[#allocation4 + $0x350] sm:$0xff]
    %v3904 = vld [vmem:[#allocation4 + $0x358] sm:$0xff]
    %v3905 = vld [vmem:[#allocation4 + $0x360] sm:$0xff]
    %v3906 = vld [vmem:[#allocation4 + $0x368] sm:$0xff]
    %v3907 = vld [vmem:[#allocation4 + $0x370] sm:$0xff]
    %v3908 = vld [vmem:[#allocation4 + $0x378] sm:$0xff]
    %v3909 = vld [vmem:[#allocation4 + $0x380] sm:$0xff]
    %v3910 = vld [vmem:[#allocation4 + $0x388] sm:$0xff]
    %v3911 = vld [vmem:[#allocation4 + $0x390] sm:$0xff]
    %v3912 = vld [vmem:[#allocation4 + $0x398] sm:$0xff]
    %v3913 = vld [vmem:[#allocation4 + $0x3a0] sm:$0xff]
    %v3914 = vld [vmem:[#allocation4 + $0x3a8] sm:$0xff]
    %v3915 = vld [vmem:[#allocation4 + $0x3b0] sm:$0xff]
    %v3916 = vld [vmem:[#allocation4 + $0x3b8] sm:$0xff]
    %v3917 = vld [vmem:[#allocation4 + $0x3c0] sm:$0xff]
    %v3918 = vld [vmem:[#allocation4 + $0x3c8] sm:$0xff]
    %v3919 = vld [vmem:[#allocation4 + $0x3d0] sm:$0xff]
    %v3920 = vld [vmem:[#allocation4 + $0x3d8] sm:$0xff]
    %v3921 = vld [vmem:[#allocation4 + $0x3e0] sm:$0xff]
    %v3922 = vld [vmem:[#allocation4 + $0x3e8] sm:$0xff]
    %v3923 = vld [vmem:[#allocation4 + $0x3f0] sm:$0xff]
    %v3924 = vld [vmem:[#allocation4 + $0x3f8] sm:$0xff]
    %v3927 = vrot.slane %v3795, 1
    %v3928 = vrot.slane %v3796, 1
    %v4059 = vunpack.c.l.b16 %v3797
    %v4060 = vunpack.c.h.b16 %v3797
    %v4061 = vunpack.c.l.b16 %v3798
    %v4062 = vunpack.c.h.b16 %v3798
    %v4063 = vunpack.c.l.b16 %v3799
    %v4064 = vunpack.c.h.b16 %v3799
    %v4065 = vunpack.c.l.b16 %v3800
    %v4066 = vunpack.c.h.b16 %v3800
    %v4067 = vunpack.c.l.b16 %v3801
    %v4068 = vunpack.c.h.b16 %v3801
    %v4069 = vunpack.c.l.b16 %v3802
    %v4070 = vunpack.c.h.b16 %v3802
    %v4071 = vunpack.c.l.b16 %v3803
    %v4072 = vunpack.c.h.b16 %v3803
    %v4073 = vunpack.c.l.b16 %v3804
    %v4074 = vunpack.c.h.b16 %v3804
    %v4075 = vunpack.c.l.b16 %v3805
    %v4076 = vunpack.c.h.b16 %v3805
    %v4077 = vunpack.c.l.b16 %v3806
    %v4078 = vunpack.c.h.b16 %v3806
    %v4079 = vunpack.c.l.b16 %v3807
    %v4080 = vunpack.c.h.b16 %v3807
    %v4081 = vunpack.c.l.b16 %v3808
    %v4082 = vunpack.c.h.b16 %v3808
    %v4083 = vunpack.c.l.b16 %v3809
    %v4084 = vunpack.c.h.b16 %v3809
    %v4085 = vunpack.c.l.b16 %v3810
    %v4086 = vunpack.c.h.b16 %v3810
    %v4087 = vunpack.c.l.b16 %v3811
    %v4088 = vunpack.c.h.b16 %v3811
    %v4089 = vunpack.c.l.b16 %v3812
    %v4090 = vunpack.c.h.b16 %v3812
    %v4091 = vunpack.c.l.b16 %v3813
    %v4092 = vunpack.c.h.b16 %v3813
    %v4093 = vunpack.c.l.b16 %v3814
    %v4094 = vunpack.c.h.b16 %v3814
    %v4095 = vunpack.c.l.b16 %v3815
    %v4096 = vunpack.c.h.b16 %v3815
    %v4097 = vunpack.c.l.b16 %v3816
    %v4098 = vunpack.c.h.b16 %v3816
    %v4099 = vunpack.c.l.b16 %v3817
    %v4100 = vunpack.c.h.b16 %v3817
    %v4101 = vunpack.c.l.b16 %v3818
    %v4102 = vunpack.c.h.b16 %v3818
    %v4103 = vunpack.c.l.b16 %v3819
    %v4104 = vunpack.c.h.b16 %v3819
    %v4105 = vunpack.c.l.b16 %v3820
    %v4106 = vunpack.c.h.b16 %v3820
    %v4107 = vunpack.c.l.b16 %v3821
    %v4108 = vunpack.c.h.b16 %v3821
    %v4109 = vunpack.c.l.b16 %v3822
    %v4110 = vunpack.c.h.b16 %v3822
    %v4111 = vunpack.c.l.b16 %v3823
    %v4112 = vunpack.c.h.b16 %v3823
    %v4113 = vunpack.c.l.b16 %v3824
    %v4114 = vunpack.c.h.b16 %v3824
    %v4115 = vunpack.c.l.b16 %v3825
    %v4116 = vunpack.c.h.b16 %v3825
    %v4117 = vunpack.c.l.b16 %v3826
    %v4118 = vunpack.c.h.b16 %v3826
    %v4119 = vunpack.c.l.b16 %v3827
    %v4120 = vunpack.c.h.b16 %v3827
    %v4121 = vunpack.c.l.b16 %v3828
    %v4122 = vunpack.c.h.b16 %v3828
    %v4123 = vunpack.c.l.b16 %v3829
    %v4124 = vunpack.c.h.b16 %v3829
    %v4125 = vunpack.c.l.b16 %v3830
    %v4126 = vunpack.c.h.b16 %v3830
    %v4127 = vunpack.c.l.b16 %v3831
    %v4128 = vunpack.c.h.b16 %v3831
    %v4129 = vunpack.c.l.b16 %v3832
    %v4130 = vunpack.c.h.b16 %v3832
    %v4131 = vunpack.c.l.b16 %v3833
    %v4132 = vunpack.c.h.b16 %v3833
    %v4133 = vunpack.c.l.b16 %v3834
    %v4134 = vunpack.c.h.b16 %v3834
    %v4135 = vunpack.c.l.b16 %v3835
    %v4136 = vunpack.c.h.b16 %v3835
    %v4137 = vunpack.c.l.b16 %v3836
    %v4138 = vunpack.c.h.b16 %v3836
    %v4139 = vunpack.c.l.b16 %v3837
    %v4140 = vunpack.c.h.b16 %v3837
    %v4141 = vunpack.c.l.b16 %v3838
    %v4142 = vunpack.c.h.b16 %v3838
    %v4143 = vunpack.c.l.b16 %v3839
    %v4144 = vunpack.c.h.b16 %v3839
    %v4145 = vunpack.c.l.b16 %v3840
    %v4146 = vunpack.c.h.b16 %v3840
    %v4147 = vunpack.c.l.b16 %v3841
    %v4148 = vunpack.c.h.b16 %v3841
    %v4149 = vunpack.c.l.b16 %v3842
    %v4150 = vunpack.c.h.b16 %v3842
    %v4151 = vunpack.c.l.b16 %v3843
    %v4152 = vunpack.c.h.b16 %v3843
    %v4153 = vunpack.c.l.b16 %v3844
    %v4154 = vunpack.c.h.b16 %v3844
    %v4155 = vunpack.c.l.b16 %v3845
    %v4156 = vunpack.c.h.b16 %v3845
    %v4157 = vunpack.c.l.b16 %v3846
    %v4158 = vunpack.c.h.b16 %v3846
    %v4159 = vunpack.c.l.b16 %v3847
    %v4160 = vunpack.c.h.b16 %v3847
    %v4161 = vunpack.c.l.b16 %v3848
    %v4162 = vunpack.c.h.b16 %v3848
    %v4163 = vunpack.c.l.b16 %v3849
    %v4164 = vunpack.c.h.b16 %v3849
    %v4165 = vunpack.c.l.b16 %v3850
    %v4166 = vunpack.c.h.b16 %v3850
    %v4167 = vunpack.c.l.b16 %v3851
    %v4168 = vunpack.c.h.b16 %v3851
    %v4169 = vunpack.c.l.b16 %v3852
    %v4170 = vunpack.c.h.b16 %v3852
    %v4171 = vunpack.c.l.b16 %v3853
    %v4172 = vunpack.c.h.b16 %v3853
    %v4173 = vunpack.c.l.b16 %v3854
    %v4174 = vunpack.c.h.b16 %v3854
    %v4175 = vunpack.c.l.b16 %v3855
    %v4176 = vunpack.c.h.b16 %v3855
    %v4177 = vunpack.c.l.b16 %v3856
    %v4178 = vunpack.c.h.b16 %v3856
    %v4179 = vunpack.c.l.b16 %v3857
    %v4180 = vunpack.c.h.b16 %v3857
    %v4181 = vunpack.c.l.b16 %v3858
    %v4182 = vunpack.c.h.b16 %v3858
    %v4183 = vunpack.c.l.b16 %v3859
    %v4184 = vunpack.c.h.b16 %v3859
    %v4185 = vunpack.c.l.b16 %v3860
    %v4186 = vunpack.c.h.b16 %v3860
    %v4187 = vunpack.c.l.b16 %v3861
    %v4188 = vunpack.c.h.b16 %v3861
    %v4189 = vunpack.c.l.b16 %v3862
    %v4190 = vunpack.c.h.b16 %v3862
    %v4191 = vunpack.c.l.b16 %v3863
    %v4192 = vunpack.c.h.b16 %v3863
    %v4193 = vunpack.c.l.b16 %v3864
    %v4194 = vunpack.c.h.b16 %v3864
    %v4195 = vunpack.c.l.b16 %v3865
    %v4196 = vunpack.c.h.b16 %v3865
    %v4197 = vunpack.c.l.b16 %v3866
    %v4198 = vunpack.c.h.b16 %v3866
    %v4199 = vunpack.c.l.b16 %v3867
    %v4200 = vunpack.c.h.b16 %v3867
    %v4201 = vunpack.c.l.b16 %v3868
    %v4202 = vunpack.c.h.b16 %v3868
    %v4203 = vunpack.c.l.b16 %v3869
    %v4204 = vunpack.c.h.b16 %v3869
    %v4205 = vunpack.c.l.b16 %v3870
    %v4206 = vunpack.c.h.b16 %v3870
    %v4207 = vunpack.c.l.b16 %v3871
    %v4208 = vunpack.c.h.b16 %v3871
    %v4209 = vunpack.c.l.b16 %v3872
    %v4210 = vunpack.c.h.b16 %v3872
    %v4211 = vunpack.c.l.b16 %v3873
    %v4212 = vunpack.c.h.b16 %v3873
    %v4213 = vunpack.c.l.b16 %v3874
    %v4214 = vunpack.c.h.b16 %v3874
    %v4215 = vunpack.c.l.b16 %v3875
    %v4216 = vunpack.c.h.b16 %v3875
    %v4217 = vunpack.c.l.b16 %v3876
    %v4218 = vunpack.c.h.b16 %v3876
    %v4219 = vunpack.c.l.b16 %v3877
    %v4220 = vunpack.c.h.b16 %v3877
    %v4221 = vunpack.c.l.b16 %v3878
    %v4222 = vunpack.c.h.b16 %v3878
    %v4223 = vunpack.c.l.b16 %v3879
    %v4224 = vunpack.c.h.b16 %v3879
    %v4225 = vunpack.c.l.b16 %v3880
    %v4226 = vunpack.c.h.b16 %v3880
    %v4227 = vunpack.c.l.b16 %v3881
    %v4228 = vunpack.c.h.b16 %v3881
    %v4229 = vunpack.c.l.b16 %v3882
    %v4230 = vunpack.c.h.b16 %v3882
    %v4231 = vunpack.c.l.b16 %v3883
    %v4232 = vunpack.c.h.b16 %v3883
    %v4233 = vunpack.c.l.b16 %v3884
    %v4234 = vunpack.c.h.b16 %v3884
    %v4235 = vunpack.c.l.b16 %v3885
    %v4236 = vunpack.c.h.b16 %v3885
    %v4237 = vunpack.c.l.b16 %v3886
    %v4238 = vunpack.c.h.b16 %v3886
    %v4239 = vunpack.c.l.b16 %v3887
    %v4240 = vunpack.c.h.b16 %v3887
    %v4241 = vunpack.c.l.b16 %v3888
    %v4242 = vunpack.c.h.b16 %v3888
    %v4243 = vunpack.c.l.b16 %v3889
    %v4244 = vunpack.c.h.b16 %v3889
    %v4245 = vunpack.c.l.b16 %v3890
    %v4246 = vunpack.c.h.b16 %v3890
    %v4247 = vunpack.c.l.b16 %v3891
    %v4248 = vunpack.c.h.b16 %v3891
    %v4249 = vunpack.c.l.b16 %v3892
    %v4250 = vunpack.c.h.b16 %v3892
    %v4251 = vunpack.c.l.b16 %v3893
    %v4252 = vunpack.c.h.b16 %v3893
    %v4253 = vunpack.c.l.b16 %v3894
    %v4254 = vunpack.c.h.b16 %v3894
    %v4255 = vunpack.c.l.b16 %v3895
    %v4256 = vunpack.c.h.b16 %v3895
    %v4257 = vunpack.c.l.b16 %v3896
    %v4258 = vunpack.c.h.b16 %v3896
    %v4259 = vunpack.c.l.b16 %v3897
    %v4260 = vunpack.c.h.b16 %v3897
    %v4261 = vunpack.c.l.b16 %v3898
    %v4262 = vunpack.c.h.b16 %v3898
    %v4263 = vunpack.c.l.b16 %v3899
    %v4264 = vunpack.c.h.b16 %v3899
    %v4265 = vunpack.c.l.b16 %v3900
    %v4266 = vunpack.c.h.b16 %v3900
    %v4267 = vunpack.c.l.b16 %v3901
    %v4268 = vunpack.c.h.b16 %v3901
    %v4269 = vunpack.c.l.b16 %v3902
    %v4270 = vunpack.c.h.b16 %v3902
    %v4271 = vunpack.c.l.b16 %v3903
    %v4272 = vunpack.c.h.b16 %v3903
    %v4273 = vunpack.c.l.b16 %v3904
    %v4274 = vunpack.c.h.b16 %v3904
    %v4275 = vunpack.c.l.b16 %v3905
    %v4276 = vunpack.c.h.b16 %v3905
    %v4277 = vunpack.c.l.b16 %v3906
    %v4278 = vunpack.c.h.b16 %v3906
    %v4279 = vunpack.c.l.b16 %v3907
    %v4280 = vunpack.c.h.b16 %v3907
    %v4281 = vunpack.c.l.b16 %v3908
    %v4282 = vunpack.c.h.b16 %v3908
    %v4283 = vunpack.c.l.b16 %v3909
    %v4284 = vunpack.c.h.b16 %v3909
    %v4285 = vunpack.c.l.b16 %v3910
    %v4286 = vunpack.c.h.b16 %v3910
    %v4287 = vunpack.c.l.b16 %v3911
    %v4288 = vunpack.c.h.b16 %v3911
    %v4289 = vunpack.c.l.b16 %v3912
    %v4290 = vunpack.c.h.b16 %v3912
    %v4291 = vunpack.c.l.b16 %v3913
    %v4292 = vunpack.c.h.b16 %v3913
    %v4293 = vunpack.c.l.b16 %v3914
    %v4294 = vunpack.c.h.b16 %v3914
    %v4295 = vunpack.c.l.b16 %v3915
    %v4296 = vunpack.c.h.b16 %v3915
    %v4297 = vunpack.c.l.b16 %v3916
    %v4298 = vunpack.c.h.b16 %v3916
    %v4299 = vunpack.c.l.b16 %v3917
    %v4300 = vunpack.c.h.b16 %v3917
    %v4301 = vunpack.c.l.b16 %v3918
    %v4302 = vunpack.c.h.b16 %v3918
    %v4303 = vunpack.c.l.b16 %v3919
    %v4304 = vunpack.c.h.b16 %v3919
    %v4305 = vunpack.c.l.b16 %v3920
    %v4306 = vunpack.c.h.b16 %v3920
    %v4307 = vunpack.c.l.b16 %v3921
    %v4308 = vunpack.c.h.b16 %v3921
    %v4309 = vunpack.c.l.b16 %v3922
    %v4310 = vunpack.c.h.b16 %v3922
    %v4311 = vunpack.c.l.b16 %v3923
    %v4312 = vunpack.c.h.b16 %v3923
    %v4313 = vunpack.c.l.b16 %v3924
    %v4314 = vunpack.c.h.b16 %v3924
    %v4315 = vpack.c.b16 %v4067, %v4059
    %v4316 = vpack.c.b16 %v4068, %v4060
    %v4317 = vpack.c.b16 %v4069, %v4061
    %v4318 = vpack.c.b16 %v4070, %v4062
    %v4319 = vpack.c.b16 %v4071, %v4063
    %v4320 = vpack.c.b16 %v4072, %v4064
    %v4321 = vpack.c.b16 %v4073, %v4065
    %v4322 = vpack.c.b16 %v4074, %v4066
    %v4323 = vpack.c.b16 %v4083, %v4075
    %v4324 = vpack.c.b16 %v4084, %v4076
    %v4325 = vpack.c.b16 %v4085, %v4077
    %v4326 = vpack.c.b16 %v4086, %v4078
    %v4327 = vpack.c.b16 %v4087, %v4079
    %v4328 = vpack.c.b16 %v4088, %v4080
    %v4329 = vpack.c.b16 %v4089, %v4081
    %v4330 = vpack.c.b16 %v4090, %v4082
    %v4331 = vpack.c.b16 %v4099, %v4091
    %v4332 = vpack.c.b16 %v4100, %v4092
    %v4333 = vpack.c.b16 %v4101, %v4093
    %v4334 = vpack.c.b16 %v4102, %v4094
    %v4335 = vpack.c.b16 %v4103, %v4095
    %v4336 = vpack.c.b16 %v4104, %v4096
    %v4337 = vpack.c.b16 %v4105, %v4097
    %v4338 = vpack.c.b16 %v4106, %v4098
    %v4339 = vpack.c.b16 %v4115, %v4107
    %v4340 = vpack.c.b16 %v4116, %v4108
    %v4341 = vpack.c.b16 %v4117, %v4109
    %v4342 = vpack.c.b16 %v4118, %v4110
    %v4343 = vpack.c.b16 %v4119, %v4111
    %v4344 = vpack.c.b16 %v4120, %v4112
    %v4345 = vpack.c.b16 %v4121, %v4113
    %v4346 = vpack.c.b16 %v4122, %v4114
    %v4347 = vpack.c.b16 %v4131, %v4123
    %v4348 = vpack.c.b16 %v4132, %v4124
    %v4349 = vpack.c.b16 %v4133, %v4125
    %v4350 = vpack.c.b16 %v4134, %v4126
    %v4351 = vpack.c.b16 %v4135, %v4127
    %v4352 = vpack.c.b16 %v4136, %v4128
    %v4353 = vpack.c.b16 %v4137, %v4129
    %v4354 = vpack.c.b16 %v4138, %v4130
    %v4355 = vpack.c.b16 %v4147, %v4139
    %v4356 = vpack.c.b16 %v4148, %v4140
    %v4357 = vpack.c.b16 %v4149, %v4141
    %v4358 = vpack.c.b16 %v4150, %v4142
    %v4359 = vpack.c.b16 %v4151, %v4143
    %v4360 = vpack.c.b16 %v4152, %v4144
    %v4361 = vpack.c.b16 %v4153, %v4145
    %v4362 = vpack.c.b16 %v4154, %v4146
    %v4363 = vpack.c.b16 %v4163, %v4155
    %v4364 = vpack.c.b16 %v4164, %v4156
    %v4365 = vpack.c.b16 %v4165, %v4157
    %v4366 = vpack.c.b16 %v4166, %v4158
    %v4367 = vpack.c.b16 %v4167, %v4159
    %v4368 = vpack.c.b16 %v4168, %v4160
    %v4369 = vpack.c.b16 %v4169, %v4161
    %v4370 = vpack.c.b16 %v4170, %v4162
    %v4371 = vpack.c.b16 %v4179, %v4171
    %v4372 = vpack.c.b16 %v4180, %v4172
    %v4373 = vpack.c.b16 %v4181, %v4173
    %v4374 = vpack.c.b16 %v4182, %v4174
    %v4375 = vpack.c.b16 %v4183, %v4175
    %v4376 = vpack.c.b16 %v4184, %v4176
    %v4377 = vpack.c.b16 %v4185, %v4177
    %v4378 = vpack.c.b16 %v4186, %v4178
    %v4379 = vpack.c.b16 %v4195, %v4187
    %v4380 = vpack.c.b16 %v4196, %v4188
    %v4381 = vpack.c.b16 %v4197, %v4189
    %v4382 = vpack.c.b16 %v4198, %v4190
    %v4383 = vpack.c.b16 %v4199, %v4191
    %v4384 = vpack.c.b16 %v4200, %v4192
    %v4385 = vpack.c.b16 %v4201, %v4193
    %v4386 = vpack.c.b16 %v4202, %v4194
    %v4387 = vpack.c.b16 %v4211, %v4203
    %v4388 = vpack.c.b16 %v4212, %v4204
    %v4389 = vpack.c.b16 %v4213, %v4205
    %v4390 = vpack.c.b16 %v4214, %v4206
    %v4391 = vpack.c.b16 %v4215, %v4207
    %v4392 = vpack.c.b16 %v4216, %v4208
    %v4393 = vpack.c.b16 %v4217, %v4209
    %v4394 = vpack.c.b16 %v4218, %v4210
    %v4395 = vpack.c.b16 %v4227, %v4219
    %v4396 = vpack.c.b16 %v4228, %v4220
    %v4397 = vpack.c.b16 %v4229, %v4221
    %v4398 = vpack.c.b16 %v4230, %v4222
    %v4399 = vpack.c.b16 %v4231, %v4223
    %v4400 = vpack.c.b16 %v4232, %v4224
    %v4401 = vpack.c.b16 %v4233, %v4225
    %v4402 = vpack.c.b16 %v4234, %v4226
    %v4403 = vpack.c.b16 %v4243, %v4235
    %v4404 = vpack.c.b16 %v4244, %v4236
    %v4405 = vpack.c.b16 %v4245, %v4237
    %v4406 = vpack.c.b16 %v4246, %v4238
    %v4407 = vpack.c.b16 %v4247, %v4239
    %v4408 = vpack.c.b16 %v4248, %v4240
    %v4409 = vpack.c.b16 %v4249, %v4241
    %v4410 = vpack.c.b16 %v4250, %v4242
    %v4411 = vpack.c.b16 %v4259, %v4251
    %v4412 = vpack.c.b16 %v4260, %v4252
    %v4413 = vpack.c.b16 %v4261, %v4253
    %v4414 = vpack.c.b16 %v4262, %v4254
    %v4415 = vpack.c.b16 %v4263, %v4255
    %v4416 = vpack.c.b16 %v4264, %v4256
    %v4417 = vpack.c.b16 %v4265, %v4257
    %v4418 = vpack.c.b16 %v4266, %v4258
    %v4419 = vpack.c.b16 %v4275, %v4267
    %v4420 = vpack.c.b16 %v4276, %v4268
    %v4421 = vpack.c.b16 %v4277, %v4269
    %v4422 = vpack.c.b16 %v4278, %v4270
    %v4423 = vpack.c.b16 %v4279, %v4271
    %v4424 = vpack.c.b16 %v4280, %v4272
    %v4425 = vpack.c.b16 %v4281, %v4273
    %v4426 = vpack.c.b16 %v4282, %v4274
    %v4427 = vpack.c.b16 %v4291, %v4283
    %v4428 = vpack.c.b16 %v4292, %v4284
    %v4429 = vpack.c.b16 %v4293, %v4285
    %v4430 = vpack.c.b16 %v4294, %v4286
    %v4431 = vpack.c.b16 %v4295, %v4287
    %v4432 = vpack.c.b16 %v4296, %v4288
    %v4433 = vpack.c.b16 %v4297, %v4289
    %v4434 = vpack.c.b16 %v4298, %v4290
    %v4435 = vpack.c.b16 %v4307, %v4299
    %v4436 = vpack.c.b16 %v4308, %v4300
    %v4437 = vpack.c.b16 %v4309, %v4301
    %v4438 = vpack.c.b16 %v4310, %v4302
    %v4439 = vpack.c.b16 %v4311, %v4303
    %v4440 = vpack.c.b16 %v4312, %v4304
    %v4441 = vpack.c.b16 %v4313, %v4305
    %v4442 = vpack.c.b16 %v4314, %v4306
    %4571 = vmatpush.bf16.msra.mxu0 %v4371
    %4572 = vmatpush.bf16.msra.mxu0 %v4363
    %4573 = vmatpush.bf16.msra.mxu0 %v4355
    %4574 = vmatpush.bf16.msra.mxu0 %v4347
    %4575 = vmatpush.bf16.msra.mxu0 %v4339
    %4576 = vmatpush.bf16.msra.mxu0 %v4331
    %4577 = vmatpush.bf16.msra.mxu0 %v4323
    %4578 = vmatpush.bf16.msra.mxu0 %v4315
    %4579 = vmatmul.bf16.gmra.mxu0 %v3927
    %v4580 = vpop.f32.mrf.mxu0
    %v4581 = vadd.f32 0.0, %v4580
    %v4582 = vpop.f32.mrf.mxu0
    %4583 = vdwg.mxu0
    %4584 = vmatpush.bf16.msra.mxu0 %v4435
    %4585 = vmatpush.bf16.msra.mxu0 %v4427
    %4586 = vmatpush.bf16.msra.mxu0 %v4419
    %4587 = vmatpush.bf16.msra.mxu0 %v4411
    %4588 = vmatpush.bf16.msra.mxu0 %v4403
    %4589 = vmatpush.bf16.msra.mxu0 %v4395
    %4590 = vmatpush.bf16.msra.mxu0 %v4387
    %4591 = vmatpush.bf16.msra.mxu0 %v4379
    %4592 = vmatmul.bf16.gmra.mxu0 %v3928
    %v4593 = vpop.f32.mrf.mxu0
    %v4594 = vadd.f32 %v4581, %v4593
    %v4595 = vpop.f32.mrf.mxu0
    %4596 = vdwg.mxu0
    %4597 = vmatpush.bf16.msra.mxu0 %v4372
    %4598 = vmatpush.bf16.msra.mxu0 %v4364
    %4599 = vmatpush.bf16.msra.mxu0 %v4356
    %4600 = vmatpush.bf16.msra.mxu0 %v4348
    %4601 = vmatpush.bf16.msra.mxu0 %v4340
    %4602 = vmatpush.bf16.msra.mxu0 %v4332
    %4603 = vmatpush.bf16.msra.mxu0 %v4324
    %4604 = vmatpush.bf16.msra.mxu0 %v4316
    %4605 = vmatmul.bf16.gmra.mxu0 %v3927
    %v4606 = vpop.f32.mrf.mxu0
    %v4607 = vadd.f32 0.0, %v4606
    %v4608 = vpop.f32.mrf.mxu0
    %4609 = vdwg.mxu0
    %4610 = vmatpush.bf16.msra.mxu0 %v4436
    %4611 = vmatpush.bf16.msra.mxu0 %v4428
    %4612 = vmatpush.bf16.msra.mxu0 %v4420
    %4613 = vmatpush.bf16.msra.mxu0 %v4412
    %4614 = vmatpush.bf16.msra.mxu0 %v4404
    %4615 = vmatpush.bf16.msra.mxu0 %v4396
    %4616 = vmatpush.bf16.msra.mxu0 %v4388
    %4617 = vmatpush.bf16.msra.mxu0 %v4380
    %4618 = vmatmul.bf16.gmra.mxu0 %v3928
    %v4619 = vpop.f32.mrf.mxu0
    %v4620 = vadd.f32 %v4607, %v4619
    %v4621 = vpop.f32.mrf.mxu0
    %4622 = vdwg.mxu0
    %4623 = vmatpush.bf16.msra.mxu0 %v4373
    %4624 = vmatpush.bf16.msra.mxu0 %v4365
    %4625 = vmatpush.bf16.msra.mxu0 %v4357
    %4626 = vmatpush.bf16.msra.mxu0 %v4349
    %4627 = vmatpush.bf16.msra.mxu0 %v4341
    %4628 = vmatpush.bf16.msra.mxu0 %v4333
    %4629 = vmatpush.bf16.msra.mxu0 %v4325
    %4630 = vmatpush.bf16.msra.mxu0 %v4317
    %4631 = vmatmul.bf16.gmra.mxu0 %v3927
    %v4632 = vpop.f32.mrf.mxu0
    %v4633 = vadd.f32 0.0, %v4632
    %v4634 = vpop.f32.mrf.mxu0
    %4635 = vdwg.mxu0
    %4636 = vmatpush.bf16.msra.mxu0 %v4437
    %4637 = vmatpush.bf16.msra.mxu0 %v4429
    %4638 = vmatpush.bf16.msra.mxu0 %v4421
    %4639 = vmatpush.bf16.msra.mxu0 %v4413
    %4640 = vmatpush.bf16.msra.mxu0 %v4405
    %4641 = vmatpush.bf16.msra.mxu0 %v4397
    %4642 = vmatpush.bf16.msra.mxu0 %v4389
    %4643 = vmatpush.bf16.msra.mxu0 %v4381
    %4644 = vmatmul.bf16.gmra.mxu0 %v3928
    %v4645 = vpop.f32.mrf.mxu0
    %v4646 = vadd.f32 %v4633, %v4645
    %v4647 = vpop.f32.mrf.mxu0
    %4648 = vdwg.mxu0
    %4649 = vmatpush.bf16.msra.mxu0 %v4374
    %4650 = vmatpush.bf16.msra.mxu0 %v4366
    %4651 = vmatpush.bf16.msra.mxu0 %v4358
    %4652 = vmatpush.bf16.msra.mxu0 %v4350
    %4653 = vmatpush.bf16.msra.mxu0 %v4342
    %4654 = vmatpush.bf16.msra.mxu0 %v4334
    %4655 = vmatpush.bf16.msra.mxu0 %v4326
    %4656 = vmatpush.bf16.msra.mxu0 %v4318
    %4657 = vmatmul.bf16.gmra.mxu0 %v3927
    %v4658 = vpop.f32.mrf.mxu0
    %v4659 = vadd.f32 0.0, %v4658
    %v4660 = vpop.f32.mrf.mxu0
    %4661 = vdwg.mxu0
    %4662 = vmatpush.bf16.msra.mxu0 %v4438
    %4663 = vmatpush.bf16.msra.mxu0 %v4430
    %4664 = vmatpush.bf16.msra.mxu0 %v4422
    %4665 = vmatpush.bf16.msra.mxu0 %v4414
    %4666 = vmatpush.bf16.msra.mxu0 %v4406
    %4667 = vmatpush.bf16.msra.mxu0 %v4398
    %4668 = vmatpush.bf16.msra.mxu0 %v4390
    %4669 = vmatpush.bf16.msra.mxu0 %v4382
    %4670 = vmatmul.bf16.gmra.mxu0 %v3928
    %v4671 = vpop.f32.mrf.mxu0
    %v4672 = vadd.f32 %v4659, %v4671
    %v4673 = vpop.f32.mrf.mxu0
    %4674 = vdwg.mxu0
    %4675 = vmatpush.bf16.msra.mxu0 %v4375
    %4676 = vmatpush.bf16.msra.mxu0 %v4367
    %4677 = vmatpush.bf16.msra.mxu0 %v4359
    %4678 = vmatpush.bf16.msra.mxu0 %v4351
    %4679 = vmatpush.bf16.msra.mxu0 %v4343
    %4680 = vmatpush.bf16.msra.mxu0 %v4335
    %4681 = vmatpush.bf16.msra.mxu0 %v4327
    %4682 = vmatpush.bf16.msra.mxu0 %v4319
    %4683 = vmatmul.bf16.gmra.mxu0 %v3927
    %v4684 = vpop.f32.mrf.mxu0
    %v4685 = vadd.f32 0.0, %v4684
    %v4686 = vpop.f32.mrf.mxu0
    %4687 = vdwg.mxu0
    %4688 = vmatpush.bf16.msra.mxu0 %v4439
    %4689 = vmatpush.bf16.msra.mxu0 %v4431
    %4690 = vmatpush.bf16.msra.mxu0 %v4423
    %4691 = vmatpush.bf16.msra.mxu0 %v4415
    %4692 = vmatpush.bf16.msra.mxu0 %v4407
    %4693 = vmatpush.bf16.msra.mxu0 %v4399
    %4694 = vmatpush.bf16.msra.mxu0 %v4391
    %4695 = vmatpush.bf16.msra.mxu0 %v4383
    %4696 = vmatmul.bf16.gmra.mxu0 %v3928
    %v4697 = vpop.f32.mrf.mxu0
    %v4698 = vadd.f32 %v4685, %v4697
    %v4699 = vpop.f32.mrf.mxu0
    %4700 = vdwg.mxu0
    %4701 = vmatpush.bf16.msra.mxu0 %v4376
    %4702 = vmatpush.bf16.msra.mxu0 %v4368
    %4703 = vmatpush.bf16.msra.mxu0 %v4360
    %4704 = vmatpush.bf16.msra.mxu0 %v4352
    %4705 = vmatpush.bf16.msra.mxu0 %v4344
    %4706 = vmatpush.bf16.msra.mxu0 %v4336
    %4707 = vmatpush.bf16.msra.mxu0 %v4328
    %4708 = vmatpush.bf16.msra.mxu0 %v4320
    %4709 = vmatmul.bf16.gmra.mxu0 %v3927
    %v4710 = vpop.f32.mrf.mxu0
    %v4711 = vadd.f32 0.0, %v4710
    %v4712 = vpop.f32.mrf.mxu0
    %4713 = vdwg.mxu0
    %4714 = vmatpush.bf16.msra.mxu0 %v4440
    %4715 = vmatpush.bf16.msra.mxu0 %v4432
    %4716 = vmatpush.bf16.msra.mxu0 %v4424
    %4717 = vmatpush.bf16.msra.mxu0 %v4416
    %4718 = vmatpush.bf16.msra.mxu0 %v4408
    %4719 = vmatpush.bf16.msra.mxu0 %v4400
    %4720 = vmatpush.bf16.msra.mxu0 %v4392
    %4721 = vmatpush.bf16.msra.mxu0 %v4384
    %4722 = vmatmul.bf16.gmra.mxu0 %v3928
    %v4723 = vpop.f32.mrf.mxu0
    %v4724 = vadd.f32 %v4711, %v4723
    %v4725 = vpop.f32.mrf.mxu0
    %4726 = vdwg.mxu0
    %4727 = vmatpush.bf16.msra.mxu0 %v4377
    %4728 = vmatpush.bf16.msra.mxu0 %v4369
    %4729 = vmatpush.bf16.msra.mxu0 %v4361
    %4730 = vmatpush.bf16.msra.mxu0 %v4353
    %4731 = vmatpush.bf16.msra.mxu0 %v4345
    %4732 = vmatpush.bf16.msra.mxu0 %v4337
    %4733 = vmatpush.bf16.msra.mxu0 %v4329
    %4734 = vmatpush.bf16.msra.mxu0 %v4321
    %4735 = vmatmul.bf16.gmra.mxu0 %v3927
    %v4736 = vpop.f32.mrf.mxu0
    %v4737 = vadd.f32 0.0, %v4736
    %v4738 = vpop.f32.mrf.mxu0
    %4739 = vdwg.mxu0
    %4740 = vmatpush.bf16.msra.mxu0 %v4441
    %4741 = vmatpush.bf16.msra.mxu0 %v4433
    %4742 = vmatpush.bf16.msra.mxu0 %v4425
    %4743 = vmatpush.bf16.msra.mxu0 %v4417
    %4744 = vmatpush.bf16.msra.mxu0 %v4409
    %4745 = vmatpush.bf16.msra.mxu0 %v4401
    %4746 = vmatpush.bf16.msra.mxu0 %v4393
    %4747 = vmatpush.bf16.msra.mxu0 %v4385
    %4748 = vmatmul.bf16.gmra.mxu0 %v3928
    %v4749 = vpop.f32.mrf.mxu0
    %v4750 = vadd.f32 %v4737, %v4749
    %v4751 = vpop.f32.mrf.mxu0
    %4752 = vdwg.mxu0
    %4753 = vmatpush.bf16.msra.mxu0 %v4378
    %4754 = vmatpush.bf16.msra.mxu0 %v4370
    %4755 = vmatpush.bf16.msra.mxu0 %v4362
    %4756 = vmatpush.bf16.msra.mxu0 %v4354
    %4757 = vmatpush.bf16.msra.mxu0 %v4346
    %4758 = vmatpush.bf16.msra.mxu0 %v4338
    %4759 = vmatpush.bf16.msra.mxu0 %v4330
    %4760 = vmatpush.bf16.msra.mxu0 %v4322
    %4761 = vmatmul.bf16.gmra.mxu0 %v3927
    %v4762 = vpop.f32.mrf.mxu0
    %v4763 = vadd.f32 0.0, %v4762
    %v4764 = vpop.f32.mrf.mxu0
    %4765 = vdwg.mxu0
    %4766 = vmatpush.bf16.msra.mxu0 %v4442
    %4767 = vmatpush.bf16.msra.mxu0 %v4434
    %4768 = vmatpush.bf16.msra.mxu0 %v4426
    %4769 = vmatpush.bf16.msra.mxu0 %v4418
    %4770 = vmatpush.bf16.msra.mxu0 %v4410
    %4771 = vmatpush.bf16.msra.mxu0 %v4402
    %4772 = vmatpush.bf16.msra.mxu0 %v4394
    %4773 = vmatpush.bf16.msra.mxu0 %v4386
    %4774 = vmatmul.bf16.gmra.mxu0 %v3928
    %v4775 = vpop.f32.mrf.mxu0
    %v4776 = vadd.f32 %v4763, %v4775
    %v4777 = vpop.f32.mrf.mxu0
    %4778 = vdwg.mxu0
    %v4787 = vrot.slane %v4594, 5
    %v4788 = vrot.slane %v4620, 5
    %v4789 = vrot.slane %v4646, 5
    %v4790 = vrot.slane %v4672, 5
    %v4791 = vrot.slane %v4698, 5
    %v4792 = vrot.slane %v4724, 5
    %v4793 = vrot.slane %v4750, 5
    %v4794 = vrot.slane %v4776, 5
    %v4803 = vadd.f32 %v147, %v4787
    %v4804 = vadd.f32 %v160, %v4788
    %v4805 = vadd.f32 %v173, %v4789
    %v4806 = vadd.f32 %v186, %v4790
    %v4807 = vadd.f32 %v199, %v4791
    %v4808 = vadd.f32 %v212, %v4792
    %v4809 = vadd.f32 %v225, %v4793
    %v4810 = vadd.f32 %v238, %v4794
    %v4811 = vxor.u32 %v4803, 2147483648
    %v4812 = vxor.u32 %v4804, 2147483648
    %v4813 = vxor.u32 %v4805, 2147483648
    %v4814 = vxor.u32 %v4806, 2147483648
    %v4815 = vxor.u32 %v4807, 2147483648
    %v4816 = vxor.u32 %v4808, 2147483648
    %v4817 = vmul.f32 %v4811, 1.442695
    %v4818 = vpow.pop %v4817
    %v4819 = vmul.f32 %v4812, 1.442695
    %v4820 = vpow.pop %v4819
    %v4821 = vmul.f32 %v4813, 1.442695
    %v4822 = vpow.pop %v4821
    %v4823 = vmul.f32 %v4814, 1.442695
    %v4824 = vpow.pop %v4823
    %v4825 = vmul.f32 %v4815, 1.442695
    %v4826 = vpow.pop %v4825
    %v4827 = vmul.f32 %v4816, 1.442695
    %v4828 = vpow.pop %v4827
    %v4829 = vadd.f32 %v4818, 1.0
    %v4830 = vadd.f32 %v4820, 1.0
    %v4831 = vadd.f32 %v4822, 1.0
    %v4832 = vadd.f32 %v4824, 1.0
    %v4833 = vadd.f32 %v4826, 1.0
    %v4834 = vadd.f32 %v4828, 1.0
    %v4835 = vrcp.pop %v4829
    %v4836 = vmul.f32 %v4829, %v4835
    %v4837 = vsub.f32 1.0, %v4836
    %v4838 = vmul.f32 %v4835, %v4837
    %v4839 = vadd.f32 %v4835, %v4838
    %vm4840 = vweird.f32 %v4829
    %vm4841 = vweird.f32 %v4835
    %vm4842 = vmor %vm4840, %vm4841
    %v4843 = vsel %vm4842, %v4835, %v4839
    %v4844 = vand.u32 2147483647, %v4829
    %vm4845 = vcmp.eq.f32.partialorder %v4844, 8.507059e+37
    %v4846 = vand.u32 %v4829, 2147483648
    %v4847 = vor.u32 1.1754944e-38, %v4846
    %v4848 = vsel %vm4845, %v4847, %v4843
    %v4849 = vmul.f32 1.0, %v4848
    %v4850 = vrcp.pop %v4830
    %v4851 = vmul.f32 %v4830, %v4850
    %v4852 = vsub.f32 1.0, %v4851
    %v4853 = vmul.f32 %v4850, %v4852
    %v4854 = vadd.f32 %v4850, %v4853
    %vm4855 = vweird.f32 %v4830
    %vm4856 = vweird.f32 %v4850
    %vm4857 = vmor %vm4855, %vm4856
    %v4858 = vsel %vm4857, %v4850, %v4854
    %v4859 = vand.u32 2147483647, %v4830
    %vm4860 = vcmp.eq.f32.partialorder %v4859, 8.507059e+37
    %v4861 = vand.u32 %v4830, 2147483648
    %v4862 = vor.u32 1.1754944e-38, %v4861
    %v4863 = vsel %vm4860, %v4862, %v4858
    %v4864 = vmul.f32 1.0, %v4863
    %v4865 = vrcp.pop %v4831
    %v4866 = vmul.f32 %v4831, %v4865
    %v4867 = vsub.f32 1.0, %v4866
    %v4868 = vmul.f32 %v4865, %v4867
    %v4869 = vadd.f32 %v4865, %v4868
    %vm4870 = vweird.f32 %v4831
    %vm4871 = vweird.f32 %v4865
    %vm4872 = vmor %vm4870, %vm4871
    %v4873 = vsel %vm4872, %v4865, %v4869
    %v4874 = vand.u32 2147483647, %v4831
    %vm4875 = vcmp.eq.f32.partialorder %v4874, 8.507059e+37
    %v4876 = vand.u32 %v4831, 2147483648
    %v4877 = vor.u32 1.1754944e-38, %v4876
    %v4878 = vsel %vm4875, %v4877, %v4873
    %v4879 = vmul.f32 1.0, %v4878
    %v4880 = vrcp.pop %v4832
    %v4881 = vmul.f32 %v4832, %v4880
    %v4882 = vsub.f32 1.0, %v4881
    %v4883 = vmul.f32 %v4880, %v4882
    %v4884 = vadd.f32 %v4880, %v4883
    %vm4885 = vweird.f32 %v4832
    %vm4886 = vweird.f32 %v4880
    %vm4887 = vmor %vm4885, %vm4886
    %v4888 = vsel %vm4887, %v4880, %v4884
    %v4889 = vand.u32 2147483647, %v4832
    %vm4890 = vcmp.eq.f32.partialorder %v4889, 8.507059e+37
    %v4891 = vand.u32 %v4832, 2147483648
    %v4892 = vor.u32 1.1754944e-38, %v4891
    %v4893 = vsel %vm4890, %v4892, %v4888
    %v4894 = vmul.f32 1.0, %v4893
    %v4895 = vrcp.pop %v4833
    %v4896 = vmul.f32 %v4833, %v4895
    %v4897 = vsub.f32 1.0, %v4896
    %v4898 = vmul.f32 %v4895, %v4897
    %v4899 = vadd.f32 %v4895, %v4898
    %vm4900 = vweird.f32 %v4833
    %vm4901 = vweird.f32 %v4895
    %vm4902 = vmor %vm4900, %vm4901
    %v4903 = vsel %vm4902, %v4895, %v4899
    %v4904 = vand.u32 2147483647, %v4833
    %vm4905 = vcmp.eq.f32.partialorder %v4904, 8.507059e+37
    %v4906 = vand.u32 %v4833, 2147483648
    %v4907 = vor.u32 1.1754944e-38, %v4906
    %v4908 = vsel %vm4905, %v4907, %v4903
    %v4909 = vmul.f32 1.0, %v4908
    %v4910 = vrcp.pop %v4834
    %v4911 = vmul.f32 %v4834, %v4910
    %v4912 = vsub.f32 1.0, %v4911
    %v4913 = vmul.f32 %v4910, %v4912
    %v4914 = vadd.f32 %v4910, %v4913
    %vm4915 = vweird.f32 %v4834
    %vm4916 = vweird.f32 %v4910
    %vm4917 = vmor %vm4915, %vm4916
    %v4918 = vsel %vm4917, %v4910, %v4914
    %v4919 = vand.u32 2147483647, %v4834
    %vm4920 = vcmp.eq.f32.partialorder %v4919, 8.507059e+37
    %v4921 = vand.u32 %v4834, 2147483648
    %v4922 = vor.u32 1.1754944e-38, %v4921
    %v4923 = vsel %vm4920, %v4922, %v4918
    %v4924 = vmul.f32 1.0, %v4923
    %v4925 = vtanh.pop %v4809
    %v4926 = vtanh.pop %v4810
    %v4929 = vrot.slane %v3745, 7
    %v4930 = vrot.slane %v3746, 7
    %v4933 = vmul.f32 %v4879, %v4929
    %v4934 = vmul.f32 %v4894, %v4930
    %v4935 = vmul.f32 %v4849, %v4925
    %v4936 = vmul.f32 %v4864, %v4926
    %v4937 = vadd.f32 %v4933, %v4935
    %v4938 = vadd.f32 %v4934, %v4936
    %v4939 = vtanh.pop %v4937
    %v4940 = vtanh.pop %v4938
    %v4941 = vmul.f32 %v4909, %v4939
    %v4942 = vmul.f32 %v4924, %v4940
    %vm4943 = vcmask 1043459
    %v4944 = vsel %vm4943, %v4941, 0.0
    %v4945 = vsel %vm4943, %v4942, 0.0
    %v4946 = vadd.f32 %v4944, %v4945
    %4947 = vadd.xlane.f32.xlu0 %v4946
    %v4948 = vpop.xlane.xlu0 %4947
    %v4949 = vmul.f32 %v4948, %v1365
    %v4950 = vsub.f32 %v4941, %v4949
    %v4951 = vsub.f32 %v4942, %v4949
    %v4952 = vmul.f32 %v4950, %v4950
    %v4953 = vmul.f32 %v4951, %v4951
    %v4954 = vsel %vm4943, %v4952, 0.0
    %v4955 = vsel %vm4943, %v4953, 0.0
    %v4956 = vadd.f32 %v4954, %v4955
    %4957 = vadd.xlane.f32.xlu0 %v4956
    %v4958 = vpop.xlane.xlu0 %4957
    %v4959 = vmul.f32 %v4958, %v1365
    %v4960 = vadd.f32 %v4959, 1e-05
    %v4961 = vrsqrt.pop %v4960
    %v4962 = vmul.f32 %v4961, %v4960
    %v4963 = vmul.f32 %v4962, %v4961
    %v4964 = vmul.f32 0.5, %v4963
    %v4965 = vsub.f32 1.5, %v4964
    %v4966 = vmul.f32 %v4961, %v4965
    %vm4967 = vweird.f32 %v4960
    %vm4968 = vweird.f32 %v4961
    %vm4969 = vmor %vm4967, %vm4968
    %v4970 = vsel %vm4969, %v4961, %v4966
    %v4971 = vmul.f32 %v4950, %v4970
    %v4972 = vmul.f32 %v4951, %v4970
    %v4973 = vmul.f32 %v4971, %v1391
    %v4974 = vmul.f32 %v4972, %v1392
    %v4975 = vadd.f32 %v4973, %v1398
    %v4976 = vadd.f32 %v4974, %v1399
    %4979 = vst [vmem:[#allocation1] sm:$0xff] %v4975
    %4980 = vst [vmem:[#allocation1 + $0x9] sm:$0xff] %v4976
    %s4981 = scalar_lea.vmem [#allocation1], 3
    %v4982 = vld [vmem:[%s4981] ss:$9 sm:$0xff]
    %s4984 = scalar_lea.vmem [#allocation2], 3
    %4985 = vst.msk [vmem:[%s4984] ss:$8 sm:$0x3] %vm1412, %v4982
    %4986 = vst.msk [vmem:[%s4984] ss:$8 sm:$0x0] %vm1412, %v4982
    %v4987 = vpack.c.bf16 %v4941, %v4941
    %v4988 = vpack.c.bf16 %v4942, %v4942
    %v4989 = vld [vmem:[#allocation4] sm:$0xff]
    %v4990 = vld [vmem:[#allocation4 + $0x8] sm:$0xff]
    %v4991 = vld [vmem:[#allocation4 + $0x10] sm:$0xff]
    %v4992 = vld [vmem:[#allocation4 + $0x18] sm:$0xff]
    %v4993 = vld [vmem:[#allocation4 + $0x20] sm:$0xff]
    %v4994 = vld [vmem:[#allocation4 + $0x28] sm:$0xff]
    %v4995 = vld [vmem:[#allocation4 + $0x30] sm:$0xff]
    %v4996 = vld [vmem:[#allocation4 + $0x38] sm:$0xff]
    %v4997 = vld [vmem:[#allocation4 + $0x40] sm:$0xff]
    %v4998 = vld [vmem:[#allocation4 + $0x48] sm:$0xff]
    %v4999 = vld [vmem:[#allocation4 + $0x50] sm:$0xff]
    %v5000 = vld [vmem:[#allocation4 + $0x58] sm:$0xff]
    %v5001 = vld [vmem:[#allocation4 + $0x60] sm:$0xff]
    %v5002 = vld [vmem:[#allocation4 + $0x68] sm:$0xff]
    %v5003 = vld [vmem:[#allocation4 + $0x70] sm:$0xff]
    %v5004 = vld [vmem:[#allocation4 + $0x78] sm:$0xff]
    %v5005 = vld [vmem:[#allocation4 + $0x80] sm:$0xff]
    %v5006 = vld [vmem:[#allocation4 + $0x88] sm:$0xff]
    %v5007 = vld [vmem:[#allocation4 + $0x90] sm:$0xff]
    %v5008 = vld [vmem:[#allocation4 + $0x98] sm:$0xff]
    %v5009 = vld [vmem:[#allocation4 + $0xa0] sm:$0xff]
    %v5010 = vld [vmem:[#allocation4 + $0xa8] sm:$0xff]
    %v5011 = vld [vmem:[#allocation4 + $0xb0] sm:$0xff]
    %v5012 = vld [vmem:[#allocation4 + $0xb8] sm:$0xff]
    %v5013 = vld [vmem:[#allocation4 + $0xc0] sm:$0xff]
    %v5014 = vld [vmem:[#allocation4 + $0xc8] sm:$0xff]
    %v5015 = vld [vmem:[#allocation4 + $0xd0] sm:$0xff]
    %v5016 = vld [vmem:[#allocation4 + $0xd8] sm:$0xff]
    %v5017 = vld [vmem:[#allocation4 + $0xe0] sm:$0xff]
    %v5018 = vld [vmem:[#allocation4 + $0xe8] sm:$0xff]
    %v5019 = vld [vmem:[#allocation4 + $0xf0] sm:$0xff]
    %v5020 = vld [vmem:[#allocation4 + $0xf8] sm:$0xff]
    %v5021 = vld [vmem:[#allocation4 + $0x100] sm:$0xff]
    %v5022 = vld [vmem:[#allocation4 + $0x108] sm:$0xff]
    %v5023 = vld [vmem:[#allocation4 + $0x110] sm:$0xff]
    %v5024 = vld [vmem:[#allocation4 + $0x118] sm:$0xff]
    %v5025 = vld [vmem:[#allocation4 + $0x120] sm:$0xff]
    %v5026 = vld [vmem:[#allocation4 + $0x128] sm:$0xff]
    %v5027 = vld [vmem:[#allocation4 + $0x130] sm:$0xff]
    %v5028 = vld [vmem:[#allocation4 + $0x138] sm:$0xff]
    %v5029 = vld [vmem:[#allocation4 + $0x140] sm:$0xff]
    %v5030 = vld [vmem:[#allocation4 + $0x148] sm:$0xff]
    %v5031 = vld [vmem:[#allocation4 + $0x150] sm:$0xff]
    %v5032 = vld [vmem:[#allocation4 + $0x158] sm:$0xff]
    %v5033 = vld [vmem:[#allocation4 + $0x160] sm:$0xff]
    %v5034 = vld [vmem:[#allocation4 + $0x168] sm:$0xff]
    %v5035 = vld [vmem:[#allocation4 + $0x170] sm:$0xff]
    %v5036 = vld [vmem:[#allocation4 + $0x178] sm:$0xff]
    %v5037 = vld [vmem:[#allocation4 + $0x180] sm:$0xff]
    %v5038 = vld [vmem:[#allocation4 + $0x188] sm:$0xff]
    %v5039 = vld [vmem:[#allocation4 + $0x190] sm:$0xff]
    %v5040 = vld [vmem:[#allocation4 + $0x198] sm:$0xff]
    %v5041 = vld [vmem:[#allocation4 + $0x1a0] sm:$0xff]
    %v5042 = vld [vmem:[#allocation4 + $0x1a8] sm:$0xff]
    %v5043 = vld [vmem:[#allocation4 + $0x1b0] sm:$0xff]
    %v5044 = vld [vmem:[#allocation4 + $0x1b8] sm:$0xff]
    %v5045 = vld [vmem:[#allocation4 + $0x1c0] sm:$0xff]
    %v5046 = vld [vmem:[#allocation4 + $0x1c8] sm:$0xff]
    %v5047 = vld [vmem:[#allocation4 + $0x1d0] sm:$0xff]
    %v5048 = vld [vmem:[#allocation4 + $0x1d8] sm:$0xff]
    %v5049 = vld [vmem:[#allocation4 + $0x1e0] sm:$0xff]
    %v5050 = vld [vmem:[#allocation4 + $0x1e8] sm:$0xff]
    %v5051 = vld [vmem:[#allocation4 + $0x1f0] sm:$0xff]
    %v5052 = vld [vmem:[#allocation4 + $0x1f8] sm:$0xff]
    %v5053 = vld [vmem:[#allocation4 + $0x200] sm:$0xff]
    %v5054 = vld [vmem:[#allocation4 + $0x208] sm:$0xff]
    %v5055 = vld [vmem:[#allocation4 + $0x210] sm:$0xff]
    %v5056 = vld [vmem:[#allocation4 + $0x218] sm:$0xff]
    %v5057 = vld [vmem:[#allocation4 + $0x220] sm:$0xff]
    %v5058 = vld [vmem:[#allocation4 + $0x228] sm:$0xff]
    %v5059 = vld [vmem:[#allocation4 + $0x230] sm:$0xff]
    %v5060 = vld [vmem:[#allocation4 + $0x238] sm:$0xff]
    %v5061 = vld [vmem:[#allocation4 + $0x240] sm:$0xff]
    %v5062 = vld [vmem:[#allocation4 + $0x248] sm:$0xff]
    %v5063 = vld [vmem:[#allocation4 + $0x250] sm:$0xff]
    %v5064 = vld [vmem:[#allocation4 + $0x258] sm:$0xff]
    %v5065 = vld [vmem:[#allocation4 + $0x260] sm:$0xff]
    %v5066 = vld [vmem:[#allocation4 + $0x268] sm:$0xff]
    %v5067 = vld [vmem:[#allocation4 + $0x270] sm:$0xff]
    %v5068 = vld [vmem:[#allocation4 + $0x278] sm:$0xff]
    %v5069 = vld [vmem:[#allocation4 + $0x280] sm:$0xff]
    %v5070 = vld [vmem:[#allocation4 + $0x288] sm:$0xff]
    %v5071 = vld [vmem:[#allocation4 + $0x290] sm:$0xff]
    %v5072 = vld [vmem:[#allocation4 + $0x298] sm:$0xff]
    %v5073 = vld [vmem:[#allocation4 + $0x2a0] sm:$0xff]
    %v5074 = vld [vmem:[#allocation4 + $0x2a8] sm:$0xff]
    %v5075 = vld [vmem:[#allocation4 + $0x2b0] sm:$0xff]
    %v5076 = vld [vmem:[#allocation4 + $0x2b8] sm:$0xff]
    %v5077 = vld [vmem:[#allocation4 + $0x2c0] sm:$0xff]
    %v5078 = vld [vmem:[#allocation4 + $0x2c8] sm:$0xff]
    %v5079 = vld [vmem:[#allocation4 + $0x2d0] sm:$0xff]
    %v5080 = vld [vmem:[#allocation4 + $0x2d8] sm:$0xff]
    %v5081 = vld [vmem:[#allocation4 + $0x2e0] sm:$0xff]
    %v5082 = vld [vmem:[#allocation4 + $0x2e8] sm:$0xff]
    %v5083 = vld [vmem:[#allocation4 + $0x2f0] sm:$0xff]
    %v5084 = vld [vmem:[#allocation4 + $0x2f8] sm:$0xff]
    %v5085 = vld [vmem:[#allocation4 + $0x300] sm:$0xff]
    %v5086 = vld [vmem:[#allocation4 + $0x308] sm:$0xff]
    %v5087 = vld [vmem:[#allocation4 + $0x310] sm:$0xff]
    %v5088 = vld [vmem:[#allocation4 + $0x318] sm:$0xff]
    %v5089 = vld [vmem:[#allocation4 + $0x320] sm:$0xff]
    %v5090 = vld [vmem:[#allocation4 + $0x328] sm:$0xff]
    %v5091 = vld [vmem:[#allocation4 + $0x330] sm:$0xff]
    %v5092 = vld [vmem:[#allocation4 + $0x338] sm:$0xff]
    %v5093 = vld [vmem:[#allocation4 + $0x340] sm:$0xff]
    %v5094 = vld [vmem:[#allocation4 + $0x348] sm:$0xff]
    %v5095 = vld [vmem:[#allocation4 + $0x350] sm:$0xff]
    %v5096 = vld [vmem:[#allocation4 + $0x358] sm:$0xff]
    %v5097 = vld [vmem:[#allocation4 + $0x360] sm:$0xff]
    %v5098 = vld [vmem:[#allocation4 + $0x368] sm:$0xff]
    %v5099 = vld [vmem:[#allocation4 + $0x370] sm:$0xff]
    %v5100 = vld [vmem:[#allocation4 + $0x378] sm:$0xff]
    %v5101 = vld [vmem:[#allocation4 + $0x380] sm:$0xff]
    %v5102 = vld [vmem:[#allocation4 + $0x388] sm:$0xff]
    %v5103 = vld [vmem:[#allocation4 + $0x390] sm:$0xff]
    %v5104 = vld [vmem:[#allocation4 + $0x398] sm:$0xff]
    %v5105 = vld [vmem:[#allocation4 + $0x3a0] sm:$0xff]
    %v5106 = vld [vmem:[#allocation4 + $0x3a8] sm:$0xff]
    %v5107 = vld [vmem:[#allocation4 + $0x3b0] sm:$0xff]
    %v5108 = vld [vmem:[#allocation4 + $0x3b8] sm:$0xff]
    %v5109 = vld [vmem:[#allocation4 + $0x3c0] sm:$0xff]
    %v5110 = vld [vmem:[#allocation4 + $0x3c8] sm:$0xff]
    %v5111 = vld [vmem:[#allocation4 + $0x3d0] sm:$0xff]
    %v5112 = vld [vmem:[#allocation4 + $0x3d8] sm:$0xff]
    %v5113 = vld [vmem:[#allocation4 + $0x3e0] sm:$0xff]
    %v5114 = vld [vmem:[#allocation4 + $0x3e8] sm:$0xff]
    %v5115 = vld [vmem:[#allocation4 + $0x3f0] sm:$0xff]
    %v5116 = vld [vmem:[#allocation4 + $0x3f8] sm:$0xff]
    %v5118 = vshrl.u32 %v4987, 16
    %v5120 = vrot.slane %v5118, 1
    %v5122 = vshrl.u32 %v4988, 16
    %v5124 = vrot.slane %v5122, 1
    %v5255 = vunpack.c.l.b16 %v4989
    %v5256 = vunpack.c.h.b16 %v4989
    %v5257 = vunpack.c.l.b16 %v4990
    %v5258 = vunpack.c.h.b16 %v4990
    %v5259 = vunpack.c.l.b16 %v4991
    %v5260 = vunpack.c.h.b16 %v4991
    %v5261 = vunpack.c.l.b16 %v4992
    %v5262 = vunpack.c.h.b16 %v4992
    %v5263 = vunpack.c.l.b16 %v4993
    %v5264 = vunpack.c.h.b16 %v4993
    %v5265 = vunpack.c.l.b16 %v4994
    %v5266 = vunpack.c.h.b16 %v4994
    %v5267 = vunpack.c.l.b16 %v4995
    %v5268 = vunpack.c.h.b16 %v4995
    %v5269 = vunpack.c.l.b16 %v4996
    %v5270 = vunpack.c.h.b16 %v4996
    %v5271 = vunpack.c.l.b16 %v4997
    %v5272 = vunpack.c.h.b16 %v4997
    %v5273 = vunpack.c.l.b16 %v4998
    %v5274 = vunpack.c.h.b16 %v4998
    %v5275 = vunpack.c.l.b16 %v4999
    %v5276 = vunpack.c.h.b16 %v4999
    %v5277 = vunpack.c.l.b16 %v5000
    %v5278 = vunpack.c.h.b16 %v5000
    %v5279 = vunpack.c.l.b16 %v5001
    %v5280 = vunpack.c.h.b16 %v5001
    %v5281 = vunpack.c.l.b16 %v5002
    %v5282 = vunpack.c.h.b16 %v5002
    %v5283 = vunpack.c.l.b16 %v5003
    %v5284 = vunpack.c.h.b16 %v5003
    %v5285 = vunpack.c.l.b16 %v5004
    %v5286 = vunpack.c.h.b16 %v5004
    %v5287 = vunpack.c.l.b16 %v5005
    %v5288 = vunpack.c.h.b16 %v5005
    %v5289 = vunpack.c.l.b16 %v5006
    %v5290 = vunpack.c.h.b16 %v5006
    %v5291 = vunpack.c.l.b16 %v5007
    %v5292 = vunpack.c.h.b16 %v5007
    %v5293 = vunpack.c.l.b16 %v5008
    %v5294 = vunpack.c.h.b16 %v5008
    %v5295 = vunpack.c.l.b16 %v5009
    %v5296 = vunpack.c.h.b16 %v5009
    %v5297 = vunpack.c.l.b16 %v5010
    %v5298 = vunpack.c.h.b16 %v5010
    %v5299 = vunpack.c.l.b16 %v5011
    %v5300 = vunpack.c.h.b16 %v5011
    %v5301 = vunpack.c.l.b16 %v5012
    %v5302 = vunpack.c.h.b16 %v5012
    %v5303 = vunpack.c.l.b16 %v5013
    %v5304 = vunpack.c.h.b16 %v5013
    %v5305 = vunpack.c.l.b16 %v5014
    %v5306 = vunpack.c.h.b16 %v5014
    %v5307 = vunpack.c.l.b16 %v5015
    %v5308 = vunpack.c.h.b16 %v5015
    %v5309 = vunpack.c.l.b16 %v5016
    %v5310 = vunpack.c.h.b16 %v5016
    %v5311 = vunpack.c.l.b16 %v5017
    %v5312 = vunpack.c.h.b16 %v5017
    %v5313 = vunpack.c.l.b16 %v5018
    %v5314 = vunpack.c.h.b16 %v5018
    %v5315 = vunpack.c.l.b16 %v5019
    %v5316 = vunpack.c.h.b16 %v5019
    %v5317 = vunpack.c.l.b16 %v5020
    %v5318 = vunpack.c.h.b16 %v5020
    %v5319 = vunpack.c.l.b16 %v5021
    %v5320 = vunpack.c.h.b16 %v5021
    %v5321 = vunpack.c.l.b16 %v5022
    %v5322 = vunpack.c.h.b16 %v5022
    %v5323 = vunpack.c.l.b16 %v5023
    %v5324 = vunpack.c.h.b16 %v5023
    %v5325 = vunpack.c.l.b16 %v5024
    %v5326 = vunpack.c.h.b16 %v5024
    %v5327 = vunpack.c.l.b16 %v5025
    %v5328 = vunpack.c.h.b16 %v5025
    %v5329 = vunpack.c.l.b16 %v5026
    %v5330 = vunpack.c.h.b16 %v5026
    %v5331 = vunpack.c.l.b16 %v5027
    %v5332 = vunpack.c.h.b16 %v5027
    %v5333 = vunpack.c.l.b16 %v5028
    %v5334 = vunpack.c.h.b16 %v5028
    %v5335 = vunpack.c.l.b16 %v5029
    %v5336 = vunpack.c.h.b16 %v5029
    %v5337 = vunpack.c.l.b16 %v5030
    %v5338 = vunpack.c.h.b16 %v5030
    %v5339 = vunpack.c.l.b16 %v5031
    %v5340 = vunpack.c.h.b16 %v5031
    %v5341 = vunpack.c.l.b16 %v5032
    %v5342 = vunpack.c.h.b16 %v5032
    %v5343 = vunpack.c.l.b16 %v5033
    %v5344 = vunpack.c.h.b16 %v5033
    %v5345 = vunpack.c.l.b16 %v5034
    %v5346 = vunpack.c.h.b16 %v5034
    %v5347 = vunpack.c.l.b16 %v5035
    %v5348 = vunpack.c.h.b16 %v5035
    %v5349 = vunpack.c.l.b16 %v5036
    %v5350 = vunpack.c.h.b16 %v5036
    %v5351 = vunpack.c.l.b16 %v5037
    %v5352 = vunpack.c.h.b16 %v5037
    %v5353 = vunpack.c.l.b16 %v5038
    %v5354 = vunpack.c.h.b16 %v5038
    %v5355 = vunpack.c.l.b16 %v5039
    %v5356 = vunpack.c.h.b16 %v5039
    %v5357 = vunpack.c.l.b16 %v5040
    %v5358 = vunpack.c.h.b16 %v5040
    %v5359 = vunpack.c.l.b16 %v5041
    %v5360 = vunpack.c.h.b16 %v5041
    %v5361 = vunpack.c.l.b16 %v5042
    %v5362 = vunpack.c.h.b16 %v5042
    %v5363 = vunpack.c.l.b16 %v5043
    %v5364 = vunpack.c.h.b16 %v5043
    %v5365 = vunpack.c.l.b16 %v5044
    %v5366 = vunpack.c.h.b16 %v5044
    %v5367 = vunpack.c.l.b16 %v5045
    %v5368 = vunpack.c.h.b16 %v5045
    %v5369 = vunpack.c.l.b16 %v5046
    %v5370 = vunpack.c.h.b16 %v5046
    %v5371 = vunpack.c.l.b16 %v5047
    %v5372 = vunpack.c.h.b16 %v5047
    %v5373 = vunpack.c.l.b16 %v5048
    %v5374 = vunpack.c.h.b16 %v5048
    %v5375 = vunpack.c.l.b16 %v5049
    %v5376 = vunpack.c.h.b16 %v5049
    %v5377 = vunpack.c.l.b16 %v5050
    %v5378 = vunpack.c.h.b16 %v5050
    %v5379 = vunpack.c.l.b16 %v5051
    %v5380 = vunpack.c.h.b16 %v5051
    %v5381 = vunpack.c.l.b16 %v5052
    %v5382 = vunpack.c.h.b16 %v5052
    %v5383 = vunpack.c.l.b16 %v5053
    %v5384 = vunpack.c.h.b16 %v5053
    %v5385 = vunpack.c.l.b16 %v5054
    %v5386 = vunpack.c.h.b16 %v5054
    %v5387 = vunpack.c.l.b16 %v5055
    %v5388 = vunpack.c.h.b16 %v5055
    %v5389 = vunpack.c.l.b16 %v5056
    %v5390 = vunpack.c.h.b16 %v5056
    %v5391 = vunpack.c.l.b16 %v5057
    %v5392 = vunpack.c.h.b16 %v5057
    %v5393 = vunpack.c.l.b16 %v5058
    %v5394 = vunpack.c.h.b16 %v5058
    %v5395 = vunpack.c.l.b16 %v5059
    %v5396 = vunpack.c.h.b16 %v5059
    %v5397 = vunpack.c.l.b16 %v5060
    %v5398 = vunpack.c.h.b16 %v5060
    %v5399 = vunpack.c.l.b16 %v5061
    %v5400 = vunpack.c.h.b16 %v5061
    %v5401 = vunpack.c.l.b16 %v5062
    %v5402 = vunpack.c.h.b16 %v5062
    %v5403 = vunpack.c.l.b16 %v5063
    %v5404 = vunpack.c.h.b16 %v5063
    %v5405 = vunpack.c.l.b16 %v5064
    %v5406 = vunpack.c.h.b16 %v5064
    %v5407 = vunpack.c.l.b16 %v5065
    %v5408 = vunpack.c.h.b16 %v5065
    %v5409 = vunpack.c.l.b16 %v5066
    %v5410 = vunpack.c.h.b16 %v5066
    %v5411 = vunpack.c.l.b16 %v5067
    %v5412 = vunpack.c.h.b16 %v5067
    %v5413 = vunpack.c.l.b16 %v5068
    %v5414 = vunpack.c.h.b16 %v5068
    %v5415 = vunpack.c.l.b16 %v5069
    %v5416 = vunpack.c.h.b16 %v5069
    %v5417 = vunpack.c.l.b16 %v5070
    %v5418 = vunpack.c.h.b16 %v5070
    %v5419 = vunpack.c.l.b16 %v5071
    %v5420 = vunpack.c.h.b16 %v5071
    %v5421 = vunpack.c.l.b16 %v5072
    %v5422 = vunpack.c.h.b16 %v5072
    %v5423 = vunpack.c.l.b16 %v5073
    %v5424 = vunpack.c.h.b16 %v5073
    %v5425 = vunpack.c.l.b16 %v5074
    %v5426 = vunpack.c.h.b16 %v5074
    %v5427 = vunpack.c.l.b16 %v5075
    %v5428 = vunpack.c.h.b16 %v5075
    %v5429 = vunpack.c.l.b16 %v5076
    %v5430 = vunpack.c.h.b16 %v5076
    %v5431 = vunpack.c.l.b16 %v5077
    %v5432 = vunpack.c.h.b16 %v5077
    %v5433 = vunpack.c.l.b16 %v5078
    %v5434 = vunpack.c.h.b16 %v5078
    %v5435 = vunpack.c.l.b16 %v5079
    %v5436 = vunpack.c.h.b16 %v5079
    %v5437 = vunpack.c.l.b16 %v5080
    %v5438 = vunpack.c.h.b16 %v5080
    %v5439 = vunpack.c.l.b16 %v5081
    %v5440 = vunpack.c.h.b16 %v5081
    %v5441 = vunpack.c.l.b16 %v5082
    %v5442 = vunpack.c.h.b16 %v5082
    %v5443 = vunpack.c.l.b16 %v5083
    %v5444 = vunpack.c.h.b16 %v5083
    %v5445 = vunpack.c.l.b16 %v5084
    %v5446 = vunpack.c.h.b16 %v5084
    %v5447 = vunpack.c.l.b16 %v5085
    %v5448 = vunpack.c.h.b16 %v5085
    %v5449 = vunpack.c.l.b16 %v5086
    %v5450 = vunpack.c.h.b16 %v5086
    %v5451 = vunpack.c.l.b16 %v5087
    %v5452 = vunpack.c.h.b16 %v5087
    %v5453 = vunpack.c.l.b16 %v5088
    %v5454 = vunpack.c.h.b16 %v5088
    %v5455 = vunpack.c.l.b16 %v5089
    %v5456 = vunpack.c.h.b16 %v5089
    %v5457 = vunpack.c.l.b16 %v5090
    %v5458 = vunpack.c.h.b16 %v5090
    %v5459 = vunpack.c.l.b16 %v5091
    %v5460 = vunpack.c.h.b16 %v5091
    %v5461 = vunpack.c.l.b16 %v5092
    %v5462 = vunpack.c.h.b16 %v5092
    %v5463 = vunpack.c.l.b16 %v5093
    %v5464 = vunpack.c.h.b16 %v5093
    %v5465 = vunpack.c.l.b16 %v5094
    %v5466 = vunpack.c.h.b16 %v5094
    %v5467 = vunpack.c.l.b16 %v5095
    %v5468 = vunpack.c.h.b16 %v5095
    %v5469 = vunpack.c.l.b16 %v5096
    %v5470 = vunpack.c.h.b16 %v5096
    %v5471 = vunpack.c.l.b16 %v5097
    %v5472 = vunpack.c.h.b16 %v5097
    %v5473 = vunpack.c.l.b16 %v5098
    %v5474 = vunpack.c.h.b16 %v5098
    %v5475 = vunpack.c.l.b16 %v5099
    %v5476 = vunpack.c.h.b16 %v5099
    %v5477 = vunpack.c.l.b16 %v5100
    %v5478 = vunpack.c.h.b16 %v5100
    %v5479 = vunpack.c.l.b16 %v5101
    %v5480 = vunpack.c.h.b16 %v5101
    %v5481 = vunpack.c.l.b16 %v5102
    %v5482 = vunpack.c.h.b16 %v5102
    %v5483 = vunpack.c.l.b16 %v5103
    %v5484 = vunpack.c.h.b16 %v5103
    %v5485 = vunpack.c.l.b16 %v5104
    %v5486 = vunpack.c.h.b16 %v5104
    %v5487 = vunpack.c.l.b16 %v5105
    %v5488 = vunpack.c.h.b16 %v5105
    %v5489 = vunpack.c.l.b16 %v5106
    %v5490 = vunpack.c.h.b16 %v5106
    %v5491 = vunpack.c.l.b16 %v5107
    %v5492 = vunpack.c.h.b16 %v5107
    %v5493 = vunpack.c.l.b16 %v5108
    %v5494 = vunpack.c.h.b16 %v5108
    %v5495 = vunpack.c.l.b16 %v5109
    %v5496 = vunpack.c.h.b16 %v5109
    %v5497 = vunpack.c.l.b16 %v5110
    %v5498 = vunpack.c.h.b16 %v5110
    %v5499 = vunpack.c.l.b16 %v5111
    %v5500 = vunpack.c.h.b16 %v5111
    %v5501 = vunpack.c.l.b16 %v5112
    %v5502 = vunpack.c.h.b16 %v5112
    %v5503 = vunpack.c.l.b16 %v5113
    %v5504 = vunpack.c.h.b16 %v5113
    %v5505 = vunpack.c.l.b16 %v5114
    %v5506 = vunpack.c.h.b16 %v5114
    %v5507 = vunpack.c.l.b16 %v5115
    %v5508 = vunpack.c.h.b16 %v5115
    %v5509 = vunpack.c.l.b16 %v5116
    %v5510 = vunpack.c.h.b16 %v5116
    %v5511 = vpack.c.b16 %v5263, %v5255
    %v5512 = vpack.c.b16 %v5264, %v5256
    %v5513 = vpack.c.b16 %v5265, %v5257
    %v5514 = vpack.c.b16 %v5266, %v5258
    %v5515 = vpack.c.b16 %v5267, %v5259
    %v5516 = vpack.c.b16 %v5268, %v5260
    %v5517 = vpack.c.b16 %v5269, %v5261
    %v5518 = vpack.c.b16 %v5270, %v5262
    %v5519 = vpack.c.b16 %v5279, %v5271
    %v5520 = vpack.c.b16 %v5280, %v5272
    %v5521 = vpack.c.b16 %v5281, %v5273
    %v5522 = vpack.c.b16 %v5282, %v5274
    %v5523 = vpack.c.b16 %v5283, %v5275
    %v5524 = vpack.c.b16 %v5284, %v5276
    %v5525 = vpack.c.b16 %v5285, %v5277
    %v5526 = vpack.c.b16 %v5286, %v5278
    %v5527 = vpack.c.b16 %v5295, %v5287
    %v5528 = vpack.c.b16 %v5296, %v5288
    %v5529 = vpack.c.b16 %v5297, %v5289
    %v5530 = vpack.c.b16 %v5298, %v5290
    %v5531 = vpack.c.b16 %v5299, %v5291
    %v5532 = vpack.c.b16 %v5300, %v5292
    %v5533 = vpack.c.b16 %v5301, %v5293
    %v5534 = vpack.c.b16 %v5302, %v5294
    %v5535 = vpack.c.b16 %v5311, %v5303
    %v5536 = vpack.c.b16 %v5312, %v5304
    %v5537 = vpack.c.b16 %v5313, %v5305
    %v5538 = vpack.c.b16 %v5314, %v5306
    %v5539 = vpack.c.b16 %v5315, %v5307
    %v5540 = vpack.c.b16 %v5316, %v5308
    %v5541 = vpack.c.b16 %v5317, %v5309
    %v5542 = vpack.c.b16 %v5318, %v5310
    %v5543 = vpack.c.b16 %v5327, %v5319
    %v5544 = vpack.c.b16 %v5328, %v5320
    %v5545 = vpack.c.b16 %v5329, %v5321
    %v5546 = vpack.c.b16 %v5330, %v5322
    %v5547 = vpack.c.b16 %v5331, %v5323
    %v5548 = vpack.c.b16 %v5332, %v5324
    %v5549 = vpack.c.b16 %v5333, %v5325
    %v5550 = vpack.c.b16 %v5334, %v5326
    %v5551 = vpack.c.b16 %v5343, %v5335
    %v5552 = vpack.c.b16 %v5344, %v5336
    %v5553 = vpack.c.b16 %v5345, %v5337
    %v5554 = vpack.c.b16 %v5346, %v5338
    %v5555 = vpack.c.b16 %v5347, %v5339
    %v5556 = vpack.c.b16 %v5348, %v5340
    %v5557 = vpack.c.b16 %v5349, %v5341
    %v5558 = vpack.c.b16 %v5350, %v5342
    %v5559 = vpack.c.b16 %v5359, %v5351
    %v5560 = vpack.c.b16 %v5360, %v5352
    %v5561 = vpack.c.b16 %v5361, %v5353
    %v5562 = vpack.c.b16 %v5362, %v5354
    %v5563 = vpack.c.b16 %v5363, %v5355
    %v5564 = vpack.c.b16 %v5364, %v5356
    %v5565 = vpack.c.b16 %v5365, %v5357
    %v5566 = vpack.c.b16 %v5366, %v5358
    %v5567 = vpack.c.b16 %v5375, %v5367
    %v5568 = vpack.c.b16 %v5376, %v5368
    %v5569 = vpack.c.b16 %v5377, %v5369
    %v5570 = vpack.c.b16 %v5378, %v5370
    %v5571 = vpack.c.b16 %v5379, %v5371
    %v5572 = vpack.c.b16 %v5380, %v5372
    %v5573 = vpack.c.b16 %v5381, %v5373
    %v5574 = vpack.c.b16 %v5382, %v5374
    %v5575 = vpack.c.b16 %v5391, %v5383
    %v5576 = vpack.c.b16 %v5392, %v5384
    %v5577 = vpack.c.b16 %v5393, %v5385
    %v5578 = vpack.c.b16 %v5394, %v5386
    %v5579 = vpack.c.b16 %v5395, %v5387
    %v5580 = vpack.c.b16 %v5396, %v5388
    %v5581 = vpack.c.b16 %v5397, %v5389
    %v5582 = vpack.c.b16 %v5398, %v5390
    %v5583 = vpack.c.b16 %v5407, %v5399
    %v5584 = vpack.c.b16 %v5408, %v5400
    %v5585 = vpack.c.b16 %v5409, %v5401
    %v5586 = vpack.c.b16 %v5410, %v5402
    %v5587 = vpack.c.b16 %v5411, %v5403
    %v5588 = vpack.c.b16 %v5412, %v5404
    %v5589 = vpack.c.b16 %v5413, %v5405
    %v5590 = vpack.c.b16 %v5414, %v5406
    %v5591 = vpack.c.b16 %v5423, %v5415
    %v5592 = vpack.c.b16 %v5424, %v5416
    %v5593 = vpack.c.b16 %v5425, %v5417
    %v5594 = vpack.c.b16 %v5426, %v5418
    %v5595 = vpack.c.b16 %v5427, %v5419
    %v5596 = vpack.c.b16 %v5428, %v5420
    %v5597 = vpack.c.b16 %v5429, %v5421
    %v5598 = vpack.c.b16 %v5430, %v5422
    %v5599 = vpack.c.b16 %v5439, %v5431
    %v5600 = vpack.c.b16 %v5440, %v5432
    %v5601 = vpack.c.b16 %v5441, %v5433
    %v5602 = vpack.c.b16 %v5442, %v5434
    %v5603 = vpack.c.b16 %v5443, %v5435
    %v5604 = vpack.c.b16 %v5444, %v5436
    %v5605 = vpack.c.b16 %v5445, %v5437
    %v5606 = vpack.c.b16 %v5446, %v5438
    %v5607 = vpack.c.b16 %v5455, %v5447
    %v5608 = vpack.c.b16 %v5456, %v5448
    %v5609 = vpack.c.b16 %v5457, %v5449
    %v5610 = vpack.c.b16 %v5458, %v5450
    %v5611 = vpack.c.b16 %v5459, %v5451
    %v5612 = vpack.c.b16 %v5460, %v5452
    %v5613 = vpack.c.b16 %v5461, %v5453
    %v5614 = vpack.c.b16 %v5462, %v5454
    %v5615 = vpack.c.b16 %v5471, %v5463
    %v5616 = vpack.c.b16 %v5472, %v5464
    %v5617 = vpack.c.b16 %v5473, %v5465
    %v5618 = vpack.c.b16 %v5474, %v5466
    %v5619 = vpack.c.b16 %v5475, %v5467
    %v5620 = vpack.c.b16 %v5476, %v5468
    %v5621 = vpack.c.b16 %v5477, %v5469
    %v5622 = vpack.c.b16 %v5478, %v5470
    %v5623 = vpack.c.b16 %v5487, %v5479
    %v5624 = vpack.c.b16 %v5488, %v5480
    %v5625 = vpack.c.b16 %v5489, %v5481
    %v5626 = vpack.c.b16 %v5490, %v5482
    %v5627 = vpack.c.b16 %v5491, %v5483
    %v5628 = vpack.c.b16 %v5492, %v5484
    %v5629 = vpack.c.b16 %v5493, %v5485
    %v5630 = vpack.c.b16 %v5494, %v5486
    %v5631 = vpack.c.b16 %v5503, %v5495
    %v5632 = vpack.c.b16 %v5504, %v5496
    %v5633 = vpack.c.b16 %v5505, %v5497
    %v5634 = vpack.c.b16 %v5506, %v5498
    %v5635 = vpack.c.b16 %v5507, %v5499
    %v5636 = vpack.c.b16 %v5508, %v5500
    %v5637 = vpack.c.b16 %v5509, %v5501
    %v5638 = vpack.c.b16 %v5510, %v5502
    %5767 = vmatpush.bf16.msra.mxu0 %v5567
    %5768 = vmatpush.bf16.msra.mxu0 %v5559
    %5769 = vmatpush.bf16.msra.mxu0 %v5551
    %5770 = vmatpush.bf16.msra.mxu0 %v5543
    %5771 = vmatpush.bf16.msra.mxu0 %v5535
    %5772 = vmatpush.bf16.msra.mxu0 %v5527
    %5773 = vmatpush.bf16.msra.mxu0 %v5519
    %5774 = vmatpush.bf16.msra.mxu0 %v5511
    %5775 = vmatmul.bf16.gmra.mxu0 %v5120
    %v5776 = vpop.f32.mrf.mxu0
    %v5777 = vadd.f32 0.0, %v5776
    %v5778 = vpop.f32.mrf.mxu0
    %5779 = vdwg.mxu0
    %5780 = vmatpush.bf16.msra.mxu0 %v5631
    %5781 = vmatpush.bf16.msra.mxu0 %v5623
    %5782 = vmatpush.bf16.msra.mxu0 %v5615
    %5783 = vmatpush.bf16.msra.mxu0 %v5607
    %5784 = vmatpush.bf16.msra.mxu0 %v5599
    %5785 = vmatpush.bf16.msra.mxu0 %v5591
    %5786 = vmatpush.bf16.msra.mxu0 %v5583
    %5787 = vmatpush.bf16.msra.mxu0 %v5575
    %5788 = vmatmul.bf16.gmra.mxu0 %v5124
    %v5789 = vpop.f32.mrf.mxu0
    %v5790 = vadd.f32 %v5777, %v5789
    %v5791 = vpop.f32.mrf.mxu0
    %5792 = vdwg.mxu0
    %5793 = vmatpush.bf16.msra.mxu0 %v5568
    %5794 = vmatpush.bf16.msra.mxu0 %v5560
    %5795 = vmatpush.bf16.msra.mxu0 %v5552
    %5796 = vmatpush.bf16.msra.mxu0 %v5544
    %5797 = vmatpush.bf16.msra.mxu0 %v5536
    %5798 = vmatpush.bf16.msra.mxu0 %v5528
    %5799 = vmatpush.bf16.msra.mxu0 %v5520
    %5800 = vmatpush.bf16.msra.mxu0 %v5512
    %5801 = vmatmul.bf16.gmra.mxu0 %v5120
    %v5802 = vpop.f32.mrf.mxu0
    %v5803 = vadd.f32 0.0, %v5802
    %v5804 = vpop.f32.mrf.mxu0
    %5805 = vdwg.mxu0
    %5806 = vmatpush.bf16.msra.mxu0 %v5632
    %5807 = vmatpush.bf16.msra.mxu0 %v5624
    %5808 = vmatpush.bf16.msra.mxu0 %v5616
    %5809 = vmatpush.bf16.msra.mxu0 %v5608
    %5810 = vmatpush.bf16.msra.mxu0 %v5600
    %5811 = vmatpush.bf16.msra.mxu0 %v5592
    %5812 = vmatpush.bf16.msra.mxu0 %v5584
    %5813 = vmatpush.bf16.msra.mxu0 %v5576
    %5814 = vmatmul.bf16.gmra.mxu0 %v5124
    %v5815 = vpop.f32.mrf.mxu0
    %v5816 = vadd.f32 %v5803, %v5815
    %v5817 = vpop.f32.mrf.mxu0
    %5818 = vdwg.mxu0
    %5819 = vmatpush.bf16.msra.mxu0 %v5569
    %5820 = vmatpush.bf16.msra.mxu0 %v5561
    %5821 = vmatpush.bf16.msra.mxu0 %v5553
    %5822 = vmatpush.bf16.msra.mxu0 %v5545
    %5823 = vmatpush.bf16.msra.mxu0 %v5537
    %5824 = vmatpush.bf16.msra.mxu0 %v5529
    %5825 = vmatpush.bf16.msra.mxu0 %v5521
    %5826 = vmatpush.bf16.msra.mxu0 %v5513
    %5827 = vmatmul.bf16.gmra.mxu0 %v5120
    %v5828 = vpop.f32.mrf.mxu0
    %v5829 = vadd.f32 0.0, %v5828
    %v5830 = vpop.f32.mrf.mxu0
    %5831 = vdwg.mxu0
    %5832 = vmatpush.bf16.msra.mxu0 %v5633
    %5833 = vmatpush.bf16.msra.mxu0 %v5625
    %5834 = vmatpush.bf16.msra.mxu0 %v5617
    %5835 = vmatpush.bf16.msra.mxu0 %v5609
    %5836 = vmatpush.bf16.msra.mxu0 %v5601
    %5837 = vmatpush.bf16.msra.mxu0 %v5593
    %5838 = vmatpush.bf16.msra.mxu0 %v5585
    %5839 = vmatpush.bf16.msra.mxu0 %v5577
    %5840 = vmatmul.bf16.gmra.mxu0 %v5124
    %v5841 = vpop.f32.mrf.mxu0
    %v5842 = vadd.f32 %v5829, %v5841
    %v5843 = vpop.f32.mrf.mxu0
    %5844 = vdwg.mxu0
    %5845 = vmatpush.bf16.msra.mxu0 %v5570
    %5846 = vmatpush.bf16.msra.mxu0 %v5562
    %5847 = vmatpush.bf16.msra.mxu0 %v5554
    %5848 = vmatpush.bf16.msra.mxu0 %v5546
    %5849 = vmatpush.bf16.msra.mxu0 %v5538
    %5850 = vmatpush.bf16.msra.mxu0 %v5530
    %5851 = vmatpush.bf16.msra.mxu0 %v5522
    %5852 = vmatpush.bf16.msra.mxu0 %v5514
    %5853 = vmatmul.bf16.gmra.mxu0 %v5120
    %v5854 = vpop.f32.mrf.mxu0
    %v5855 = vadd.f32 0.0, %v5854
    %v5856 = vpop.f32.mrf.mxu0
    %5857 = vdwg.mxu0
    %5858 = vmatpush.bf16.msra.mxu0 %v5634
    %5859 = vmatpush.bf16.msra.mxu0 %v5626
    %5860 = vmatpush.bf16.msra.mxu0 %v5618
    %5861 = vmatpush.bf16.msra.mxu0 %v5610
    %5862 = vmatpush.bf16.msra.mxu0 %v5602
    %5863 = vmatpush.bf16.msra.mxu0 %v5594
    %5864 = vmatpush.bf16.msra.mxu0 %v5586
    %5865 = vmatpush.bf16.msra.mxu0 %v5578
    %5866 = vmatmul.bf16.gmra.mxu0 %v5124
    %v5867 = vpop.f32.mrf.mxu0
    %v5868 = vadd.f32 %v5855, %v5867
    %v5869 = vpop.f32.mrf.mxu0
    %5870 = vdwg.mxu0
    %5871 = vmatpush.bf16.msra.mxu0 %v5571
    %5872 = vmatpush.bf16.msra.mxu0 %v5563
    %5873 = vmatpush.bf16.msra.mxu0 %v5555
    %5874 = vmatpush.bf16.msra.mxu0 %v5547
    %5875 = vmatpush.bf16.msra.mxu0 %v5539
    %5876 = vmatpush.bf16.msra.mxu0 %v5531
    %5877 = vmatpush.bf16.msra.mxu0 %v5523
    %5878 = vmatpush.bf16.msra.mxu0 %v5515
    %5879 = vmatmul.bf16.gmra.mxu0 %v5120
    %v5880 = vpop.f32.mrf.mxu0
    %v5881 = vadd.f32 0.0, %v5880
    %v5882 = vpop.f32.mrf.mxu0
    %5883 = vdwg.mxu0
    %5884 = vmatpush.bf16.msra.mxu0 %v5635
    %5885 = vmatpush.bf16.msra.mxu0 %v5627
    %5886 = vmatpush.bf16.msra.mxu0 %v5619
    %5887 = vmatpush.bf16.msra.mxu0 %v5611
    %5888 = vmatpush.bf16.msra.mxu0 %v5603
    %5889 = vmatpush.bf16.msra.mxu0 %v5595
    %5890 = vmatpush.bf16.msra.mxu0 %v5587
    %5891 = vmatpush.bf16.msra.mxu0 %v5579
    %5892 = vmatmul.bf16.gmra.mxu0 %v5124
    %v5893 = vpop.f32.mrf.mxu0
    %v5894 = vadd.f32 %v5881, %v5893
    %v5895 = vpop.f32.mrf.mxu0
    %5896 = vdwg.mxu0
    %5897 = vmatpush.bf16.msra.mxu0 %v5572
    %5898 = vmatpush.bf16.msra.mxu0 %v5564
    %5899 = vmatpush.bf16.msra.mxu0 %v5556
    %5900 = vmatpush.bf16.msra.mxu0 %v5548
    %5901 = vmatpush.bf16.msra.mxu0 %v5540
    %5902 = vmatpush.bf16.msra.mxu0 %v5532
    %5903 = vmatpush.bf16.msra.mxu0 %v5524
    %5904 = vmatpush.bf16.msra.mxu0 %v5516
    %5905 = vmatmul.bf16.gmra.mxu0 %v5120
    %v5906 = vpop.f32.mrf.mxu0
    %v5907 = vadd.f32 0.0, %v5906
    %v5908 = vpop.f32.mrf.mxu0
    %5909 = vdwg.mxu0
    %5910 = vmatpush.bf16.msra.mxu0 %v5636
    %5911 = vmatpush.bf16.msra.mxu0 %v5628
    %5912 = vmatpush.bf16.msra.mxu0 %v5620
    %5913 = vmatpush.bf16.msra.mxu0 %v5612
    %5914 = vmatpush.bf16.msra.mxu0 %v5604
    %5915 = vmatpush.bf16.msra.mxu0 %v5596
    %5916 = vmatpush.bf16.msra.mxu0 %v5588
    %5917 = vmatpush.bf16.msra.mxu0 %v5580
    %5918 = vmatmul.bf16.gmra.mxu0 %v5124
    %v5919 = vpop.f32.mrf.mxu0
    %v5920 = vadd.f32 %v5907, %v5919
    %v5921 = vpop.f32.mrf.mxu0
    %5922 = vdwg.mxu0
    %5923 = vmatpush.bf16.msra.mxu0 %v5573
    %5924 = vmatpush.bf16.msra.mxu0 %v5565
    %5925 = vmatpush.bf16.msra.mxu0 %v5557
    %5926 = vmatpush.bf16.msra.mxu0 %v5549
    %5927 = vmatpush.bf16.msra.mxu0 %v5541
    %5928 = vmatpush.bf16.msra.mxu0 %v5533
    %5929 = vmatpush.bf16.msra.mxu0 %v5525
    %5930 = vmatpush.bf16.msra.mxu0 %v5517
    %5931 = vmatmul.bf16.gmra.mxu0 %v5120
    %v5932 = vpop.f32.mrf.mxu0
    %v5933 = vadd.f32 0.0, %v5932
    %v5934 = vpop.f32.mrf.mxu0
    %5935 = vdwg.mxu0
    %5936 = vmatpush.bf16.msra.mxu0 %v5637
    %5937 = vmatpush.bf16.msra.mxu0 %v5629
    %5938 = vmatpush.bf16.msra.mxu0 %v5621
    %5939 = vmatpush.bf16.msra.mxu0 %v5613
    %5940 = vmatpush.bf16.msra.mxu0 %v5605
    %5941 = vmatpush.bf16.msra.mxu0 %v5597
    %5942 = vmatpush.bf16.msra.mxu0 %v5589
    %5943 = vmatpush.bf16.msra.mxu0 %v5581
    %5944 = vmatmul.bf16.gmra.mxu0 %v5124
    %v5945 = vpop.f32.mrf.mxu0
    %v5946 = vadd.f32 %v5933, %v5945
    %v5947 = vpop.f32.mrf.mxu0
    %5948 = vdwg.mxu0
    %5949 = vmatpush.bf16.msra.mxu0 %v5574
    %5950 = vmatpush.bf16.msra.mxu0 %v5566
    %5951 = vmatpush.bf16.msra.mxu0 %v5558
    %5952 = vmatpush.bf16.msra.mxu0 %v5550
    %5953 = vmatpush.bf16.msra.mxu0 %v5542
    %5954 = vmatpush.bf16.msra.mxu0 %v5534
    %5955 = vmatpush.bf16.msra.mxu0 %v5526
    %5956 = vmatpush.bf16.msra.mxu0 %v5518
    %5957 = vmatmul.bf16.gmra.mxu0 %v5120
    %v5958 = vpop.f32.mrf.mxu0
    %v5959 = vadd.f32 0.0, %v5958
    %v5960 = vpop.f32.mrf.mxu0
    %5961 = vdwg.mxu0
    %5962 = vmatpush.bf16.msra.mxu0 %v5638
    %5963 = vmatpush.bf16.msra.mxu0 %v5630
    %5964 = vmatpush.bf16.msra.mxu0 %v5622
    %5965 = vmatpush.bf16.msra.mxu0 %v5614
    %5966 = vmatpush.bf16.msra.mxu0 %v5606
    %5967 = vmatpush.bf16.msra.mxu0 %v5598
    %5968 = vmatpush.bf16.msra.mxu0 %v5590
    %5969 = vmatpush.bf16.msra.mxu0 %v5582
    %5970 = vmatmul.bf16.gmra.mxu0 %v5124
    %v5971 = vpop.f32.mrf.mxu0
    %v5972 = vadd.f32 %v5959, %v5971
    %v5973 = vpop.f32.mrf.mxu0
    %5974 = vdwg.mxu0
    %v5983 = vrot.slane %v5790, 4
    %v5984 = vrot.slane %v5816, 4
    %v5985 = vrot.slane %v5842, 4
    %v5986 = vrot.slane %v5868, 4
    %v5987 = vrot.slane %v5894, 4
    %v5988 = vrot.slane %v5920, 4
    %v5989 = vrot.slane %v5946, 4
    %v5990 = vrot.slane %v5972, 4
    %v5999 = vadd.f32 %v147, %v5983
    %v6000 = vadd.f32 %v160, %v5984
    %v6001 = vadd.f32 %v173, %v5985
    %v6002 = vadd.f32 %v186, %v5986
    %v6003 = vadd.f32 %v199, %v5987
    %v6004 = vadd.f32 %v212, %v5988
    %v6005 = vadd.f32 %v225, %v5989
    %v6006 = vadd.f32 %v238, %v5990
    %v6007 = vxor.u32 %v5999, 2147483648
    %v6008 = vxor.u32 %v6000, 2147483648
    %v6009 = vxor.u32 %v6001, 2147483648
    %v6010 = vxor.u32 %v6002, 2147483648
    %v6011 = vxor.u32 %v6003, 2147483648
    %v6012 = vxor.u32 %v6004, 2147483648
    %v6013 = vmul.f32 %v6007, 1.442695
    %v6014 = vpow.pop %v6013
    %v6015 = vmul.f32 %v6008, 1.442695
    %v6016 = vpow.pop %v6015
    %v6017 = vmul.f32 %v6009, 1.442695
    %v6018 = vpow.pop %v6017
    %v6019 = vmul.f32 %v6010, 1.442695
    %v6020 = vpow.pop %v6019
    %v6021 = vmul.f32 %v6011, 1.442695
    %v6022 = vpow.pop %v6021
    %v6023 = vmul.f32 %v6012, 1.442695
    %v6024 = vpow.pop %v6023
    %v6025 = vadd.f32 %v6014, 1.0
    %v6026 = vadd.f32 %v6016, 1.0
    %v6027 = vadd.f32 %v6018, 1.0
    %v6028 = vadd.f32 %v6020, 1.0
    %v6029 = vadd.f32 %v6022, 1.0
    %v6030 = vadd.f32 %v6024, 1.0
    %v6031 = vrcp.pop %v6025
    %v6032 = vmul.f32 %v6025, %v6031
    %v6033 = vsub.f32 1.0, %v6032
    %v6034 = vmul.f32 %v6031, %v6033
    %v6035 = vadd.f32 %v6031, %v6034
    %vm6036 = vweird.f32 %v6025
    %vm6037 = vweird.f32 %v6031
    %vm6038 = vmor %vm6036, %vm6037
    %v6039 = vsel %vm6038, %v6031, %v6035
    %v6040 = vand.u32 2147483647, %v6025
    %vm6041 = vcmp.eq.f32.partialorder %v6040, 8.507059e+37
    %v6042 = vand.u32 %v6025, 2147483648
    %v6043 = vor.u32 1.1754944e-38, %v6042
    %v6044 = vsel %vm6041, %v6043, %v6039
    %v6045 = vmul.f32 1.0, %v6044
    %v6046 = vrcp.pop %v6026
    %v6047 = vmul.f32 %v6026, %v6046
    %v6048 = vsub.f32 1.0, %v6047
    %v6049 = vmul.f32 %v6046, %v6048
    %v6050 = vadd.f32 %v6046, %v6049
    %vm6051 = vweird.f32 %v6026
    %vm6052 = vweird.f32 %v6046
    %vm6053 = vmor %vm6051, %vm6052
    %v6054 = vsel %vm6053, %v6046, %v6050
    %v6055 = vand.u32 2147483647, %v6026
    %vm6056 = vcmp.eq.f32.partialorder %v6055, 8.507059e+37
    %v6057 = vand.u32 %v6026, 2147483648
    %v6058 = vor.u32 1.1754944e-38, %v6057
    %v6059 = vsel %vm6056, %v6058, %v6054
    %v6060 = vmul.f32 1.0, %v6059
    %v6061 = vrcp.pop %v6027
    %v6062 = vmul.f32 %v6027, %v6061
    %v6063 = vsub.f32 1.0, %v6062
    %v6064 = vmul.f32 %v6061, %v6063
    %v6065 = vadd.f32 %v6061, %v6064
    %vm6066 = vweird.f32 %v6027
    %vm6067 = vweird.f32 %v6061
    %vm6068 = vmor %vm6066, %vm6067
    %v6069 = vsel %vm6068, %v6061, %v6065
    %v6070 = vand.u32 2147483647, %v6027
    %vm6071 = vcmp.eq.f32.partialorder %v6070, 8.507059e+37
    %v6072 = vand.u32 %v6027, 2147483648
    %v6073 = vor.u32 1.1754944e-38, %v6072
    %v6074 = vsel %vm6071, %v6073, %v6069
    %v6075 = vmul.f32 1.0, %v6074
    %v6076 = vrcp.pop %v6028
    %v6077 = vmul.f32 %v6028, %v6076
    %v6078 = vsub.f32 1.0, %v6077
    %v6079 = vmul.f32 %v6076, %v6078
    %v6080 = vadd.f32 %v6076, %v6079
    %vm6081 = vweird.f32 %v6028
    %vm6082 = vweird.f32 %v6076
    %vm6083 = vmor %vm6081, %vm6082
    %v6084 = vsel %vm6083, %v6076, %v6080
    %v6085 = vand.u32 2147483647, %v6028
    %vm6086 = vcmp.eq.f32.partialorder %v6085, 8.507059e+37
    %v6087 = vand.u32 %v6028, 2147483648
    %v6088 = vor.u32 1.1754944e-38, %v6087
    %v6089 = vsel %vm6086, %v6088, %v6084
    %v6090 = vmul.f32 1.0, %v6089
    %v6091 = vrcp.pop %v6029
    %v6092 = vmul.f32 %v6029, %v6091
    %v6093 = vsub.f32 1.0, %v6092
    %v6094 = vmul.f32 %v6091, %v6093
    %v6095 = vadd.f32 %v6091, %v6094
    %vm6096 = vweird.f32 %v6029
    %vm6097 = vweird.f32 %v6091
    %vm6098 = vmor %vm6096, %vm6097
    %v6099 = vsel %vm6098, %v6091, %v6095
    %v6100 = vand.u32 2147483647, %v6029
    %vm6101 = vcmp.eq.f32.partialorder %v6100, 8.507059e+37
    %v6102 = vand.u32 %v6029, 2147483648
    %v6103 = vor.u32 1.1754944e-38, %v6102
    %v6104 = vsel %vm6101, %v6103, %v6099
    %v6105 = vmul.f32 1.0, %v6104
    %v6106 = vrcp.pop %v6030
    %v6107 = vmul.f32 %v6030, %v6106
    %v6108 = vsub.f32 1.0, %v6107
    %v6109 = vmul.f32 %v6106, %v6108
    %v6110 = vadd.f32 %v6106, %v6109
    %vm6111 = vweird.f32 %v6030
    %vm6112 = vweird.f32 %v6106
    %vm6113 = vmor %vm6111, %vm6112
    %v6114 = vsel %vm6113, %v6106, %v6110
    %v6115 = vand.u32 2147483647, %v6030
    %vm6116 = vcmp.eq.f32.partialorder %v6115, 8.507059e+37
    %v6117 = vand.u32 %v6030, 2147483648
    %v6118 = vor.u32 1.1754944e-38, %v6117
    %v6119 = vsel %vm6116, %v6118, %v6114
    %v6120 = vmul.f32 1.0, %v6119
    %v6121 = vtanh.pop %v6005
    %v6122 = vtanh.pop %v6006
    %v6125 = vrot.slane %v4937, 7
    %v6126 = vrot.slane %v4938, 7
    %v6129 = vmul.f32 %v6075, %v6125
    %v6130 = vmul.f32 %v6090, %v6126
    %v6131 = vmul.f32 %v6045, %v6121
    %v6132 = vmul.f32 %v6060, %v6122
    %v6133 = vadd.f32 %v6129, %v6131
    %v6134 = vadd.f32 %v6130, %v6132
    %v6135 = vtanh.pop %v6133
    %v6136 = vtanh.pop %v6134
    %v6137 = vmul.f32 %v6105, %v6135
    %v6138 = vmul.f32 %v6120, %v6136
    %vm6139 = vcmask 1044484
    %v6140 = vsel %vm6139, %v6137, 0.0
    %v6141 = vsel %vm6139, %v6138, 0.0
    %v6142 = vadd.f32 %v6140, %v6141
    %6143 = vadd.xlane.f32.xlu0 %v6142
    %v6144 = vpop.xlane.xlu0 %6143
    %v6145 = vmul.f32 %v6144, %v1365
    %v6146 = vsub.f32 %v6137, %v6145
    %v6147 = vsub.f32 %v6138, %v6145
    %v6148 = vmul.f32 %v6146, %v6146
    %v6149 = vmul.f32 %v6147, %v6147
    %v6150 = vsel %vm6139, %v6148, 0.0
    %v6151 = vsel %vm6139, %v6149, 0.0
    %v6152 = vadd.f32 %v6150, %v6151
    %6153 = vadd.xlane.f32.xlu0 %v6152
    %v6154 = vpop.xlane.xlu0 %6153
    %v6155 = vmul.f32 %v6154, %v1365
    %v6156 = vadd.f32 %v6155, 1e-05
    %v6157 = vrsqrt.pop %v6156
    %v6158 = vmul.f32 %v6157, %v6156
    %v6159 = vmul.f32 %v6158, %v6157
    %v6160 = vmul.f32 0.5, %v6159
    %v6161 = vsub.f32 1.5, %v6160
    %v6162 = vmul.f32 %v6157, %v6161
    %vm6163 = vweird.f32 %v6156
    %vm6164 = vweird.f32 %v6157
    %vm6165 = vmor %vm6163, %vm6164
    %v6166 = vsel %vm6165, %v6157, %v6162
    %v6167 = vmul.f32 %v6146, %v6166
    %v6168 = vmul.f32 %v6147, %v6166
    %v6169 = vmul.f32 %v6167, %v1391
    %v6170 = vmul.f32 %v6168, %v1392
    %v6171 = vadd.f32 %v6169, %v1398
    %v6172 = vadd.f32 %v6170, %v1399
    %6175 = vst [vmem:[#allocation1] sm:$0xff] %v6171
    %6176 = vst [vmem:[#allocation1 + $0x9] sm:$0xff] %v6172
    %s6177 = scalar_lea.vmem [#allocation1], 4
    %v6178 = vld [vmem:[%s6177] ss:$9 sm:$0xff]
    %s6180 = scalar_lea.vmem [#allocation2], 4
    %6181 = vst.msk [vmem:[%s6180] ss:$8 sm:$0x3] %vm1412, %v6178
    %6182 = vst.msk [vmem:[%s6180] ss:$8 sm:$0x0] %vm1412, %v6178
    %v6183 = vpack.c.bf16 %v6137, %v6137
    %v6184 = vpack.c.bf16 %v6138, %v6138
    %v6185 = vld [vmem:[#allocation4] sm:$0xff]
    %v6186 = vld [vmem:[#allocation4 + $0x8] sm:$0xff]
    %v6187 = vld [vmem:[#allocation4 + $0x10] sm:$0xff]
    %v6188 = vld [vmem:[#allocation4 + $0x18] sm:$0xff]
    %v6189 = vld [vmem:[#allocation4 + $0x20] sm:$0xff]
    %v6190 = vld [vmem:[#allocation4 + $0x28] sm:$0xff]
    %v6191 = vld [vmem:[#allocation4 + $0x30] sm:$0xff]
    %v6192 = vld [vmem:[#allocation4 + $0x38] sm:$0xff]
    %v6193 = vld [vmem:[#allocation4 + $0x40] sm:$0xff]
    %v6194 = vld [vmem:[#allocation4 + $0x48] sm:$0xff]
    %v6195 = vld [vmem:[#allocation4 + $0x50] sm:$0xff]
    %v6196 = vld [vmem:[#allocation4 + $0x58] sm:$0xff]
    %v6197 = vld [vmem:[#allocation4 + $0x60] sm:$0xff]
    %v6198 = vld [vmem:[#allocation4 + $0x68] sm:$0xff]
    %v6199 = vld [vmem:[#allocation4 + $0x70] sm:$0xff]
    %v6200 = vld [vmem:[#allocation4 + $0x78] sm:$0xff]
    %v6201 = vld [vmem:[#allocation4 + $0x80] sm:$0xff]
    %v6202 = vld [vmem:[#allocation4 + $0x88] sm:$0xff]
    %v6203 = vld [vmem:[#allocation4 + $0x90] sm:$0xff]
    %v6204 = vld [vmem:[#allocation4 + $0x98] sm:$0xff]
    %v6205 = vld [vmem:[#allocation4 + $0xa0] sm:$0xff]
    %v6206 = vld [vmem:[#allocation4 + $0xa8] sm:$0xff]
    %v6207 = vld [vmem:[#allocation4 + $0xb0] sm:$0xff]
    %v6208 = vld [vmem:[#allocation4 + $0xb8] sm:$0xff]
    %v6209 = vld [vmem:[#allocation4 + $0xc0] sm:$0xff]
    %v6210 = vld [vmem:[#allocation4 + $0xc8] sm:$0xff]
    %v6211 = vld [vmem:[#allocation4 + $0xd0] sm:$0xff]
    %v6212 = vld [vmem:[#allocation4 + $0xd8] sm:$0xff]
    %v6213 = vld [vmem:[#allocation4 + $0xe0] sm:$0xff]
    %v6214 = vld [vmem:[#allocation4 + $0xe8] sm:$0xff]
    %v6215 = vld [vmem:[#allocation4 + $0xf0] sm:$0xff]
    %v6216 = vld [vmem:[#allocation4 + $0xf8] sm:$0xff]
    %v6217 = vld [vmem:[#allocation4 + $0x100] sm:$0xff]
    %v6218 = vld [vmem:[#allocation4 + $0x108] sm:$0xff]
    %v6219 = vld [vmem:[#allocation4 + $0x110] sm:$0xff]
    %v6220 = vld [vmem:[#allocation4 + $0x118] sm:$0xff]
    %v6221 = vld [vmem:[#allocation4 + $0x120] sm:$0xff]
    %v6222 = vld [vmem:[#allocation4 + $0x128] sm:$0xff]
    %v6223 = vld [vmem:[#allocation4 + $0x130] sm:$0xff]
    %v6224 = vld [vmem:[#allocation4 + $0x138] sm:$0xff]
    %v6225 = vld [vmem:[#allocation4 + $0x140] sm:$0xff]
    %v6226 = vld [vmem:[#allocation4 + $0x148] sm:$0xff]
    %v6227 = vld [vmem:[#allocation4 + $0x150] sm:$0xff]
    %v6228 = vld [vmem:[#allocation4 + $0x158] sm:$0xff]
    %v6229 = vld [vmem:[#allocation4 + $0x160] sm:$0xff]
    %v6230 = vld [vmem:[#allocation4 + $0x168] sm:$0xff]
    %v6231 = vld [vmem:[#allocation4 + $0x170] sm:$0xff]
    %v6232 = vld [vmem:[#allocation4 + $0x178] sm:$0xff]
    %v6233 = vld [vmem:[#allocation4 + $0x180] sm:$0xff]
    %v6234 = vld [vmem:[#allocation4 + $0x188] sm:$0xff]
    %v6235 = vld [vmem:[#allocation4 + $0x190] sm:$0xff]
    %v6236 = vld [vmem:[#allocation4 + $0x198] sm:$0xff]
    %v6237 = vld [vmem:[#allocation4 + $0x1a0] sm:$0xff]
    %v6238 = vld [vmem:[#allocation4 + $0x1a8] sm:$0xff]
    %v6239 = vld [vmem:[#allocation4 + $0x1b0] sm:$0xff]
    %v6240 = vld [vmem:[#allocation4 + $0x1b8] sm:$0xff]
    %v6241 = vld [vmem:[#allocation4 + $0x1c0] sm:$0xff]
    %v6242 = vld [vmem:[#allocation4 + $0x1c8] sm:$0xff]
    %v6243 = vld [vmem:[#allocation4 + $0x1d0] sm:$0xff]
    %v6244 = vld [vmem:[#allocation4 + $0x1d8] sm:$0xff]
    %v6245 = vld [vmem:[#allocation4 + $0x1e0] sm:$0xff]
    %v6246 = vld [vmem:[#allocation4 + $0x1e8] sm:$0xff]
    %v6247 = vld [vmem:[#allocation4 + $0x1f0] sm:$0xff]
    %v6248 = vld [vmem:[#allocation4 + $0x1f8] sm:$0xff]
    %v6249 = vld [vmem:[#allocation4 + $0x200] sm:$0xff]
    %v6250 = vld [vmem:[#allocation4 + $0x208] sm:$0xff]
    %v6251 = vld [vmem:[#allocation4 + $0x210] sm:$0xff]
    %v6252 = vld [vmem:[#allocation4 + $0x218] sm:$0xff]
    %v6253 = vld [vmem:[#allocation4 + $0x220] sm:$0xff]
    %v6254 = vld [vmem:[#allocation4 + $0x228] sm:$0xff]
    %v6255 = vld [vmem:[#allocation4 + $0x230] sm:$0xff]
    %v6256 = vld [vmem:[#allocation4 + $0x238] sm:$0xff]
    %v6257 = vld [vmem:[#allocation4 + $0x240] sm:$0xff]
    %v6258 = vld [vmem:[#allocation4 + $0x248] sm:$0xff]
    %v6259 = vld [vmem:[#allocation4 + $0x250] sm:$0xff]
    %v6260 = vld [vmem:[#allocation4 + $0x258] sm:$0xff]
    %v6261 = vld [vmem:[#allocation4 + $0x260] sm:$0xff]
    %v6262 = vld [vmem:[#allocation4 + $0x268] sm:$0xff]
    %v6263 = vld [vmem:[#allocation4 + $0x270] sm:$0xff]
    %v6264 = vld [vmem:[#allocation4 + $0x278] sm:$0xff]
    %v6265 = vld [vmem:[#allocation4 + $0x280] sm:$0xff]
    %v6266 = vld [vmem:[#allocation4 + $0x288] sm:$0xff]
    %v6267 = vld [vmem:[#allocation4 + $0x290] sm:$0xff]
    %v6268 = vld [vmem:[#allocation4 + $0x298] sm:$0xff]
    %v6269 = vld [vmem:[#allocation4 + $0x2a0] sm:$0xff]
    %v6270 = vld [vmem:[#allocation4 + $0x2a8] sm:$0xff]
    %v6271 = vld [vmem:[#allocation4 + $0x2b0] sm:$0xff]
    %v6272 = vld [vmem:[#allocation4 + $0x2b8] sm:$0xff]
    %v6273 = vld [vmem:[#allocation4 + $0x2c0] sm:$0xff]
    %v6274 = vld [vmem:[#allocation4 + $0x2c8] sm:$0xff]
    %v6275 = vld [vmem:[#allocation4 + $0x2d0] sm:$0xff]
    %v6276 = vld [vmem:[#allocation4 + $0x2d8] sm:$0xff]
    %v6277 = vld [vmem:[#allocation4 + $0x2e0] sm:$0xff]
    %v6278 = vld [vmem:[#allocation4 + $0x2e8] sm:$0xff]
    %v6279 = vld [vmem:[#allocation4 + $0x2f0] sm:$0xff]
    %v6280 = vld [vmem:[#allocation4 + $0x2f8] sm:$0xff]
    %v6281 = vld [vmem:[#allocation4 + $0x300] sm:$0xff]
    %v6282 = vld [vmem:[#allocation4 + $0x308] sm:$0xff]
    %v6283 = vld [vmem:[#allocation4 + $0x310] sm:$0xff]
    %v6284 = vld [vmem:[#allocation4 + $0x318] sm:$0xff]
    %v6285 = vld [vmem:[#allocation4 + $0x320] sm:$0xff]
    %v6286 = vld [vmem:[#allocation4 + $0x328] sm:$0xff]
    %v6287 = vld [vmem:[#allocation4 + $0x330] sm:$0xff]
    %v6288 = vld [vmem:[#allocation4 + $0x338] sm:$0xff]
    %v6289 = vld [vmem:[#allocation4 + $0x340] sm:$0xff]
    %v6290 = vld [vmem:[#allocation4 + $0x348] sm:$0xff]
    %v6291 = vld [vmem:[#allocation4 + $0x350] sm:$0xff]
    %v6292 = vld [vmem:[#allocation4 + $0x358] sm:$0xff]
    %v6293 = vld [vmem:[#allocation4 + $0x360] sm:$0xff]
    %v6294 = vld [vmem:[#allocation4 + $0x368] sm:$0xff]
    %v6295 = vld [vmem:[#allocation4 + $0x370] sm:$0xff]
    %v6296 = vld [vmem:[#allocation4 + $0x378] sm:$0xff]
    %v6297 = vld [vmem:[#allocation4 + $0x380] sm:$0xff]
    %v6298 = vld [vmem:[#allocation4 + $0x388] sm:$0xff]
    %v6299 = vld [vmem:[#allocation4 + $0x390] sm:$0xff]
    %v6300 = vld [vmem:[#allocation4 + $0x398] sm:$0xff]
    %v6301 = vld [vmem:[#allocation4 + $0x3a0] sm:$0xff]
    %v6302 = vld [vmem:[#allocation4 + $0x3a8] sm:$0xff]
    %v6303 = vld [vmem:[#allocation4 + $0x3b0] sm:$0xff]
    %v6304 = vld [vmem:[#allocation4 + $0x3b8] sm:$0xff]
    %v6305 = vld [vmem:[#allocation4 + $0x3c0] sm:$0xff]
    %v6306 = vld [vmem:[#allocation4 + $0x3c8] sm:$0xff]
    %v6307 = vld [vmem:[#allocation4 + $0x3d0] sm:$0xff]
    %v6308 = vld [vmem:[#allocation4 + $0x3d8] sm:$0xff]
    %v6309 = vld [vmem:[#allocation4 + $0x3e0] sm:$0xff]
    %v6310 = vld [vmem:[#allocation4 + $0x3e8] sm:$0xff]
    %v6311 = vld [vmem:[#allocation4 + $0x3f0] sm:$0xff]
    %v6312 = vld [vmem:[#allocation4 + $0x3f8] sm:$0xff]
    %v6315 = vrot.slane %v6183, 2
    %v6316 = vrot.slane %v6184, 2
    %v6447 = vunpack.c.l.b16 %v6185
    %v6448 = vunpack.c.h.b16 %v6185
    %v6449 = vunpack.c.l.b16 %v6186
    %v6450 = vunpack.c.h.b16 %v6186
    %v6451 = vunpack.c.l.b16 %v6187
    %v6452 = vunpack.c.h.b16 %v6187
    %v6453 = vunpack.c.l.b16 %v6188
    %v6454 = vunpack.c.h.b16 %v6188
    %v6455 = vunpack.c.l.b16 %v6189
    %v6456 = vunpack.c.h.b16 %v6189
    %v6457 = vunpack.c.l.b16 %v6190
    %v6458 = vunpack.c.h.b16 %v6190
    %v6459 = vunpack.c.l.b16 %v6191
    %v6460 = vunpack.c.h.b16 %v6191
    %v6461 = vunpack.c.l.b16 %v6192
    %v6462 = vunpack.c.h.b16 %v6192
    %v6463 = vunpack.c.l.b16 %v6193
    %v6464 = vunpack.c.h.b16 %v6193
    %v6465 = vunpack.c.l.b16 %v6194
    %v6466 = vunpack.c.h.b16 %v6194
    %v6467 = vunpack.c.l.b16 %v6195
    %v6468 = vunpack.c.h.b16 %v6195
    %v6469 = vunpack.c.l.b16 %v6196
    %v6470 = vunpack.c.h.b16 %v6196
    %v6471 = vunpack.c.l.b16 %v6197
    %v6472 = vunpack.c.h.b16 %v6197
    %v6473 = vunpack.c.l.b16 %v6198
    %v6474 = vunpack.c.h.b16 %v6198
    %v6475 = vunpack.c.l.b16 %v6199
    %v6476 = vunpack.c.h.b16 %v6199
    %v6477 = vunpack.c.l.b16 %v6200
    %v6478 = vunpack.c.h.b16 %v6200
    %v6479 = vunpack.c.l.b16 %v6201
    %v6480 = vunpack.c.h.b16 %v6201
    %v6481 = vunpack.c.l.b16 %v6202
    %v6482 = vunpack.c.h.b16 %v6202
    %v6483 = vunpack.c.l.b16 %v6203
    %v6484 = vunpack.c.h.b16 %v6203
    %v6485 = vunpack.c.l.b16 %v6204
    %v6486 = vunpack.c.h.b16 %v6204
    %v6487 = vunpack.c.l.b16 %v6205
    %v6488 = vunpack.c.h.b16 %v6205
    %v6489 = vunpack.c.l.b16 %v6206
    %v6490 = vunpack.c.h.b16 %v6206
    %v6491 = vunpack.c.l.b16 %v6207
    %v6492 = vunpack.c.h.b16 %v6207
    %v6493 = vunpack.c.l.b16 %v6208
    %v6494 = vunpack.c.h.b16 %v6208
    %v6495 = vunpack.c.l.b16 %v6209
    %v6496 = vunpack.c.h.b16 %v6209
    %v6497 = vunpack.c.l.b16 %v6210
    %v6498 = vunpack.c.h.b16 %v6210
    %v6499 = vunpack.c.l.b16 %v6211
    %v6500 = vunpack.c.h.b16 %v6211
    %v6501 = vunpack.c.l.b16 %v6212
    %v6502 = vunpack.c.h.b16 %v6212
    %v6503 = vunpack.c.l.b16 %v6213
    %v6504 = vunpack.c.h.b16 %v6213
    %v6505 = vunpack.c.l.b16 %v6214
    %v6506 = vunpack.c.h.b16 %v6214
    %v6507 = vunpack.c.l.b16 %v6215
    %v6508 = vunpack.c.h.b16 %v6215
    %v6509 = vunpack.c.l.b16 %v6216
    %v6510 = vunpack.c.h.b16 %v6216
    %v6511 = vunpack.c.l.b16 %v6217
    %v6512 = vunpack.c.h.b16 %v6217
    %v6513 = vunpack.c.l.b16 %v6218
    %v6514 = vunpack.c.h.b16 %v6218
    %v6515 = vunpack.c.l.b16 %v6219
    %v6516 = vunpack.c.h.b16 %v6219
    %v6517 = vunpack.c.l.b16 %v6220
    %v6518 = vunpack.c.h.b16 %v6220
    %v6519 = vunpack.c.l.b16 %v6221
    %v6520 = vunpack.c.h.b16 %v6221
    %v6521 = vunpack.c.l.b16 %v6222
    %v6522 = vunpack.c.h.b16 %v6222
    %v6523 = vunpack.c.l.b16 %v6223
    %v6524 = vunpack.c.h.b16 %v6223
    %v6525 = vunpack.c.l.b16 %v6224
    %v6526 = vunpack.c.h.b16 %v6224
    %v6527 = vunpack.c.l.b16 %v6225
    %v6528 = vunpack.c.h.b16 %v6225
    %v6529 = vunpack.c.l.b16 %v6226
    %v6530 = vunpack.c.h.b16 %v6226
    %v6531 = vunpack.c.l.b16 %v6227
    %v6532 = vunpack.c.h.b16 %v6227
    %v6533 = vunpack.c.l.b16 %v6228
    %v6534 = vunpack.c.h.b16 %v6228
    %v6535 = vunpack.c.l.b16 %v6229
    %v6536 = vunpack.c.h.b16 %v6229
    %v6537 = vunpack.c.l.b16 %v6230
    %v6538 = vunpack.c.h.b16 %v6230
    %v6539 = vunpack.c.l.b16 %v6231
    %v6540 = vunpack.c.h.b16 %v6231
    %v6541 = vunpack.c.l.b16 %v6232
    %v6542 = vunpack.c.h.b16 %v6232
    %v6543 = vunpack.c.l.b16 %v6233
    %v6544 = vunpack.c.h.b16 %v6233
    %v6545 = vunpack.c.l.b16 %v6234
    %v6546 = vunpack.c.h.b16 %v6234
    %v6547 = vunpack.c.l.b16 %v6235
    %v6548 = vunpack.c.h.b16 %v6235
    %v6549 = vunpack.c.l.b16 %v6236
    %v6550 = vunpack.c.h.b16 %v6236
    %v6551 = vunpack.c.l.b16 %v6237
    %v6552 = vunpack.c.h.b16 %v6237
    %v6553 = vunpack.c.l.b16 %v6238
    %v6554 = vunpack.c.h.b16 %v6238
    %v6555 = vunpack.c.l.b16 %v6239
    %v6556 = vunpack.c.h.b16 %v6239
    %v6557 = vunpack.c.l.b16 %v6240
    %v6558 = vunpack.c.h.b16 %v6240
    %v6559 = vunpack.c.l.b16 %v6241
    %v6560 = vunpack.c.h.b16 %v6241
    %v6561 = vunpack.c.l.b16 %v6242
    %v6562 = vunpack.c.h.b16 %v6242
    %v6563 = vunpack.c.l.b16 %v6243
    %v6564 = vunpack.c.h.b16 %v6243
    %v6565 = vunpack.c.l.b16 %v6244
    %v6566 = vunpack.c.h.b16 %v6244
    %v6567 = vunpack.c.l.b16 %v6245
    %v6568 = vunpack.c.h.b16 %v6245
    %v6569 = vunpack.c.l.b16 %v6246
    %v6570 = vunpack.c.h.b16 %v6246
    %v6571 = vunpack.c.l.b16 %v6247
    %v6572 = vunpack.c.h.b16 %v6247
    %v6573 = vunpack.c.l.b16 %v6248
    %v6574 = vunpack.c.h.b16 %v6248
    %v6575 = vunpack.c.l.b16 %v6249
    %v6576 = vunpack.c.h.b16 %v6249
    %v6577 = vunpack.c.l.b16 %v6250
    %v6578 = vunpack.c.h.b16 %v6250
    %v6579 = vunpack.c.l.b16 %v6251
    %v6580 = vunpack.c.h.b16 %v6251
    %v6581 = vunpack.c.l.b16 %v6252
    %v6582 = vunpack.c.h.b16 %v6252
    %v6583 = vunpack.c.l.b16 %v6253
    %v6584 = vunpack.c.h.b16 %v6253
    %v6585 = vunpack.c.l.b16 %v6254
    %v6586 = vunpack.c.h.b16 %v6254
    %v6587 = vunpack.c.l.b16 %v6255
    %v6588 = vunpack.c.h.b16 %v6255
    %v6589 = vunpack.c.l.b16 %v6256
    %v6590 = vunpack.c.h.b16 %v6256
    %v6591 = vunpack.c.l.b16 %v6257
    %v6592 = vunpack.c.h.b16 %v6257
    %v6593 = vunpack.c.l.b16 %v6258
    %v6594 = vunpack.c.h.b16 %v6258
    %v6595 = vunpack.c.l.b16 %v6259
    %v6596 = vunpack.c.h.b16 %v6259
    %v6597 = vunpack.c.l.b16 %v6260
    %v6598 = vunpack.c.h.b16 %v6260
    %v6599 = vunpack.c.l.b16 %v6261
    %v6600 = vunpack.c.h.b16 %v6261
    %v6601 = vunpack.c.l.b16 %v6262
    %v6602 = vunpack.c.h.b16 %v6262
    %v6603 = vunpack.c.l.b16 %v6263
    %v6604 = vunpack.c.h.b16 %v6263
    %v6605 = vunpack.c.l.b16 %v6264
    %v6606 = vunpack.c.h.b16 %v6264
    %v6607 = vunpack.c.l.b16 %v6265
    %v6608 = vunpack.c.h.b16 %v6265
    %v6609 = vunpack.c.l.b16 %v6266
    %v6610 = vunpack.c.h.b16 %v6266
    %v6611 = vunpack.c.l.b16 %v6267
    %v6612 = vunpack.c.h.b16 %v6267
    %v6613 = vunpack.c.l.b16 %v6268
    %v6614 = vunpack.c.h.b16 %v6268
    %v6615 = vunpack.c.l.b16 %v6269
    %v6616 = vunpack.c.h.b16 %v6269
    %v6617 = vunpack.c.l.b16 %v6270
    %v6618 = vunpack.c.h.b16 %v6270
    %v6619 = vunpack.c.l.b16 %v6271
    %v6620 = vunpack.c.h.b16 %v6271
    %v6621 = vunpack.c.l.b16 %v6272
    %v6622 = vunpack.c.h.b16 %v6272
    %v6623 = vunpack.c.l.b16 %v6273
    %v6624 = vunpack.c.h.b16 %v6273
    %v6625 = vunpack.c.l.b16 %v6274
    %v6626 = vunpack.c.h.b16 %v6274
    %v6627 = vunpack.c.l.b16 %v6275
    %v6628 = vunpack.c.h.b16 %v6275
    %v6629 = vunpack.c.l.b16 %v6276
    %v6630 = vunpack.c.h.b16 %v6276
    %v6631 = vunpack.c.l.b16 %v6277
    %v6632 = vunpack.c.h.b16 %v6277
    %v6633 = vunpack.c.l.b16 %v6278
    %v6634 = vunpack.c.h.b16 %v6278
    %v6635 = vunpack.c.l.b16 %v6279
    %v6636 = vunpack.c.h.b16 %v6279
    %v6637 = vunpack.c.l.b16 %v6280
    %v6638 = vunpack.c.h.b16 %v6280
    %v6639 = vunpack.c.l.b16 %v6281
    %v6640 = vunpack.c.h.b16 %v6281
    %v6641 = vunpack.c.l.b16 %v6282
    %v6642 = vunpack.c.h.b16 %v6282
    %v6643 = vunpack.c.l.b16 %v6283
    %v6644 = vunpack.c.h.b16 %v6283
    %v6645 = vunpack.c.l.b16 %v6284
    %v6646 = vunpack.c.h.b16 %v6284
    %v6647 = vunpack.c.l.b16 %v6285
    %v6648 = vunpack.c.h.b16 %v6285
    %v6649 = vunpack.c.l.b16 %v6286
    %v6650 = vunpack.c.h.b16 %v6286
    %v6651 = vunpack.c.l.b16 %v6287
    %v6652 = vunpack.c.h.b16 %v6287
    %v6653 = vunpack.c.l.b16 %v6288
    %v6654 = vunpack.c.h.b16 %v6288
    %v6655 = vunpack.c.l.b16 %v6289
    %v6656 = vunpack.c.h.b16 %v6289
    %v6657 = vunpack.c.l.b16 %v6290
    %v6658 = vunpack.c.h.b16 %v6290
    %v6659 = vunpack.c.l.b16 %v6291
    %v6660 = vunpack.c.h.b16 %v6291
    %v6661 = vunpack.c.l.b16 %v6292
    %v6662 = vunpack.c.h.b16 %v6292
    %v6663 = vunpack.c.l.b16 %v6293
    %v6664 = vunpack.c.h.b16 %v6293
    %v6665 = vunpack.c.l.b16 %v6294
    %v6666 = vunpack.c.h.b16 %v6294
    %v6667 = vunpack.c.l.b16 %v6295
    %v6668 = vunpack.c.h.b16 %v6295
    %v6669 = vunpack.c.l.b16 %v6296
    %v6670 = vunpack.c.h.b16 %v6296
    %v6671 = vunpack.c.l.b16 %v6297
    %v6672 = vunpack.c.h.b16 %v6297
    %v6673 = vunpack.c.l.b16 %v6298
    %v6674 = vunpack.c.h.b16 %v6298
    %v6675 = vunpack.c.l.b16 %v6299
    %v6676 = vunpack.c.h.b16 %v6299
    %v6677 = vunpack.c.l.b16 %v6300
    %v6678 = vunpack.c.h.b16 %v6300
    %v6679 = vunpack.c.l.b16 %v6301
    %v6680 = vunpack.c.h.b16 %v6301
    %v6681 = vunpack.c.l.b16 %v6302
    %v6682 = vunpack.c.h.b16 %v6302
    %v6683 = vunpack.c.l.b16 %v6303
    %v6684 = vunpack.c.h.b16 %v6303
    %v6685 = vunpack.c.l.b16 %v6304
    %v6686 = vunpack.c.h.b16 %v6304
    %v6687 = vunpack.c.l.b16 %v6305
    %v6688 = vunpack.c.h.b16 %v6305
    %v6689 = vunpack.c.l.b16 %v6306
    %v6690 = vunpack.c.h.b16 %v6306
    %v6691 = vunpack.c.l.b16 %v6307
    %v6692 = vunpack.c.h.b16 %v6307
    %v6693 = vunpack.c.l.b16 %v6308
    %v6694 = vunpack.c.h.b16 %v6308
    %v6695 = vunpack.c.l.b16 %v6309
    %v6696 = vunpack.c.h.b16 %v6309
    %v6697 = vunpack.c.l.b16 %v6310
    %v6698 = vunpack.c.h.b16 %v6310
    %v6699 = vunpack.c.l.b16 %v6311
    %v6700 = vunpack.c.h.b16 %v6311
    %v6701 = vunpack.c.l.b16 %v6312
    %v6702 = vunpack.c.h.b16 %v6312
    %v6703 = vpack.c.b16 %v6455, %v6447
    %v6704 = vpack.c.b16 %v6456, %v6448
    %v6705 = vpack.c.b16 %v6457, %v6449
    %v6706 = vpack.c.b16 %v6458, %v6450
    %v6707 = vpack.c.b16 %v6459, %v6451
    %v6708 = vpack.c.b16 %v6460, %v6452
    %v6709 = vpack.c.b16 %v6461, %v6453
    %v6710 = vpack.c.b16 %v6462, %v6454
    %v6711 = vpack.c.b16 %v6471, %v6463
    %v6712 = vpack.c.b16 %v6472, %v6464
    %v6713 = vpack.c.b16 %v6473, %v6465
    %v6714 = vpack.c.b16 %v6474, %v6466
    %v6715 = vpack.c.b16 %v6475, %v6467
    %v6716 = vpack.c.b16 %v6476, %v6468
    %v6717 = vpack.c.b16 %v6477, %v6469
    %v6718 = vpack.c.b16 %v6478, %v6470
    %v6719 = vpack.c.b16 %v6487, %v6479
    %v6720 = vpack.c.b16 %v6488, %v6480
    %v6721 = vpack.c.b16 %v6489, %v6481
    %v6722 = vpack.c.b16 %v6490, %v6482
    %v6723 = vpack.c.b16 %v6491, %v6483
    %v6724 = vpack.c.b16 %v6492, %v6484
    %v6725 = vpack.c.b16 %v6493, %v6485
    %v6726 = vpack.c.b16 %v6494, %v6486
    %v6727 = vpack.c.b16 %v6503, %v6495
    %v6728 = vpack.c.b16 %v6504, %v6496
    %v6729 = vpack.c.b16 %v6505, %v6497
    %v6730 = vpack.c.b16 %v6506, %v6498
    %v6731 = vpack.c.b16 %v6507, %v6499
    %v6732 = vpack.c.b16 %v6508, %v6500
    %v6733 = vpack.c.b16 %v6509, %v6501
    %v6734 = vpack.c.b16 %v6510, %v6502
    %v6735 = vpack.c.b16 %v6519, %v6511
    %v6736 = vpack.c.b16 %v6520, %v6512
    %v6737 = vpack.c.b16 %v6521, %v6513
    %v6738 = vpack.c.b16 %v6522, %v6514
    %v6739 = vpack.c.b16 %v6523, %v6515
    %v6740 = vpack.c.b16 %v6524, %v6516
    %v6741 = vpack.c.b16 %v6525, %v6517
    %v6742 = vpack.c.b16 %v6526, %v6518
    %v6743 = vpack.c.b16 %v6535, %v6527
    %v6744 = vpack.c.b16 %v6536, %v6528
    %v6745 = vpack.c.b16 %v6537, %v6529
    %v6746 = vpack.c.b16 %v6538, %v6530
    %v6747 = vpack.c.b16 %v6539, %v6531
    %v6748 = vpack.c.b16 %v6540, %v6532
    %v6749 = vpack.c.b16 %v6541, %v6533
    %v6750 = vpack.c.b16 %v6542, %v6534
    %v6751 = vpack.c.b16 %v6551, %v6543
    %v6752 = vpack.c.b16 %v6552, %v6544
    %v6753 = vpack.c.b16 %v6553, %v6545
    %v6754 = vpack.c.b16 %v6554, %v6546
    %v6755 = vpack.c.b16 %v6555, %v6547
    %v6756 = vpack.c.b16 %v6556, %v6548
    %v6757 = vpack.c.b16 %v6557, %v6549
    %v6758 = vpack.c.b16 %v6558, %v6550
    %v6759 = vpack.c.b16 %v6567, %v6559
    %v6760 = vpack.c.b16 %v6568, %v6560
    %v6761 = vpack.c.b16 %v6569, %v6561
    %v6762 = vpack.c.b16 %v6570, %v6562
    %v6763 = vpack.c.b16 %v6571, %v6563
    %v6764 = vpack.c.b16 %v6572, %v6564
    %v6765 = vpack.c.b16 %v6573, %v6565
    %v6766 = vpack.c.b16 %v6574, %v6566
    %v6767 = vpack.c.b16 %v6583, %v6575
    %v6768 = vpack.c.b16 %v6584, %v6576
    %v6769 = vpack.c.b16 %v6585, %v6577
    %v6770 = vpack.c.b16 %v6586, %v6578
    %v6771 = vpack.c.b16 %v6587, %v6579
    %v6772 = vpack.c.b16 %v6588, %v6580
    %v6773 = vpack.c.b16 %v6589, %v6581
    %v6774 = vpack.c.b16 %v6590, %v6582
    %v6775 = vpack.c.b16 %v6599, %v6591
    %v6776 = vpack.c.b16 %v6600, %v6592
    %v6777 = vpack.c.b16 %v6601, %v6593
    %v6778 = vpack.c.b16 %v6602, %v6594
    %v6779 = vpack.c.b16 %v6603, %v6595
    %v6780 = vpack.c.b16 %v6604, %v6596
    %v6781 = vpack.c.b16 %v6605, %v6597
    %v6782 = vpack.c.b16 %v6606, %v6598
    %v6783 = vpack.c.b16 %v6615, %v6607
    %v6784 = vpack.c.b16 %v6616, %v6608
    %v6785 = vpack.c.b16 %v6617, %v6609
    %v6786 = vpack.c.b16 %v6618, %v6610
    %v6787 = vpack.c.b16 %v6619, %v6611
    %v6788 = vpack.c.b16 %v6620, %v6612
    %v6789 = vpack.c.b16 %v6621, %v6613
    %v6790 = vpack.c.b16 %v6622, %v6614
    %v6791 = vpack.c.b16 %v6631, %v6623
    %v6792 = vpack.c.b16 %v6632, %v6624
    %v6793 = vpack.c.b16 %v6633, %v6625
    %v6794 = vpack.c.b16 %v6634, %v6626
    %v6795 = vpack.c.b16 %v6635, %v6627
    %v6796 = vpack.c.b16 %v6636, %v6628
    %v6797 = vpack.c.b16 %v6637, %v6629
    %v6798 = vpack.c.b16 %v6638, %v6630
    %v6799 = vpack.c.b16 %v6647, %v6639
    %v6800 = vpack.c.b16 %v6648, %v6640
    %v6801 = vpack.c.b16 %v6649, %v6641
    %v6802 = vpack.c.b16 %v6650, %v6642
    %v6803 = vpack.c.b16 %v6651, %v6643
    %v6804 = vpack.c.b16 %v6652, %v6644
    %v6805 = vpack.c.b16 %v6653, %v6645
    %v6806 = vpack.c.b16 %v6654, %v6646
    %v6807 = vpack.c.b16 %v6663, %v6655
    %v6808 = vpack.c.b16 %v6664, %v6656
    %v6809 = vpack.c.b16 %v6665, %v6657
    %v6810 = vpack.c.b16 %v6666, %v6658
    %v6811 = vpack.c.b16 %v6667, %v6659
    %v6812 = vpack.c.b16 %v6668, %v6660
    %v6813 = vpack.c.b16 %v6669, %v6661
    %v6814 = vpack.c.b16 %v6670, %v6662
    %v6815 = vpack.c.b16 %v6679, %v6671
    %v6816 = vpack.c.b16 %v6680, %v6672
    %v6817 = vpack.c.b16 %v6681, %v6673
    %v6818 = vpack.c.b16 %v6682, %v6674
    %v6819 = vpack.c.b16 %v6683, %v6675
    %v6820 = vpack.c.b16 %v6684, %v6676
    %v6821 = vpack.c.b16 %v6685, %v6677
    %v6822 = vpack.c.b16 %v6686, %v6678
    %v6823 = vpack.c.b16 %v6695, %v6687
    %v6824 = vpack.c.b16 %v6696, %v6688
    %v6825 = vpack.c.b16 %v6697, %v6689
    %v6826 = vpack.c.b16 %v6698, %v6690
    %v6827 = vpack.c.b16 %v6699, %v6691
    %v6828 = vpack.c.b16 %v6700, %v6692
    %v6829 = vpack.c.b16 %v6701, %v6693
    %v6830 = vpack.c.b16 %v6702, %v6694
    %6959 = vmatpush.bf16.msra.mxu0 %v6759
    %6960 = vmatpush.bf16.msra.mxu0 %v6751
    %6961 = vmatpush.bf16.msra.mxu0 %v6743
    %6962 = vmatpush.bf16.msra.mxu0 %v6735
    %6963 = vmatpush.bf16.msra.mxu0 %v6727
    %6964 = vmatpush.bf16.msra.mxu0 %v6719
    %6965 = vmatpush.bf16.msra.mxu0 %v6711
    %6966 = vmatpush.bf16.msra.mxu0 %v6703
    %6967 = vmatmul.bf16.gmra.mxu0 %v6315
    %v6968 = vpop.f32.mrf.mxu0
    %v6969 = vadd.f32 0.0, %v6968
    %v6970 = vpop.f32.mrf.mxu0
    %6971 = vdwg.mxu0
    %6972 = vmatpush.bf16.msra.mxu0 %v6823
    %6973 = vmatpush.bf16.msra.mxu0 %v6815
    %6974 = vmatpush.bf16.msra.mxu0 %v6807
    %6975 = vmatpush.bf16.msra.mxu0 %v6799
    %6976 = vmatpush.bf16.msra.mxu0 %v6791
    %6977 = vmatpush.bf16.msra.mxu0 %v6783
    %6978 = vmatpush.bf16.msra.mxu0 %v6775
    %6979 = vmatpush.bf16.msra.mxu0 %v6767
    %6980 = vmatmul.bf16.gmra.mxu0 %v6316
    %v6981 = vpop.f32.mrf.mxu0
    %v6982 = vadd.f32 %v6969, %v6981
    %v6983 = vpop.f32.mrf.mxu0
    %6984 = vdwg.mxu0
    %6985 = vmatpush.bf16.msra.mxu0 %v6760
    %6986 = vmatpush.bf16.msra.mxu0 %v6752
    %6987 = vmatpush.bf16.msra.mxu0 %v6744
    %6988 = vmatpush.bf16.msra.mxu0 %v6736
    %6989 = vmatpush.bf16.msra.mxu0 %v6728
    %6990 = vmatpush.bf16.msra.mxu0 %v6720
    %6991 = vmatpush.bf16.msra.mxu0 %v6712
    %6992 = vmatpush.bf16.msra.mxu0 %v6704
    %6993 = vmatmul.bf16.gmra.mxu0 %v6315
    %v6994 = vpop.f32.mrf.mxu0
    %v6995 = vadd.f32 0.0, %v6994
    %v6996 = vpop.f32.mrf.mxu0
    %6997 = vdwg.mxu0
    %6998 = vmatpush.bf16.msra.mxu0 %v6824
    %6999 = vmatpush.bf16.msra.mxu0 %v6816
    %7000 = vmatpush.bf16.msra.mxu0 %v6808
    %7001 = vmatpush.bf16.msra.mxu0 %v6800
    %7002 = vmatpush.bf16.msra.mxu0 %v6792
    %7003 = vmatpush.bf16.msra.mxu0 %v6784
    %7004 = vmatpush.bf16.msra.mxu0 %v6776
    %7005 = vmatpush.bf16.msra.mxu0 %v6768
    %7006 = vmatmul.bf16.gmra.mxu0 %v6316
    %v7007 = vpop.f32.mrf.mxu0
    %v7008 = vadd.f32 %v6995, %v7007
    %v7009 = vpop.f32.mrf.mxu0
    %7010 = vdwg.mxu0
    %7011 = vmatpush.bf16.msra.mxu0 %v6761
    %7012 = vmatpush.bf16.msra.mxu0 %v6753
    %7013 = vmatpush.bf16.msra.mxu0 %v6745
    %7014 = vmatpush.bf16.msra.mxu0 %v6737
    %7015 = vmatpush.bf16.msra.mxu0 %v6729
    %7016 = vmatpush.bf16.msra.mxu0 %v6721
    %7017 = vmatpush.bf16.msra.mxu0 %v6713
    %7018 = vmatpush.bf16.msra.mxu0 %v6705
    %7019 = vmatmul.bf16.gmra.mxu0 %v6315
    %v7020 = vpop.f32.mrf.mxu0
    %v7021 = vadd.f32 0.0, %v7020
    %v7022 = vpop.f32.mrf.mxu0
    %7023 = vdwg.mxu0
    %7024 = vmatpush.bf16.msra.mxu0 %v6825
    %7025 = vmatpush.bf16.msra.mxu0 %v6817
    %7026 = vmatpush.bf16.msra.mxu0 %v6809
    %7027 = vmatpush.bf16.msra.mxu0 %v6801
    %7028 = vmatpush.bf16.msra.mxu0 %v6793
    %7029 = vmatpush.bf16.msra.mxu0 %v6785
    %7030 = vmatpush.bf16.msra.mxu0 %v6777
    %7031 = vmatpush.bf16.msra.mxu0 %v6769
    %7032 = vmatmul.bf16.gmra.mxu0 %v6316
    %v7033 = vpop.f32.mrf.mxu0
    %v7034 = vadd.f32 %v7021, %v7033
    %v7035 = vpop.f32.mrf.mxu0
    %7036 = vdwg.mxu0
    %7037 = vmatpush.bf16.msra.mxu0 %v6762
    %7038 = vmatpush.bf16.msra.mxu0 %v6754
    %7039 = vmatpush.bf16.msra.mxu0 %v6746
    %7040 = vmatpush.bf16.msra.mxu0 %v6738
    %7041 = vmatpush.bf16.msra.mxu0 %v6730
    %7042 = vmatpush.bf16.msra.mxu0 %v6722
    %7043 = vmatpush.bf16.msra.mxu0 %v6714
    %7044 = vmatpush.bf16.msra.mxu0 %v6706
    %7045 = vmatmul.bf16.gmra.mxu0 %v6315
    %v7046 = vpop.f32.mrf.mxu0
    %v7047 = vadd.f32 0.0, %v7046
    %v7048 = vpop.f32.mrf.mxu0
    %7049 = vdwg.mxu0
    %7050 = vmatpush.bf16.msra.mxu0 %v6826
    %7051 = vmatpush.bf16.msra.mxu0 %v6818
    %7052 = vmatpush.bf16.msra.mxu0 %v6810
    %7053 = vmatpush.bf16.msra.mxu0 %v6802
    %7054 = vmatpush.bf16.msra.mxu0 %v6794
    %7055 = vmatpush.bf16.msra.mxu0 %v6786
    %7056 = vmatpush.bf16.msra.mxu0 %v6778
    %7057 = vmatpush.bf16.msra.mxu0 %v6770
    %7058 = vmatmul.bf16.gmra.mxu0 %v6316
    %v7059 = vpop.f32.mrf.mxu0
    %v7060 = vadd.f32 %v7047, %v7059
    %v7061 = vpop.f32.mrf.mxu0
    %7062 = vdwg.mxu0
    %7063 = vmatpush.bf16.msra.mxu0 %v6763
    %7064 = vmatpush.bf16.msra.mxu0 %v6755
    %7065 = vmatpush.bf16.msra.mxu0 %v6747
    %7066 = vmatpush.bf16.msra.mxu0 %v6739
    %7067 = vmatpush.bf16.msra.mxu0 %v6731
    %7068 = vmatpush.bf16.msra.mxu0 %v6723
    %7069 = vmatpush.bf16.msra.mxu0 %v6715
    %7070 = vmatpush.bf16.msra.mxu0 %v6707
    %7071 = vmatmul.bf16.gmra.mxu0 %v6315
    %v7072 = vpop.f32.mrf.mxu0
    %v7073 = vadd.f32 0.0, %v7072
    %v7074 = vpop.f32.mrf.mxu0
    %7075 = vdwg.mxu0
    %7076 = vmatpush.bf16.msra.mxu0 %v6827
    %7077 = vmatpush.bf16.msra.mxu0 %v6819
    %7078 = vmatpush.bf16.msra.mxu0 %v6811
    %7079 = vmatpush.bf16.msra.mxu0 %v6803
    %7080 = vmatpush.bf16.msra.mxu0 %v6795
    %7081 = vmatpush.bf16.msra.mxu0 %v6787
    %7082 = vmatpush.bf16.msra.mxu0 %v6779
    %7083 = vmatpush.bf16.msra.mxu0 %v6771
    %7084 = vmatmul.bf16.gmra.mxu0 %v6316
    %v7085 = vpop.f32.mrf.mxu0
    %v7086 = vadd.f32 %v7073, %v7085
    %v7087 = vpop.f32.mrf.mxu0
    %7088 = vdwg.mxu0
    %7089 = vmatpush.bf16.msra.mxu0 %v6764
    %7090 = vmatpush.bf16.msra.mxu0 %v6756
    %7091 = vmatpush.bf16.msra.mxu0 %v6748
    %7092 = vmatpush.bf16.msra.mxu0 %v6740
    %7093 = vmatpush.bf16.msra.mxu0 %v6732
    %7094 = vmatpush.bf16.msra.mxu0 %v6724
    %7095 = vmatpush.bf16.msra.mxu0 %v6716
    %7096 = vmatpush.bf16.msra.mxu0 %v6708
    %7097 = vmatmul.bf16.gmra.mxu0 %v6315
    %v7098 = vpop.f32.mrf.mxu0
    %v7099 = vadd.f32 0.0, %v7098
    %v7100 = vpop.f32.mrf.mxu0
    %7101 = vdwg.mxu0
    %7102 = vmatpush.bf16.msra.mxu0 %v6828
    %7103 = vmatpush.bf16.msra.mxu0 %v6820
    %7104 = vmatpush.bf16.msra.mxu0 %v6812
    %7105 = vmatpush.bf16.msra.mxu0 %v6804
    %7106 = vmatpush.bf16.msra.mxu0 %v6796
    %7107 = vmatpush.bf16.msra.mxu0 %v6788
    %7108 = vmatpush.bf16.msra.mxu0 %v6780
    %7109 = vmatpush.bf16.msra.mxu0 %v6772
    %7110 = vmatmul.bf16.gmra.mxu0 %v6316
    %v7111 = vpop.f32.mrf.mxu0
    %v7112 = vadd.f32 %v7099, %v7111
    %v7113 = vpop.f32.mrf.mxu0
    %7114 = vdwg.mxu0
    %7115 = vmatpush.bf16.msra.mxu0 %v6765
    %7116 = vmatpush.bf16.msra.mxu0 %v6757
    %7117 = vmatpush.bf16.msra.mxu0 %v6749
    %7118 = vmatpush.bf16.msra.mxu0 %v6741
    %7119 = vmatpush.bf16.msra.mxu0 %v6733
    %7120 = vmatpush.bf16.msra.mxu0 %v6725
    %7121 = vmatpush.bf16.msra.mxu0 %v6717
    %7122 = vmatpush.bf16.msra.mxu0 %v6709
    %7123 = vmatmul.bf16.gmra.mxu0 %v6315
    %v7124 = vpop.f32.mrf.mxu0
    %v7125 = vadd.f32 0.0, %v7124
    %v7126 = vpop.f32.mrf.mxu0
    %7127 = vdwg.mxu0
    %7128 = vmatpush.bf16.msra.mxu0 %v6829
    %7129 = vmatpush.bf16.msra.mxu0 %v6821
    %7130 = vmatpush.bf16.msra.mxu0 %v6813
    %7131 = vmatpush.bf16.msra.mxu0 %v6805
    %7132 = vmatpush.bf16.msra.mxu0 %v6797
    %7133 = vmatpush.bf16.msra.mxu0 %v6789
    %7134 = vmatpush.bf16.msra.mxu0 %v6781
    %7135 = vmatpush.bf16.msra.mxu0 %v6773
    %7136 = vmatmul.bf16.gmra.mxu0 %v6316
    %v7137 = vpop.f32.mrf.mxu0
    %v7138 = vadd.f32 %v7125, %v7137
    %v7139 = vpop.f32.mrf.mxu0
    %7140 = vdwg.mxu0
    %7141 = vmatpush.bf16.msra.mxu0 %v6766
    %7142 = vmatpush.bf16.msra.mxu0 %v6758
    %7143 = vmatpush.bf16.msra.mxu0 %v6750
    %7144 = vmatpush.bf16.msra.mxu0 %v6742
    %7145 = vmatpush.bf16.msra.mxu0 %v6734
    %7146 = vmatpush.bf16.msra.mxu0 %v6726
    %7147 = vmatpush.bf16.msra.mxu0 %v6718
    %7148 = vmatpush.bf16.msra.mxu0 %v6710
    %7149 = vmatmul.bf16.gmra.mxu0 %v6315
    %v7150 = vpop.f32.mrf.mxu0
    %v7151 = vadd.f32 0.0, %v7150
    %v7152 = vpop.f32.mrf.mxu0
    %7153 = vdwg.mxu0
    %7154 = vmatpush.bf16.msra.mxu0 %v6830
    %7155 = vmatpush.bf16.msra.mxu0 %v6822
    %7156 = vmatpush.bf16.msra.mxu0 %v6814
    %7157 = vmatpush.bf16.msra.mxu0 %v6806
    %7158 = vmatpush.bf16.msra.mxu0 %v6798
    %7159 = vmatpush.bf16.msra.mxu0 %v6790
    %7160 = vmatpush.bf16.msra.mxu0 %v6782
    %7161 = vmatpush.bf16.msra.mxu0 %v6774
    %7162 = vmatmul.bf16.gmra.mxu0 %v6316
    %v7163 = vpop.f32.mrf.mxu0
    %v7164 = vadd.f32 %v7151, %v7163
    %v7165 = vpop.f32.mrf.mxu0
    %7166 = vdwg.mxu0
    %v7175 = vrot.slane %v6982, 3
    %v7176 = vrot.slane %v7008, 3
    %v7177 = vrot.slane %v7034, 3
    %v7178 = vrot.slane %v7060, 3
    %v7179 = vrot.slane %v7086, 3
    %v7180 = vrot.slane %v7112, 3
    %v7181 = vrot.slane %v7138, 3
    %v7182 = vrot.slane %v7164, 3
    %v7191 = vadd.f32 %v147, %v7175
    %v7192 = vadd.f32 %v160, %v7176
    %v7193 = vadd.f32 %v173, %v7177
    %v7194 = vadd.f32 %v186, %v7178
    %v7195 = vadd.f32 %v199, %v7179
    %v7196 = vadd.f32 %v212, %v7180
    %v7197 = vadd.f32 %v225, %v7181
    %v7198 = vadd.f32 %v238, %v7182
    %v7199 = vxor.u32 %v7191, 2147483648
    %v7200 = vxor.u32 %v7192, 2147483648
    %v7201 = vxor.u32 %v7193, 2147483648
    %v7202 = vxor.u32 %v7194, 2147483648
    %v7203 = vxor.u32 %v7195, 2147483648
    %v7204 = vxor.u32 %v7196, 2147483648
    %v7205 = vmul.f32 %v7199, 1.442695
    %v7206 = vpow.pop %v7205
    %v7207 = vmul.f32 %v7200, 1.442695
    %v7208 = vpow.pop %v7207
    %v7209 = vmul.f32 %v7201, 1.442695
    %v7210 = vpow.pop %v7209
    %v7211 = vmul.f32 %v7202, 1.442695
    %v7212 = vpow.pop %v7211
    %v7213 = vmul.f32 %v7203, 1.442695
    %v7214 = vpow.pop %v7213
    %v7215 = vmul.f32 %v7204, 1.442695
    %v7216 = vpow.pop %v7215
    %v7217 = vadd.f32 %v7206, 1.0
    %v7218 = vadd.f32 %v7208, 1.0
    %v7219 = vadd.f32 %v7210, 1.0
    %v7220 = vadd.f32 %v7212, 1.0
    %v7221 = vadd.f32 %v7214, 1.0
    %v7222 = vadd.f32 %v7216, 1.0
    %v7223 = vrcp.pop %v7217
    %v7224 = vmul.f32 %v7217, %v7223
    %v7225 = vsub.f32 1.0, %v7224
    %v7226 = vmul.f32 %v7223, %v7225
    %v7227 = vadd.f32 %v7223, %v7226
    %vm7228 = vweird.f32 %v7217
    %vm7229 = vweird.f32 %v7223
    %vm7230 = vmor %vm7228, %vm7229
    %v7231 = vsel %vm7230, %v7223, %v7227
    %v7232 = vand.u32 2147483647, %v7217
    %vm7233 = vcmp.eq.f32.partialorder %v7232, 8.507059e+37
    %v7234 = vand.u32 %v7217, 2147483648
    %v7235 = vor.u32 1.1754944e-38, %v7234
    %v7236 = vsel %vm7233, %v7235, %v7231
    %v7237 = vmul.f32 1.0, %v7236
    %v7238 = vrcp.pop %v7218
    %v7239 = vmul.f32 %v7218, %v7238
    %v7240 = vsub.f32 1.0, %v7239
    %v7241 = vmul.f32 %v7238, %v7240
    %v7242 = vadd.f32 %v7238, %v7241
    %vm7243 = vweird.f32 %v7218
    %vm7244 = vweird.f32 %v7238
    %vm7245 = vmor %vm7243, %vm7244
    %v7246 = vsel %vm7245, %v7238, %v7242
    %v7247 = vand.u32 2147483647, %v7218
    %vm7248 = vcmp.eq.f32.partialorder %v7247, 8.507059e+37
    %v7249 = vand.u32 %v7218, 2147483648
    %v7250 = vor.u32 1.1754944e-38, %v7249
    %v7251 = vsel %vm7248, %v7250, %v7246
    %v7252 = vmul.f32 1.0, %v7251
    %v7253 = vrcp.pop %v7219
    %v7254 = vmul.f32 %v7219, %v7253
    %v7255 = vsub.f32 1.0, %v7254
    %v7256 = vmul.f32 %v7253, %v7255
    %v7257 = vadd.f32 %v7253, %v7256
    %vm7258 = vweird.f32 %v7219
    %vm7259 = vweird.f32 %v7253
    %vm7260 = vmor %vm7258, %vm7259
    %v7261 = vsel %vm7260, %v7253, %v7257
    %v7262 = vand.u32 2147483647, %v7219
    %vm7263 = vcmp.eq.f32.partialorder %v7262, 8.507059e+37
    %v7264 = vand.u32 %v7219, 2147483648
    %v7265 = vor.u32 1.1754944e-38, %v7264
    %v7266 = vsel %vm7263, %v7265, %v7261
    %v7267 = vmul.f32 1.0, %v7266
    %v7268 = vrcp.pop %v7220
    %v7269 = vmul.f32 %v7220, %v7268
    %v7270 = vsub.f32 1.0, %v7269
    %v7271 = vmul.f32 %v7268, %v7270
    %v7272 = vadd.f32 %v7268, %v7271
    %vm7273 = vweird.f32 %v7220
    %vm7274 = vweird.f32 %v7268
    %vm7275 = vmor %vm7273, %vm7274
    %v7276 = vsel %vm7275, %v7268, %v7272
    %v7277 = vand.u32 2147483647, %v7220
    %vm7278 = vcmp.eq.f32.partialorder %v7277, 8.507059e+37
    %v7279 = vand.u32 %v7220, 2147483648
    %v7280 = vor.u32 1.1754944e-38, %v7279
    %v7281 = vsel %vm7278, %v7280, %v7276
    %v7282 = vmul.f32 1.0, %v7281
    %v7283 = vrcp.pop %v7221
    %v7284 = vmul.f32 %v7221, %v7283
    %v7285 = vsub.f32 1.0, %v7284
    %v7286 = vmul.f32 %v7283, %v7285
    %v7287 = vadd.f32 %v7283, %v7286
    %vm7288 = vweird.f32 %v7221
    %vm7289 = vweird.f32 %v7283
    %vm7290 = vmor %vm7288, %vm7289
    %v7291 = vsel %vm7290, %v7283, %v7287
    %v7292 = vand.u32 2147483647, %v7221
    %vm7293 = vcmp.eq.f32.partialorder %v7292, 8.507059e+37
    %v7294 = vand.u32 %v7221, 2147483648
    %v7295 = vor.u32 1.1754944e-38, %v7294
    %v7296 = vsel %vm7293, %v7295, %v7291
    %v7297 = vmul.f32 1.0, %v7296
    %v7298 = vrcp.pop %v7222
    %v7299 = vmul.f32 %v7222, %v7298
    %v7300 = vsub.f32 1.0, %v7299
    %v7301 = vmul.f32 %v7298, %v7300
    %v7302 = vadd.f32 %v7298, %v7301
    %vm7303 = vweird.f32 %v7222
    %vm7304 = vweird.f32 %v7298
    %vm7305 = vmor %vm7303, %vm7304
    %v7306 = vsel %vm7305, %v7298, %v7302
    %v7307 = vand.u32 2147483647, %v7222
    %vm7308 = vcmp.eq.f32.partialorder %v7307, 8.507059e+37
    %v7309 = vand.u32 %v7222, 2147483648
    %v7310 = vor.u32 1.1754944e-38, %v7309
    %v7311 = vsel %vm7308, %v7310, %v7306
    %v7312 = vmul.f32 1.0, %v7311
    %v7313 = vtanh.pop %v7197
    %v7314 = vtanh.pop %v7198
    %v7317 = vrot.slane %v6133, 7
    %v7318 = vrot.slane %v6134, 7
    %v7321 = vmul.f32 %v7267, %v7317
    %v7322 = vmul.f32 %v7282, %v7318
    %v7323 = vmul.f32 %v7237, %v7313
    %v7324 = vmul.f32 %v7252, %v7314
    %v7325 = vadd.f32 %v7321, %v7323
    %v7326 = vadd.f32 %v7322, %v7324
    %v7327 = vtanh.pop %v7325
    %v7328 = vtanh.pop %v7326
    %v7329 = vmul.f32 %v7297, %v7327
    %v7330 = vmul.f32 %v7312, %v7328
    %vm7331 = vcmask 1045509
    %v7332 = vsel %vm7331, %v7329, 0.0
    %v7333 = vsel %vm7331, %v7330, 0.0
    %v7334 = vadd.f32 %v7332, %v7333
    %7335 = vadd.xlane.f32.xlu0 %v7334
    %v7336 = vpop.xlane.xlu0 %7335
    %v7337 = vmul.f32 %v7336, %v1365
    %v7338 = vsub.f32 %v7329, %v7337
    %v7339 = vsub.f32 %v7330, %v7337
    %v7340 = vmul.f32 %v7338, %v7338
    %v7341 = vmul.f32 %v7339, %v7339
    %v7342 = vsel %vm7331, %v7340, 0.0
    %v7343 = vsel %vm7331, %v7341, 0.0
    %v7344 = vadd.f32 %v7342, %v7343
    %7345 = vadd.xlane.f32.xlu0 %v7344
    %v7346 = vpop.xlane.xlu0 %7345
    %v7347 = vmul.f32 %v7346, %v1365
    %v7348 = vadd.f32 %v7347, 1e-05
    %v7349 = vrsqrt.pop %v7348
    %v7350 = vmul.f32 %v7349, %v7348
    %v7351 = vmul.f32 %v7350, %v7349
    %v7352 = vmul.f32 0.5, %v7351
    %v7353 = vsub.f32 1.5, %v7352
    %v7354 = vmul.f32 %v7349, %v7353
    %vm7355 = vweird.f32 %v7348
    %vm7356 = vweird.f32 %v7349
    %vm7357 = vmor %vm7355, %vm7356
    %v7358 = vsel %vm7357, %v7349, %v7354
    %v7359 = vmul.f32 %v7338, %v7358
    %v7360 = vmul.f32 %v7339, %v7358
    %v7361 = vmul.f32 %v7359, %v1391
    %v7362 = vmul.f32 %v7360, %v1392
    %v7363 = vadd.f32 %v7361, %v1398
    %v7364 = vadd.f32 %v7362, %v1399
    %7367 = vst [vmem:[#allocation1] sm:$0xff] %v7363
    %7368 = vst [vmem:[#allocation1 + $0x9] sm:$0xff] %v7364
    %s7369 = scalar_lea.vmem [#allocation1], 5
    %v7370 = vld [vmem:[%s7369] ss:$9 sm:$0xff]
    %s7372 = scalar_lea.vmem [#allocation2], 5
    %7373 = vst.msk [vmem:[%s7372] ss:$8 sm:$0x3] %vm1412, %v7370
    %7374 = vst.msk [vmem:[%s7372] ss:$8 sm:$0x0] %vm1412, %v7370
    %v7375 = vpack.c.bf16 %v7329, %v7329
    %v7376 = vpack.c.bf16 %v7330, %v7330
    %v7377 = vld [vmem:[#allocation4] sm:$0xff]
    %v7378 = vld [vmem:[#allocation4 + $0x8] sm:$0xff]
    %v7379 = vld [vmem:[#allocation4 + $0x10] sm:$0xff]
    %v7380 = vld [vmem:[#allocation4 + $0x18] sm:$0xff]
    %v7381 = vld [vmem:[#allocation4 + $0x20] sm:$0xff]
    %v7382 = vld [vmem:[#allocation4 + $0x28] sm:$0xff]
    %v7383 = vld [vmem:[#allocation4 + $0x30] sm:$0xff]
    %v7384 = vld [vmem:[#allocation4 + $0x38] sm:$0xff]
    %v7385 = vld [vmem:[#allocation4 + $0x40] sm:$0xff]
    %v7386 = vld [vmem:[#allocation4 + $0x48] sm:$0xff]
    %v7387 = vld [vmem:[#allocation4 + $0x50] sm:$0xff]
    %v7388 = vld [vmem:[#allocation4 + $0x58] sm:$0xff]
    %v7389 = vld [vmem:[#allocation4 + $0x60] sm:$0xff]
    %v7390 = vld [vmem:[#allocation4 + $0x68] sm:$0xff]
    %v7391 = vld [vmem:[#allocation4 + $0x70] sm:$0xff]
    %v7392 = vld [vmem:[#allocation4 + $0x78] sm:$0xff]
    %v7393 = vld [vmem:[#allocation4 + $0x80] sm:$0xff]
    %v7394 = vld [vmem:[#allocation4 + $0x88] sm:$0xff]
    %v7395 = vld [vmem:[#allocation4 + $0x90] sm:$0xff]
    %v7396 = vld [vmem:[#allocation4 + $0x98] sm:$0xff]
    %v7397 = vld [vmem:[#allocation4 + $0xa0] sm:$0xff]
    %v7398 = vld [vmem:[#allocation4 + $0xa8] sm:$0xff]
    %v7399 = vld [vmem:[#allocation4 + $0xb0] sm:$0xff]
    %v7400 = vld [vmem:[#allocation4 + $0xb8] sm:$0xff]
    %v7401 = vld [vmem:[#allocation4 + $0xc0] sm:$0xff]
    %v7402 = vld [vmem:[#allocation4 + $0xc8] sm:$0xff]
    %v7403 = vld [vmem:[#allocation4 + $0xd0] sm:$0xff]
    %v7404 = vld [vmem:[#allocation4 + $0xd8] sm:$0xff]
    %v7405 = vld [vmem:[#allocation4 + $0xe0] sm:$0xff]
    %v7406 = vld [vmem:[#allocation4 + $0xe8] sm:$0xff]
    %v7407 = vld [vmem:[#allocation4 + $0xf0] sm:$0xff]
    %v7408 = vld [vmem:[#allocation4 + $0xf8] sm:$0xff]
    %v7409 = vld [vmem:[#allocation4 + $0x100] sm:$0xff]
    %v7410 = vld [vmem:[#allocation4 + $0x108] sm:$0xff]
    %v7411 = vld [vmem:[#allocation4 + $0x110] sm:$0xff]
    %v7412 = vld [vmem:[#allocation4 + $0x118] sm:$0xff]
    %v7413 = vld [vmem:[#allocation4 + $0x120] sm:$0xff]
    %v7414 = vld [vmem:[#allocation4 + $0x128] sm:$0xff]
    %v7415 = vld [vmem:[#allocation4 + $0x130] sm:$0xff]
    %v7416 = vld [vmem:[#allocation4 + $0x138] sm:$0xff]
    %v7417 = vld [vmem:[#allocation4 + $0x140] sm:$0xff]
    %v7418 = vld [vmem:[#allocation4 + $0x148] sm:$0xff]
    %v7419 = vld [vmem:[#allocation4 + $0x150] sm:$0xff]
    %v7420 = vld [vmem:[#allocation4 + $0x158] sm:$0xff]
    %v7421 = vld [vmem:[#allocation4 + $0x160] sm:$0xff]
    %v7422 = vld [vmem:[#allocation4 + $0x168] sm:$0xff]
    %v7423 = vld [vmem:[#allocation4 + $0x170] sm:$0xff]
    %v7424 = vld [vmem:[#allocation4 + $0x178] sm:$0xff]
    %v7425 = vld [vmem:[#allocation4 + $0x180] sm:$0xff]
    %v7426 = vld [vmem:[#allocation4 + $0x188] sm:$0xff]
    %v7427 = vld [vmem:[#allocation4 + $0x190] sm:$0xff]
    %v7428 = vld [vmem:[#allocation4 + $0x198] sm:$0xff]
    %v7429 = vld [vmem:[#allocation4 + $0x1a0] sm:$0xff]
    %v7430 = vld [vmem:[#allocation4 + $0x1a8] sm:$0xff]
    %v7431 = vld [vmem:[#allocation4 + $0x1b0] sm:$0xff]
    %v7432 = vld [vmem:[#allocation4 + $0x1b8] sm:$0xff]
    %v7433 = vld [vmem:[#allocation4 + $0x1c0] sm:$0xff]
    %v7434 = vld [vmem:[#allocation4 + $0x1c8] sm:$0xff]
    %v7435 = vld [vmem:[#allocation4 + $0x1d0] sm:$0xff]
    %v7436 = vld [vmem:[#allocation4 + $0x1d8] sm:$0xff]
    %v7437 = vld [vmem:[#allocation4 + $0x1e0] sm:$0xff]
    %v7438 = vld [vmem:[#allocation4 + $0x1e8] sm:$0xff]
    %v7439 = vld [vmem:[#allocation4 + $0x1f0] sm:$0xff]
    %v7440 = vld [vmem:[#allocation4 + $0x1f8] sm:$0xff]
    %v7441 = vld [vmem:[#allocation4 + $0x200] sm:$0xff]
    %v7442 = vld [vmem:[#allocation4 + $0x208] sm:$0xff]
    %v7443 = vld [vmem:[#allocation4 + $0x210] sm:$0xff]
    %v7444 = vld [vmem:[#allocation4 + $0x218] sm:$0xff]
    %v7445 = vld [vmem:[#allocation4 + $0x220] sm:$0xff]
    %v7446 = vld [vmem:[#allocation4 + $0x228] sm:$0xff]
    %v7447 = vld [vmem:[#allocation4 + $0x230] sm:$0xff]
    %v7448 = vld [vmem:[#allocation4 + $0x238] sm:$0xff]
    %v7449 = vld [vmem:[#allocation4 + $0x240] sm:$0xff]
    %v7450 = vld [vmem:[#allocation4 + $0x248] sm:$0xff]
    %v7451 = vld [vmem:[#allocation4 + $0x250] sm:$0xff]
    %v7452 = vld [vmem:[#allocation4 + $0x258] sm:$0xff]
    %v7453 = vld [vmem:[#allocation4 + $0x260] sm:$0xff]
    %v7454 = vld [vmem:[#allocation4 + $0x268] sm:$0xff]
    %v7455 = vld [vmem:[#allocation4 + $0x270] sm:$0xff]
    %v7456 = vld [vmem:[#allocation4 + $0x278] sm:$0xff]
    %v7457 = vld [vmem:[#allocation4 + $0x280] sm:$0xff]
    %v7458 = vld [vmem:[#allocation4 + $0x288] sm:$0xff]
    %v7459 = vld [vmem:[#allocation4 + $0x290] sm:$0xff]
    %v7460 = vld [vmem:[#allocation4 + $0x298] sm:$0xff]
    %v7461 = vld [vmem:[#allocation4 + $0x2a0] sm:$0xff]
    %v7462 = vld [vmem:[#allocation4 + $0x2a8] sm:$0xff]
    %v7463 = vld [vmem:[#allocation4 + $0x2b0] sm:$0xff]
    %v7464 = vld [vmem:[#allocation4 + $0x2b8] sm:$0xff]
    %v7465 = vld [vmem:[#allocation4 + $0x2c0] sm:$0xff]
    %v7466 = vld [vmem:[#allocation4 + $0x2c8] sm:$0xff]
    %v7467 = vld [vmem:[#allocation4 + $0x2d0] sm:$0xff]
    %v7468 = vld [vmem:[#allocation4 + $0x2d8] sm:$0xff]
    %v7469 = vld [vmem:[#allocation4 + $0x2e0] sm:$0xff]
    %v7470 = vld [vmem:[#allocation4 + $0x2e8] sm:$0xff]
    %v7471 = vld [vmem:[#allocation4 + $0x2f0] sm:$0xff]
    %v7472 = vld [vmem:[#allocation4 + $0x2f8] sm:$0xff]
    %v7473 = vld [vmem:[#allocation4 + $0x300] sm:$0xff]
    %v7474 = vld [vmem:[#allocation4 + $0x308] sm:$0xff]
    %v7475 = vld [vmem:[#allocation4 + $0x310] sm:$0xff]
    %v7476 = vld [vmem:[#allocation4 + $0x318] sm:$0xff]
    %v7477 = vld [vmem:[#allocation4 + $0x320] sm:$0xff]
    %v7478 = vld [vmem:[#allocation4 + $0x328] sm:$0xff]
    %v7479 = vld [vmem:[#allocation4 + $0x330] sm:$0xff]
    %v7480 = vld [vmem:[#allocation4 + $0x338] sm:$0xff]
    %v7481 = vld [vmem:[#allocation4 + $0x340] sm:$0xff]
    %v7482 = vld [vmem:[#allocation4 + $0x348] sm:$0xff]
    %v7483 = vld [vmem:[#allocation4 + $0x350] sm:$0xff]
    %v7484 = vld [vmem:[#allocation4 + $0x358] sm:$0xff]
    %v7485 = vld [vmem:[#allocation4 + $0x360] sm:$0xff]
    %v7486 = vld [vmem:[#allocation4 + $0x368] sm:$0xff]
    %v7487 = vld [vmem:[#allocation4 + $0x370] sm:$0xff]
    %v7488 = vld [vmem:[#allocation4 + $0x378] sm:$0xff]
    %v7489 = vld [vmem:[#allocation4 + $0x380] sm:$0xff]
    %v7490 = vld [vmem:[#allocation4 + $0x388] sm:$0xff]
    %v7491 = vld [vmem:[#allocation4 + $0x390] sm:$0xff]
    %v7492 = vld [vmem:[#allocation4 + $0x398] sm:$0xff]
    %v7493 = vld [vmem:[#allocation4 + $0x3a0] sm:$0xff]
    %v7494 = vld [vmem:[#allocation4 + $0x3a8] sm:$0xff]
    %v7495 = vld [vmem:[#allocation4 + $0x3b0] sm:$0xff]
    %v7496 = vld [vmem:[#allocation4 + $0x3b8] sm:$0xff]
    %v7497 = vld [vmem:[#allocation4 + $0x3c0] sm:$0xff]
    %v7498 = vld [vmem:[#allocation4 + $0x3c8] sm:$0xff]
    %v7499 = vld [vmem:[#allocation4 + $0x3d0] sm:$0xff]
    %v7500 = vld [vmem:[#allocation4 + $0x3d8] sm:$0xff]
    %v7501 = vld [vmem:[#allocation4 + $0x3e0] sm:$0xff]
    %v7502 = vld [vmem:[#allocation4 + $0x3e8] sm:$0xff]
    %v7503 = vld [vmem:[#allocation4 + $0x3f0] sm:$0xff]
    %v7504 = vld [vmem:[#allocation4 + $0x3f8] sm:$0xff]
    %v7506 = vshrl.u32 %v7375, 16
    %v7508 = vrot.slane %v7506, 2
    %v7510 = vshrl.u32 %v7376, 16
    %v7512 = vrot.slane %v7510, 2
    %v7643 = vunpack.c.l.b16 %v7377
    %v7644 = vunpack.c.h.b16 %v7377
    %v7645 = vunpack.c.l.b16 %v7378
    %v7646 = vunpack.c.h.b16 %v7378
    %v7647 = vunpack.c.l.b16 %v7379
    %v7648 = vunpack.c.h.b16 %v7379
    %v7649 = vunpack.c.l.b16 %v7380
    %v7650 = vunpack.c.h.b16 %v7380
    %v7651 = vunpack.c.l.b16 %v7381
    %v7652 = vunpack.c.h.b16 %v7381
    %v7653 = vunpack.c.l.b16 %v7382
    %v7654 = vunpack.c.h.b16 %v7382
    %v7655 = vunpack.c.l.b16 %v7383
    %v7656 = vunpack.c.h.b16 %v7383
    %v7657 = vunpack.c.l.b16 %v7384
    %v7658 = vunpack.c.h.b16 %v7384
    %v7659 = vunpack.c.l.b16 %v7385
    %v7660 = vunpack.c.h.b16 %v7385
    %v7661 = vunpack.c.l.b16 %v7386
    %v7662 = vunpack.c.h.b16 %v7386
    %v7663 = vunpack.c.l.b16 %v7387
    %v7664 = vunpack.c.h.b16 %v7387
    %v7665 = vunpack.c.l.b16 %v7388
    %v7666 = vunpack.c.h.b16 %v7388
    %v7667 = vunpack.c.l.b16 %v7389
    %v7668 = vunpack.c.h.b16 %v7389
    %v7669 = vunpack.c.l.b16 %v7390
    %v7670 = vunpack.c.h.b16 %v7390
    %v7671 = vunpack.c.l.b16 %v7391
    %v7672 = vunpack.c.h.b16 %v7391
    %v7673 = vunpack.c.l.b16 %v7392
    %v7674 = vunpack.c.h.b16 %v7392
    %v7675 = vunpack.c.l.b16 %v7393
    %v7676 = vunpack.c.h.b16 %v7393
    %v7677 = vunpack.c.l.b16 %v7394
    %v7678 = vunpack.c.h.b16 %v7394
    %v7679 = vunpack.c.l.b16 %v7395
    %v7680 = vunpack.c.h.b16 %v7395
    %v7681 = vunpack.c.l.b16 %v7396
    %v7682 = vunpack.c.h.b16 %v7396
    %v7683 = vunpack.c.l.b16 %v7397
    %v7684 = vunpack.c.h.b16 %v7397
    %v7685 = vunpack.c.l.b16 %v7398
    %v7686 = vunpack.c.h.b16 %v7398
    %v7687 = vunpack.c.l.b16 %v7399
    %v7688 = vunpack.c.h.b16 %v7399
    %v7689 = vunpack.c.l.b16 %v7400
    %v7690 = vunpack.c.h.b16 %v7400
    %v7691 = vunpack.c.l.b16 %v7401
    %v7692 = vunpack.c.h.b16 %v7401
    %v7693 = vunpack.c.l.b16 %v7402
    %v7694 = vunpack.c.h.b16 %v7402
    %v7695 = vunpack.c.l.b16 %v7403
    %v7696 = vunpack.c.h.b16 %v7403
    %v7697 = vunpack.c.l.b16 %v7404
    %v7698 = vunpack.c.h.b16 %v7404
    %v7699 = vunpack.c.l.b16 %v7405
    %v7700 = vunpack.c.h.b16 %v7405
    %v7701 = vunpack.c.l.b16 %v7406
    %v7702 = vunpack.c.h.b16 %v7406
    %v7703 = vunpack.c.l.b16 %v7407
    %v7704 = vunpack.c.h.b16 %v7407
    %v7705 = vunpack.c.l.b16 %v7408
    %v7706 = vunpack.c.h.b16 %v7408
    %v7707 = vunpack.c.l.b16 %v7409
    %v7708 = vunpack.c.h.b16 %v7409
    %v7709 = vunpack.c.l.b16 %v7410
    %v7710 = vunpack.c.h.b16 %v7410
    %v7711 = vunpack.c.l.b16 %v7411
    %v7712 = vunpack.c.h.b16 %v7411
    %v7713 = vunpack.c.l.b16 %v7412
    %v7714 = vunpack.c.h.b16 %v7412
    %v7715 = vunpack.c.l.b16 %v7413
    %v7716 = vunpack.c.h.b16 %v7413
    %v7717 = vunpack.c.l.b16 %v7414
    %v7718 = vunpack.c.h.b16 %v7414
    %v7719 = vunpack.c.l.b16 %v7415
    %v7720 = vunpack.c.h.b16 %v7415
    %v7721 = vunpack.c.l.b16 %v7416
    %v7722 = vunpack.c.h.b16 %v7416
    %v7723 = vunpack.c.l.b16 %v7417
    %v7724 = vunpack.c.h.b16 %v7417
    %v7725 = vunpack.c.l.b16 %v7418
    %v7726 = vunpack.c.h.b16 %v7418
    %v7727 = vunpack.c.l.b16 %v7419
    %v7728 = vunpack.c.h.b16 %v7419
    %v7729 = vunpack.c.l.b16 %v7420
    %v7730 = vunpack.c.h.b16 %v7420
    %v7731 = vunpack.c.l.b16 %v7421
    %v7732 = vunpack.c.h.b16 %v7421
    %v7733 = vunpack.c.l.b16 %v7422
    %v7734 = vunpack.c.h.b16 %v7422
    %v7735 = vunpack.c.l.b16 %v7423
    %v7736 = vunpack.c.h.b16 %v7423
    %v7737 = vunpack.c.l.b16 %v7424
    %v7738 = vunpack.c.h.b16 %v7424
    %v7739 = vunpack.c.l.b16 %v7425
    %v7740 = vunpack.c.h.b16 %v7425
    %v7741 = vunpack.c.l.b16 %v7426
    %v7742 = vunpack.c.h.b16 %v7426
    %v7743 = vunpack.c.l.b16 %v7427
    %v7744 = vunpack.c.h.b16 %v7427
    %v7745 = vunpack.c.l.b16 %v7428
    %v7746 = vunpack.c.h.b16 %v7428
    %v7747 = vunpack.c.l.b16 %v7429
    %v7748 = vunpack.c.h.b16 %v7429
    %v7749 = vunpack.c.l.b16 %v7430
    %v7750 = vunpack.c.h.b16 %v7430
    %v7751 = vunpack.c.l.b16 %v7431
    %v7752 = vunpack.c.h.b16 %v7431
    %v7753 = vunpack.c.l.b16 %v7432
    %v7754 = vunpack.c.h.b16 %v7432
    %v7755 = vunpack.c.l.b16 %v7433
    %v7756 = vunpack.c.h.b16 %v7433
    %v7757 = vunpack.c.l.b16 %v7434
    %v7758 = vunpack.c.h.b16 %v7434
    %v7759 = vunpack.c.l.b16 %v7435
    %v7760 = vunpack.c.h.b16 %v7435
    %v7761 = vunpack.c.l.b16 %v7436
    %v7762 = vunpack.c.h.b16 %v7436
    %v7763 = vunpack.c.l.b16 %v7437
    %v7764 = vunpack.c.h.b16 %v7437
    %v7765 = vunpack.c.l.b16 %v7438
    %v7766 = vunpack.c.h.b16 %v7438
    %v7767 = vunpack.c.l.b16 %v7439
    %v7768 = vunpack.c.h.b16 %v7439
    %v7769 = vunpack.c.l.b16 %v7440
    %v7770 = vunpack.c.h.b16 %v7440
    %v7771 = vunpack.c.l.b16 %v7441
    %v7772 = vunpack.c.h.b16 %v7441
    %v7773 = vunpack.c.l.b16 %v7442
    %v7774 = vunpack.c.h.b16 %v7442
    %v7775 = vunpack.c.l.b16 %v7443
    %v7776 = vunpack.c.h.b16 %v7443
    %v7777 = vunpack.c.l.b16 %v7444
    %v7778 = vunpack.c.h.b16 %v7444
    %v7779 = vunpack.c.l.b16 %v7445
    %v7780 = vunpack.c.h.b16 %v7445
    %v7781 = vunpack.c.l.b16 %v7446
    %v7782 = vunpack.c.h.b16 %v7446
    %v7783 = vunpack.c.l.b16 %v7447
    %v7784 = vunpack.c.h.b16 %v7447
    %v7785 = vunpack.c.l.b16 %v7448
    %v7786 = vunpack.c.h.b16 %v7448
    %v7787 = vunpack.c.l.b16 %v7449
    %v7788 = vunpack.c.h.b16 %v7449
    %v7789 = vunpack.c.l.b16 %v7450
    %v7790 = vunpack.c.h.b16 %v7450
    %v7791 = vunpack.c.l.b16 %v7451
    %v7792 = vunpack.c.h.b16 %v7451
    %v7793 = vunpack.c.l.b16 %v7452
    %v7794 = vunpack.c.h.b16 %v7452
    %v7795 = vunpack.c.l.b16 %v7453
    %v7796 = vunpack.c.h.b16 %v7453
    %v7797 = vunpack.c.l.b16 %v7454
    %v7798 = vunpack.c.h.b16 %v7454
    %v7799 = vunpack.c.l.b16 %v7455
    %v7800 = vunpack.c.h.b16 %v7455
    %v7801 = vunpack.c.l.b16 %v7456
    %v7802 = vunpack.c.h.b16 %v7456
    %v7803 = vunpack.c.l.b16 %v7457
    %v7804 = vunpack.c.h.b16 %v7457
    %v7805 = vunpack.c.l.b16 %v7458
    %v7806 = vunpack.c.h.b16 %v7458
    %v7807 = vunpack.c.l.b16 %v7459
    %v7808 = vunpack.c.h.b16 %v7459
    %v7809 = vunpack.c.l.b16 %v7460
    %v7810 = vunpack.c.h.b16 %v7460
    %v7811 = vunpack.c.l.b16 %v7461
    %v7812 = vunpack.c.h.b16 %v7461
    %v7813 = vunpack.c.l.b16 %v7462
    %v7814 = vunpack.c.h.b16 %v7462
    %v7815 = vunpack.c.l.b16 %v7463
    %v7816 = vunpack.c.h.b16 %v7463
    %v7817 = vunpack.c.l.b16 %v7464
    %v7818 = vunpack.c.h.b16 %v7464
    %v7819 = vunpack.c.l.b16 %v7465
    %v7820 = vunpack.c.h.b16 %v7465
    %v7821 = vunpack.c.l.b16 %v7466
    %v7822 = vunpack.c.h.b16 %v7466
    %v7823 = vunpack.c.l.b16 %v7467
    %v7824 = vunpack.c.h.b16 %v7467
    %v7825 = vunpack.c.l.b16 %v7468
    %v7826 = vunpack.c.h.b16 %v7468
    %v7827 = vunpack.c.l.b16 %v7469
    %v7828 = vunpack.c.h.b16 %v7469
    %v7829 = vunpack.c.l.b16 %v7470
    %v7830 = vunpack.c.h.b16 %v7470
    %v7831 = vunpack.c.l.b16 %v7471
    %v7832 = vunpack.c.h.b16 %v7471
    %v7833 = vunpack.c.l.b16 %v7472
    %v7834 = vunpack.c.h.b16 %v7472
    %v7835 = vunpack.c.l.b16 %v7473
    %v7836 = vunpack.c.h.b16 %v7473
    %v7837 = vunpack.c.l.b16 %v7474
    %v7838 = vunpack.c.h.b16 %v7474
    %v7839 = vunpack.c.l.b16 %v7475
    %v7840 = vunpack.c.h.b16 %v7475
    %v7841 = vunpack.c.l.b16 %v7476
    %v7842 = vunpack.c.h.b16 %v7476
    %v7843 = vunpack.c.l.b16 %v7477
    %v7844 = vunpack.c.h.b16 %v7477
    %v7845 = vunpack.c.l.b16 %v7478
    %v7846 = vunpack.c.h.b16 %v7478
    %v7847 = vunpack.c.l.b16 %v7479
    %v7848 = vunpack.c.h.b16 %v7479
    %v7849 = vunpack.c.l.b16 %v7480
    %v7850 = vunpack.c.h.b16 %v7480
    %v7851 = vunpack.c.l.b16 %v7481
    %v7852 = vunpack.c.h.b16 %v7481
    %v7853 = vunpack.c.l.b16 %v7482
    %v7854 = vunpack.c.h.b16 %v7482
    %v7855 = vunpack.c.l.b16 %v7483
    %v7856 = vunpack.c.h.b16 %v7483
    %v7857 = vunpack.c.l.b16 %v7484
    %v7858 = vunpack.c.h.b16 %v7484
    %v7859 = vunpack.c.l.b16 %v7485
    %v7860 = vunpack.c.h.b16 %v7485
    %v7861 = vunpack.c.l.b16 %v7486
    %v7862 = vunpack.c.h.b16 %v7486
    %v7863 = vunpack.c.l.b16 %v7487
    %v7864 = vunpack.c.h.b16 %v7487
    %v7865 = vunpack.c.l.b16 %v7488
    %v7866 = vunpack.c.h.b16 %v7488
    %v7867 = vunpack.c.l.b16 %v7489
    %v7868 = vunpack.c.h.b16 %v7489
    %v7869 = vunpack.c.l.b16 %v7490
    %v7870 = vunpack.c.h.b16 %v7490
    %v7871 = vunpack.c.l.b16 %v7491
    %v7872 = vunpack.c.h.b16 %v7491
    %v7873 = vunpack.c.l.b16 %v7492
    %v7874 = vunpack.c.h.b16 %v7492
    %v7875 = vunpack.c.l.b16 %v7493
    %v7876 = vunpack.c.h.b16 %v7493
    %v7877 = vunpack.c.l.b16 %v7494
    %v7878 = vunpack.c.h.b16 %v7494
    %v7879 = vunpack.c.l.b16 %v7495
    %v7880 = vunpack.c.h.b16 %v7495
    %v7881 = vunpack.c.l.b16 %v7496
    %v7882 = vunpack.c.h.b16 %v7496
    %v7883 = vunpack.c.l.b16 %v7497
    %v7884 = vunpack.c.h.b16 %v7497
    %v7885 = vunpack.c.l.b16 %v7498
    %v7886 = vunpack.c.h.b16 %v7498
    %v7887 = vunpack.c.l.b16 %v7499
    %v7888 = vunpack.c.h.b16 %v7499
    %v7889 = vunpack.c.l.b16 %v7500
    %v7890 = vunpack.c.h.b16 %v7500
    %v7891 = vunpack.c.l.b16 %v7501
    %v7892 = vunpack.c.h.b16 %v7501
    %v7893 = vunpack.c.l.b16 %v7502
    %v7894 = vunpack.c.h.b16 %v7502
    %v7895 = vunpack.c.l.b16 %v7503
    %v7896 = vunpack.c.h.b16 %v7503
    %v7897 = vunpack.c.l.b16 %v7504
    %v7898 = vunpack.c.h.b16 %v7504
    %v7899 = vpack.c.b16 %v7651, %v7643
    %v7900 = vpack.c.b16 %v7652, %v7644
    %v7901 = vpack.c.b16 %v7653, %v7645
    %v7902 = vpack.c.b16 %v7654, %v7646
    %v7903 = vpack.c.b16 %v7655, %v7647
    %v7904 = vpack.c.b16 %v7656, %v7648
    %v7905 = vpack.c.b16 %v7657, %v7649
    %v7906 = vpack.c.b16 %v7658, %v7650
    %v7907 = vpack.c.b16 %v7667, %v7659
    %v7908 = vpack.c.b16 %v7668, %v7660
    %v7909 = vpack.c.b16 %v7669, %v7661
    %v7910 = vpack.c.b16 %v7670, %v7662
    %v7911 = vpack.c.b16 %v7671, %v7663
    %v7912 = vpack.c.b16 %v7672, %v7664
    %v7913 = vpack.c.b16 %v7673, %v7665
    %v7914 = vpack.c.b16 %v7674, %v7666
    %v7915 = vpack.c.b16 %v7683, %v7675
    %v7916 = vpack.c.b16 %v7684, %v7676
    %v7917 = vpack.c.b16 %v7685, %v7677
    %v7918 = vpack.c.b16 %v7686, %v7678
    %v7919 = vpack.c.b16 %v7687, %v7679
    %v7920 = vpack.c.b16 %v7688, %v7680
    %v7921 = vpack.c.b16 %v7689, %v7681
    %v7922 = vpack.c.b16 %v7690, %v7682
    %v7923 = vpack.c.b16 %v7699, %v7691
    %v7924 = vpack.c.b16 %v7700, %v7692
    %v7925 = vpack.c.b16 %v7701, %v7693
    %v7926 = vpack.c.b16 %v7702, %v7694
    %v7927 = vpack.c.b16 %v7703, %v7695
    %v7928 = vpack.c.b16 %v7704, %v7696
    %v7929 = vpack.c.b16 %v7705, %v7697
    %v7930 = vpack.c.b16 %v7706, %v7698
    %v7931 = vpack.c.b16 %v7715, %v7707
    %v7932 = vpack.c.b16 %v7716, %v7708
    %v7933 = vpack.c.b16 %v7717, %v7709
    %v7934 = vpack.c.b16 %v7718, %v7710
    %v7935 = vpack.c.b16 %v7719, %v7711
    %v7936 = vpack.c.b16 %v7720, %v7712
    %v7937 = vpack.c.b16 %v7721, %v7713
    %v7938 = vpack.c.b16 %v7722, %v7714
    %v7939 = vpack.c.b16 %v7731, %v7723
    %v7940 = vpack.c.b16 %v7732, %v7724
    %v7941 = vpack.c.b16 %v7733, %v7725
    %v7942 = vpack.c.b16 %v7734, %v7726
    %v7943 = vpack.c.b16 %v7735, %v7727
    %v7944 = vpack.c.b16 %v7736, %v7728
    %v7945 = vpack.c.b16 %v7737, %v7729
    %v7946 = vpack.c.b16 %v7738, %v7730
    %v7947 = vpack.c.b16 %v7747, %v7739
    %v7948 = vpack.c.b16 %v7748, %v7740
    %v7949 = vpack.c.b16 %v7749, %v7741
    %v7950 = vpack.c.b16 %v7750, %v7742
    %v7951 = vpack.c.b16 %v7751, %v7743
    %v7952 = vpack.c.b16 %v7752, %v7744
    %v7953 = vpack.c.b16 %v7753, %v7745
    %v7954 = vpack.c.b16 %v7754, %v7746
    %v7955 = vpack.c.b16 %v7763, %v7755
    %v7956 = vpack.c.b16 %v7764, %v7756
    %v7957 = vpack.c.b16 %v7765, %v7757
    %v7958 = vpack.c.b16 %v7766, %v7758
    %v7959 = vpack.c.b16 %v7767, %v7759
    %v7960 = vpack.c.b16 %v7768, %v7760
    %v7961 = vpack.c.b16 %v7769, %v7761
    %v7962 = vpack.c.b16 %v7770, %v7762
    %v7963 = vpack.c.b16 %v7779, %v7771
    %v7964 = vpack.c.b16 %v7780, %v7772
    %v7965 = vpack.c.b16 %v7781, %v7773
    %v7966 = vpack.c.b16 %v7782, %v7774
    %v7967 = vpack.c.b16 %v7783, %v7775
    %v7968 = vpack.c.b16 %v7784, %v7776
    %v7969 = vpack.c.b16 %v7785, %v7777
    %v7970 = vpack.c.b16 %v7786, %v7778
    %v7971 = vpack.c.b16 %v7795, %v7787
    %v7972 = vpack.c.b16 %v7796, %v7788
    %v7973 = vpack.c.b16 %v7797, %v7789
    %v7974 = vpack.c.b16 %v7798, %v7790
    %v7975 = vpack.c.b16 %v7799, %v7791
    %v7976 = vpack.c.b16 %v7800, %v7792
    %v7977 = vpack.c.b16 %v7801, %v7793
    %v7978 = vpack.c.b16 %v7802, %v7794
    %v7979 = vpack.c.b16 %v7811, %v7803
    %v7980 = vpack.c.b16 %v7812, %v7804
    %v7981 = vpack.c.b16 %v7813, %v7805
    %v7982 = vpack.c.b16 %v7814, %v7806
    %v7983 = vpack.c.b16 %v7815, %v7807
    %v7984 = vpack.c.b16 %v7816, %v7808
    %v7985 = vpack.c.b16 %v7817, %v7809
    %v7986 = vpack.c.b16 %v7818, %v7810
    %v7987 = vpack.c.b16 %v7827, %v7819
    %v7988 = vpack.c.b16 %v7828, %v7820
    %v7989 = vpack.c.b16 %v7829, %v7821
    %v7990 = vpack.c.b16 %v7830, %v7822
    %v7991 = vpack.c.b16 %v7831, %v7823
    %v7992 = vpack.c.b16 %v7832, %v7824
    %v7993 = vpack.c.b16 %v7833, %v7825
    %v7994 = vpack.c.b16 %v7834, %v7826
    %v7995 = vpack.c.b16 %v7843, %v7835
    %v7996 = vpack.c.b16 %v7844, %v7836
    %v7997 = vpack.c.b16 %v7845, %v7837
    %v7998 = vpack.c.b16 %v7846, %v7838
    %v7999 = vpack.c.b16 %v7847, %v7839
    %v8000 = vpack.c.b16 %v7848, %v7840
    %v8001 = vpack.c.b16 %v7849, %v7841
    %v8002 = vpack.c.b16 %v7850, %v7842
    %v8003 = vpack.c.b16 %v7859, %v7851
    %v8004 = vpack.c.b16 %v7860, %v7852
    %v8005 = vpack.c.b16 %v7861, %v7853
    %v8006 = vpack.c.b16 %v7862, %v7854
    %v8007 = vpack.c.b16 %v7863, %v7855
    %v8008 = vpack.c.b16 %v7864, %v7856
    %v8009 = vpack.c.b16 %v7865, %v7857
    %v8010 = vpack.c.b16 %v7866, %v7858
    %v8011 = vpack.c.b16 %v7875, %v7867
    %v8012 = vpack.c.b16 %v7876, %v7868
    %v8013 = vpack.c.b16 %v7877, %v7869
    %v8014 = vpack.c.b16 %v7878, %v7870
    %v8015 = vpack.c.b16 %v7879, %v7871
    %v8016 = vpack.c.b16 %v7880, %v7872
    %v8017 = vpack.c.b16 %v7881, %v7873
    %v8018 = vpack.c.b16 %v7882, %v7874
    %v8019 = vpack.c.b16 %v7891, %v7883
    %v8020 = vpack.c.b16 %v7892, %v7884
    %v8021 = vpack.c.b16 %v7893, %v7885
    %v8022 = vpack.c.b16 %v7894, %v7886
    %v8023 = vpack.c.b16 %v7895, %v7887
    %v8024 = vpack.c.b16 %v7896, %v7888
    %v8025 = vpack.c.b16 %v7897, %v7889
    %v8026 = vpack.c.b16 %v7898, %v7890
    %8155 = vmatpush.bf16.msra.mxu0 %v7955
    %8156 = vmatpush.bf16.msra.mxu0 %v7947
    %8157 = vmatpush.bf16.msra.mxu0 %v7939
    %8158 = vmatpush.bf16.msra.mxu0 %v7931
    %8159 = vmatpush.bf16.msra.mxu0 %v7923
    %8160 = vmatpush.bf16.msra.mxu0 %v7915
    %8161 = vmatpush.bf16.msra.mxu0 %v7907
    %8162 = vmatpush.bf16.msra.mxu0 %v7899
    %8163 = vmatmul.bf16.gmra.mxu0 %v7508
    %v8164 = vpop.f32.mrf.mxu0
    %v8165 = vadd.f32 0.0, %v8164
    %v8166 = vpop.f32.mrf.mxu0
    %8167 = vdwg.mxu0
    %8168 = vmatpush.bf16.msra.mxu0 %v8019
    %8169 = vmatpush.bf16.msra.mxu0 %v8011
    %8170 = vmatpush.bf16.msra.mxu0 %v8003
    %8171 = vmatpush.bf16.msra.mxu0 %v7995
    %8172 = vmatpush.bf16.msra.mxu0 %v7987
    %8173 = vmatpush.bf16.msra.mxu0 %v7979
    %8174 = vmatpush.bf16.msra.mxu0 %v7971
    %8175 = vmatpush.bf16.msra.mxu0 %v7963
    %8176 = vmatmul.bf16.gmra.mxu0 %v7512
    %v8177 = vpop.f32.mrf.mxu0
    %v8178 = vadd.f32 %v8165, %v8177
    %v8179 = vpop.f32.mrf.mxu0
    %8180 = vdwg.mxu0
    %8181 = vmatpush.bf16.msra.mxu0 %v7956
    %8182 = vmatpush.bf16.msra.mxu0 %v7948
    %8183 = vmatpush.bf16.msra.mxu0 %v7940
    %8184 = vmatpush.bf16.msra.mxu0 %v7932
    %8185 = vmatpush.bf16.msra.mxu0 %v7924
    %8186 = vmatpush.bf16.msra.mxu0 %v7916
    %8187 = vmatpush.bf16.msra.mxu0 %v7908
    %8188 = vmatpush.bf16.msra.mxu0 %v7900
    %8189 = vmatmul.bf16.gmra.mxu0 %v7508
    %v8190 = vpop.f32.mrf.mxu0
    %v8191 = vadd.f32 0.0, %v8190
    %v8192 = vpop.f32.mrf.mxu0
    %8193 = vdwg.mxu0
    %8194 = vmatpush.bf16.msra.mxu0 %v8020
    %8195 = vmatpush.bf16.msra.mxu0 %v8012
    %8196 = vmatpush.bf16.msra.mxu0 %v8004
    %8197 = vmatpush.bf16.msra.mxu0 %v7996
    %8198 = vmatpush.bf16.msra.mxu0 %v7988
    %8199 = vmatpush.bf16.msra.mxu0 %v7980
    %8200 = vmatpush.bf16.msra.mxu0 %v7972
    %8201 = vmatpush.bf16.msra.mxu0 %v7964
    %8202 = vmatmul.bf16.gmra.mxu0 %v7512
    %v8203 = vpop.f32.mrf.mxu0
    %v8204 = vadd.f32 %v8191, %v8203
    %v8205 = vpop.f32.mrf.mxu0
    %8206 = vdwg.mxu0
    %8207 = vmatpush.bf16.msra.mxu0 %v7957
    %8208 = vmatpush.bf16.msra.mxu0 %v7949
    %8209 = vmatpush.bf16.msra.mxu0 %v7941
    %8210 = vmatpush.bf16.msra.mxu0 %v7933
    %8211 = vmatpush.bf16.msra.mxu0 %v7925
    %8212 = vmatpush.bf16.msra.mxu0 %v7917
    %8213 = vmatpush.bf16.msra.mxu0 %v7909
    %8214 = vmatpush.bf16.msra.mxu0 %v7901
    %8215 = vmatmul.bf16.gmra.mxu0 %v7508
    %v8216 = vpop.f32.mrf.mxu0
    %v8217 = vadd.f32 0.0, %v8216
    %v8218 = vpop.f32.mrf.mxu0
    %8219 = vdwg.mxu0
    %8220 = vmatpush.bf16.msra.mxu0 %v8021
    %8221 = vmatpush.bf16.msra.mxu0 %v8013
    %8222 = vmatpush.bf16.msra.mxu0 %v8005
    %8223 = vmatpush.bf16.msra.mxu0 %v7997
    %8224 = vmatpush.bf16.msra.mxu0 %v7989
    %8225 = vmatpush.bf16.msra.mxu0 %v7981
    %8226 = vmatpush.bf16.msra.mxu0 %v7973
    %8227 = vmatpush.bf16.msra.mxu0 %v7965
    %8228 = vmatmul.bf16.gmra.mxu0 %v7512
    %v8229 = vpop.f32.mrf.mxu0
    %v8230 = vadd.f32 %v8217, %v8229
    %v8231 = vpop.f32.mrf.mxu0
    %8232 = vdwg.mxu0
    %8233 = vmatpush.bf16.msra.mxu0 %v7958
    %8234 = vmatpush.bf16.msra.mxu0 %v7950
    %8235 = vmatpush.bf16.msra.mxu0 %v7942
    %8236 = vmatpush.bf16.msra.mxu0 %v7934
    %8237 = vmatpush.bf16.msra.mxu0 %v7926
    %8238 = vmatpush.bf16.msra.mxu0 %v7918
    %8239 = vmatpush.bf16.msra.mxu0 %v7910
    %8240 = vmatpush.bf16.msra.mxu0 %v7902
    %8241 = vmatmul.bf16.gmra.mxu0 %v7508
    %v8242 = vpop.f32.mrf.mxu0
    %v8243 = vadd.f32 0.0, %v8242
    %v8244 = vpop.f32.mrf.mxu0
    %8245 = vdwg.mxu0
    %8246 = vmatpush.bf16.msra.mxu0 %v8022
    %8247 = vmatpush.bf16.msra.mxu0 %v8014
    %8248 = vmatpush.bf16.msra.mxu0 %v8006
    %8249 = vmatpush.bf16.msra.mxu0 %v7998
    %8250 = vmatpush.bf16.msra.mxu0 %v7990
    %8251 = vmatpush.bf16.msra.mxu0 %v7982
    %8252 = vmatpush.bf16.msra.mxu0 %v7974
    %8253 = vmatpush.bf16.msra.mxu0 %v7966
    %8254 = vmatmul.bf16.gmra.mxu0 %v7512
    %v8255 = vpop.f32.mrf.mxu0
    %v8256 = vadd.f32 %v8243, %v8255
    %v8257 = vpop.f32.mrf.mxu0
    %8258 = vdwg.mxu0
    %8259 = vmatpush.bf16.msra.mxu0 %v7959
    %8260 = vmatpush.bf16.msra.mxu0 %v7951
    %8261 = vmatpush.bf16.msra.mxu0 %v7943
    %8262 = vmatpush.bf16.msra.mxu0 %v7935
    %8263 = vmatpush.bf16.msra.mxu0 %v7927
    %8264 = vmatpush.bf16.msra.mxu0 %v7919
    %8265 = vmatpush.bf16.msra.mxu0 %v7911
    %8266 = vmatpush.bf16.msra.mxu0 %v7903
    %8267 = vmatmul.bf16.gmra.mxu0 %v7508
    %v8268 = vpop.f32.mrf.mxu0
    %v8269 = vadd.f32 0.0, %v8268
    %v8270 = vpop.f32.mrf.mxu0
    %8271 = vdwg.mxu0
    %8272 = vmatpush.bf16.msra.mxu0 %v8023
    %8273 = vmatpush.bf16.msra.mxu0 %v8015
    %8274 = vmatpush.bf16.msra.mxu0 %v8007
    %8275 = vmatpush.bf16.msra.mxu0 %v7999
    %8276 = vmatpush.bf16.msra.mxu0 %v7991
    %8277 = vmatpush.bf16.msra.mxu0 %v7983
    %8278 = vmatpush.bf16.msra.mxu0 %v7975
    %8279 = vmatpush.bf16.msra.mxu0 %v7967
    %8280 = vmatmul.bf16.gmra.mxu0 %v7512
    %v8281 = vpop.f32.mrf.mxu0
    %v8282 = vadd.f32 %v8269, %v8281
    %v8283 = vpop.f32.mrf.mxu0
    %8284 = vdwg.mxu0
    %8285 = vmatpush.bf16.msra.mxu0 %v7960
    %8286 = vmatpush.bf16.msra.mxu0 %v7952
    %8287 = vmatpush.bf16.msra.mxu0 %v7944
    %8288 = vmatpush.bf16.msra.mxu0 %v7936
    %8289 = vmatpush.bf16.msra.mxu0 %v7928
    %8290 = vmatpush.bf16.msra.mxu0 %v7920
    %8291 = vmatpush.bf16.msra.mxu0 %v7912
    %8292 = vmatpush.bf16.msra.mxu0 %v7904
    %8293 = vmatmul.bf16.gmra.mxu0 %v7508
    %v8294 = vpop.f32.mrf.mxu0
    %v8295 = vadd.f32 0.0, %v8294
    %v8296 = vpop.f32.mrf.mxu0
    %8297 = vdwg.mxu0
    %8298 = vmatpush.bf16.msra.mxu0 %v8024
    %8299 = vmatpush.bf16.msra.mxu0 %v8016
    %8300 = vmatpush.bf16.msra.mxu0 %v8008
    %8301 = vmatpush.bf16.msra.mxu0 %v8000
    %8302 = vmatpush.bf16.msra.mxu0 %v7992
    %8303 = vmatpush.bf16.msra.mxu0 %v7984
    %8304 = vmatpush.bf16.msra.mxu0 %v7976
    %8305 = vmatpush.bf16.msra.mxu0 %v7968
    %8306 = vmatmul.bf16.gmra.mxu0 %v7512
    %v8307 = vpop.f32.mrf.mxu0
    %v8308 = vadd.f32 %v8295, %v8307
    %v8309 = vpop.f32.mrf.mxu0
    %8310 = vdwg.mxu0
    %8311 = vmatpush.bf16.msra.mxu0 %v7961
    %8312 = vmatpush.bf16.msra.mxu0 %v7953
    %8313 = vmatpush.bf16.msra.mxu0 %v7945
    %8314 = vmatpush.bf16.msra.mxu0 %v7937
    %8315 = vmatpush.bf16.msra.mxu0 %v7929
    %8316 = vmatpush.bf16.msra.mxu0 %v7921
    %8317 = vmatpush.bf16.msra.mxu0 %v7913
    %8318 = vmatpush.bf16.msra.mxu0 %v7905
    %8319 = vmatmul.bf16.gmra.mxu0 %v7508
    %v8320 = vpop.f32.mrf.mxu0
    %v8321 = vadd.f32 0.0, %v8320
    %v8322 = vpop.f32.mrf.mxu0
    %8323 = vdwg.mxu0
    %8324 = vmatpush.bf16.msra.mxu0 %v8025
    %8325 = vmatpush.bf16.msra.mxu0 %v8017
    %8326 = vmatpush.bf16.msra.mxu0 %v8009
    %8327 = vmatpush.bf16.msra.mxu0 %v8001
    %8328 = vmatpush.bf16.msra.mxu0 %v7993
    %8329 = vmatpush.bf16.msra.mxu0 %v7985
    %8330 = vmatpush.bf16.msra.mxu0 %v7977
    %8331 = vmatpush.bf16.msra.mxu0 %v7969
    %8332 = vmatmul.bf16.gmra.mxu0 %v7512
    %v8333 = vpop.f32.mrf.mxu0
    %v8334 = vadd.f32 %v8321, %v8333
    %v8335 = vpop.f32.mrf.mxu0
    %8336 = vdwg.mxu0
    %8337 = vmatpush.bf16.msra.mxu0 %v7962
    %8338 = vmatpush.bf16.msra.mxu0 %v7954
    %8339 = vmatpush.bf16.msra.mxu0 %v7946
    %8340 = vmatpush.bf16.msra.mxu0 %v7938
    %8341 = vmatpush.bf16.msra.mxu0 %v7930
    %8342 = vmatpush.bf16.msra.mxu0 %v7922
    %8343 = vmatpush.bf16.msra.mxu0 %v7914
    %8344 = vmatpush.bf16.msra.mxu0 %v7906
    %8345 = vmatmul.bf16.gmra.mxu0 %v7508
    %v8346 = vpop.f32.mrf.mxu0
    %v8347 = vadd.f32 0.0, %v8346
    %v8348 = vpop.f32.mrf.mxu0
    %8349 = vdwg.mxu0
    %8350 = vmatpush.bf16.msra.mxu0 %v8026
    %8351 = vmatpush.bf16.msra.mxu0 %v8018
    %8352 = vmatpush.bf16.msra.mxu0 %v8010
    %8353 = vmatpush.bf16.msra.mxu0 %v8002
    %8354 = vmatpush.bf16.msra.mxu0 %v7994
    %8355 = vmatpush.bf16.msra.mxu0 %v7986
    %8356 = vmatpush.bf16.msra.mxu0 %v7978
    %8357 = vmatpush.bf16.msra.mxu0 %v7970
    %8358 = vmatmul.bf16.gmra.mxu0 %v7512
    %v8359 = vpop.f32.mrf.mxu0
    %v8360 = vadd.f32 %v8347, %v8359
    %v8361 = vpop.f32.mrf.mxu0
    %8362 = vdwg.mxu0
    %v8371 = vrot.slane %v8178, 2
    %v8372 = vrot.slane %v8204, 2
    %v8373 = vrot.slane %v8230, 2
    %v8374 = vrot.slane %v8256, 2
    %v8375 = vrot.slane %v8282, 2
    %v8376 = vrot.slane %v8308, 2
    %v8377 = vrot.slane %v8334, 2
    %v8378 = vrot.slane %v8360, 2
    %v8387 = vadd.f32 %v147, %v8371
    %v8388 = vadd.f32 %v160, %v8372
    %v8389 = vadd.f32 %v173, %v8373
    %v8390 = vadd.f32 %v186, %v8374
    %v8391 = vadd.f32 %v199, %v8375
    %v8392 = vadd.f32 %v212, %v8376
    %v8393 = vadd.f32 %v225, %v8377
    %v8394 = vadd.f32 %v238, %v8378
    %v8395 = vxor.u32 %v8387, 2147483648
    %v8396 = vxor.u32 %v8388, 2147483648
    %v8397 = vxor.u32 %v8389, 2147483648
    %v8398 = vxor.u32 %v8390, 2147483648
    %v8399 = vxor.u32 %v8391, 2147483648
    %v8400 = vxor.u32 %v8392, 2147483648
    %v8401 = vmul.f32 %v8395, 1.442695
    %v8402 = vpow.pop %v8401
    %v8403 = vmul.f32 %v8396, 1.442695
    %v8404 = vpow.pop %v8403
    %v8405 = vmul.f32 %v8397, 1.442695
    %v8406 = vpow.pop %v8405
    %v8407 = vmul.f32 %v8398, 1.442695
    %v8408 = vpow.pop %v8407
    %v8409 = vmul.f32 %v8399, 1.442695
    %v8410 = vpow.pop %v8409
    %v8411 = vmul.f32 %v8400, 1.442695
    %v8412 = vpow.pop %v8411
    %v8413 = vadd.f32 %v8402, 1.0
    %v8414 = vadd.f32 %v8404, 1.0
    %v8415 = vadd.f32 %v8406, 1.0
    %v8416 = vadd.f32 %v8408, 1.0
    %v8417 = vadd.f32 %v8410, 1.0
    %v8418 = vadd.f32 %v8412, 1.0
    %v8419 = vrcp.pop %v8413
    %v8420 = vmul.f32 %v8413, %v8419
    %v8421 = vsub.f32 1.0, %v8420
    %v8422 = vmul.f32 %v8419, %v8421
    %v8423 = vadd.f32 %v8419, %v8422
    %vm8424 = vweird.f32 %v8413
    %vm8425 = vweird.f32 %v8419
    %vm8426 = vmor %vm8424, %vm8425
    %v8427 = vsel %vm8426, %v8419, %v8423
    %v8428 = vand.u32 2147483647, %v8413
    %vm8429 = vcmp.eq.f32.partialorder %v8428, 8.507059e+37
    %v8430 = vand.u32 %v8413, 2147483648
    %v8431 = vor.u32 1.1754944e-38, %v8430
    %v8432 = vsel %vm8429, %v8431, %v8427
    %v8433 = vmul.f32 1.0, %v8432
    %v8434 = vrcp.pop %v8414
    %v8435 = vmul.f32 %v8414, %v8434
    %v8436 = vsub.f32 1.0, %v8435
    %v8437 = vmul.f32 %v8434, %v8436
    %v8438 = vadd.f32 %v8434, %v8437
    %vm8439 = vweird.f32 %v8414
    %vm8440 = vweird.f32 %v8434
    %vm8441 = vmor %vm8439, %vm8440
    %v8442 = vsel %vm8441, %v8434, %v8438
    %v8443 = vand.u32 2147483647, %v8414
    %vm8444 = vcmp.eq.f32.partialorder %v8443, 8.507059e+37
    %v8445 = vand.u32 %v8414, 2147483648
    %v8446 = vor.u32 1.1754944e-38, %v8445
    %v8447 = vsel %vm8444, %v8446, %v8442
    %v8448 = vmul.f32 1.0, %v8447
    %v8449 = vrcp.pop %v8415
    %v8450 = vmul.f32 %v8415, %v8449
    %v8451 = vsub.f32 1.0, %v8450
    %v8452 = vmul.f32 %v8449, %v8451
    %v8453 = vadd.f32 %v8449, %v8452
    %vm8454 = vweird.f32 %v8415
    %vm8455 = vweird.f32 %v8449
    %vm8456 = vmor %vm8454, %vm8455
    %v8457 = vsel %vm8456, %v8449, %v8453
    %v8458 = vand.u32 2147483647, %v8415
    %vm8459 = vcmp.eq.f32.partialorder %v8458, 8.507059e+37
    %v8460 = vand.u32 %v8415, 2147483648
    %v8461 = vor.u32 1.1754944e-38, %v8460
    %v8462 = vsel %vm8459, %v8461, %v8457
    %v8463 = vmul.f32 1.0, %v8462
    %v8464 = vrcp.pop %v8416
    %v8465 = vmul.f32 %v8416, %v8464
    %v8466 = vsub.f32 1.0, %v8465
    %v8467 = vmul.f32 %v8464, %v8466
    %v8468 = vadd.f32 %v8464, %v8467
    %vm8469 = vweird.f32 %v8416
    %vm8470 = vweird.f32 %v8464
    %vm8471 = vmor %vm8469, %vm8470
    %v8472 = vsel %vm8471, %v8464, %v8468
    %v8473 = vand.u32 2147483647, %v8416
    %vm8474 = vcmp.eq.f32.partialorder %v8473, 8.507059e+37
    %v8475 = vand.u32 %v8416, 2147483648
    %v8476 = vor.u32 1.1754944e-38, %v8475
    %v8477 = vsel %vm8474, %v8476, %v8472
    %v8478 = vmul.f32 1.0, %v8477
    %v8479 = vrcp.pop %v8417
    %v8480 = vmul.f32 %v8417, %v8479
    %v8481 = vsub.f32 1.0, %v8480
    %v8482 = vmul.f32 %v8479, %v8481
    %v8483 = vadd.f32 %v8479, %v8482
    %vm8484 = vweird.f32 %v8417
    %vm8485 = vweird.f32 %v8479
    %vm8486 = vmor %vm8484, %vm8485
    %v8487 = vsel %vm8486, %v8479, %v8483
    %v8488 = vand.u32 2147483647, %v8417
    %vm8489 = vcmp.eq.f32.partialorder %v8488, 8.507059e+37
    %v8490 = vand.u32 %v8417, 2147483648
    %v8491 = vor.u32 1.1754944e-38, %v8490
    %v8492 = vsel %vm8489, %v8491, %v8487
    %v8493 = vmul.f32 1.0, %v8492
    %v8494 = vrcp.pop %v8418
    %v8495 = vmul.f32 %v8418, %v8494
    %v8496 = vsub.f32 1.0, %v8495
    %v8497 = vmul.f32 %v8494, %v8496
    %v8498 = vadd.f32 %v8494, %v8497
    %vm8499 = vweird.f32 %v8418
    %vm8500 = vweird.f32 %v8494
    %vm8501 = vmor %vm8499, %vm8500
    %v8502 = vsel %vm8501, %v8494, %v8498
    %v8503 = vand.u32 2147483647, %v8418
    %vm8504 = vcmp.eq.f32.partialorder %v8503, 8.507059e+37
    %v8505 = vand.u32 %v8418, 2147483648
    %v8506 = vor.u32 1.1754944e-38, %v8505
    %v8507 = vsel %vm8504, %v8506, %v8502
    %v8508 = vmul.f32 1.0, %v8507
    %v8509 = vtanh.pop %v8393
    %v8510 = vtanh.pop %v8394
    %v8513 = vrot.slane %v7325, 7
    %v8514 = vrot.slane %v7326, 7
    %v8517 = vmul.f32 %v8463, %v8513
    %v8518 = vmul.f32 %v8478, %v8514
    %v8519 = vmul.f32 %v8433, %v8509
    %v8520 = vmul.f32 %v8448, %v8510
    %v8521 = vadd.f32 %v8517, %v8519
    %v8522 = vadd.f32 %v8518, %v8520
    %v8523 = vtanh.pop %v8521
    %v8524 = vtanh.pop %v8522
    %v8525 = vmul.f32 %v8493, %v8523
    %v8526 = vmul.f32 %v8508, %v8524
    %vm8527 = vcmask 1046534
    %v8528 = vsel %vm8527, %v8525, 0.0
    %v8529 = vsel %vm8527, %v8526, 0.0
    %v8530 = vadd.f32 %v8528, %v8529
    %8531 = vadd.xlane.f32.xlu0 %v8530
    %v8532 = vpop.xlane.xlu0 %8531
    %v8533 = vmul.f32 %v8532, %v1365
    %v8534 = vsub.f32 %v8525, %v8533
    %v8535 = vsub.f32 %v8526, %v8533
    %v8536 = vmul.f32 %v8534, %v8534
    %v8537 = vmul.f32 %v8535, %v8535
    %v8538 = vsel %vm8527, %v8536, 0.0
    %v8539 = vsel %vm8527, %v8537, 0.0
    %v8540 = vadd.f32 %v8538, %v8539
    %8541 = vadd.xlane.f32.xlu0 %v8540
    %v8542 = vpop.xlane.xlu0 %8541
    %v8543 = vmul.f32 %v8542, %v1365
    %v8544 = vadd.f32 %v8543, 1e-05
    %v8545 = vrsqrt.pop %v8544
    %v8546 = vmul.f32 %v8545, %v8544
    %v8547 = vmul.f32 %v8546, %v8545
    %v8548 = vmul.f32 0.5, %v8547
    %v8549 = vsub.f32 1.5, %v8548
    %v8550 = vmul.f32 %v8545, %v8549
    %vm8551 = vweird.f32 %v8544
    %vm8552 = vweird.f32 %v8545
    %vm8553 = vmor %vm8551, %vm8552
    %v8554 = vsel %vm8553, %v8545, %v8550
    %v8555 = vmul.f32 %v8534, %v8554
    %v8556 = vmul.f32 %v8535, %v8554
    %v8557 = vmul.f32 %v8555, %v1391
    %v8558 = vmul.f32 %v8556, %v1392
    %v8559 = vadd.f32 %v8557, %v1398
    %v8560 = vadd.f32 %v8558, %v1399
    %8563 = vst [vmem:[#allocation1] sm:$0xff] %v8559
    %8564 = vst [vmem:[#allocation1 + $0x9] sm:$0xff] %v8560
    %s8565 = scalar_lea.vmem [#allocation1], 6
    %v8566 = vld [vmem:[%s8565] ss:$9 sm:$0xff]
    %s8568 = scalar_lea.vmem [#allocation2], 6
    %8569 = vst.msk [vmem:[%s8568] ss:$8 sm:$0x3] %vm1412, %v8566
    %8570 = vst.msk [vmem:[%s8568] ss:$8 sm:$0x0] %vm1412, %v8566
    %v8571 = vpack.c.bf16 %v8525, %v8525
    %v8572 = vpack.c.bf16 %v8526, %v8526
    %v8573 = vld [vmem:[#allocation4] sm:$0xff]
    %v8574 = vld [vmem:[#allocation4 + $0x8] sm:$0xff]
    %v8575 = vld [vmem:[#allocation4 + $0x10] sm:$0xff]
    %v8576 = vld [vmem:[#allocation4 + $0x18] sm:$0xff]
    %v8577 = vld [vmem:[#allocation4 + $0x20] sm:$0xff]
    %v8578 = vld [vmem:[#allocation4 + $0x28] sm:$0xff]
    %v8579 = vld [vmem:[#allocation4 + $0x30] sm:$0xff]
    %v8580 = vld [vmem:[#allocation4 + $0x38] sm:$0xff]
    %v8581 = vld [vmem:[#allocation4 + $0x40] sm:$0xff]
    %v8582 = vld [vmem:[#allocation4 + $0x48] sm:$0xff]
    %v8583 = vld [vmem:[#allocation4 + $0x50] sm:$0xff]
    %v8584 = vld [vmem:[#allocation4 + $0x58] sm:$0xff]
    %v8585 = vld [vmem:[#allocation4 + $0x60] sm:$0xff]
    %v8586 = vld [vmem:[#allocation4 + $0x68] sm:$0xff]
    %v8587 = vld [vmem:[#allocation4 + $0x70] sm:$0xff]
    %v8588 = vld [vmem:[#allocation4 + $0x78] sm:$0xff]
    %v8589 = vld [vmem:[#allocation4 + $0x80] sm:$0xff]
    %v8590 = vld [vmem:[#allocation4 + $0x88] sm:$0xff]
    %v8591 = vld [vmem:[#allocation4 + $0x90] sm:$0xff]
    %v8592 = vld [vmem:[#allocation4 + $0x98] sm:$0xff]
    %v8593 = vld [vmem:[#allocation4 + $0xa0] sm:$0xff]
    %v8594 = vld [vmem:[#allocation4 + $0xa8] sm:$0xff]
    %v8595 = vld [vmem:[#allocation4 + $0xb0] sm:$0xff]
    %v8596 = vld [vmem:[#allocation4 + $0xb8] sm:$0xff]
    %v8597 = vld [vmem:[#allocation4 + $0xc0] sm:$0xff]
    %v8598 = vld [vmem:[#allocation4 + $0xc8] sm:$0xff]
    %v8599 = vld [vmem:[#allocation4 + $0xd0] sm:$0xff]
    %v8600 = vld [vmem:[#allocation4 + $0xd8] sm:$0xff]
    %v8601 = vld [vmem:[#allocation4 + $0xe0] sm:$0xff]
    %v8602 = vld [vmem:[#allocation4 + $0xe8] sm:$0xff]
    %v8603 = vld [vmem:[#allocation4 + $0xf0] sm:$0xff]
    %v8604 = vld [vmem:[#allocation4 + $0xf8] sm:$0xff]
    %v8605 = vld [vmem:[#allocation4 + $0x100] sm:$0xff]
    %v8606 = vld [vmem:[#allocation4 + $0x108] sm:$0xff]
    %v8607 = vld [vmem:[#allocation4 + $0x110] sm:$0xff]
    %v8608 = vld [vmem:[#allocation4 + $0x118] sm:$0xff]
    %v8609 = vld [vmem:[#allocation4 + $0x120] sm:$0xff]
    %v8610 = vld [vmem:[#allocation4 + $0x128] sm:$0xff]
    %v8611 = vld [vmem:[#allocation4 + $0x130] sm:$0xff]
    %v8612 = vld [vmem:[#allocation4 + $0x138] sm:$0xff]
    %v8613 = vld [vmem:[#allocation4 + $0x140] sm:$0xff]
    %v8614 = vld [vmem:[#allocation4 + $0x148] sm:$0xff]
    %v8615 = vld [vmem:[#allocation4 + $0x150] sm:$0xff]
    %v8616 = vld [vmem:[#allocation4 + $0x158] sm:$0xff]
    %v8617 = vld [vmem:[#allocation4 + $0x160] sm:$0xff]
    %v8618 = vld [vmem:[#allocation4 + $0x168] sm:$0xff]
    %v8619 = vld [vmem:[#allocation4 + $0x170] sm:$0xff]
    %v8620 = vld [vmem:[#allocation4 + $0x178] sm:$0xff]
    %v8621 = vld [vmem:[#allocation4 + $0x180] sm:$0xff]
    %v8622 = vld [vmem:[#allocation4 + $0x188] sm:$0xff]
    %v8623 = vld [vmem:[#allocation4 + $0x190] sm:$0xff]
    %v8624 = vld [vmem:[#allocation4 + $0x198] sm:$0xff]
    %v8625 = vld [vmem:[#allocation4 + $0x1a0] sm:$0xff]
    %v8626 = vld [vmem:[#allocation4 + $0x1a8] sm:$0xff]
    %v8627 = vld [vmem:[#allocation4 + $0x1b0] sm:$0xff]
    %v8628 = vld [vmem:[#allocation4 + $0x1b8] sm:$0xff]
    %v8629 = vld [vmem:[#allocation4 + $0x1c0] sm:$0xff]
    %v8630 = vld [vmem:[#allocation4 + $0x1c8] sm:$0xff]
    %v8631 = vld [vmem:[#allocation4 + $0x1d0] sm:$0xff]
    %v8632 = vld [vmem:[#allocation4 + $0x1d8] sm:$0xff]
    %v8633 = vld [vmem:[#allocation4 + $0x1e0] sm:$0xff]
    %v8634 = vld [vmem:[#allocation4 + $0x1e8] sm:$0xff]
    %v8635 = vld [vmem:[#allocation4 + $0x1f0] sm:$0xff]
    %v8636 = vld [vmem:[#allocation4 + $0x1f8] sm:$0xff]
    %v8637 = vld [vmem:[#allocation4 + $0x200] sm:$0xff]
    %v8638 = vld [vmem:[#allocation4 + $0x208] sm:$0xff]
    %v8639 = vld [vmem:[#allocation4 + $0x210] sm:$0xff]
    %v8640 = vld [vmem:[#allocation4 + $0x218] sm:$0xff]
    %v8641 = vld [vmem:[#allocation4 + $0x220] sm:$0xff]
    %v8642 = vld [vmem:[#allocation4 + $0x228] sm:$0xff]
    %v8643 = vld [vmem:[#allocation4 + $0x230] sm:$0xff]
    %v8644 = vld [vmem:[#allocation4 + $0x238] sm:$0xff]
    %v8645 = vld [vmem:[#allocation4 + $0x240] sm:$0xff]
    %v8646 = vld [vmem:[#allocation4 + $0x248] sm:$0xff]
    %v8647 = vld [vmem:[#allocation4 + $0x250] sm:$0xff]
    %v8648 = vld [vmem:[#allocation4 + $0x258] sm:$0xff]
    %v8649 = vld [vmem:[#allocation4 + $0x260] sm:$0xff]
    %v8650 = vld [vmem:[#allocation4 + $0x268] sm:$0xff]
    %v8651 = vld [vmem:[#allocation4 + $0x270] sm:$0xff]
    %v8652 = vld [vmem:[#allocation4 + $0x278] sm:$0xff]
    %v8653 = vld [vmem:[#allocation4 + $0x280] sm:$0xff]
    %v8654 = vld [vmem:[#allocation4 + $0x288] sm:$0xff]
    %v8655 = vld [vmem:[#allocation4 + $0x290] sm:$0xff]
    %v8656 = vld [vmem:[#allocation4 + $0x298] sm:$0xff]
    %v8657 = vld [vmem:[#allocation4 + $0x2a0] sm:$0xff]
    %v8658 = vld [vmem:[#allocation4 + $0x2a8] sm:$0xff]
    %v8659 = vld [vmem:[#allocation4 + $0x2b0] sm:$0xff]
    %v8660 = vld [vmem:[#allocation4 + $0x2b8] sm:$0xff]
    %v8661 = vld [vmem:[#allocation4 + $0x2c0] sm:$0xff]
    %v8662 = vld [vmem:[#allocation4 + $0x2c8] sm:$0xff]
    %v8663 = vld [vmem:[#allocation4 + $0x2d0] sm:$0xff]
    %v8664 = vld [vmem:[#allocation4 + $0x2d8] sm:$0xff]
    %v8665 = vld [vmem:[#allocation4 + $0x2e0] sm:$0xff]
    %v8666 = vld [vmem:[#allocation4 + $0x2e8] sm:$0xff]
    %v8667 = vld [vmem:[#allocation4 + $0x2f0] sm:$0xff]
    %v8668 = vld [vmem:[#allocation4 + $0x2f8] sm:$0xff]
    %v8669 = vld [vmem:[#allocation4 + $0x300] sm:$0xff]
    %v8670 = vld [vmem:[#allocation4 + $0x308] sm:$0xff]
    %v8671 = vld [vmem:[#allocation4 + $0x310] sm:$0xff]
    %v8672 = vld [vmem:[#allocation4 + $0x318] sm:$0xff]
    %v8673 = vld [vmem:[#allocation4 + $0x320] sm:$0xff]
    %v8674 = vld [vmem:[#allocation4 + $0x328] sm:$0xff]
    %v8675 = vld [vmem:[#allocation4 + $0x330] sm:$0xff]
    %v8676 = vld [vmem:[#allocation4 + $0x338] sm:$0xff]
    %v8677 = vld [vmem:[#allocation4 + $0x340] sm:$0xff]
    %v8678 = vld [vmem:[#allocation4 + $0x348] sm:$0xff]
    %v8679 = vld [vmem:[#allocation4 + $0x350] sm:$0xff]
    %v8680 = vld [vmem:[#allocation4 + $0x358] sm:$0xff]
    %v8681 = vld [vmem:[#allocation4 + $0x360] sm:$0xff]
    %v8682 = vld [vmem:[#allocation4 + $0x368] sm:$0xff]
    %v8683 = vld [vmem:[#allocation4 + $0x370] sm:$0xff]
    %v8684 = vld [vmem:[#allocation4 + $0x378] sm:$0xff]
    %v8685 = vld [vmem:[#allocation4 + $0x380] sm:$0xff]
    %v8686 = vld [vmem:[#allocation4 + $0x388] sm:$0xff]
    %v8687 = vld [vmem:[#allocation4 + $0x390] sm:$0xff]
    %v8688 = vld [vmem:[#allocation4 + $0x398] sm:$0xff]
    %v8689 = vld [vmem:[#allocation4 + $0x3a0] sm:$0xff]
    %v8690 = vld [vmem:[#allocation4 + $0x3a8] sm:$0xff]
    %v8691 = vld [vmem:[#allocation4 + $0x3b0] sm:$0xff]
    %v8692 = vld [vmem:[#allocation4 + $0x3b8] sm:$0xff]
    %v8693 = vld [vmem:[#allocation4 + $0x3c0] sm:$0xff]
    %v8694 = vld [vmem:[#allocation4 + $0x3c8] sm:$0xff]
    %v8695 = vld [vmem:[#allocation4 + $0x3d0] sm:$0xff]
    %v8696 = vld [vmem:[#allocation4 + $0x3d8] sm:$0xff]
    %v8697 = vld [vmem:[#allocation4 + $0x3e0] sm:$0xff]
    %v8698 = vld [vmem:[#allocation4 + $0x3e8] sm:$0xff]
    %v8699 = vld [vmem:[#allocation4 + $0x3f0] sm:$0xff]
    %v8700 = vld [vmem:[#allocation4 + $0x3f8] sm:$0xff]
    %v8703 = vrot.slane %v8571, 3
    %v8704 = vrot.slane %v8572, 3
    %v8835 = vunpack.c.l.b16 %v8573
    %v8836 = vunpack.c.h.b16 %v8573
    %v8837 = vunpack.c.l.b16 %v8574
    %v8838 = vunpack.c.h.b16 %v8574
    %v8839 = vunpack.c.l.b16 %v8575
    %v8840 = vunpack.c.h.b16 %v8575
    %v8841 = vunpack.c.l.b16 %v8576
    %v8842 = vunpack.c.h.b16 %v8576
    %v8843 = vunpack.c.l.b16 %v8577
    %v8844 = vunpack.c.h.b16 %v8577
    %v8845 = vunpack.c.l.b16 %v8578
    %v8846 = vunpack.c.h.b16 %v8578
    %v8847 = vunpack.c.l.b16 %v8579
    %v8848 = vunpack.c.h.b16 %v8579
    %v8849 = vunpack.c.l.b16 %v8580
    %v8850 = vunpack.c.h.b16 %v8580
    %v8851 = vunpack.c.l.b16 %v8581
    %v8852 = vunpack.c.h.b16 %v8581
    %v8853 = vunpack.c.l.b16 %v8582
    %v8854 = vunpack.c.h.b16 %v8582
    %v8855 = vunpack.c.l.b16 %v8583
    %v8856 = vunpack.c.h.b16 %v8583
    %v8857 = vunpack.c.l.b16 %v8584
    %v8858 = vunpack.c.h.b16 %v8584
    %v8859 = vunpack.c.l.b16 %v8585
    %v8860 = vunpack.c.h.b16 %v8585
    %v8861 = vunpack.c.l.b16 %v8586
    %v8862 = vunpack.c.h.b16 %v8586
    %v8863 = vunpack.c.l.b16 %v8587
    %v8864 = vunpack.c.h.b16 %v8587
    %v8865 = vunpack.c.l.b16 %v8588
    %v8866 = vunpack.c.h.b16 %v8588
    %v8867 = vunpack.c.l.b16 %v8589
    %v8868 = vunpack.c.h.b16 %v8589
    %v8869 = vunpack.c.l.b16 %v8590
    %v8870 = vunpack.c.h.b16 %v8590
    %v8871 = vunpack.c.l.b16 %v8591
    %v8872 = vunpack.c.h.b16 %v8591
    %v8873 = vunpack.c.l.b16 %v8592
    %v8874 = vunpack.c.h.b16 %v8592
    %v8875 = vunpack.c.l.b16 %v8593
    %v8876 = vunpack.c.h.b16 %v8593
    %v8877 = vunpack.c.l.b16 %v8594
    %v8878 = vunpack.c.h.b16 %v8594
    %v8879 = vunpack.c.l.b16 %v8595
    %v8880 = vunpack.c.h.b16 %v8595
    %v8881 = vunpack.c.l.b16 %v8596
    %v8882 = vunpack.c.h.b16 %v8596
    %v8883 = vunpack.c.l.b16 %v8597
    %v8884 = vunpack.c.h.b16 %v8597
    %v8885 = vunpack.c.l.b16 %v8598
    %v8886 = vunpack.c.h.b16 %v8598
    %v8887 = vunpack.c.l.b16 %v8599
    %v8888 = vunpack.c.h.b16 %v8599
    %v8889 = vunpack.c.l.b16 %v8600
    %v8890 = vunpack.c.h.b16 %v8600
    %v8891 = vunpack.c.l.b16 %v8601
    %v8892 = vunpack.c.h.b16 %v8601
    %v8893 = vunpack.c.l.b16 %v8602
    %v8894 = vunpack.c.h.b16 %v8602
    %v8895 = vunpack.c.l.b16 %v8603
    %v8896 = vunpack.c.h.b16 %v8603
    %v8897 = vunpack.c.l.b16 %v8604
    %v8898 = vunpack.c.h.b16 %v8604
    %v8899 = vunpack.c.l.b16 %v8605
    %v8900 = vunpack.c.h.b16 %v8605
    %v8901 = vunpack.c.l.b16 %v8606
    %v8902 = vunpack.c.h.b16 %v8606
    %v8903 = vunpack.c.l.b16 %v8607
    %v8904 = vunpack.c.h.b16 %v8607
    %v8905 = vunpack.c.l.b16 %v8608
    %v8906 = vunpack.c.h.b16 %v8608
    %v8907 = vunpack.c.l.b16 %v8609
    %v8908 = vunpack.c.h.b16 %v8609
    %v8909 = vunpack.c.l.b16 %v8610
    %v8910 = vunpack.c.h.b16 %v8610
    %v8911 = vunpack.c.l.b16 %v8611
    %v8912 = vunpack.c.h.b16 %v8611
    %v8913 = vunpack.c.l.b16 %v8612
    %v8914 = vunpack.c.h.b16 %v8612
    %v8915 = vunpack.c.l.b16 %v8613
    %v8916 = vunpack.c.h.b16 %v8613
    %v8917 = vunpack.c.l.b16 %v8614
    %v8918 = vunpack.c.h.b16 %v8614
    %v8919 = vunpack.c.l.b16 %v8615
    %v8920 = vunpack.c.h.b16 %v8615
    %v8921 = vunpack.c.l.b16 %v8616
    %v8922 = vunpack.c.h.b16 %v8616
    %v8923 = vunpack.c.l.b16 %v8617
    %v8924 = vunpack.c.h.b16 %v8617
    %v8925 = vunpack.c.l.b16 %v8618
    %v8926 = vunpack.c.h.b16 %v8618
    %v8927 = vunpack.c.l.b16 %v8619
    %v8928 = vunpack.c.h.b16 %v8619
    %v8929 = vunpack.c.l.b16 %v8620
    %v8930 = vunpack.c.h.b16 %v8620
    %v8931 = vunpack.c.l.b16 %v8621
    %v8932 = vunpack.c.h.b16 %v8621
    %v8933 = vunpack.c.l.b16 %v8622
    %v8934 = vunpack.c.h.b16 %v8622
    %v8935 = vunpack.c.l.b16 %v8623
    %v8936 = vunpack.c.h.b16 %v8623
    %v8937 = vunpack.c.l.b16 %v8624
    %v8938 = vunpack.c.h.b16 %v8624
    %v8939 = vunpack.c.l.b16 %v8625
    %v8940 = vunpack.c.h.b16 %v8625
    %v8941 = vunpack.c.l.b16 %v8626
    %v8942 = vunpack.c.h.b16 %v8626
    %v8943 = vunpack.c.l.b16 %v8627
    %v8944 = vunpack.c.h.b16 %v8627
    %v8945 = vunpack.c.l.b16 %v8628
    %v8946 = vunpack.c.h.b16 %v8628
    %v8947 = vunpack.c.l.b16 %v8629
    %v8948 = vunpack.c.h.b16 %v8629
    %v8949 = vunpack.c.l.b16 %v8630
    %v8950 = vunpack.c.h.b16 %v8630
    %v8951 = vunpack.c.l.b16 %v8631
    %v8952 = vunpack.c.h.b16 %v8631
    %v8953 = vunpack.c.l.b16 %v8632
    %v8954 = vunpack.c.h.b16 %v8632
    %v8955 = vunpack.c.l.b16 %v8633
    %v8956 = vunpack.c.h.b16 %v8633
    %v8957 = vunpack.c.l.b16 %v8634
    %v8958 = vunpack.c.h.b16 %v8634
    %v8959 = vunpack.c.l.b16 %v8635
    %v8960 = vunpack.c.h.b16 %v8635
    %v8961 = vunpack.c.l.b16 %v8636
    %v8962 = vunpack.c.h.b16 %v8636
    %v8963 = vunpack.c.l.b16 %v8637
    %v8964 = vunpack.c.h.b16 %v8637
    %v8965 = vunpack.c.l.b16 %v8638
    %v8966 = vunpack.c.h.b16 %v8638
    %v8967 = vunpack.c.l.b16 %v8639
    %v8968 = vunpack.c.h.b16 %v8639
    %v8969 = vunpack.c.l.b16 %v8640
    %v8970 = vunpack.c.h.b16 %v8640
    %v8971 = vunpack.c.l.b16 %v8641
    %v8972 = vunpack.c.h.b16 %v8641
    %v8973 = vunpack.c.l.b16 %v8642
    %v8974 = vunpack.c.h.b16 %v8642
    %v8975 = vunpack.c.l.b16 %v8643
    %v8976 = vunpack.c.h.b16 %v8643
    %v8977 = vunpack.c.l.b16 %v8644
    %v8978 = vunpack.c.h.b16 %v8644
    %v8979 = vunpack.c.l.b16 %v8645
    %v8980 = vunpack.c.h.b16 %v8645
    %v8981 = vunpack.c.l.b16 %v8646
    %v8982 = vunpack.c.h.b16 %v8646
    %v8983 = vunpack.c.l.b16 %v8647
    %v8984 = vunpack.c.h.b16 %v8647
    %v8985 = vunpack.c.l.b16 %v8648
    %v8986 = vunpack.c.h.b16 %v8648
    %v8987 = vunpack.c.l.b16 %v8649
    %v8988 = vunpack.c.h.b16 %v8649
    %v8989 = vunpack.c.l.b16 %v8650
    %v8990 = vunpack.c.h.b16 %v8650
    %v8991 = vunpack.c.l.b16 %v8651
    %v8992 = vunpack.c.h.b16 %v8651
    %v8993 = vunpack.c.l.b16 %v8652
    %v8994 = vunpack.c.h.b16 %v8652
    %v8995 = vunpack.c.l.b16 %v8653
    %v8996 = vunpack.c.h.b16 %v8653
    %v8997 = vunpack.c.l.b16 %v8654
    %v8998 = vunpack.c.h.b16 %v8654
    %v8999 = vunpack.c.l.b16 %v8655
    %v9000 = vunpack.c.h.b16 %v8655
    %v9001 = vunpack.c.l.b16 %v8656
    %v9002 = vunpack.c.h.b16 %v8656
    %v9003 = vunpack.c.l.b16 %v8657
    %v9004 = vunpack.c.h.b16 %v8657
    %v9005 = vunpack.c.l.b16 %v8658
    %v9006 = vunpack.c.h.b16 %v8658
    %v9007 = vunpack.c.l.b16 %v8659
    %v9008 = vunpack.c.h.b16 %v8659
    %v9009 = vunpack.c.l.b16 %v8660
    %v9010 = vunpack.c.h.b16 %v8660
    %v9011 = vunpack.c.l.b16 %v8661
    %v9012 = vunpack.c.h.b16 %v8661
    %v9013 = vunpack.c.l.b16 %v8662
    %v9014 = vunpack.c.h.b16 %v8662
    %v9015 = vunpack.c.l.b16 %v8663
    %v9016 = vunpack.c.h.b16 %v8663
    %v9017 = vunpack.c.l.b16 %v8664
    %v9018 = vunpack.c.h.b16 %v8664
    %v9019 = vunpack.c.l.b16 %v8665
    %v9020 = vunpack.c.h.b16 %v8665
    %v9021 = vunpack.c.l.b16 %v8666
    %v9022 = vunpack.c.h.b16 %v8666
    %v9023 = vunpack.c.l.b16 %v8667
    %v9024 = vunpack.c.h.b16 %v8667
    %v9025 = vunpack.c.l.b16 %v8668
    %v9026 = vunpack.c.h.b16 %v8668
    %v9027 = vunpack.c.l.b16 %v8669
    %v9028 = vunpack.c.h.b16 %v8669
    %v9029 = vunpack.c.l.b16 %v8670
    %v9030 = vunpack.c.h.b16 %v8670
    %v9031 = vunpack.c.l.b16 %v8671
    %v9032 = vunpack.c.h.b16 %v8671
    %v9033 = vunpack.c.l.b16 %v8672
    %v9034 = vunpack.c.h.b16 %v8672
    %v9035 = vunpack.c.l.b16 %v8673
    %v9036 = vunpack.c.h.b16 %v8673
    %v9037 = vunpack.c.l.b16 %v8674
    %v9038 = vunpack.c.h.b16 %v8674
    %v9039 = vunpack.c.l.b16 %v8675
    %v9040 = vunpack.c.h.b16 %v8675
    %v9041 = vunpack.c.l.b16 %v8676
    %v9042 = vunpack.c.h.b16 %v8676
    %v9043 = vunpack.c.l.b16 %v8677
    %v9044 = vunpack.c.h.b16 %v8677
    %v9045 = vunpack.c.l.b16 %v8678
    %v9046 = vunpack.c.h.b16 %v8678
    %v9047 = vunpack.c.l.b16 %v8679
    %v9048 = vunpack.c.h.b16 %v8679
    %v9049 = vunpack.c.l.b16 %v8680
    %v9050 = vunpack.c.h.b16 %v8680
    %v9051 = vunpack.c.l.b16 %v8681
    %v9052 = vunpack.c.h.b16 %v8681
    %v9053 = vunpack.c.l.b16 %v8682
    %v9054 = vunpack.c.h.b16 %v8682
    %v9055 = vunpack.c.l.b16 %v8683
    %v9056 = vunpack.c.h.b16 %v8683
    %v9057 = vunpack.c.l.b16 %v8684
    %v9058 = vunpack.c.h.b16 %v8684
    %v9059 = vunpack.c.l.b16 %v8685
    %v9060 = vunpack.c.h.b16 %v8685
    %v9061 = vunpack.c.l.b16 %v8686
    %v9062 = vunpack.c.h.b16 %v8686
    %v9063 = vunpack.c.l.b16 %v8687
    %v9064 = vunpack.c.h.b16 %v8687
    %v9065 = vunpack.c.l.b16 %v8688
    %v9066 = vunpack.c.h.b16 %v8688
    %v9067 = vunpack.c.l.b16 %v8689
    %v9068 = vunpack.c.h.b16 %v8689
    %v9069 = vunpack.c.l.b16 %v8690
    %v9070 = vunpack.c.h.b16 %v8690
    %v9071 = vunpack.c.l.b16 %v8691
    %v9072 = vunpack.c.h.b16 %v8691
    %v9073 = vunpack.c.l.b16 %v8692
    %v9074 = vunpack.c.h.b16 %v8692
    %v9075 = vunpack.c.l.b16 %v8693
    %v9076 = vunpack.c.h.b16 %v8693
    %v9077 = vunpack.c.l.b16 %v8694
    %v9078 = vunpack.c.h.b16 %v8694
    %v9079 = vunpack.c.l.b16 %v8695
    %v9080 = vunpack.c.h.b16 %v8695
    %v9081 = vunpack.c.l.b16 %v8696
    %v9082 = vunpack.c.h.b16 %v8696
    %v9083 = vunpack.c.l.b16 %v8697
    %v9084 = vunpack.c.h.b16 %v8697
    %v9085 = vunpack.c.l.b16 %v8698
    %v9086 = vunpack.c.h.b16 %v8698
    %v9087 = vunpack.c.l.b16 %v8699
    %v9088 = vunpack.c.h.b16 %v8699
    %v9089 = vunpack.c.l.b16 %v8700
    %v9090 = vunpack.c.h.b16 %v8700
    %v9091 = vpack.c.b16 %v8843, %v8835
    %v9092 = vpack.c.b16 %v8844, %v8836
    %v9093 = vpack.c.b16 %v8845, %v8837
    %v9094 = vpack.c.b16 %v8846, %v8838
    %v9095 = vpack.c.b16 %v8847, %v8839
    %v9096 = vpack.c.b16 %v8848, %v8840
    %v9097 = vpack.c.b16 %v8849, %v8841
    %v9098 = vpack.c.b16 %v8850, %v8842
    %v9099 = vpack.c.b16 %v8859, %v8851
    %v9100 = vpack.c.b16 %v8860, %v8852
    %v9101 = vpack.c.b16 %v8861, %v8853
    %v9102 = vpack.c.b16 %v8862, %v8854
    %v9103 = vpack.c.b16 %v8863, %v8855
    %v9104 = vpack.c.b16 %v8864, %v8856
    %v9105 = vpack.c.b16 %v8865, %v8857
    %v9106 = vpack.c.b16 %v8866, %v8858
    %v9107 = vpack.c.b16 %v8875, %v8867
    %v9108 = vpack.c.b16 %v8876, %v8868
    %v9109 = vpack.c.b16 %v8877, %v8869
    %v9110 = vpack.c.b16 %v8878, %v8870
    %v9111 = vpack.c.b16 %v8879, %v8871
    %v9112 = vpack.c.b16 %v8880, %v8872
    %v9113 = vpack.c.b16 %v8881, %v8873
    %v9114 = vpack.c.b16 %v8882, %v8874
    %v9115 = vpack.c.b16 %v8891, %v8883
    %v9116 = vpack.c.b16 %v8892, %v8884
    %v9117 = vpack.c.b16 %v8893, %v8885
    %v9118 = vpack.c.b16 %v8894, %v8886
    %v9119 = vpack.c.b16 %v8895, %v8887
    %v9120 = vpack.c.b16 %v8896, %v8888
    %v9121 = vpack.c.b16 %v8897, %v8889
    %v9122 = vpack.c.b16 %v8898, %v8890
    %v9123 = vpack.c.b16 %v8907, %v8899
    %v9124 = vpack.c.b16 %v8908, %v8900
    %v9125 = vpack.c.b16 %v8909, %v8901
    %v9126 = vpack.c.b16 %v8910, %v8902
    %v9127 = vpack.c.b16 %v8911, %v8903
    %v9128 = vpack.c.b16 %v8912, %v8904
    %v9129 = vpack.c.b16 %v8913, %v8905
    %v9130 = vpack.c.b16 %v8914, %v8906
    %v9131 = vpack.c.b16 %v8923, %v8915
    %v9132 = vpack.c.b16 %v8924, %v8916
    %v9133 = vpack.c.b16 %v8925, %v8917
    %v9134 = vpack.c.b16 %v8926, %v8918
    %v9135 = vpack.c.b16 %v8927, %v8919
    %v9136 = vpack.c.b16 %v8928, %v8920
    %v9137 = vpack.c.b16 %v8929, %v8921
    %v9138 = vpack.c.b16 %v8930, %v8922
    %v9139 = vpack.c.b16 %v8939, %v8931
    %v9140 = vpack.c.b16 %v8940, %v8932
    %v9141 = vpack.c.b16 %v8941, %v8933
    %v9142 = vpack.c.b16 %v8942, %v8934
    %v9143 = vpack.c.b16 %v8943, %v8935
    %v9144 = vpack.c.b16 %v8944, %v8936
    %v9145 = vpack.c.b16 %v8945, %v8937
    %v9146 = vpack.c.b16 %v8946, %v8938
    %v9147 = vpack.c.b16 %v8955, %v8947
    %v9148 = vpack.c.b16 %v8956, %v8948
    %v9149 = vpack.c.b16 %v8957, %v8949
    %v9150 = vpack.c.b16 %v8958, %v8950
    %v9151 = vpack.c.b16 %v8959, %v8951
    %v9152 = vpack.c.b16 %v8960, %v8952
    %v9153 = vpack.c.b16 %v8961, %v8953
    %v9154 = vpack.c.b16 %v8962, %v8954
    %v9155 = vpack.c.b16 %v8971, %v8963
    %v9156 = vpack.c.b16 %v8972, %v8964
    %v9157 = vpack.c.b16 %v8973, %v8965
    %v9158 = vpack.c.b16 %v8974, %v8966
    %v9159 = vpack.c.b16 %v8975, %v8967
    %v9160 = vpack.c.b16 %v8976, %v8968
    %v9161 = vpack.c.b16 %v8977, %v8969
    %v9162 = vpack.c.b16 %v8978, %v8970
    %v9163 = vpack.c.b16 %v8987, %v8979
    %v9164 = vpack.c.b16 %v8988, %v8980
    %v9165 = vpack.c.b16 %v8989, %v8981
    %v9166 = vpack.c.b16 %v8990, %v8982
    %v9167 = vpack.c.b16 %v8991, %v8983
    %v9168 = vpack.c.b16 %v8992, %v8984
    %v9169 = vpack.c.b16 %v8993, %v8985
    %v9170 = vpack.c.b16 %v8994, %v8986
    %v9171 = vpack.c.b16 %v9003, %v8995
    %v9172 = vpack.c.b16 %v9004, %v8996
    %v9173 = vpack.c.b16 %v9005, %v8997
    %v9174 = vpack.c.b16 %v9006, %v8998
    %v9175 = vpack.c.b16 %v9007, %v8999
    %v9176 = vpack.c.b16 %v9008, %v9000
    %v9177 = vpack.c.b16 %v9009, %v9001
    %v9178 = vpack.c.b16 %v9010, %v9002
    %v9179 = vpack.c.b16 %v9019, %v9011
    %v9180 = vpack.c.b16 %v9020, %v9012
    %v9181 = vpack.c.b16 %v9021, %v9013
    %v9182 = vpack.c.b16 %v9022, %v9014
    %v9183 = vpack.c.b16 %v9023, %v9015
    %v9184 = vpack.c.b16 %v9024, %v9016
    %v9185 = vpack.c.b16 %v9025, %v9017
    %v9186 = vpack.c.b16 %v9026, %v9018
    %v9187 = vpack.c.b16 %v9035, %v9027
    %v9188 = vpack.c.b16 %v9036, %v9028
    %v9189 = vpack.c.b16 %v9037, %v9029
    %v9190 = vpack.c.b16 %v9038, %v9030
    %v9191 = vpack.c.b16 %v9039, %v9031
    %v9192 = vpack.c.b16 %v9040, %v9032
    %v9193 = vpack.c.b16 %v9041, %v9033
    %v9194 = vpack.c.b16 %v9042, %v9034
    %v9195 = vpack.c.b16 %v9051, %v9043
    %v9196 = vpack.c.b16 %v9052, %v9044
    %v9197 = vpack.c.b16 %v9053, %v9045
    %v9198 = vpack.c.b16 %v9054, %v9046
    %v9199 = vpack.c.b16 %v9055, %v9047
    %v9200 = vpack.c.b16 %v9056, %v9048
    %v9201 = vpack.c.b16 %v9057, %v9049
    %v9202 = vpack.c.b16 %v9058, %v9050
    %v9203 = vpack.c.b16 %v9067, %v9059
    %v9204 = vpack.c.b16 %v9068, %v9060
    %v9205 = vpack.c.b16 %v9069, %v9061
    %v9206 = vpack.c.b16 %v9070, %v9062
    %v9207 = vpack.c.b16 %v9071, %v9063
    %v9208 = vpack.c.b16 %v9072, %v9064
    %v9209 = vpack.c.b16 %v9073, %v9065
    %v9210 = vpack.c.b16 %v9074, %v9066
    %v9211 = vpack.c.b16 %v9083, %v9075
    %v9212 = vpack.c.b16 %v9084, %v9076
    %v9213 = vpack.c.b16 %v9085, %v9077
    %v9214 = vpack.c.b16 %v9086, %v9078
    %v9215 = vpack.c.b16 %v9087, %v9079
    %v9216 = vpack.c.b16 %v9088, %v9080
    %v9217 = vpack.c.b16 %v9089, %v9081
    %v9218 = vpack.c.b16 %v9090, %v9082
    %9347 = vmatpush.bf16.msra.mxu0 %v9147
    %9348 = vmatpush.bf16.msra.mxu0 %v9139
    %9349 = vmatpush.bf16.msra.mxu0 %v9131
    %9350 = vmatpush.bf16.msra.mxu0 %v9123
    %9351 = vmatpush.bf16.msra.mxu0 %v9115
    %9352 = vmatpush.bf16.msra.mxu0 %v9107
    %9353 = vmatpush.bf16.msra.mxu0 %v9099
    %9354 = vmatpush.bf16.msra.mxu0 %v9091
    %9355 = vmatmul.bf16.gmra.mxu0 %v8703
    %v9356 = vpop.f32.mrf.mxu0
    %v9357 = vadd.f32 0.0, %v9356
    %v9358 = vpop.f32.mrf.mxu0
    %9359 = vdwg.mxu0
    %9360 = vmatpush.bf16.msra.mxu0 %v9211
    %9361 = vmatpush.bf16.msra.mxu0 %v9203
    %9362 = vmatpush.bf16.msra.mxu0 %v9195
    %9363 = vmatpush.bf16.msra.mxu0 %v9187
    %9364 = vmatpush.bf16.msra.mxu0 %v9179
    %9365 = vmatpush.bf16.msra.mxu0 %v9171
    %9366 = vmatpush.bf16.msra.mxu0 %v9163
    %9367 = vmatpush.bf16.msra.mxu0 %v9155
    %9368 = vmatmul.bf16.gmra.mxu0 %v8704
    %v9369 = vpop.f32.mrf.mxu0
    %v9370 = vadd.f32 %v9357, %v9369
    %v9371 = vpop.f32.mrf.mxu0
    %9372 = vdwg.mxu0
    %9373 = vmatpush.bf16.msra.mxu0 %v9148
    %9374 = vmatpush.bf16.msra.mxu0 %v9140
    %9375 = vmatpush.bf16.msra.mxu0 %v9132
    %9376 = vmatpush.bf16.msra.mxu0 %v9124
    %9377 = vmatpush.bf16.msra.mxu0 %v9116
    %9378 = vmatpush.bf16.msra.mxu0 %v9108
    %9379 = vmatpush.bf16.msra.mxu0 %v9100
    %9380 = vmatpush.bf16.msra.mxu0 %v9092
    %9381 = vmatmul.bf16.gmra.mxu0 %v8703
    %v9382 = vpop.f32.mrf.mxu0
    %v9383 = vadd.f32 0.0, %v9382
    %v9384 = vpop.f32.mrf.mxu0
    %9385 = vdwg.mxu0
    %9386 = vmatpush.bf16.msra.mxu0 %v9212
    %9387 = vmatpush.bf16.msra.mxu0 %v9204
    %9388 = vmatpush.bf16.msra.mxu0 %v9196
    %9389 = vmatpush.bf16.msra.mxu0 %v9188
    %9390 = vmatpush.bf16.msra.mxu0 %v9180
    %9391 = vmatpush.bf16.msra.mxu0 %v9172
    %9392 = vmatpush.bf16.msra.mxu0 %v9164
    %9393 = vmatpush.bf16.msra.mxu0 %v9156
    %9394 = vmatmul.bf16.gmra.mxu0 %v8704
    %v9395 = vpop.f32.mrf.mxu0
    %v9396 = vadd.f32 %v9383, %v9395
    %v9397 = vpop.f32.mrf.mxu0
    %9398 = vdwg.mxu0
    %9399 = vmatpush.bf16.msra.mxu0 %v9149
    %9400 = vmatpush.bf16.msra.mxu0 %v9141
    %9401 = vmatpush.bf16.msra.mxu0 %v9133
    %9402 = vmatpush.bf16.msra.mxu0 %v9125
    %9403 = vmatpush.bf16.msra.mxu0 %v9117
    %9404 = vmatpush.bf16.msra.mxu0 %v9109
    %9405 = vmatpush.bf16.msra.mxu0 %v9101
    %9406 = vmatpush.bf16.msra.mxu0 %v9093
    %9407 = vmatmul.bf16.gmra.mxu0 %v8703
    %v9408 = vpop.f32.mrf.mxu0
    %v9409 = vadd.f32 0.0, %v9408
    %v9410 = vpop.f32.mrf.mxu0
    %9411 = vdwg.mxu0
    %9412 = vmatpush.bf16.msra.mxu0 %v9213
    %9413 = vmatpush.bf16.msra.mxu0 %v9205
    %9414 = vmatpush.bf16.msra.mxu0 %v9197
    %9415 = vmatpush.bf16.msra.mxu0 %v9189
    %9416 = vmatpush.bf16.msra.mxu0 %v9181
    %9417 = vmatpush.bf16.msra.mxu0 %v9173
    %9418 = vmatpush.bf16.msra.mxu0 %v9165
    %9419 = vmatpush.bf16.msra.mxu0 %v9157
    %9420 = vmatmul.bf16.gmra.mxu0 %v8704
    %v9421 = vpop.f32.mrf.mxu0
    %v9422 = vadd.f32 %v9409, %v9421
    %v9423 = vpop.f32.mrf.mxu0
    %9424 = vdwg.mxu0
    %9425 = vmatpush.bf16.msra.mxu0 %v9150
    %9426 = vmatpush.bf16.msra.mxu0 %v9142
    %9427 = vmatpush.bf16.msra.mxu0 %v9134
    %9428 = vmatpush.bf16.msra.mxu0 %v9126
    %9429 = vmatpush.bf16.msra.mxu0 %v9118
    %9430 = vmatpush.bf16.msra.mxu0 %v9110
    %9431 = vmatpush.bf16.msra.mxu0 %v9102
    %9432 = vmatpush.bf16.msra.mxu0 %v9094
    %9433 = vmatmul.bf16.gmra.mxu0 %v8703
    %v9434 = vpop.f32.mrf.mxu0
    %v9435 = vadd.f32 0.0, %v9434
    %v9436 = vpop.f32.mrf.mxu0
    %9437 = vdwg.mxu0
    %9438 = vmatpush.bf16.msra.mxu0 %v9214
    %9439 = vmatpush.bf16.msra.mxu0 %v9206
    %9440 = vmatpush.bf16.msra.mxu0 %v9198
    %9441 = vmatpush.bf16.msra.mxu0 %v9190
    %9442 = vmatpush.bf16.msra.mxu0 %v9182
    %9443 = vmatpush.bf16.msra.mxu0 %v9174
    %9444 = vmatpush.bf16.msra.mxu0 %v9166
    %9445 = vmatpush.bf16.msra.mxu0 %v9158
    %9446 = vmatmul.bf16.gmra.mxu0 %v8704
    %v9447 = vpop.f32.mrf.mxu0
    %v9448 = vadd.f32 %v9435, %v9447
    %v9449 = vpop.f32.mrf.mxu0
    %9450 = vdwg.mxu0
    %9451 = vmatpush.bf16.msra.mxu0 %v9151
    %9452 = vmatpush.bf16.msra.mxu0 %v9143
    %9453 = vmatpush.bf16.msra.mxu0 %v9135
    %9454 = vmatpush.bf16.msra.mxu0 %v9127
    %9455 = vmatpush.bf16.msra.mxu0 %v9119
    %9456 = vmatpush.bf16.msra.mxu0 %v9111
    %9457 = vmatpush.bf16.msra.mxu0 %v9103
    %9458 = vmatpush.bf16.msra.mxu0 %v9095
    %9459 = vmatmul.bf16.gmra.mxu0 %v8703
    %v9460 = vpop.f32.mrf.mxu0
    %v9461 = vadd.f32 0.0, %v9460
    %v9462 = vpop.f32.mrf.mxu0
    %9463 = vdwg.mxu0
    %9464 = vmatpush.bf16.msra.mxu0 %v9215
    %9465 = vmatpush.bf16.msra.mxu0 %v9207
    %9466 = vmatpush.bf16.msra.mxu0 %v9199
    %9467 = vmatpush.bf16.msra.mxu0 %v9191
    %9468 = vmatpush.bf16.msra.mxu0 %v9183
    %9469 = vmatpush.bf16.msra.mxu0 %v9175
    %9470 = vmatpush.bf16.msra.mxu0 %v9167
    %9471 = vmatpush.bf16.msra.mxu0 %v9159
    %9472 = vmatmul.bf16.gmra.mxu0 %v8704
    %v9473 = vpop.f32.mrf.mxu0
    %v9474 = vadd.f32 %v9461, %v9473
    %v9475 = vpop.f32.mrf.mxu0
    %9476 = vdwg.mxu0
    %9477 = vmatpush.bf16.msra.mxu0 %v9152
    %9478 = vmatpush.bf16.msra.mxu0 %v9144
    %9479 = vmatpush.bf16.msra.mxu0 %v9136
    %9480 = vmatpush.bf16.msra.mxu0 %v9128
    %9481 = vmatpush.bf16.msra.mxu0 %v9120
    %9482 = vmatpush.bf16.msra.mxu0 %v9112
    %9483 = vmatpush.bf16.msra.mxu0 %v9104
    %9484 = vmatpush.bf16.msra.mxu0 %v9096
    %9485 = vmatmul.bf16.gmra.mxu0 %v8703
    %v9486 = vpop.f32.mrf.mxu0
    %v9487 = vadd.f32 0.0, %v9486
    %v9488 = vpop.f32.mrf.mxu0
    %9489 = vdwg.mxu0
    %9490 = vmatpush.bf16.msra.mxu0 %v9216
    %9491 = vmatpush.bf16.msra.mxu0 %v9208
    %9492 = vmatpush.bf16.msra.mxu0 %v9200
    %9493 = vmatpush.bf16.msra.mxu0 %v9192
    %9494 = vmatpush.bf16.msra.mxu0 %v9184
    %9495 = vmatpush.bf16.msra.mxu0 %v9176
    %9496 = vmatpush.bf16.msra.mxu0 %v9168
    %9497 = vmatpush.bf16.msra.mxu0 %v9160
    %9498 = vmatmul.bf16.gmra.mxu0 %v8704
    %v9499 = vpop.f32.mrf.mxu0
    %v9500 = vadd.f32 %v9487, %v9499
    %v9501 = vpop.f32.mrf.mxu0
    %9502 = vdwg.mxu0
    %9503 = vmatpush.bf16.msra.mxu0 %v9153
    %9504 = vmatpush.bf16.msra.mxu0 %v9145
    %9505 = vmatpush.bf16.msra.mxu0 %v9137
    %9506 = vmatpush.bf16.msra.mxu0 %v9129
    %9507 = vmatpush.bf16.msra.mxu0 %v9121
    %9508 = vmatpush.bf16.msra.mxu0 %v9113
    %9509 = vmatpush.bf16.msra.mxu0 %v9105
    %9510 = vmatpush.bf16.msra.mxu0 %v9097
    %9511 = vmatmul.bf16.gmra.mxu0 %v8703
    %v9512 = vpop.f32.mrf.mxu0
    %v9513 = vadd.f32 0.0, %v9512
    %v9514 = vpop.f32.mrf.mxu0
    %9515 = vdwg.mxu0
    %9516 = vmatpush.bf16.msra.mxu0 %v9217
    %9517 = vmatpush.bf16.msra.mxu0 %v9209
    %9518 = vmatpush.bf16.msra.mxu0 %v9201
    %9519 = vmatpush.bf16.msra.mxu0 %v9193
    %9520 = vmatpush.bf16.msra.mxu0 %v9185
    %9521 = vmatpush.bf16.msra.mxu0 %v9177
    %9522 = vmatpush.bf16.msra.mxu0 %v9169
    %9523 = vmatpush.bf16.msra.mxu0 %v9161
    %9524 = vmatmul.bf16.gmra.mxu0 %v8704
    %v9525 = vpop.f32.mrf.mxu0
    %v9526 = vadd.f32 %v9513, %v9525
    %v9527 = vpop.f32.mrf.mxu0
    %9528 = vdwg.mxu0
    %9529 = vmatpush.bf16.msra.mxu0 %v9154
    %9530 = vmatpush.bf16.msra.mxu0 %v9146
    %9531 = vmatpush.bf16.msra.mxu0 %v9138
    %9532 = vmatpush.bf16.msra.mxu0 %v9130
    %9533 = vmatpush.bf16.msra.mxu0 %v9122
    %9534 = vmatpush.bf16.msra.mxu0 %v9114
    %9535 = vmatpush.bf16.msra.mxu0 %v9106
    %9536 = vmatpush.bf16.msra.mxu0 %v9098
    %9537 = vmatmul.bf16.gmra.mxu0 %v8703
    %v9538 = vpop.f32.mrf.mxu0
    %v9539 = vadd.f32 0.0, %v9538
    %v9540 = vpop.f32.mrf.mxu0
    %9541 = vdwg.mxu0
    %9542 = vmatpush.bf16.msra.mxu0 %v9218
    %9543 = vmatpush.bf16.msra.mxu0 %v9210
    %9544 = vmatpush.bf16.msra.mxu0 %v9202
    %9545 = vmatpush.bf16.msra.mxu0 %v9194
    %9546 = vmatpush.bf16.msra.mxu0 %v9186
    %9547 = vmatpush.bf16.msra.mxu0 %v9178
    %9548 = vmatpush.bf16.msra.mxu0 %v9170
    %9549 = vmatpush.bf16.msra.mxu0 %v9162
    %9550 = vmatmul.bf16.gmra.mxu0 %v8704
    %v9551 = vpop.f32.mrf.mxu0
    %v9552 = vadd.f32 %v9539, %v9551
    %v9553 = vpop.f32.mrf.mxu0
    %9554 = vdwg.mxu0
    %v9563 = vrot.slane %v9370, 1
    %v9564 = vrot.slane %v9396, 1
    %v9565 = vrot.slane %v9422, 1
    %v9566 = vrot.slane %v9448, 1
    %v9567 = vrot.slane %v9474, 1
    %v9568 = vrot.slane %v9500, 1
    %v9569 = vrot.slane %v9526, 1
    %v9570 = vrot.slane %v9552, 1
    %v9579 = vadd.f32 %v147, %v9563
    %v9580 = vadd.f32 %v160, %v9564
    %v9581 = vadd.f32 %v173, %v9565
    %v9582 = vadd.f32 %v186, %v9566
    %v9583 = vadd.f32 %v199, %v9567
    %v9584 = vadd.f32 %v212, %v9568
    %v9585 = vadd.f32 %v225, %v9569
    %v9586 = vadd.f32 %v238, %v9570
    %v9587 = vxor.u32 %v9579, 2147483648
    %v9588 = vxor.u32 %v9580, 2147483648
    %v9589 = vxor.u32 %v9581, 2147483648
    %v9590 = vxor.u32 %v9582, 2147483648
    %v9591 = vxor.u32 %v9583, 2147483648
    %v9592 = vxor.u32 %v9584, 2147483648
    %v9593 = vmul.f32 %v9587, 1.442695
    %v9594 = vpow.pop %v9593
    %v9595 = vmul.f32 %v9588, 1.442695
    %v9596 = vpow.pop %v9595
    %v9597 = vmul.f32 %v9589, 1.442695
    %v9598 = vpow.pop %v9597
    %v9599 = vmul.f32 %v9590, 1.442695
    %v9600 = vpow.pop %v9599
    %v9601 = vmul.f32 %v9591, 1.442695
    %v9602 = vpow.pop %v9601
    %v9603 = vmul.f32 %v9592, 1.442695
    %v9604 = vpow.pop %v9603
    %v9605 = vadd.f32 %v9594, 1.0
    %v9606 = vadd.f32 %v9596, 1.0
    %v9607 = vadd.f32 %v9598, 1.0
    %v9608 = vadd.f32 %v9600, 1.0
    %v9609 = vadd.f32 %v9602, 1.0
    %v9610 = vadd.f32 %v9604, 1.0
    %v9611 = vrcp.pop %v9605
    %v9612 = vmul.f32 %v9605, %v9611
    %v9613 = vsub.f32 1.0, %v9612
    %v9614 = vmul.f32 %v9611, %v9613
    %v9615 = vadd.f32 %v9611, %v9614
    %vm9616 = vweird.f32 %v9605
    %vm9617 = vweird.f32 %v9611
    %vm9618 = vmor %vm9616, %vm9617
    %v9619 = vsel %vm9618, %v9611, %v9615
    %v9620 = vand.u32 2147483647, %v9605
    %vm9621 = vcmp.eq.f32.partialorder %v9620, 8.507059e+37
    %v9622 = vand.u32 %v9605, 2147483648
    %v9623 = vor.u32 1.1754944e-38, %v9622
    %v9624 = vsel %vm9621, %v9623, %v9619
    %v9625 = vmul.f32 1.0, %v9624
    %v9626 = vrcp.pop %v9606
    %v9627 = vmul.f32 %v9606, %v9626
    %v9628 = vsub.f32 1.0, %v9627
    %v9629 = vmul.f32 %v9626, %v9628
    %v9630 = vadd.f32 %v9626, %v9629
    %vm9631 = vweird.f32 %v9606
    %vm9632 = vweird.f32 %v9626
    %vm9633 = vmor %vm9631, %vm9632
    %v9634 = vsel %vm9633, %v9626, %v9630
    %v9635 = vand.u32 2147483647, %v9606
    %vm9636 = vcmp.eq.f32.partialorder %v9635, 8.507059e+37
    %v9637 = vand.u32 %v9606, 2147483648
    %v9638 = vor.u32 1.1754944e-38, %v9637
    %v9639 = vsel %vm9636, %v9638, %v9634
    %v9640 = vmul.f32 1.0, %v9639
    %v9641 = vrcp.pop %v9607
    %v9642 = vmul.f32 %v9607, %v9641
    %v9643 = vsub.f32 1.0, %v9642
    %v9644 = vmul.f32 %v9641, %v9643
    %v9645 = vadd.f32 %v9641, %v9644
    %vm9646 = vweird.f32 %v9607
    %vm9647 = vweird.f32 %v9641
    %vm9648 = vmor %vm9646, %vm9647
    %v9649 = vsel %vm9648, %v9641, %v9645
    %v9650 = vand.u32 2147483647, %v9607
    %vm9651 = vcmp.eq.f32.partialorder %v9650, 8.507059e+37
    %v9652 = vand.u32 %v9607, 2147483648
    %v9653 = vor.u32 1.1754944e-38, %v9652
    %v9654 = vsel %vm9651, %v9653, %v9649
    %v9655 = vmul.f32 1.0, %v9654
    %v9656 = vrcp.pop %v9608
    %v9657 = vmul.f32 %v9608, %v9656
    %v9658 = vsub.f32 1.0, %v9657
    %v9659 = vmul.f32 %v9656, %v9658
    %v9660 = vadd.f32 %v9656, %v9659
    %vm9661 = vweird.f32 %v9608
    %vm9662 = vweird.f32 %v9656
    %vm9663 = vmor %vm9661, %vm9662
    %v9664 = vsel %vm9663, %v9656, %v9660
    %v9665 = vand.u32 2147483647, %v9608
    %vm9666 = vcmp.eq.f32.partialorder %v9665, 8.507059e+37
    %v9667 = vand.u32 %v9608, 2147483648
    %v9668 = vor.u32 1.1754944e-38, %v9667
    %v9669 = vsel %vm9666, %v9668, %v9664
    %v9670 = vmul.f32 1.0, %v9669
    %v9671 = vrcp.pop %v9609
    %v9672 = vmul.f32 %v9609, %v9671
    %v9673 = vsub.f32 1.0, %v9672
    %v9674 = vmul.f32 %v9671, %v9673
    %v9675 = vadd.f32 %v9671, %v9674
    %vm9676 = vweird.f32 %v9609
    %vm9677 = vweird.f32 %v9671
    %vm9678 = vmor %vm9676, %vm9677
    %v9679 = vsel %vm9678, %v9671, %v9675
    %v9680 = vand.u32 2147483647, %v9609
    %vm9681 = vcmp.eq.f32.partialorder %v9680, 8.507059e+37
    %v9682 = vand.u32 %v9609, 2147483648
    %v9683 = vor.u32 1.1754944e-38, %v9682
    %v9684 = vsel %vm9681, %v9683, %v9679
    %v9685 = vmul.f32 1.0, %v9684
    %v9686 = vrcp.pop %v9610
    %v9687 = vmul.f32 %v9610, %v9686
    %v9688 = vsub.f32 1.0, %v9687
    %v9689 = vmul.f32 %v9686, %v9688
    %v9690 = vadd.f32 %v9686, %v9689
    %vm9691 = vweird.f32 %v9610
    %vm9692 = vweird.f32 %v9686
    %vm9693 = vmor %vm9691, %vm9692
    %v9694 = vsel %vm9693, %v9686, %v9690
    %v9695 = vand.u32 2147483647, %v9610
    %vm9696 = vcmp.eq.f32.partialorder %v9695, 8.507059e+37
    %v9697 = vand.u32 %v9610, 2147483648
    %v9698 = vor.u32 1.1754944e-38, %v9697
    %v9699 = vsel %vm9696, %v9698, %v9694
    %v9700 = vmul.f32 1.0, %v9699
    %v9701 = vtanh.pop %v9585
    %v9702 = vtanh.pop %v9586
    %v9705 = vrot.slane %v8521, 7
    %v9706 = vrot.slane %v8522, 7
    %v9709 = vmul.f32 %v9655, %v9705
    %v9710 = vmul.f32 %v9670, %v9706
    %v9711 = vmul.f32 %v9625, %v9701
    %v9712 = vmul.f32 %v9640, %v9702
    %v9713 = vadd.f32 %v9709, %v9711
    %v9714 = vadd.f32 %v9710, %v9712
    %v9715 = vtanh.pop %v9713
    %v9716 = vtanh.pop %v9714
    %v9717 = vmul.f32 %v9685, %v9715
    %v9718 = vmul.f32 %v9700, %v9716
    %vm9719 = vcmask 1047559
    %v9720 = vsel %vm9719, %v9717, 0.0
    %v9721 = vsel %vm9719, %v9718, 0.0
    %v9722 = vadd.f32 %v9720, %v9721
    %9723 = vadd.xlane.f32.xlu0 %v9722
    %v9724 = vpop.xlane.xlu0 %9723
    %v9725 = vmul.f32 %v9724, %v1365
    %v9726 = vsub.f32 %v9717, %v9725
    %v9727 = vsub.f32 %v9718, %v9725
    %v9728 = vmul.f32 %v9726, %v9726
    %v9729 = vmul.f32 %v9727, %v9727
    %v9730 = vsel %vm9719, %v9728, 0.0
    %v9731 = vsel %vm9719, %v9729, 0.0
    %v9732 = vadd.f32 %v9730, %v9731
    %9733 = vadd.xlane.f32.xlu0 %v9732
    %v9734 = vpop.xlane.xlu0 %9733
    %v9735 = vmul.f32 %v9734, %v1365
    %v9736 = vadd.f32 %v9735, 1e-05
    %v9737 = vrsqrt.pop %v9736
    %v9738 = vmul.f32 %v9737, %v9736
    %v9739 = vmul.f32 %v9738, %v9737
    %v9740 = vmul.f32 0.5, %v9739
    %v9741 = vsub.f32 1.5, %v9740
    %v9742 = vmul.f32 %v9737, %v9741
    %vm9743 = vweird.f32 %v9736
    %vm9744 = vweird.f32 %v9737
    %vm9745 = vmor %vm9743, %vm9744
    %v9746 = vsel %vm9745, %v9737, %v9742
    %v9747 = vmul.f32 %v9726, %v9746
    %v9748 = vmul.f32 %v9727, %v9746
    %v9749 = vmul.f32 %v9747, %v1391
    %v9750 = vmul.f32 %v9748, %v1392
    %v9751 = vadd.f32 %v9749, %v1398
    %v9752 = vadd.f32 %v9750, %v1399
    %9755 = vst [vmem:[#allocation1] sm:$0xff] %v9751
    %9756 = vst [vmem:[#allocation1 + $0x9] sm:$0xff] %v9752
    %s9757 = scalar_lea.vmem [#allocation1], 7
    %v9758 = vld [vmem:[%s9757] ss:$9 sm:$0xff]
    %s9760 = scalar_lea.vmem [#allocation2], 7
    %9761 = vst.msk [vmem:[%s9760] ss:$8 sm:$0x3] %vm1412, %v9758
    %9762 = vst.msk [vmem:[%s9760] ss:$8 sm:$0x0] %vm1412, %v9758
    %v9763 = vld [vmem:[#allocation2] sm:$0xff]
    %v9764 = vld [vmem:[#allocation2 + $0x8] sm:$0xff]
    %v9765 = vpack.c.bf16 %v9763, %v9763
    %v9766 = vpack.c.bf16 %v9764, %v9764
    %v9767 = vld [vmem:[#allocation7] sm:$0xff]
    %v9768 = vld [vmem:[#allocation7 + $0x8] sm:$0xff]
    %v9769 = vld [vmem:[#allocation7 + $0x10] sm:$0xff]
    %v9770 = vld [vmem:[#allocation7 + $0x18] sm:$0xff]
    %v9771 = vld [vmem:[#allocation7 + $0x20] sm:$0xff]
    %v9772 = vld [vmem:[#allocation7 + $0x28] sm:$0xff]
    %v9773 = vld [vmem:[#allocation7 + $0x30] sm:$0xff]
    %v9774 = vld [vmem:[#allocation7 + $0x38] sm:$0xff]
    %v9775 = vld [vmem:[#allocation7 + $0x40] sm:$0xff]
    %v9776 = vld [vmem:[#allocation7 + $0x48] sm:$0xff]
    %v9777 = vld [vmem:[#allocation7 + $0x50] sm:$0xff]
    %v9778 = vld [vmem:[#allocation7 + $0x58] sm:$0xff]
    %v9779 = vld [vmem:[#allocation7 + $0x60] sm:$0xff]
    %v9780 = vld [vmem:[#allocation7 + $0x68] sm:$0xff]
    %v9781 = vld [vmem:[#allocation7 + $0x70] sm:$0xff]
    %v9782 = vld [vmem:[#allocation7 + $0x78] sm:$0xff]
    %v9783 = vld [vmem:[#allocation7 + $0x80] sm:$0xff]
    %v9784 = vld [vmem:[#allocation7 + $0x88] sm:$0xff]
    %v9785 = vld [vmem:[#allocation7 + $0x90] sm:$0xff]
    %v9786 = vld [vmem:[#allocation7 + $0x98] sm:$0xff]
    %v9787 = vld [vmem:[#allocation7 + $0xa0] sm:$0xff]
    %v9788 = vld [vmem:[#allocation7 + $0xa8] sm:$0xff]
    %v9789 = vld [vmem:[#allocation7 + $0xb0] sm:$0xff]
    %v9790 = vld [vmem:[#allocation7 + $0xb8] sm:$0xff]
    %v9791 = vld [vmem:[#allocation7 + $0xc0] sm:$0xff]
    %v9792 = vld [vmem:[#allocation7 + $0xc8] sm:$0xff]
    %v9793 = vld [vmem:[#allocation7 + $0xd0] sm:$0xff]
    %v9794 = vld [vmem:[#allocation7 + $0xd8] sm:$0xff]
    %v9795 = vld [vmem:[#allocation7 + $0xe0] sm:$0xff]
    %v9796 = vld [vmem:[#allocation7 + $0xe8] sm:$0xff]
    %v9797 = vld [vmem:[#allocation7 + $0xf0] sm:$0xff]
    %v9798 = vld [vmem:[#allocation7 + $0xf8] sm:$0xff]
    %v9799 = vld [vmem:[%s8] sm:$0x3]
    %v9801 = vperm.slane %v9799, 0
    %v9802 = vperm.slane %v9799, 1
    %v9837 = vunpack.c.l.b16 %v9767
    %v9838 = vunpack.c.h.b16 %v9767
    %v9839 = vunpack.c.l.b16 %v9768
    %v9840 = vunpack.c.h.b16 %v9768
    %v9841 = vunpack.c.l.b16 %v9769
    %v9842 = vunpack.c.h.b16 %v9769
    %v9843 = vunpack.c.l.b16 %v9770
    %v9844 = vunpack.c.h.b16 %v9770
    %v9845 = vunpack.c.l.b16 %v9771
    %v9846 = vunpack.c.h.b16 %v9771
    %v9847 = vunpack.c.l.b16 %v9772
    %v9848 = vunpack.c.h.b16 %v9772
    %v9849 = vunpack.c.l.b16 %v9773
    %v9850 = vunpack.c.h.b16 %v9773
    %v9851 = vunpack.c.l.b16 %v9774
    %v9852 = vunpack.c.h.b16 %v9774
    %v9853 = vunpack.c.l.b16 %v9775
    %v9854 = vunpack.c.h.b16 %v9775
    %v9855 = vunpack.c.l.b16 %v9776
    %v9856 = vunpack.c.h.b16 %v9776
    %v9857 = vunpack.c.l.b16 %v9777
    %v9858 = vunpack.c.h.b16 %v9777
    %v9859 = vunpack.c.l.b16 %v9778
    %v9860 = vunpack.c.h.b16 %v9778
    %v9861 = vunpack.c.l.b16 %v9779
    %v9862 = vunpack.c.h.b16 %v9779
    %v9863 = vunpack.c.l.b16 %v9780
    %v9864 = vunpack.c.h.b16 %v9780
    %v9865 = vunpack.c.l.b16 %v9781
    %v9866 = vunpack.c.h.b16 %v9781
    %v9867 = vunpack.c.l.b16 %v9782
    %v9868 = vunpack.c.h.b16 %v9782
    %v9869 = vunpack.c.l.b16 %v9783
    %v9870 = vunpack.c.h.b16 %v9783
    %v9871 = vunpack.c.l.b16 %v9784
    %v9872 = vunpack.c.h.b16 %v9784
    %v9873 = vunpack.c.l.b16 %v9785
    %v9874 = vunpack.c.h.b16 %v9785
    %v9875 = vunpack.c.l.b16 %v9786
    %v9876 = vunpack.c.h.b16 %v9786
    %v9877 = vunpack.c.l.b16 %v9787
    %v9878 = vunpack.c.h.b16 %v9787
    %v9879 = vunpack.c.l.b16 %v9788
    %v9880 = vunpack.c.h.b16 %v9788
    %v9881 = vunpack.c.l.b16 %v9789
    %v9882 = vunpack.c.h.b16 %v9789
    %v9883 = vunpack.c.l.b16 %v9790
    %v9884 = vunpack.c.h.b16 %v9790
    %v9885 = vunpack.c.l.b16 %v9791
    %v9886 = vunpack.c.h.b16 %v9791
    %v9887 = vunpack.c.l.b16 %v9792
    %v9888 = vunpack.c.h.b16 %v9792
    %v9889 = vunpack.c.l.b16 %v9793
    %v9890 = vunpack.c.h.b16 %v9793
    %v9891 = vunpack.c.l.b16 %v9794
    %v9892 = vunpack.c.h.b16 %v9794
    %v9893 = vunpack.c.l.b16 %v9795
    %v9894 = vunpack.c.h.b16 %v9795
    %v9895 = vunpack.c.l.b16 %v9796
    %v9896 = vunpack.c.h.b16 %v9796
    %v9897 = vunpack.c.l.b16 %v9797
    %v9898 = vunpack.c.h.b16 %v9797
    %v9899 = vunpack.c.l.b16 %v9798
    %v9900 = vunpack.c.h.b16 %v9798
    %v9901 = vpack.c.b16 %v9839, %v9837
    %v9902 = vpack.c.b16 %v9840, %v9838
    %v9903 = vpack.c.b16 %v9843, %v9841
    %v9904 = vpack.c.b16 %v9844, %v9842
    %v9905 = vpack.c.b16 %v9847, %v9845
    %v9906 = vpack.c.b16 %v9848, %v9846
    %v9907 = vpack.c.b16 %v9851, %v9849
    %v9908 = vpack.c.b16 %v9852, %v9850
    %v9909 = vpack.c.b16 %v9855, %v9853
    %v9910 = vpack.c.b16 %v9856, %v9854
    %v9911 = vpack.c.b16 %v9859, %v9857
    %v9912 = vpack.c.b16 %v9860, %v9858
    %v9913 = vpack.c.b16 %v9863, %v9861
    %v9914 = vpack.c.b16 %v9864, %v9862
    %v9915 = vpack.c.b16 %v9867, %v9865
    %v9916 = vpack.c.b16 %v9868, %v9866
    %v9917 = vpack.c.b16 %v9871, %v9869
    %v9918 = vpack.c.b16 %v9872, %v9870
    %v9919 = vpack.c.b16 %v9875, %v9873
    %v9920 = vpack.c.b16 %v9876, %v9874
    %v9921 = vpack.c.b16 %v9879, %v9877
    %v9922 = vpack.c.b16 %v9880, %v9878
    %v9923 = vpack.c.b16 %v9883, %v9881
    %v9924 = vpack.c.b16 %v9884, %v9882
    %v9925 = vpack.c.b16 %v9887, %v9885
    %v9926 = vpack.c.b16 %v9888, %v9886
    %v9927 = vpack.c.b16 %v9891, %v9889
    %v9928 = vpack.c.b16 %v9892, %v9890
    %v9929 = vpack.c.b16 %v9895, %v9893
    %v9930 = vpack.c.b16 %v9896, %v9894
    %v9931 = vpack.c.b16 %v9899, %v9897
    %v9932 = vpack.c.b16 %v9900, %v9898
    %9965 = vmatpush.bf16.msra.mxu0 %v9915
    %9966 = vmatpush.bf16.msra.mxu0 %v9913
    %9967 = vmatpush.bf16.msra.mxu0 %v9911
    %9968 = vmatpush.bf16.msra.mxu0 %v9909
    %9969 = vmatpush.bf16.msra.mxu0 %v9907
    %9970 = vmatpush.bf16.msra.mxu0 %v9905
    %9971 = vmatpush.bf16.msra.mxu0 %v9903
    %9972 = vmatpush.bf16.msra.mxu0 %v9901
    %9973 = vmatmul.bf16.gmra.mxu0 %v9765
    %v9974 = vpop.f32.mrf.mxu0
    %v9975 = vadd.f32 %v9801, %v9974
    %v9976 = vpop.f32.mrf.mxu0
    %9977 = vdwg.mxu0
    %9978 = vmatpush.bf16.msra.mxu0 %v9931
    %9979 = vmatpush.bf16.msra.mxu0 %v9929
    %9980 = vmatpush.bf16.msra.mxu0 %v9927
    %9981 = vmatpush.bf16.msra.mxu0 %v9925
    %9982 = vmatpush.bf16.msra.mxu0 %v9923
    %9983 = vmatpush.bf16.msra.mxu0 %v9921
    %9984 = vmatpush.bf16.msra.mxu0 %v9919
    %9985 = vmatpush.bf16.msra.mxu0 %v9917
    %9986 = vmatmul.bf16.gmra.mxu0 %v9766
    %v9987 = vpop.f32.mrf.mxu0
    %v9988 = vadd.f32 %v9975, %v9987
    %v9989 = vpop.f32.mrf.mxu0
    %9990 = vdwg.mxu0
    %9991 = vmatpush.bf16.msra.mxu0 %v9916
    %9992 = vmatpush.bf16.msra.mxu0 %v9914
    %9993 = vmatpush.bf16.msra.mxu0 %v9912
    %9994 = vmatpush.bf16.msra.mxu0 %v9910
    %9995 = vmatpush.bf16.msra.mxu0 %v9908
    %9996 = vmatpush.bf16.msra.mxu0 %v9906
    %9997 = vmatpush.bf16.msra.mxu0 %v9904
    %9998 = vmatpush.bf16.msra.mxu0 %v9902
    %9999 = vmatmul.bf16.gmra.mxu0 %v9765
    %v10000 = vpop.f32.mrf.mxu0
    %v10001 = vadd.f32 %v9802, %v10000
    %v10002 = vpop.f32.mrf.mxu0
    %10003 = vdwg.mxu0
    %10004 = vmatpush.bf16.msra.mxu0 %v9932
    %10005 = vmatpush.bf16.msra.mxu0 %v9930
    %10006 = vmatpush.bf16.msra.mxu0 %v9928
    %10007 = vmatpush.bf16.msra.mxu0 %v9926
    %10008 = vmatpush.bf16.msra.mxu0 %v9924
    %10009 = vmatpush.bf16.msra.mxu0 %v9922
    %10010 = vmatpush.bf16.msra.mxu0 %v9920
    %10011 = vmatpush.bf16.msra.mxu0 %v9918
    %10012 = vmatmul.bf16.gmra.mxu0 %v9766
    %v10013 = vpop.f32.mrf.mxu0
    %v10014 = vadd.f32 %v10001, %v10013
    %v10015 = vpop.f32.mrf.mxu0
    %10016 = vdwg.mxu0
    %v10017 = vld [vmem:[%s7] sm:$0xff]
    %v10018 = vld [vmem:[%s7 + $0x8] sm:$0xff]
    %v10019 = vld [vmem:[%s7 + $0x10] sm:$0xff]
    %v10020 = vld [vmem:[%s7 + $0x18] sm:$0xff]
    %v10021 = vld [vmem:[%s7 + $0x20] sm:$0xff]
    %v10022 = vld [vmem:[%s7 + $0x28] sm:$0xff]
    %v10023 = vld [vmem:[%s7 + $0x30] sm:$0xff]
    %v10024 = vld [vmem:[%s7 + $0x38] sm:$0xff]
    %v10025 = vld [vmem:[%s9] sm:$0x1]
    %v10026 = vld [vmem:[%s10] sm:$0x1]
    %v10035 = vunpack.c.l.b16 %v10017
    %v10036 = vunpack.c.h.b16 %v10017
    %v10037 = vunpack.c.l.b16 %v10018
    %v10038 = vunpack.c.h.b16 %v10018
    %v10039 = vunpack.c.l.b16 %v10019
    %v10040 = vunpack.c.h.b16 %v10019
    %v10041 = vunpack.c.l.b16 %v10020
    %v10042 = vunpack.c.h.b16 %v10020
    %v10043 = vunpack.c.l.b16 %v10021
    %v10044 = vunpack.c.h.b16 %v10021
    %v10045 = vunpack.c.l.b16 %v10022
    %v10046 = vunpack.c.h.b16 %v10022
    %v10047 = vunpack.c.l.b16 %v10023
    %v10048 = vunpack.c.h.b16 %v10023
    %v10049 = vunpack.c.l.b16 %v10024
    %v10050 = vunpack.c.h.b16 %v10024
    %v10051 = vpack.c.b16 %v10037, %v10035
    %v10052 = vpack.c.b16 %v10038, %v10036
    %v10053 = vpack.c.b16 %v10041, %v10039
    %v10054 = vpack.c.b16 %v10042, %v10040
    %v10055 = vpack.c.b16 %v10045, %v10043
    %v10056 = vpack.c.b16 %v10046, %v10044
    %v10057 = vpack.c.b16 %v10049, %v10047
    %v10058 = vpack.c.b16 %v10050, %v10048
    %vm10067 = vcmask 523264
    %v10069 = vsel %vm10067, 0, 0
    %10071 = vmatpush.bf16.msra.mxu0 0
    %10072 = vmatpush.bf16.msra.mxu0 0
    %10073 = vmatpush.bf16.msra.mxu0 0
    %10074 = vmatpush.bf16.msra.mxu0 0
    %10075 = vmatpush.bf16.msra.mxu0 %v10057
    %10076 = vmatpush.bf16.msra.mxu0 %v10055
    %10077 = vmatpush.bf16.msra.mxu0 %v10053
    %10078 = vmatpush.bf16.msra.mxu0 %v10051
    %10079 = vmatmul.bf16.gmra.mxu0 %v10069
    %v10080 = vpop.f32.mrf.mxu0
    %v10081 = vadd.f32 0.0, %v10080
    %v10082 = vpop.f32.mrf.mxu0
    %10083 = vdwg.mxu0
    %10084 = vmatpush.bf16.msra.mxu0 0
    %10085 = vmatpush.bf16.msra.mxu0 0
    %10086 = vmatpush.bf16.msra.mxu0 0
    %10087 = vmatpush.bf16.msra.mxu0 0
    %10088 = vmatpush.bf16.msra.mxu0 %v10058
    %10089 = vmatpush.bf16.msra.mxu0 %v10056
    %10090 = vmatpush.bf16.msra.mxu0 %v10054
    %10091 = vmatpush.bf16.msra.mxu0 %v10052
    %10092 = vmatmul.bf16.gmra.mxu0 %v10069
    %v10093 = vpop.f32.mrf.mxu0
    %v10094 = vadd.f32 0.0, %v10093
    %v10095 = vpop.f32.mrf.mxu0
    %10096 = vdwg.mxu0
    %v10097 = vadd.f32 %v9988, %v10081
    %v10098 = vadd.f32 %v10014, %v10094
    %v10099 = vxor.u32 %v10097, 2147483648
    %v10100 = vxor.u32 %v10098, 2147483648
    %v10101 = vmul.f32 %v10099, 1.442695
    %v10102 = vpow.pop %v10101
    %v10103 = vmul.f32 %v10100, 1.442695
    %v10104 = vpow.pop %v10103
    %v10105 = vadd.f32 %v10102, 1.0
    %v10106 = vadd.f32 %v10104, 1.0
    %v10107 = vrcp.pop %v10105
    %v10108 = vmul.f32 %v10105, %v10107
    %v10109 = vsub.f32 1.0, %v10108
    %v10110 = vmul.f32 %v10107, %v10109
    %v10111 = vadd.f32 %v10107, %v10110
    %vm10112 = vweird.f32 %v10105
    %vm10113 = vweird.f32 %v10107
    %vm10114 = vmor %vm10112, %vm10113
    %v10115 = vsel %vm10114, %v10107, %v10111
    %v10116 = vand.u32 2147483647, %v10105
    %vm10117 = vcmp.eq.f32.partialorder %v10116, 8.507059e+37
    %v10118 = vand.u32 %v10105, 2147483648
    %v10119 = vor.u32 1.1754944e-38, %v10118
    %v10120 = vsel %vm10117, %v10119, %v10115
    %v10121 = vmul.f32 1.0, %v10120
    %v10122 = vrcp.pop %v10106
    %v10123 = vmul.f32 %v10106, %v10122
    %v10124 = vsub.f32 1.0, %v10123
    %v10125 = vmul.f32 %v10122, %v10124
    %v10126 = vadd.f32 %v10122, %v10125
    %vm10127 = vweird.f32 %v10106
    %vm10128 = vweird.f32 %v10122
    %vm10129 = vmor %vm10127, %vm10128
    %v10130 = vsel %vm10129, %v10122, %v10126
    %v10131 = vand.u32 2147483647, %v10106
    %vm10132 = vcmp.eq.f32.partialorder %v10131, 8.507059e+37
    %v10133 = vand.u32 %v10106, 2147483648
    %v10134 = vor.u32 1.1754944e-38, %v10133
    %v10135 = vsel %vm10132, %v10134, %v10130
    %v10136 = vmul.f32 1.0, %v10135
    %v10137 = vtanh.pop %v10098
    %v10138 = vmul.f32 %v10121, 0.0
    %10140 = vrot.lane.b32.xlu0 %v10137, 64
    %v10141 = vpop.permute.xlu0 %10140
    %v10143 = vmul.f32 %v10121, %v10141
    %10145 = vrot.lane.b32.xlu0 %v10143, 64
    %v10146 = vpop.permute.xlu0 %10145
    %v10148 = vadd.f32 %v10138, %v10146
    %v10149 = vtanh.pop %v10148
    %10151 = vrot.lane.b32.xlu0 %v10149, 64
    %v10152 = vpop.permute.xlu0 %10151
    %v10154 = vmul.f32 %v10136, %v10152
    %vm10155 = vcmask 516096
    %v10156 = vsel %vm10155, %v10154, 0.0
    %10157 = vadd.xlane.f32.xlu0 %v10156
    %v10158 = vpop.xlane.xlu0 %10157
    %v10159 = vrcp.pop 64.0
    %v10160 = vmul.f32 64.0, %v10159
    %v10161 = vsub.f32 1.0, %v10160
    %v10162 = vmul.f32 %v10159, %v10161
    %v10163 = vadd.f32 %v10159, %v10162
    %vm10164 = vweird.f32 %v10159
    %v10165 = vsel %vm10164, %v10159, %v10163
    %v10166 = vmul.f32 %v10158, %v10165
    %v10167 = vsub.f32 %v10154, %v10166
    %v10168 = vmul.f32 %v10167, %v10167
    %v10169 = vsel %vm10155, %v10168, 0.0
    %10170 = vadd.xlane.f32.xlu0 %v10169
    %v10171 = vpop.xlane.xlu0 %10170
    %v10172 = vmul.f32 %v10171, %v10165
    %v10173 = vadd.f32 %v10172, 1e-05
    %v10174 = vrsqrt.pop %v10173
    %v10175 = vmul.f32 %v10174, %v10173
    %v10176 = vmul.f32 %v10175, %v10174
    %v10177 = vmul.f32 0.5, %v10176
    %v10178 = vsub.f32 1.5, %v10177
    %v10179 = vmul.f32 %v10174, %v10178
    %vm10180 = vweird.f32 %v10173
    %vm10181 = vweird.f32 %v10174
    %vm10182 = vmor %vm10180, %vm10181
    %v10183 = vsel %vm10182, %v10174, %v10179
    %v10184 = vmul.f32 %v10167, %v10183
    %v10185 = vmul.f32 %v10184, %v10025
    %v10186 = vadd.f32 %v10185, %v10026
    %10187 = vst.msk [vmem:[#allocation3] sm:$0x1] %vm10155, %v10186
    %v10188 = vpack.c.bf16 %v10154, %v10154
    %v10190 = vsel %vm10067, %v10188, 0
    %10192 = vmatpush.bf16.msra.mxu0 0
    %10193 = vmatpush.bf16.msra.mxu0 0
    %10194 = vmatpush.bf16.msra.mxu0 0
    %10195 = vmatpush.bf16.msra.mxu0 0
    %10196 = vmatpush.bf16.msra.mxu0 %v10057
    %10197 = vmatpush.bf16.msra.mxu0 %v10055
    %10198 = vmatpush.bf16.msra.mxu0 %v10053
    %10199 = vmatpush.bf16.msra.mxu0 %v10051
    %10200 = vmatmul.bf16.gmra.mxu0 %v10190
    %v10201 = vpop.f32.mrf.mxu0
    %v10202 = vadd.f32 0.0, %v10201
    %v10203 = vpop.f32.mrf.mxu0
    %10204 = vdwg.mxu0
    %10205 = vmatpush.bf16.msra.mxu0 0
    %10206 = vmatpush.bf16.msra.mxu0 0
    %10207 = vmatpush.bf16.msra.mxu0 0
    %10208 = vmatpush.bf16.msra.mxu0 0
    %10209 = vmatpush.bf16.msra.mxu0 %v10058
    %10210 = vmatpush.bf16.msra.mxu0 %v10056
    %10211 = vmatpush.bf16.msra.mxu0 %v10054
    %10212 = vmatpush.bf16.msra.mxu0 %v10052
    %10213 = vmatmul.bf16.gmra.mxu0 %v10190
    %v10214 = vpop.f32.mrf.mxu0
    %v10215 = vadd.f32 0.0, %v10214
    %v10216 = vpop.f32.mrf.mxu0
    %10217 = vdwg.mxu0
    %v10220 = vrot.slane %v10202, 7
    %v10221 = vrot.slane %v10215, 7
    %v10224 = vadd.f32 %v9988, %v10220
    %v10225 = vadd.f32 %v10014, %v10221
    %v10226 = vxor.u32 %v10224, 2147483648
    %v10227 = vxor.u32 %v10225, 2147483648
    %v10228 = vmul.f32 %v10226, 1.442695
    %v10229 = vpow.pop %v10228
    %v10230 = vmul.f32 %v10227, 1.442695
    %v10231 = vpow.pop %v10230
    %v10232 = vadd.f32 %v10229, 1.0
    %v10233 = vadd.f32 %v10231, 1.0
    %v10234 = vrcp.pop %v10232
    %v10235 = vmul.f32 %v10232, %v10234
    %v10236 = vsub.f32 1.0, %v10235
    %v10237 = vmul.f32 %v10234, %v10236
    %v10238 = vadd.f32 %v10234, %v10237
    %vm10239 = vweird.f32 %v10232
    %vm10240 = vweird.f32 %v10234
    %vm10241 = vmor %vm10239, %vm10240
    %v10242 = vsel %vm10241, %v10234, %v10238
    %v10243 = vand.u32 2147483647, %v10232
    %vm10244 = vcmp.eq.f32.partialorder %v10243, 8.507059e+37
    %v10245 = vand.u32 %v10232, 2147483648
    %v10246 = vor.u32 1.1754944e-38, %v10245
    %v10247 = vsel %vm10244, %v10246, %v10242
    %v10248 = vmul.f32 1.0, %v10247
    %v10249 = vrcp.pop %v10233
    %v10250 = vmul.f32 %v10233, %v10249
    %v10251 = vsub.f32 1.0, %v10250
    %v10252 = vmul.f32 %v10249, %v10251
    %v10253 = vadd.f32 %v10249, %v10252
    %vm10254 = vweird.f32 %v10233
    %vm10255 = vweird.f32 %v10249
    %vm10256 = vmor %vm10254, %vm10255
    %v10257 = vsel %vm10256, %v10249, %v10253
    %v10258 = vand.u32 2147483647, %v10233
    %vm10259 = vcmp.eq.f32.partialorder %v10258, 8.507059e+37
    %v10260 = vand.u32 %v10233, 2147483648
    %v10261 = vor.u32 1.1754944e-38, %v10260
    %v10262 = vsel %vm10259, %v10261, %v10257
    %v10263 = vmul.f32 1.0, %v10262
    %v10264 = vtanh.pop %v10225
    %v10266 = vrot.slane %v10148, 7
    %v10268 = vmul.f32 %v10248, %v10266
    %10270 = vrot.lane.b32.xlu0 %v10264, 64
    %v10271 = vpop.permute.xlu0 %10270
    %v10273 = vmul.f32 %v10248, %v10271
    %10275 = vrot.lane.b32.xlu0 %v10273, 64
    %v10276 = vpop.permute.xlu0 %10275
    %v10278 = vadd.f32 %v10268, %v10276
    %v10279 = vtanh.pop %v10278
    %10281 = vrot.lane.b32.xlu0 %v10279, 64
    %v10282 = vpop.permute.xlu0 %10281
    %v10284 = vmul.f32 %v10263, %v10282
    %vm10285 = vcmask 517121
    %v10286 = vsel %vm10285, %v10284, 0.0
    %10287 = vadd.xlane.f32.xlu0 %v10286
    %v10288 = vpop.xlane.xlu0 %10287
    %v10289 = vmul.f32 %v10288, %v10165
    %v10290 = vsub.f32 %v10284, %v10289
    %v10291 = vmul.f32 %v10290, %v10290
    %v10292 = vsel %vm10285, %v10291, 0.0
    %10293 = vadd.xlane.f32.xlu0 %v10292
    %v10294 = vpop.xlane.xlu0 %10293
    %v10295 = vmul.f32 %v10294, %v10165
    %v10296 = vadd.f32 %v10295, 1e-05
    %v10297 = vrsqrt.pop %v10296
    %v10298 = vmul.f32 %v10297, %v10296
    %v10299 = vmul.f32 %v10298, %v10297
    %v10300 = vmul.f32 0.5, %v10299
    %v10301 = vsub.f32 1.5, %v10300
    %v10302 = vmul.f32 %v10297, %v10301
    %vm10303 = vweird.f32 %v10296
    %vm10304 = vweird.f32 %v10297
    %vm10305 = vmor %vm10303, %vm10304
    %v10306 = vsel %vm10305, %v10297, %v10302
    %v10307 = vmul.f32 %v10290, %v10306
    %v10309 = vperm.slane %v10025, 0
    %v10311 = vmul.f32 %v10307, %v10309
    %v10313 = vperm.slane %v10026, 0
    %v10315 = vadd.f32 %v10311, %v10313
    %10316 = vst.msk [vmem:[#allocation3] sm:$0x2] %vm10285, %v10315
    %v10317 = vpack.c.bf16 %v10284, %v10284
    %v10319 = vshrl.u32 %v10317, 16
    %v10322 = vsel %vm10067, %v10319, 0
    %10324 = vmatpush.bf16.msra.mxu0 0
    %10325 = vmatpush.bf16.msra.mxu0 0
    %10326 = vmatpush.bf16.msra.mxu0 0
    %10327 = vmatpush.bf16.msra.mxu0 0
    %10328 = vmatpush.bf16.msra.mxu0 %v10057
    %10329 = vmatpush.bf16.msra.mxu0 %v10055
    %10330 = vmatpush.bf16.msra.mxu0 %v10053
    %10331 = vmatpush.bf16.msra.mxu0 %v10051
    %10332 = vmatmul.bf16.gmra.mxu0 %v10322
    %v10333 = vpop.f32.mrf.mxu0
    %v10334 = vadd.f32 0.0, %v10333
    %v10335 = vpop.f32.mrf.mxu0
    %10336 = vdwg.mxu0
    %10337 = vmatpush.bf16.msra.mxu0 0
    %10338 = vmatpush.bf16.msra.mxu0 0
    %10339 = vmatpush.bf16.msra.mxu0 0
    %10340 = vmatpush.bf16.msra.mxu0 0
    %10341 = vmatpush.bf16.msra.mxu0 %v10058
    %10342 = vmatpush.bf16.msra.mxu0 %v10056
    %10343 = vmatpush.bf16.msra.mxu0 %v10054
    %10344 = vmatpush.bf16.msra.mxu0 %v10052
    %10345 = vmatmul.bf16.gmra.mxu0 %v10322
    %v10346 = vpop.f32.mrf.mxu0
    %v10347 = vadd.f32 0.0, %v10346
    %v10348 = vpop.f32.mrf.mxu0
    %10349 = vdwg.mxu0
    %v10352 = vrot.slane %v10334, 6
    %v10353 = vrot.slane %v10347, 6
    %v10356 = vadd.f32 %v9988, %v10352
    %v10357 = vadd.f32 %v10014, %v10353
    %v10358 = vxor.u32 %v10356, 2147483648
    %v10359 = vxor.u32 %v10357, 2147483648
    %v10360 = vmul.f32 %v10358, 1.442695
    %v10361 = vpow.pop %v10360
    %v10362 = vmul.f32 %v10359, 1.442695
    %v10363 = vpow.pop %v10362
    %v10364 = vadd.f32 %v10361, 1.0
    %v10365 = vadd.f32 %v10363, 1.0
    %v10366 = vrcp.pop %v10364
    %v10367 = vmul.f32 %v10364, %v10366
    %v10368 = vsub.f32 1.0, %v10367
    %v10369 = vmul.f32 %v10366, %v10368
    %v10370 = vadd.f32 %v10366, %v10369
    %vm10371 = vweird.f32 %v10364
    %vm10372 = vweird.f32 %v10366
    %vm10373 = vmor %vm10371, %vm10372
    %v10374 = vsel %vm10373, %v10366, %v10370
    %v10375 = vand.u32 2147483647, %v10364
    %vm10376 = vcmp.eq.f32.partialorder %v10375, 8.507059e+37
    %v10377 = vand.u32 %v10364, 2147483648
    %v10378 = vor.u32 1.1754944e-38, %v10377
    %v10379 = vsel %vm10376, %v10378, %v10374
    %v10380 = vmul.f32 1.0, %v10379
    %v10381 = vrcp.pop %v10365
    %v10382 = vmul.f32 %v10365, %v10381
    %v10383 = vsub.f32 1.0, %v10382
    %v10384 = vmul.f32 %v10381, %v10383
    %v10385 = vadd.f32 %v10381, %v10384
    %vm10386 = vweird.f32 %v10365
    %vm10387 = vweird.f32 %v10381
    %vm10388 = vmor %vm10386, %vm10387
    %v10389 = vsel %vm10388, %v10381, %v10385
    %v10390 = vand.u32 2147483647, %v10365
    %vm10391 = vcmp.eq.f32.partialorder %v10390, 8.507059e+37
    %v10392 = vand.u32 %v10365, 2147483648
    %v10393 = vor.u32 1.1754944e-38, %v10392
    %v10394 = vsel %vm10391, %v10393, %v10389
    %v10395 = vmul.f32 1.0, %v10394
    %v10396 = vtanh.pop %v10357
    %v10398 = vrot.slane %v10278, 7
    %v10400 = vmul.f32 %v10380, %v10398
    %10402 = vrot.lane.b32.xlu0 %v10396, 64
    %v10403 = vpop.permute.xlu0 %10402
    %v10405 = vmul.f32 %v10380, %v10403
    %10407 = vrot.lane.b32.xlu0 %v10405, 64
    %v10408 = vpop.permute.xlu0 %10407
    %v10410 = vadd.f32 %v10400, %v10408
    %v10411 = vtanh.pop %v10410
    %10413 = vrot.lane.b32.xlu0 %v10411, 64
    %v10414 = vpop.permute.xlu0 %10413
    %v10416 = vmul.f32 %v10395, %v10414
    %vm10417 = vcmask 518146
    %v10418 = vsel %vm10417, %v10416, 0.0
    %10419 = vadd.xlane.f32.xlu0 %v10418
    %v10420 = vpop.xlane.xlu0 %10419
    %v10421 = vmul.f32 %v10420, %v10165
    %v10422 = vsub.f32 %v10416, %v10421
    %v10423 = vmul.f32 %v10422, %v10422
    %v10424 = vsel %vm10417, %v10423, 0.0
    %10425 = vadd.xlane.f32.xlu0 %v10424
    %v10426 = vpop.xlane.xlu0 %10425
    %v10427 = vmul.f32 %v10426, %v10165
    %v10428 = vadd.f32 %v10427, 1e-05
    %v10429 = vrsqrt.pop %v10428
    %v10430 = vmul.f32 %v10429, %v10428
    %v10431 = vmul.f32 %v10430, %v10429
    %v10432 = vmul.f32 0.5, %v10431
    %v10433 = vsub.f32 1.5, %v10432
    %v10434 = vmul.f32 %v10429, %v10433
    %vm10435 = vweird.f32 %v10428
    %vm10436 = vweird.f32 %v10429
    %vm10437 = vmor %vm10435, %vm10436
    %v10438 = vsel %vm10437, %v10429, %v10434
    %v10439 = vmul.f32 %v10422, %v10438
    %v10440 = vmul.f32 %v10439, %v10309
    %v10441 = vadd.f32 %v10440, %v10313
    %10442 = vst.msk [vmem:[#allocation3] sm:$0x4] %vm10417, %v10441
    %v10443 = vpack.c.bf16 %v10416, %v10416
    %v10445 = vrot.slane %v10443, 1
    %v10447 = vsel %vm10067, %v10445, 0
    %10449 = vmatpush.bf16.msra.mxu0 0
    %10450 = vmatpush.bf16.msra.mxu0 0
    %10451 = vmatpush.bf16.msra.mxu0 0
    %10452 = vmatpush.bf16.msra.mxu0 0
    %10453 = vmatpush.bf16.msra.mxu0 %v10057
    %10454 = vmatpush.bf16.msra.mxu0 %v10055
    %10455 = vmatpush.bf16.msra.mxu0 %v10053
    %10456 = vmatpush.bf16.msra.mxu0 %v10051
    %10457 = vmatmul.bf16.gmra.mxu0 %v10447
    %v10458 = vpop.f32.mrf.mxu0
    %v10459 = vadd.f32 0.0, %v10458
    %v10460 = vpop.f32.mrf.mxu0
    %10461 = vdwg.mxu0
    %10462 = vmatpush.bf16.msra.mxu0 0
    %10463 = vmatpush.bf16.msra.mxu0 0
    %10464 = vmatpush.bf16.msra.mxu0 0
    %10465 = vmatpush.bf16.msra.mxu0 0
    %10466 = vmatpush.bf16.msra.mxu0 %v10058
    %10467 = vmatpush.bf16.msra.mxu0 %v10056
    %10468 = vmatpush.bf16.msra.mxu0 %v10054
    %10469 = vmatpush.bf16.msra.mxu0 %v10052
    %10470 = vmatmul.bf16.gmra.mxu0 %v10447
    %v10471 = vpop.f32.mrf.mxu0
    %v10472 = vadd.f32 0.0, %v10471
    %v10473 = vpop.f32.mrf.mxu0
    %10474 = vdwg.mxu0
    %v10477 = vrot.slane %v10459, 5
    %v10478 = vrot.slane %v10472, 5
    %v10481 = vadd.f32 %v9988, %v10477
    %v10482 = vadd.f32 %v10014, %v10478
    %v10483 = vxor.u32 %v10481, 2147483648
    %v10484 = vxor.u32 %v10482, 2147483648
    %v10485 = vmul.f32 %v10483, 1.442695
    %v10486 = vpow.pop %v10485
    %v10487 = vmul.f32 %v10484, 1.442695
    %v10488 = vpow.pop %v10487
    %v10489 = vadd.f32 %v10486, 1.0
    %v10490 = vadd.f32 %v10488, 1.0
    %v10491 = vrcp.pop %v10489
    %v10492 = vmul.f32 %v10489, %v10491
    %v10493 = vsub.f32 1.0, %v10492
    %v10494 = vmul.f32 %v10491, %v10493
    %v10495 = vadd.f32 %v10491, %v10494
    %vm10496 = vweird.f32 %v10489
    %vm10497 = vweird.f32 %v10491
    %vm10498 = vmor %vm10496, %vm10497
    %v10499 = vsel %vm10498, %v10491, %v10495
    %v10500 = vand.u32 2147483647, %v10489
    %vm10501 = vcmp.eq.f32.partialorder %v10500, 8.507059e+37
    %v10502 = vand.u32 %v10489, 2147483648
    %v10503 = vor.u32 1.1754944e-38, %v10502
    %v10504 = vsel %vm10501, %v10503, %v10499
    %v10505 = vmul.f32 1.0, %v10504
    %v10506 = vrcp.pop %v10490
    %v10507 = vmul.f32 %v10490, %v10506
    %v10508 = vsub.f32 1.0, %v10507
    %v10509 = vmul.f32 %v10506, %v10508
    %v10510 = vadd.f32 %v10506, %v10509
    %vm10511 = vweird.f32 %v10490
    %vm10512 = vweird.f32 %v10506
    %vm10513 = vmor %vm10511, %vm10512
    %v10514 = vsel %vm10513, %v10506, %v10510
    %v10515 = vand.u32 2147483647, %v10490
    %vm10516 = vcmp.eq.f32.partialorder %v10515, 8.507059e+37
    %v10517 = vand.u32 %v10490, 2147483648
    %v10518 = vor.u32 1.1754944e-38, %v10517
    %v10519 = vsel %vm10516, %v10518, %v10514
    %v10520 = vmul.f32 1.0, %v10519
    %v10521 = vtanh.pop %v10482
    %v10523 = vrot.slane %v10410, 7
    %v10525 = vmul.f32 %v10505, %v10523
    %10527 = vrot.lane.b32.xlu0 %v10521, 64
    %v10528 = vpop.permute.xlu0 %10527
    %v10530 = vmul.f32 %v10505, %v10528
    %10532 = vrot.lane.b32.xlu0 %v10530, 64
    %v10533 = vpop.permute.xlu0 %10532
    %v10535 = vadd.f32 %v10525, %v10533
    %v10536 = vtanh.pop %v10535
    %10538 = vrot.lane.b32.xlu0 %v10536, 64
    %v10539 = vpop.permute.xlu0 %10538
    %v10541 = vmul.f32 %v10520, %v10539
    %vm10542 = vcmask 519171
    %v10543 = vsel %vm10542, %v10541, 0.0
    %10544 = vadd.xlane.f32.xlu0 %v10543
    %v10545 = vpop.xlane.xlu0 %10544
    %v10546 = vmul.f32 %v10545, %v10165
    %v10547 = vsub.f32 %v10541, %v10546
    %v10548 = vmul.f32 %v10547, %v10547
    %v10549 = vsel %vm10542, %v10548, 0.0
    %10550 = vadd.xlane.f32.xlu0 %v10549
    %v10551 = vpop.xlane.xlu0 %10550
    %v10552 = vmul.f32 %v10551, %v10165
    %v10553 = vadd.f32 %v10552, 1e-05
    %v10554 = vrsqrt.pop %v10553
    %v10555 = vmul.f32 %v10554, %v10553
    %v10556 = vmul.f32 %v10555, %v10554
    %v10557 = vmul.f32 0.5, %v10556
    %v10558 = vsub.f32 1.5, %v10557
    %v10559 = vmul.f32 %v10554, %v10558
    %vm10560 = vweird.f32 %v10553
    %vm10561 = vweird.f32 %v10554
    %vm10562 = vmor %vm10560, %vm10561
    %v10563 = vsel %vm10562, %v10554, %v10559
    %v10564 = vmul.f32 %v10547, %v10563
    %v10565 = vmul.f32 %v10564, %v10309
    %v10566 = vadd.f32 %v10565, %v10313
    %10567 = vst.msk [vmem:[#allocation3] sm:$0x8] %vm10542, %v10566
    %v10568 = vpack.c.bf16 %v10541, %v10541
    %v10570 = vshrl.u32 %v10568, 16
    %v10572 = vrot.slane %v10570, 1
    %v10574 = vsel %vm10067, %v10572, 0
    %10576 = vmatpush.bf16.msra.mxu0 0
    %10577 = vmatpush.bf16.msra.mxu0 0
    %10578 = vmatpush.bf16.msra.mxu0 0
    %10579 = vmatpush.bf16.msra.mxu0 0
    %10580 = vmatpush.bf16.msra.mxu0 %v10057
    %10581 = vmatpush.bf16.msra.mxu0 %v10055
    %10582 = vmatpush.bf16.msra.mxu0 %v10053
    %10583 = vmatpush.bf16.msra.mxu0 %v10051
    %10584 = vmatmul.bf16.gmra.mxu0 %v10574
    %v10585 = vpop.f32.mrf.mxu0
    %v10586 = vadd.f32 0.0, %v10585
    %v10587 = vpop.f32.mrf.mxu0
    %10588 = vdwg.mxu0
    %10589 = vmatpush.bf16.msra.mxu0 0
    %10590 = vmatpush.bf16.msra.mxu0 0
    %10591 = vmatpush.bf16.msra.mxu0 0
    %10592 = vmatpush.bf16.msra.mxu0 0
    %10593 = vmatpush.bf16.msra.mxu0 %v10058
    %10594 = vmatpush.bf16.msra.mxu0 %v10056
    %10595 = vmatpush.bf16.msra.mxu0 %v10054
    %10596 = vmatpush.bf16.msra.mxu0 %v10052
    %10597 = vmatmul.bf16.gmra.mxu0 %v10574
    %v10598 = vpop.f32.mrf.mxu0
    %v10599 = vadd.f32 0.0, %v10598
    %v10600 = vpop.f32.mrf.mxu0
    %10601 = vdwg.mxu0
    %v10604 = vrot.slane %v10586, 4
    %v10605 = vrot.slane %v10599, 4
    %v10608 = vadd.f32 %v9988, %v10604
    %v10609 = vadd.f32 %v10014, %v10605
    %v10610 = vxor.u32 %v10608, 2147483648
    %v10611 = vxor.u32 %v10609, 2147483648
    %v10612 = vmul.f32 %v10610, 1.442695
    %v10613 = vpow.pop %v10612
    %v10614 = vmul.f32 %v10611, 1.442695
    %v10615 = vpow.pop %v10614
    %v10616 = vadd.f32 %v10613, 1.0
    %v10617 = vadd.f32 %v10615, 1.0
    %v10618 = vrcp.pop %v10616
    %v10619 = vmul.f32 %v10616, %v10618
    %v10620 = vsub.f32 1.0, %v10619
    %v10621 = vmul.f32 %v10618, %v10620
    %v10622 = vadd.f32 %v10618, %v10621
    %vm10623 = vweird.f32 %v10616
    %vm10624 = vweird.f32 %v10618
    %vm10625 = vmor %vm10623, %vm10624
    %v10626 = vsel %vm10625, %v10618, %v10622
    %v10627 = vand.u32 2147483647, %v10616
    %vm10628 = vcmp.eq.f32.partialorder %v10627, 8.507059e+37
    %v10629 = vand.u32 %v10616, 2147483648
    %v10630 = vor.u32 1.1754944e-38, %v10629
    %v10631 = vsel %vm10628, %v10630, %v10626
    %v10632 = vmul.f32 1.0, %v10631
    %v10633 = vrcp.pop %v10617
    %v10634 = vmul.f32 %v10617, %v10633
    %v10635 = vsub.f32 1.0, %v10634
    %v10636 = vmul.f32 %v10633, %v10635
    %v10637 = vadd.f32 %v10633, %v10636
    %vm10638 = vweird.f32 %v10617
    %vm10639 = vweird.f32 %v10633
    %vm10640 = vmor %vm10638, %vm10639
    %v10641 = vsel %vm10640, %v10633, %v10637
    %v10642 = vand.u32 2147483647, %v10617
    %vm10643 = vcmp.eq.f32.partialorder %v10642, 8.507059e+37
    %v10644 = vand.u32 %v10617, 2147483648
    %v10645 = vor.u32 1.1754944e-38, %v10644
    %v10646 = vsel %vm10643, %v10645, %v10641
    %v10647 = vmul.f32 1.0, %v10646
    %v10648 = vtanh.pop %v10609
    %v10650 = vrot.slane %v10535, 7
    %v10652 = vmul.f32 %v10632, %v10650
    %10654 = vrot.lane.b32.xlu0 %v10648, 64
    %v10655 = vpop.permute.xlu0 %10654
    %v10657 = vmul.f32 %v10632, %v10655
    %10659 = vrot.lane.b32.xlu0 %v10657, 64
    %v10660 = vpop.permute.xlu0 %10659
    %v10662 = vadd.f32 %v10652, %v10660
    %v10663 = vtanh.pop %v10662
    %10665 = vrot.lane.b32.xlu0 %v10663, 64
    %v10666 = vpop.permute.xlu0 %10665
    %v10668 = vmul.f32 %v10647, %v10666
    %vm10669 = vcmask 520196
    %v10670 = vsel %vm10669, %v10668, 0.0
    %10671 = vadd.xlane.f32.xlu0 %v10670
    %v10672 = vpop.xlane.xlu0 %10671
    %v10673 = vmul.f32 %v10672, %v10165
    %v10674 = vsub.f32 %v10668, %v10673
    %v10675 = vmul.f32 %v10674, %v10674
    %v10676 = vsel %vm10669, %v10675, 0.0
    %10677 = vadd.xlane.f32.xlu0 %v10676
    %v10678 = vpop.xlane.xlu0 %10677
    %v10679 = vmul.f32 %v10678, %v10165
    %v10680 = vadd.f32 %v10679, 1e-05
    %v10681 = vrsqrt.pop %v10680
    %v10682 = vmul.f32 %v10681, %v10680
    %v10683 = vmul.f32 %v10682, %v10681
    %v10684 = vmul.f32 0.5, %v10683
    %v10685 = vsub.f32 1.5, %v10684
    %v10686 = vmul.f32 %v10681, %v10685
    %vm10687 = vweird.f32 %v10680
    %vm10688 = vweird.f32 %v10681
    %vm10689 = vmor %vm10687, %vm10688
    %v10690 = vsel %vm10689, %v10681, %v10686
    %v10691 = vmul.f32 %v10674, %v10690
    %v10692 = vmul.f32 %v10691, %v10309
    %v10693 = vadd.f32 %v10692, %v10313
    %10694 = vst.msk [vmem:[#allocation3] sm:$0x10] %vm10669, %v10693
    %v10695 = vpack.c.bf16 %v10668, %v10668
    %v10697 = vrot.slane %v10695, 2
    %v10699 = vsel %vm10067, %v10697, 0
    %10701 = vmatpush.bf16.msra.mxu0 0
    %10702 = vmatpush.bf16.msra.mxu0 0
    %10703 = vmatpush.bf16.msra.mxu0 0
    %10704 = vmatpush.bf16.msra.mxu0 0
    %10705 = vmatpush.bf16.msra.mxu0 %v10057
    %10706 = vmatpush.bf16.msra.mxu0 %v10055
    %10707 = vmatpush.bf16.msra.mxu0 %v10053
    %10708 = vmatpush.bf16.msra.mxu0 %v10051
    %10709 = vmatmul.bf16.gmra.mxu0 %v10699
    %v10710 = vpop.f32.mrf.mxu0
    %v10711 = vadd.f32 0.0, %v10710
    %v10712 = vpop.f32.mrf.mxu0
    %10713 = vdwg.mxu0
    %10714 = vmatpush.bf16.msra.mxu0 0
    %10715 = vmatpush.bf16.msra.mxu0 0
    %10716 = vmatpush.bf16.msra.mxu0 0
    %10717 = vmatpush.bf16.msra.mxu0 0
    %10718 = vmatpush.bf16.msra.mxu0 %v10058
    %10719 = vmatpush.bf16.msra.mxu0 %v10056
    %10720 = vmatpush.bf16.msra.mxu0 %v10054
    %10721 = vmatpush.bf16.msra.mxu0 %v10052
    %10722 = vmatmul.bf16.gmra.mxu0 %v10699
    %v10723 = vpop.f32.mrf.mxu0
    %v10724 = vadd.f32 0.0, %v10723
    %v10725 = vpop.f32.mrf.mxu0
    %10726 = vdwg.mxu0
    %v10729 = vrot.slane %v10711, 3
    %v10730 = vrot.slane %v10724, 3
    %v10733 = vadd.f32 %v9988, %v10729
    %v10734 = vadd.f32 %v10014, %v10730
    %v10735 = vxor.u32 %v10733, 2147483648
    %v10736 = vxor.u32 %v10734, 2147483648
    %v10737 = vmul.f32 %v10735, 1.442695
    %v10738 = vpow.pop %v10737
    %v10739 = vmul.f32 %v10736, 1.442695
    %v10740 = vpow.pop %v10739
    %v10741 = vadd.f32 %v10738, 1.0
    %v10742 = vadd.f32 %v10740, 1.0
    %v10743 = vrcp.pop %v10741
    %v10744 = vmul.f32 %v10741, %v10743
    %v10745 = vsub.f32 1.0, %v10744
    %v10746 = vmul.f32 %v10743, %v10745
    %v10747 = vadd.f32 %v10743, %v10746
    %vm10748 = vweird.f32 %v10741
    %vm10749 = vweird.f32 %v10743
    %vm10750 = vmor %vm10748, %vm10749
    %v10751 = vsel %vm10750, %v10743, %v10747
    %v10752 = vand.u32 2147483647, %v10741
    %vm10753 = vcmp.eq.f32.partialorder %v10752, 8.507059e+37
    %v10754 = vand.u32 %v10741, 2147483648
    %v10755 = vor.u32 1.1754944e-38, %v10754
    %v10756 = vsel %vm10753, %v10755, %v10751
    %v10757 = vmul.f32 1.0, %v10756
    %v10758 = vrcp.pop %v10742
    %v10759 = vmul.f32 %v10742, %v10758
    %v10760 = vsub.f32 1.0, %v10759
    %v10761 = vmul.f32 %v10758, %v10760
    %v10762 = vadd.f32 %v10758, %v10761
    %vm10763 = vweird.f32 %v10742
    %vm10764 = vweird.f32 %v10758
    %vm10765 = vmor %vm10763, %vm10764
    %v10766 = vsel %vm10765, %v10758, %v10762
    %v10767 = vand.u32 2147483647, %v10742
    %vm10768 = vcmp.eq.f32.partialorder %v10767, 8.507059e+37
    %v10769 = vand.u32 %v10742, 2147483648
    %v10770 = vor.u32 1.1754944e-38, %v10769
    %v10771 = vsel %vm10768, %v10770, %v10766
    %v10772 = vmul.f32 1.0, %v10771
    %v10773 = vtanh.pop %v10734
    %v10775 = vrot.slane %v10662, 7
    %v10777 = vmul.f32 %v10757, %v10775
    %10779 = vrot.lane.b32.xlu0 %v10773, 64
    %v10780 = vpop.permute.xlu0 %10779
    %v10782 = vmul.f32 %v10757, %v10780
    %10784 = vrot.lane.b32.xlu0 %v10782, 64
    %v10785 = vpop.permute.xlu0 %10784
    %v10787 = vadd.f32 %v10777, %v10785
    %v10788 = vtanh.pop %v10787
    %10790 = vrot.lane.b32.xlu0 %v10788, 64
    %v10791 = vpop.permute.xlu0 %10790
    %v10793 = vmul.f32 %v10772, %v10791
    %vm10794 = vcmask 521221
    %v10795 = vsel %vm10794, %v10793, 0.0
    %10796 = vadd.xlane.f32.xlu0 %v10795
    %v10797 = vpop.xlane.xlu0 %10796
    %v10798 = vmul.f32 %v10797, %v10165
    %v10799 = vsub.f32 %v10793, %v10798
    %v10800 = vmul.f32 %v10799, %v10799
    %v10801 = vsel %vm10794, %v10800, 0.0
    %10802 = vadd.xlane.f32.xlu0 %v10801
    %v10803 = vpop.xlane.xlu0 %10802
    %v10804 = vmul.f32 %v10803, %v10165
    %v10805 = vadd.f32 %v10804, 1e-05
    %v10806 = vrsqrt.pop %v10805
    %v10807 = vmul.f32 %v10806, %v10805
    %v10808 = vmul.f32 %v10807, %v10806
    %v10809 = vmul.f32 0.5, %v10808
    %v10810 = vsub.f32 1.5, %v10809
    %v10811 = vmul.f32 %v10806, %v10810
    %vm10812 = vweird.f32 %v10805
    %vm10813 = vweird.f32 %v10806
    %vm10814 = vmor %vm10812, %vm10813
    %v10815 = vsel %vm10814, %v10806, %v10811
    %v10816 = vmul.f32 %v10799, %v10815
    %v10817 = vmul.f32 %v10816, %v10309
    %v10818 = vadd.f32 %v10817, %v10313
    %10819 = vst.msk [vmem:[#allocation3] sm:$0x20] %vm10794, %v10818
    %v10820 = vpack.c.bf16 %v10793, %v10793
    %v10822 = vshrl.u32 %v10820, 16
    %v10824 = vrot.slane %v10822, 2
    %v10826 = vsel %vm10067, %v10824, 0
    %10828 = vmatpush.bf16.msra.mxu0 0
    %10829 = vmatpush.bf16.msra.mxu0 0
    %10830 = vmatpush.bf16.msra.mxu0 0
    %10831 = vmatpush.bf16.msra.mxu0 0
    %10832 = vmatpush.bf16.msra.mxu0 %v10057
    %10833 = vmatpush.bf16.msra.mxu0 %v10055
    %10834 = vmatpush.bf16.msra.mxu0 %v10053
    %10835 = vmatpush.bf16.msra.mxu0 %v10051
    %10836 = vmatmul.bf16.gmra.mxu0 %v10826
    %v10837 = vpop.f32.mrf.mxu0
    %v10838 = vadd.f32 0.0, %v10837
    %v10839 = vpop.f32.mrf.mxu0
    %10840 = vdwg.mxu0
    %10841 = vmatpush.bf16.msra.mxu0 0
    %10842 = vmatpush.bf16.msra.mxu0 0
    %10843 = vmatpush.bf16.msra.mxu0 0
    %10844 = vmatpush.bf16.msra.mxu0 0
    %10845 = vmatpush.bf16.msra.mxu0 %v10058
    %10846 = vmatpush.bf16.msra.mxu0 %v10056
    %10847 = vmatpush.bf16.msra.mxu0 %v10054
    %10848 = vmatpush.bf16.msra.mxu0 %v10052
    %10849 = vmatmul.bf16.gmra.mxu0 %v10826
    %v10850 = vpop.f32.mrf.mxu0
    %v10851 = vadd.f32 0.0, %v10850
    %v10852 = vpop.f32.mrf.mxu0
    %10853 = vdwg.mxu0
    %v10856 = vrot.slane %v10838, 2
    %v10857 = vrot.slane %v10851, 2
    %v10860 = vadd.f32 %v9988, %v10856
    %v10861 = vadd.f32 %v10014, %v10857
    %v10862 = vxor.u32 %v10860, 2147483648
    %v10863 = vxor.u32 %v10861, 2147483648
    %v10864 = vmul.f32 %v10862, 1.442695
    %v10865 = vpow.pop %v10864
    %v10866 = vmul.f32 %v10863, 1.442695
    %v10867 = vpow.pop %v10866
    %v10868 = vadd.f32 %v10865, 1.0
    %v10869 = vadd.f32 %v10867, 1.0
    %v10870 = vrcp.pop %v10868
    %v10871 = vmul.f32 %v10868, %v10870
    %v10872 = vsub.f32 1.0, %v10871
    %v10873 = vmul.f32 %v10870, %v10872
    %v10874 = vadd.f32 %v10870, %v10873
    %vm10875 = vweird.f32 %v10868
    %vm10876 = vweird.f32 %v10870
    %vm10877 = vmor %vm10875, %vm10876
    %v10878 = vsel %vm10877, %v10870, %v10874
    %v10879 = vand.u32 2147483647, %v10868
    %vm10880 = vcmp.eq.f32.partialorder %v10879, 8.507059e+37
    %v10881 = vand.u32 %v10868, 2147483648
    %v10882 = vor.u32 1.1754944e-38, %v10881
    %v10883 = vsel %vm10880, %v10882, %v10878
    %v10884 = vmul.f32 1.0, %v10883
    %v10885 = vrcp.pop %v10869
    %v10886 = vmul.f32 %v10869, %v10885
    %v10887 = vsub.f32 1.0, %v10886
    %v10888 = vmul.f32 %v10885, %v10887
    %v10889 = vadd.f32 %v10885, %v10888
    %vm10890 = vweird.f32 %v10869
    %vm10891 = vweird.f32 %v10885
    %vm10892 = vmor %vm10890, %vm10891
    %v10893 = vsel %vm10892, %v10885, %v10889
    %v10894 = vand.u32 2147483647, %v10869
    %vm10895 = vcmp.eq.f32.partialorder %v10894, 8.507059e+37
    %v10896 = vand.u32 %v10869, 2147483648
    %v10897 = vor.u32 1.1754944e-38, %v10896
    %v10898 = vsel %vm10895, %v10897, %v10893
    %v10899 = vmul.f32 1.0, %v10898
    %v10900 = vtanh.pop %v10861
    %v10902 = vrot.slane %v10787, 7
    %v10904 = vmul.f32 %v10884, %v10902
    %10906 = vrot.lane.b32.xlu0 %v10900, 64
    %v10907 = vpop.permute.xlu0 %10906
    %v10909 = vmul.f32 %v10884, %v10907
    %10911 = vrot.lane.b32.xlu0 %v10909, 64
    %v10912 = vpop.permute.xlu0 %10911
    %v10914 = vadd.f32 %v10904, %v10912
    %v10915 = vtanh.pop %v10914
    %10917 = vrot.lane.b32.xlu0 %v10915, 64
    %v10918 = vpop.permute.xlu0 %10917
    %v10920 = vmul.f32 %v10899, %v10918
    %vm10921 = vcmask 522246
    %v10922 = vsel %vm10921, %v10920, 0.0
    %10923 = vadd.xlane.f32.xlu0 %v10922
    %v10924 = vpop.xlane.xlu0 %10923
    %v10925 = vmul.f32 %v10924, %v10165
    %v10926 = vsub.f32 %v10920, %v10925
    %v10927 = vmul.f32 %v10926, %v10926
    %v10928 = vsel %vm10921, %v10927, 0.0
    %10929 = vadd.xlane.f32.xlu0 %v10928
    %v10930 = vpop.xlane.xlu0 %10929
    %v10931 = vmul.f32 %v10930, %v10165
    %v10932 = vadd.f32 %v10931, 1e-05
    %v10933 = vrsqrt.pop %v10932
    %v10934 = vmul.f32 %v10933, %v10932
    %v10935 = vmul.f32 %v10934, %v10933
    %v10936 = vmul.f32 0.5, %v10935
    %v10937 = vsub.f32 1.5, %v10936
    %v10938 = vmul.f32 %v10933, %v10937
    %vm10939 = vweird.f32 %v10932
    %vm10940 = vweird.f32 %v10933
    %vm10941 = vmor %vm10939, %vm10940
    %v10942 = vsel %vm10941, %v10933, %v10938
    %v10943 = vmul.f32 %v10926, %v10942
    %v10944 = vmul.f32 %v10943, %v10309
    %v10945 = vadd.f32 %v10944, %v10313
    %10946 = vst.msk [vmem:[#allocation3] sm:$0x40] %vm10921, %v10945
    %v10947 = vpack.c.bf16 %v10920, %v10920
    %v10949 = vrot.slane %v10947, 3
    %v10951 = vsel %vm10067, %v10949, 0
    %10953 = vmatpush.bf16.msra.mxu0 0
    %10954 = vmatpush.bf16.msra.mxu0 0
    %10955 = vmatpush.bf16.msra.mxu0 0
    %10956 = vmatpush.bf16.msra.mxu0 0
    %10957 = vmatpush.bf16.msra.mxu0 %v10057
    %10958 = vmatpush.bf16.msra.mxu0 %v10055
    %10959 = vmatpush.bf16.msra.mxu0 %v10053
    %10960 = vmatpush.bf16.msra.mxu0 %v10051
    %10961 = vmatmul.bf16.gmra.mxu0 %v10951
    %v10962 = vpop.f32.mrf.mxu0
    %v10963 = vadd.f32 0.0, %v10962
    %v10964 = vpop.f32.mrf.mxu0
    %10965 = vdwg.mxu0
    %10966 = vmatpush.bf16.msra.mxu0 0
    %10967 = vmatpush.bf16.msra.mxu0 0
    %10968 = vmatpush.bf16.msra.mxu0 0
    %10969 = vmatpush.bf16.msra.mxu0 0
    %10970 = vmatpush.bf16.msra.mxu0 %v10058
    %10971 = vmatpush.bf16.msra.mxu0 %v10056
    %10972 = vmatpush.bf16.msra.mxu0 %v10054
    %10973 = vmatpush.bf16.msra.mxu0 %v10052
    %10974 = vmatmul.bf16.gmra.mxu0 %v10951
    %v10975 = vpop.f32.mrf.mxu0
    %v10976 = vadd.f32 0.0, %v10975
    %v10977 = vpop.f32.mrf.mxu0
    %10978 = vdwg.mxu0
    %v10981 = vrot.slane %v10963, 1
    %v10982 = vrot.slane %v10976, 1
    %v10985 = vadd.f32 %v9988, %v10981
    %v10986 = vadd.f32 %v10014, %v10982
    %v10987 = vxor.u32 %v10985, 2147483648
    %v10988 = vxor.u32 %v10986, 2147483648
    %v10989 = vmul.f32 %v10987, 1.442695
    %v10990 = vpow.pop %v10989
    %v10991 = vmul.f32 %v10988, 1.442695
    %v10992 = vpow.pop %v10991
    %v10993 = vadd.f32 %v10990, 1.0
    %v10994 = vadd.f32 %v10992, 1.0
    %v10995 = vrcp.pop %v10993
    %v10996 = vmul.f32 %v10993, %v10995
    %v10997 = vsub.f32 1.0, %v10996
    %v10998 = vmul.f32 %v10995, %v10997
    %v10999 = vadd.f32 %v10995, %v10998
    %vm11000 = vweird.f32 %v10993
    %vm11001 = vweird.f32 %v10995
    %vm11002 = vmor %vm11000, %vm11001
    %v11003 = vsel %vm11002, %v10995, %v10999
    %v11004 = vand.u32 2147483647, %v10993
    %vm11005 = vcmp.eq.f32.partialorder %v11004, 8.507059e+37
    %v11006 = vand.u32 %v10993, 2147483648
    %v11007 = vor.u32 1.1754944e-38, %v11006
    %v11008 = vsel %vm11005, %v11007, %v11003
    %v11009 = vmul.f32 1.0, %v11008
    %v11010 = vrcp.pop %v10994
    %v11011 = vmul.f32 %v10994, %v11010
    %v11012 = vsub.f32 1.0, %v11011
    %v11013 = vmul.f32 %v11010, %v11012
    %v11014 = vadd.f32 %v11010, %v11013
    %vm11015 = vweird.f32 %v10994
    %vm11016 = vweird.f32 %v11010
    %vm11017 = vmor %vm11015, %vm11016
    %v11018 = vsel %vm11017, %v11010, %v11014
    %v11019 = vand.u32 2147483647, %v10994
    %vm11020 = vcmp.eq.f32.partialorder %v11019, 8.507059e+37
    %v11021 = vand.u32 %v10994, 2147483648
    %v11022 = vor.u32 1.1754944e-38, %v11021
    %v11023 = vsel %vm11020, %v11022, %v11018
    %v11024 = vmul.f32 1.0, %v11023
    %v11025 = vtanh.pop %v10986
    %v11027 = vrot.slane %v10914, 7
    %v11029 = vmul.f32 %v11009, %v11027
    %11031 = vrot.lane.b32.xlu0 %v11025, 64
    %v11032 = vpop.permute.xlu0 %11031
    %v11034 = vmul.f32 %v11009, %v11032
    %11036 = vrot.lane.b32.xlu0 %v11034, 64
    %v11037 = vpop.permute.xlu0 %11036
    %v11039 = vadd.f32 %v11029, %v11037
    %v11040 = vtanh.pop %v11039
    %11042 = vrot.lane.b32.xlu0 %v11040, 64
    %v11043 = vpop.permute.xlu0 %11042
    %v11045 = vmul.f32 %v11024, %v11043
    %vm11046 = vcmask 523271
    %v11047 = vsel %vm11046, %v11045, 0.0
    %11048 = vadd.xlane.f32.xlu0 %v11047
    %v11049 = vpop.xlane.xlu0 %11048
    %v11050 = vmul.f32 %v11049, %v10165
    %v11051 = vsub.f32 %v11045, %v11050
    %v11052 = vmul.f32 %v11051, %v11051
    %v11053 = vsel %vm11046, %v11052, 0.0
    %11054 = vadd.xlane.f32.xlu0 %v11053
    %v11055 = vpop.xlane.xlu0 %11054
    %v11056 = vmul.f32 %v11055, %v10165
    %v11057 = vadd.f32 %v11056, 1e-05
    %v11058 = vrsqrt.pop %v11057
    %v11059 = vmul.f32 %v11058, %v11057
    %v11060 = vmul.f32 %v11059, %v11058
    %v11061 = vmul.f32 0.5, %v11060
    %v11062 = vsub.f32 1.5, %v11061
    %v11063 = vmul.f32 %v11058, %v11062
    %vm11064 = vweird.f32 %v11057
    %vm11065 = vweird.f32 %v11058
    %vm11066 = vmor %vm11064, %vm11065
    %v11067 = vsel %vm11066, %v11058, %v11063
    %v11068 = vmul.f32 %v11051, %v11067
    %v11069 = vmul.f32 %v11068, %v10309
    %v11070 = vadd.f32 %v11069, %v10313
    %11071 = vst.msk [vmem:[#allocation3] sm:$0x80] %vm11046, %v11070
    %v11072 = vld [vmem:[#allocation3] sm:$0xff]
    %v11073 = vld [vmem:[%s11] sm:$0xff]
    %v11074 = vld [vmem:[%s11 + $0x8] sm:$0xff]
    %v11075 = vld [vmem:[%s11 + $0x10] sm:$0xff]
    %v11076 = vld [vmem:[%s11 + $0x18] sm:$0xff]
    %v11077 = vld [vmem:[%s11 + $0x20] sm:$0xff]
    %v11078 = vld [vmem:[%s11 + $0x28] sm:$0xff]
    %v11079 = vld [vmem:[%s11 + $0x30] sm:$0xff]
    %v11080 = vld [vmem:[%s11 + $0x38] sm:$0xff]
    %v11081 = vld [vmem:[%s13] sm:$0x1]
    %v11083 = vperm.slane %v11081, 0
    %v11086 = vsel %vm10067, %v11072, 0
    %11088 = vmatpush.msra.mxu0 0.0
    %11089 = vmatpush.msra.mxu0 0.0
    %11090 = vmatpush.msra.mxu0 0.0
    %11091 = vmatpush.msra.mxu0 0.0
    %11092 = vmatpush.msra.mxu0 0.0
    %11093 = vmatpush.msra.mxu0 0.0
    %11094 = vmatpush.msra.mxu0 0.0
    %11095 = vmatpush.msra.mxu0 0.0
    %11096 = vmatpush.msra.mxu0 %v11080
    %11097 = vmatpush.msra.mxu0 %v11079
    %11098 = vmatpush.msra.mxu0 %v11078
    %11099 = vmatpush.msra.mxu0 %v11077
    %11100 = vmatpush.msra.mxu0 %v11076
    %11101 = vmatpush.msra.mxu0 %v11075
    %11102 = vmatpush.msra.mxu0 %v11074
    %11103 = vmatpush.msra.mxu0 %v11073
    %11104 = vmatmul.f32.gmra.mxu0 %v11086
    %v11105 = vpop.f32.mrf.mxu0
    %v11106 = vadd.f32 %v11083, %v11105
    %11107 = vdwg.mxu0
    %v11108 = vld [vmem:[%s12] sm:$0xff]
    %vm11109 = vcmask 64512
    %v11111 = vsel %vm11109, 0.0, 0
    %11113 = vmatpush.msra.mxu0 0.0
    %11114 = vmatpush.msra.mxu0 0.0
    %11115 = vmatpush.msra.mxu0 0.0
    %11116 = vmatpush.msra.mxu0 0.0
    %11117 = vmatpush.msra.mxu0 0.0
    %11118 = vmatpush.msra.mxu0 0.0
    %11119 = vmatpush.msra.mxu0 0.0
    %11120 = vmatpush.msra.mxu0 0.0
    %11121 = vmatpush.msra.mxu0 0.0
    %11122 = vmatpush.msra.mxu0 0.0
    %11123 = vmatpush.msra.mxu0 0.0
    %11124 = vmatpush.msra.mxu0 0.0
    %11125 = vmatpush.msra.mxu0 0.0
    %11126 = vmatpush.msra.mxu0 0.0
    %11127 = vmatpush.msra.mxu0 0.0
    %11128 = vmatpush.msra.mxu0 %v11108
    %11129 = vmatmul.f32.gmra.mxu0 %v11111
    %v11130 = vpop.f32.mrf.mxu0
    %v11131 = vadd.f32 0.0, %v11130
    %11132 = vdwg.mxu0
    %v11133 = vadd.f32 %v11106, %v11131
    %v11134 = vxor.u32 %v11133, 2147483648
    %v11135 = vmul.f32 %v11134, 1.442695
    %v11136 = vpow.pop %v11135
    %v11137 = vadd.f32 %v11136, 1.0
    %v11138 = vrcp.pop %v11137
    %v11139 = vmul.f32 %v11137, %v11138
    %v11140 = vsub.f32 1.0, %v11139
    %v11141 = vmul.f32 %v11138, %v11140
    %v11142 = vadd.f32 %v11138, %v11141
    %vm11143 = vweird.f32 %v11137
    %vm11144 = vweird.f32 %v11138
    %vm11145 = vmor %vm11143, %vm11144
    %v11146 = vsel %vm11145, %v11138, %v11142
    %v11147 = vand.u32 2147483647, %v11137
    %vm11148 = vcmp.eq.f32.partialorder %v11147, 8.507059e+37
    %v11149 = vand.u32 %v11137, 2147483648
    %v11150 = vor.u32 1.1754944e-38, %v11149
    %v11151 = vsel %vm11148, %v11150, %v11146
    %v11152 = vmul.f32 1.0, %v11151
    %v11153 = vtanh.pop %v11133
    %v11154 = vmul.f32 %v11152, 0.0
    %11156 = vrot.lane.b32.xlu0 %v11153, 104
    %v11157 = vpop.permute.xlu0 %11156
    %v11159 = vmul.f32 %v11152, %v11157
    %11161 = vrot.lane.b32.xlu0 %v11159, 8
    %v11162 = vpop.permute.xlu0 %11161
    %v11164 = vadd.f32 %v11154, %v11162
    %v11165 = vtanh.pop %v11164
    %11167 = vrot.lane.b32.xlu0 %v11165, 8
    %v11168 = vpop.permute.xlu0 %11167
    %v11170 = vmul.f32 %v11152, %v11168
    %11172 = vrot.lane.b32.xlu0 %v11170, 112
    %v11173 = vpop.permute.xlu0 %11172
    %v11174 = vsel %vm11109, %v11173, 0
    %11176 = vmatpush.msra.mxu0 0.0
    %11177 = vmatpush.msra.mxu0 0.0
    %11178 = vmatpush.msra.mxu0 0.0
    %11179 = vmatpush.msra.mxu0 0.0
    %11180 = vmatpush.msra.mxu0 0.0
    %11181 = vmatpush.msra.mxu0 0.0
    %11182 = vmatpush.msra.mxu0 0.0
    %11183 = vmatpush.msra.mxu0 0.0
    %11184 = vmatpush.msra.mxu0 0.0
    %11185 = vmatpush.msra.mxu0 0.0
    %11186 = vmatpush.msra.mxu0 0.0
    %11187 = vmatpush.msra.mxu0 0.0
    %11188 = vmatpush.msra.mxu0 0.0
    %11189 = vmatpush.msra.mxu0 0.0
    %11190 = vmatpush.msra.mxu0 0.0
    %11191 = vmatpush.msra.mxu0 %v11108
    %11192 = vmatmul.f32.gmra.mxu0 %v11174
    %v11193 = vpop.f32.mrf.mxu0
    %v11194 = vadd.f32 0.0, %v11193
    %11195 = vdwg.mxu0
    %v11197 = vrot.slane %v11194, 7
    %v11199 = vadd.f32 %v11106, %v11197
    %v11200 = vxor.u32 %v11199, 2147483648
    %v11201 = vmul.f32 %v11200, 1.442695
    %v11202 = vpow.pop %v11201
    %v11203 = vadd.f32 %v11202, 1.0
    %v11204 = vrcp.pop %v11203
    %v11205 = vmul.f32 %v11203, %v11204
    %v11206 = vsub.f32 1.0, %v11205
    %v11207 = vmul.f32 %v11204, %v11206
    %v11208 = vadd.f32 %v11204, %v11207
    %vm11209 = vweird.f32 %v11203
    %vm11210 = vweird.f32 %v11204
    %vm11211 = vmor %vm11209, %vm11210
    %v11212 = vsel %vm11211, %v11204, %v11208
    %v11213 = vand.u32 2147483647, %v11203
    %vm11214 = vcmp.eq.f32.partialorder %v11213, 8.507059e+37
    %v11215 = vand.u32 %v11203, 2147483648
    %v11216 = vor.u32 1.1754944e-38, %v11215
    %v11217 = vsel %vm11214, %v11216, %v11212
    %v11218 = vmul.f32 1.0, %v11217
    %v11219 = vtanh.pop %v11199
    %v11221 = vrot.slane %v11164, 7
    %v11223 = vmul.f32 %v11218, %v11221
    %11225 = vrot.lane.b32.xlu0 %v11219, 104
    %v11226 = vpop.permute.xlu0 %11225
    %v11228 = vmul.f32 %v11218, %v11226
    %11230 = vrot.lane.b32.xlu0 %v11228, 8
    %v11231 = vpop.permute.xlu0 %11230
    %v11233 = vadd.f32 %v11223, %v11231
    %v11234 = vtanh.pop %v11233
    %11236 = vrot.lane.b32.xlu0 %v11234, 8
    %v11237 = vpop.permute.xlu0 %11236
    %v11239 = vmul.f32 %v11218, %v11237
    %v11241 = vrot.slane %v11239, 1
    %11242 = vrot.lane.b32.xlu0 %v11241, 112
    %v11243 = vpop.permute.xlu0 %11242
    %v11244 = vsel %vm11109, %v11243, 0
    %11246 = vmatpush.msra.mxu0 0.0
    %11247 = vmatpush.msra.mxu0 0.0
    %11248 = vmatpush.msra.mxu0 0.0
    %11249 = vmatpush.msra.mxu0 0.0
    %11250 = vmatpush.msra.mxu0 0.0
    %11251 = vmatpush.msra.mxu0 0.0
    %11252 = vmatpush.msra.mxu0 0.0
    %11253 = vmatpush.msra.mxu0 0.0
    %11254 = vmatpush.msra.mxu0 0.0
    %11255 = vmatpush.msra.mxu0 0.0
    %11256 = vmatpush.msra.mxu0 0.0
    %11257 = vmatpush.msra.mxu0 0.0
    %11258 = vmatpush.msra.mxu0 0.0
    %11259 = vmatpush.msra.mxu0 0.0
    %11260 = vmatpush.msra.mxu0 0.0
    %11261 = vmatpush.msra.mxu0 %v11108
    %11262 = vmatmul.f32.gmra.mxu0 %v11244
    %v11263 = vpop.f32.mrf.mxu0
    %v11264 = vadd.f32 0.0, %v11263
    %11265 = vdwg.mxu0
    %v11267 = vrot.slane %v11264, 6
    %v11269 = vadd.f32 %v11106, %v11267
    %v11270 = vxor.u32 %v11269, 2147483648
    %v11271 = vmul.f32 %v11270, 1.442695
    %v11272 = vpow.pop %v11271
    %v11273 = vadd.f32 %v11272, 1.0
    %v11274 = vrcp.pop %v11273
    %v11275 = vmul.f32 %v11273, %v11274
    %v11276 = vsub.f32 1.0, %v11275
    %v11277 = vmul.f32 %v11274, %v11276
    %v11278 = vadd.f32 %v11274, %v11277
    %vm11279 = vweird.f32 %v11273
    %vm11280 = vweird.f32 %v11274
    %vm11281 = vmor %vm11279, %vm11280
    %v11282 = vsel %vm11281, %v11274, %v11278
    %v11283 = vand.u32 2147483647, %v11273
    %vm11284 = vcmp.eq.f32.partialorder %v11283, 8.507059e+37
    %v11285 = vand.u32 %v11273, 2147483648
    %v11286 = vor.u32 1.1754944e-38, %v11285
    %v11287 = vsel %vm11284, %v11286, %v11282
    %v11288 = vmul.f32 1.0, %v11287
    %v11289 = vtanh.pop %v11269
    %v11291 = vrot.slane %v11233, 7
    %v11293 = vmul.f32 %v11288, %v11291
    %11295 = vrot.lane.b32.xlu0 %v11289, 104
    %v11296 = vpop.permute.xlu0 %11295
    %v11298 = vmul.f32 %v11288, %v11296
    %11300 = vrot.lane.b32.xlu0 %v11298, 8
    %v11301 = vpop.permute.xlu0 %11300
    %v11303 = vadd.f32 %v11293, %v11301
    %v11304 = vtanh.pop %v11303
    %11306 = vrot.lane.b32.xlu0 %v11304, 8
    %v11307 = vpop.permute.xlu0 %11306
    %v11309 = vmul.f32 %v11288, %v11307
    %v11311 = vrot.slane %v11309, 2
    %11312 = vrot.lane.b32.xlu0 %v11311, 112
    %v11313 = vpop.permute.xlu0 %11312
    %v11314 = vsel %vm11109, %v11313, 0
    %11316 = vmatpush.msra.mxu0 0.0
    %11317 = vmatpush.msra.mxu0 0.0
    %11318 = vmatpush.msra.mxu0 0.0
    %11319 = vmatpush.msra.mxu0 0.0
    %11320 = vmatpush.msra.mxu0 0.0
    %11321 = vmatpush.msra.mxu0 0.0
    %11322 = vmatpush.msra.mxu0 0.0
    %11323 = vmatpush.msra.mxu0 0.0
    %11324 = vmatpush.msra.mxu0 0.0
    %11325 = vmatpush.msra.mxu0 0.0
    %11326 = vmatpush.msra.mxu0 0.0
    %11327 = vmatpush.msra.mxu0 0.0
    %11328 = vmatpush.msra.mxu0 0.0
    %11329 = vmatpush.msra.mxu0 0.0
    %11330 = vmatpush.msra.mxu0 0.0
    %11331 = vmatpush.msra.mxu0 %v11108
    %11332 = vmatmul.f32.gmra.mxu0 %v11314
    %v11333 = vpop.f32.mrf.mxu0
    %v11334 = vadd.f32 0.0, %v11333
    %11335 = vdwg.mxu0
    %v11337 = vrot.slane %v11334, 5
    %v11339 = vadd.f32 %v11106, %v11337
    %v11340 = vxor.u32 %v11339, 2147483648
    %v11341 = vmul.f32 %v11340, 1.442695
    %v11342 = vpow.pop %v11341
    %v11343 = vadd.f32 %v11342, 1.0
    %v11344 = vrcp.pop %v11343
    %v11345 = vmul.f32 %v11343, %v11344
    %v11346 = vsub.f32 1.0, %v11345
    %v11347 = vmul.f32 %v11344, %v11346
    %v11348 = vadd.f32 %v11344, %v11347
    %vm11349 = vweird.f32 %v11343
    %vm11350 = vweird.f32 %v11344
    %vm11351 = vmor %vm11349, %vm11350
    %v11352 = vsel %vm11351, %v11344, %v11348
    %v11353 = vand.u32 2147483647, %v11343
    %vm11354 = vcmp.eq.f32.partialorder %v11353, 8.507059e+37
    %v11355 = vand.u32 %v11343, 2147483648
    %v11356 = vor.u32 1.1754944e-38, %v11355
    %v11357 = vsel %vm11354, %v11356, %v11352
    %v11358 = vmul.f32 1.0, %v11357
    %v11359 = vtanh.pop %v11339
    %v11361 = vrot.slane %v11303, 7
    %v11363 = vmul.f32 %v11358, %v11361
    %11365 = vrot.lane.b32.xlu0 %v11359, 104
    %v11366 = vpop.permute.xlu0 %11365
    %v11368 = vmul.f32 %v11358, %v11366
    %11370 = vrot.lane.b32.xlu0 %v11368, 8
    %v11371 = vpop.permute.xlu0 %11370
    %v11373 = vadd.f32 %v11363, %v11371
    %v11374 = vtanh.pop %v11373
    %11376 = vrot.lane.b32.xlu0 %v11374, 8
    %v11377 = vpop.permute.xlu0 %11376
    %v11379 = vmul.f32 %v11358, %v11377
    %v11381 = vrot.slane %v11379, 3
    %11382 = vrot.lane.b32.xlu0 %v11381, 112
    %v11383 = vpop.permute.xlu0 %11382
    %v11384 = vsel %vm11109, %v11383, 0
    %11386 = vmatpush.msra.mxu0 0.0
    %11387 = vmatpush.msra.mxu0 0.0
    %11388 = vmatpush.msra.mxu0 0.0
    %11389 = vmatpush.msra.mxu0 0.0
    %11390 = vmatpush.msra.mxu0 0.0
    %11391 = vmatpush.msra.mxu0 0.0
    %11392 = vmatpush.msra.mxu0 0.0
    %11393 = vmatpush.msra.mxu0 0.0
    %11394 = vmatpush.msra.mxu0 0.0
    %11395 = vmatpush.msra.mxu0 0.0
    %11396 = vmatpush.msra.mxu0 0.0
    %11397 = vmatpush.msra.mxu0 0.0
    %11398 = vmatpush.msra.mxu0 0.0
    %11399 = vmatpush.msra.mxu0 0.0
    %11400 = vmatpush.msra.mxu0 0.0
    %11401 = vmatpush.msra.mxu0 %v11108
    %11402 = vmatmul.f32.gmra.mxu0 %v11384
    %v11403 = vpop.f32.mrf.mxu0
    %v11404 = vadd.f32 0.0, %v11403
    %11405 = vdwg.mxu0
    %v11407 = vrot.slane %v11404, 4
    %v11409 = vadd.f32 %v11106, %v11407
    %v11410 = vxor.u32 %v11409, 2147483648
    %v11411 = vmul.f32 %v11410, 1.442695
    %v11412 = vpow.pop %v11411
    %v11413 = vadd.f32 %v11412, 1.0
    %v11414 = vrcp.pop %v11413
    %v11415 = vmul.f32 %v11413, %v11414
    %v11416 = vsub.f32 1.0, %v11415
    %v11417 = vmul.f32 %v11414, %v11416
    %v11418 = vadd.f32 %v11414, %v11417
    %vm11419 = vweird.f32 %v11413
    %vm11420 = vweird.f32 %v11414
    %vm11421 = vmor %vm11419, %vm11420
    %v11422 = vsel %vm11421, %v11414, %v11418
    %v11423 = vand.u32 2147483647, %v11413
    %vm11424 = vcmp.eq.f32.partialorder %v11423, 8.507059e+37
    %v11425 = vand.u32 %v11413, 2147483648
    %v11426 = vor.u32 1.1754944e-38, %v11425
    %v11427 = vsel %vm11424, %v11426, %v11422
    %v11428 = vmul.f32 1.0, %v11427
    %v11429 = vtanh.pop %v11409
    %v11431 = vrot.slane %v11373, 7
    %v11433 = vmul.f32 %v11428, %v11431
    %11435 = vrot.lane.b32.xlu0 %v11429, 104
    %v11436 = vpop.permute.xlu0 %11435
    %v11438 = vmul.f32 %v11428, %v11436
    %11440 = vrot.lane.b32.xlu0 %v11438, 8
    %v11441 = vpop.permute.xlu0 %11440
    %v11443 = vadd.f32 %v11433, %v11441
    %v11444 = vtanh.pop %v11443
    %11446 = vrot.lane.b32.xlu0 %v11444, 8
    %v11447 = vpop.permute.xlu0 %11446
    %v11449 = vmul.f32 %v11428, %v11447
    %v11451 = vrot.slane %v11449, 4
    %11452 = vrot.lane.b32.xlu0 %v11451, 112
    %v11453 = vpop.permute.xlu0 %11452
    %v11454 = vsel %vm11109, %v11453, 0
    %11456 = vmatpush.msra.mxu0 0.0
    %11457 = vmatpush.msra.mxu0 0.0
    %11458 = vmatpush.msra.mxu0 0.0
    %11459 = vmatpush.msra.mxu0 0.0
    %11460 = vmatpush.msra.mxu0 0.0
    %11461 = vmatpush.msra.mxu0 0.0
    %11462 = vmatpush.msra.mxu0 0.0
    %11463 = vmatpush.msra.mxu0 0.0
    %11464 = vmatpush.msra.mxu0 0.0
    %11465 = vmatpush.msra.mxu0 0.0
    %11466 = vmatpush.msra.mxu0 0.0
    %11467 = vmatpush.msra.mxu0 0.0
    %11468 = vmatpush.msra.mxu0 0.0
    %11469 = vmatpush.msra.mxu0 0.0
    %11470 = vmatpush.msra.mxu0 0.0
    %11471 = vmatpush.msra.mxu0 %v11108
    %11472 = vmatmul.f32.gmra.mxu0 %v11454
    %v11473 = vpop.f32.mrf.mxu0
    %v11474 = vadd.f32 0.0, %v11473
    %11475 = vdwg.mxu0
    %v11477 = vrot.slane %v11474, 3
    %v11479 = vadd.f32 %v11106, %v11477
    %v11480 = vxor.u32 %v11479, 2147483648
    %v11481 = vmul.f32 %v11480, 1.442695
    %v11482 = vpow.pop %v11481
    %v11483 = vadd.f32 %v11482, 1.0
    %v11484 = vrcp.pop %v11483
    %v11485 = vmul.f32 %v11483, %v11484
    %v11486 = vsub.f32 1.0, %v11485
    %v11487 = vmul.f32 %v11484, %v11486
    %v11488 = vadd.f32 %v11484, %v11487
    %vm11489 = vweird.f32 %v11483
    %vm11490 = vweird.f32 %v11484
    %vm11491 = vmor %vm11489, %vm11490
    %v11492 = vsel %vm11491, %v11484, %v11488
    %v11493 = vand.u32 2147483647, %v11483
    %vm11494 = vcmp.eq.f32.partialorder %v11493, 8.507059e+37
    %v11495 = vand.u32 %v11483, 2147483648
    %v11496 = vor.u32 1.1754944e-38, %v11495
    %v11497 = vsel %vm11494, %v11496, %v11492
    %v11498 = vmul.f32 1.0, %v11497
    %v11499 = vtanh.pop %v11479
    %v11501 = vrot.slane %v11443, 7
    %v11503 = vmul.f32 %v11498, %v11501
    %11505 = vrot.lane.b32.xlu0 %v11499, 104
    %v11506 = vpop.permute.xlu0 %11505
    %v11508 = vmul.f32 %v11498, %v11506
    %11510 = vrot.lane.b32.xlu0 %v11508, 8
    %v11511 = vpop.permute.xlu0 %11510
    %v11513 = vadd.f32 %v11503, %v11511
    %v11514 = vtanh.pop %v11513
    %11516 = vrot.lane.b32.xlu0 %v11514, 8
    %v11517 = vpop.permute.xlu0 %11516
    %v11519 = vmul.f32 %v11498, %v11517
    %v11521 = vrot.slane %v11519, 5
    %11522 = vrot.lane.b32.xlu0 %v11521, 112
    %v11523 = vpop.permute.xlu0 %11522
    %v11524 = vsel %vm11109, %v11523, 0
    %11526 = vmatpush.msra.mxu0 0.0
    %11527 = vmatpush.msra.mxu0 0.0
    %11528 = vmatpush.msra.mxu0 0.0
    %11529 = vmatpush.msra.mxu0 0.0
    %11530 = vmatpush.msra.mxu0 0.0
    %11531 = vmatpush.msra.mxu0 0.0
    %11532 = vmatpush.msra.mxu0 0.0
    %11533 = vmatpush.msra.mxu0 0.0
    %11534 = vmatpush.msra.mxu0 0.0
    %11535 = vmatpush.msra.mxu0 0.0
    %11536 = vmatpush.msra.mxu0 0.0
    %11537 = vmatpush.msra.mxu0 0.0
    %11538 = vmatpush.msra.mxu0 0.0
    %11539 = vmatpush.msra.mxu0 0.0
    %11540 = vmatpush.msra.mxu0 0.0
    %11541 = vmatpush.msra.mxu0 %v11108
    %11542 = vmatmul.f32.gmra.mxu0 %v11524
    %v11543 = vpop.f32.mrf.mxu0
    %v11544 = vadd.f32 0.0, %v11543
    %11545 = vdwg.mxu0
    %v11547 = vrot.slane %v11544, 2
    %v11549 = vadd.f32 %v11106, %v11547
    %v11550 = vxor.u32 %v11549, 2147483648
    %v11551 = vmul.f32 %v11550, 1.442695
    %v11552 = vpow.pop %v11551
    %v11553 = vadd.f32 %v11552, 1.0
    %v11554 = vrcp.pop %v11553
    %v11555 = vmul.f32 %v11553, %v11554
    %v11556 = vsub.f32 1.0, %v11555
    %v11557 = vmul.f32 %v11554, %v11556
    %v11558 = vadd.f32 %v11554, %v11557
    %vm11559 = vweird.f32 %v11553
    %vm11560 = vweird.f32 %v11554
    %vm11561 = vmor %vm11559, %vm11560
    %v11562 = vsel %vm11561, %v11554, %v11558
    %v11563 = vand.u32 2147483647, %v11553
    %vm11564 = vcmp.eq.f32.partialorder %v11563, 8.507059e+37
    %v11565 = vand.u32 %v11553, 2147483648
    %v11566 = vor.u32 1.1754944e-38, %v11565
    %v11567 = vsel %vm11564, %v11566, %v11562
    %v11568 = vmul.f32 1.0, %v11567
    %v11569 = vtanh.pop %v11549
    %v11571 = vrot.slane %v11513, 7
    %v11573 = vmul.f32 %v11568, %v11571
    %11575 = vrot.lane.b32.xlu0 %v11569, 104
    %v11576 = vpop.permute.xlu0 %11575
    %v11578 = vmul.f32 %v11568, %v11576
    %11580 = vrot.lane.b32.xlu0 %v11578, 8
    %v11581 = vpop.permute.xlu0 %11580
    %v11583 = vadd.f32 %v11573, %v11581
    %v11584 = vtanh.pop %v11583
    %11586 = vrot.lane.b32.xlu0 %v11584, 8
    %v11587 = vpop.permute.xlu0 %11586
    %v11589 = vmul.f32 %v11568, %v11587
    %v11591 = vrot.slane %v11589, 6
    %11592 = vrot.lane.b32.xlu0 %v11591, 112
    %v11593 = vpop.permute.xlu0 %11592
    %v11594 = vsel %vm11109, %v11593, 0
    %11596 = vmatpush.msra.mxu0 0.0
    %11597 = vmatpush.msra.mxu0 0.0
    %11598 = vmatpush.msra.mxu0 0.0
    %11599 = vmatpush.msra.mxu0 0.0
    %11600 = vmatpush.msra.mxu0 0.0
    %11601 = vmatpush.msra.mxu0 0.0
    %11602 = vmatpush.msra.mxu0 0.0
    %11603 = vmatpush.msra.mxu0 0.0
    %11604 = vmatpush.msra.mxu0 0.0
    %11605 = vmatpush.msra.mxu0 0.0
    %11606 = vmatpush.msra.mxu0 0.0
    %11607 = vmatpush.msra.mxu0 0.0
    %11608 = vmatpush.msra.mxu0 0.0
    %11609 = vmatpush.msra.mxu0 0.0
    %11610 = vmatpush.msra.mxu0 0.0
    %11611 = vmatpush.msra.mxu0 %v11108
    %11612 = vmatmul.f32.gmra.mxu0 %v11594
    %v11613 = vpop.f32.mrf.mxu0
    %v11614 = vadd.f32 0.0, %v11613
    %11615 = vdwg.mxu0
    %v11617 = vrot.slane %v11614, 1
    %v11619 = vadd.f32 %v11106, %v11617
    %v11620 = vxor.u32 %v11619, 2147483648
    %v11621 = vmul.f32 %v11620, 1.442695
    %v11622 = vpow.pop %v11621
    %v11623 = vadd.f32 %v11622, 1.0
    %v11624 = vrcp.pop %v11623
    %v11625 = vmul.f32 %v11623, %v11624
    %v11626 = vsub.f32 1.0, %v11625
    %v11627 = vmul.f32 %v11624, %v11626
    %v11628 = vadd.f32 %v11624, %v11627
    %vm11629 = vweird.f32 %v11623
    %vm11630 = vweird.f32 %v11624
    %vm11631 = vmor %vm11629, %vm11630
    %v11632 = vsel %vm11631, %v11624, %v11628
    %v11633 = vand.u32 2147483647, %v11623
    %vm11634 = vcmp.eq.f32.partialorder %v11633, 8.507059e+37
    %v11635 = vand.u32 %v11623, 2147483648
    %v11636 = vor.u32 1.1754944e-38, %v11635
    %v11637 = vsel %vm11634, %v11636, %v11632
    %v11638 = vmul.f32 1.0, %v11637
    %v11639 = vtanh.pop %v11619
    %v11641 = vrot.slane %v11583, 7
    %v11643 = vmul.f32 %v11638, %v11641
    %11645 = vrot.lane.b32.xlu0 %v11639, 104
    %v11646 = vpop.permute.xlu0 %11645
    %v11648 = vmul.f32 %v11638, %v11646
    %11650 = vrot.lane.b32.xlu0 %v11648, 8
    %v11651 = vpop.permute.xlu0 %11650
    %v11653 = vadd.f32 %v11643, %v11651
    %v11654 = vtanh.pop %v11653
    %11656 = vrot.lane.b32.xlu0 %v11654, 8
    %v11657 = vpop.permute.xlu0 %11656
    %v11659 = vmul.f32 %v11638, %v11657
    %11661 = vrot.lane.b32.xlu0 %v11659, 112
    %v11662 = vpop.permute.xlu0 %11661
    %vm11664 = vcmask 64519
    %11665 = vst.msk [vmem:[#allocation9 - $0x7] sm:$0x80] %vm11664, %v11662
    // Predicated region
    $region66: #{tpu_custom_call.1} parent=1 // pred_check
      _
    $region67: #{tpu_custom_call.1} parent=1 // pred_check_branch
      %11667 = sbr.rel (0) target = $region69
    $region68: #{tpu_custom_call.1} parent=1 // pred_region
      %11669 = vsyncadd [#allocation6], 0
      %s11671 = sshll.u32 [#allocation9], 4
      %s11672 = int_to_ptr.vmem [resolvable:$true] %s11671
      %s11673 = sshll.u32 %s14, 4
      %s11674 = int_to_ptr.hbm [resolvable:$true] %s11673
      %11676 = dma.vmem_to_hbm [thread:$0]  %s11672, 16, %s11674, [#allocation6]
    $region69: #{tpu_custom_call.1} parent=1 // pred_fallthru
      _
    // Predicated region
    $region70: #{tpu_custom_call.1} parent=1 // pred_check
      _
    $region71: #{tpu_custom_call.1} parent=1 // pred_check_branch
      %11678 = sbr.rel (0) target = $region73
    $region72: #{tpu_custom_call.1} parent=1 // pred_region
      %11680 = dma.done [#allocation6], 16
    $region73: #{tpu_custom_call.1} parent=1 // pred_fallthru
      _
    %11681 = vsyncpa [#allocation5], 1
    %11682 = vsyncpa [#allocation8], 1
    %11683 = vsyncpa [#allocation6], 1

</llo_original>
